<compile_context>
chip_gen: v6e
topology: v6e:2x2x1
jax: 0.10.0
libtpu: 0.0.40
codegen_flags: <defaults>
</compile_context>

<pallas_src>
import functools
import math

import numpy as np
import jax
import jax.numpy as jnp
from jax import lax
from jax.experimental import pallas as pl
from jax.experimental.pallas import tpu as pltpu


_COMPILER_PARAMS = pltpu.CompilerParams(
    dimension_semantics=("arbitrary",),
    vmem_limit_bytes=32 * 1024 * 1024,   # generous on v5e/v6e, within v7x's 64 MiB
)


# ----------------------------- Pallas kernels --------------------------------

def _conv_tower_kernel(p1_ref, w1_ref, b1_ref, w2_ref, b2_ref, g_ref, o_ref, *, n):
    """conv1 + pool + relu + conv2 + pool + relu, fully in VMEM.

    p1_ref : (25, n*576)        im2col(x)^T, columns ordered (dh, dw, img, oh, ow)
    w1_ref : (10, 25)           conv1 weights, rows = out channels
    b1_ref : (10, 1)
    w2_ref : (25, 20, 10)       conv2 weights per tap k=(kh*5+kw): (C_out, C_in)
    b2_ref : (20, 1)
    g_ref  : (25, n*144, n*64)  0/1 gather matrices implementing conv2's im2col
    o_ref  : (20, n*16)         relu(maxpool(conv2(...))), cols (img, oh', ow')
    """
    c2 = w2_ref.shape[1]
    k_taps = w2_ref.shape[0]

    # ---- conv1: one lane-dense MXU matmul + bias ----------------------------
    y1 = jnp.dot(w1_ref[...], p1_ref[...], preferred_element_type=jnp.float32)
    y1 = y1 + b1_ref[...]                                    # (10, n*576)

    # ---- 2x2 max-pool + relu: window members are 4 contiguous column groups -
    q = n * 144
    m1 = jnp.maximum(jnp.maximum(y1[:, 0 * q:1 * q], y1[:, 1 * q:2 * q]),
                     jnp.maximum(y1[:, 2 * q:3 * q], y1[:, 3 * q:4 * q]))
    a1 = jnp.maximum(m1, 0.0)                                # (10, n*144)

    # ---- conv2: per-tap in-VMEM gather matmul + small channel matmul --------
    acc = jnp.zeros((c2, n * 64), dtype=jnp.float32)
    for k in range(k_taps):
        gathered = jnp.dot(a1, g_ref[k], preferred_element_type=jnp.float32)   # (10, n*64)
        acc = acc + jnp.dot(w2_ref[k], gathered, preferred_element_type=jnp.float32)
    acc = acc + b2_ref[...]                                  # (20, n*64)
    # TODO(synk): Dropout2d on the conv2 output is an inference-mode identity.

    # ---- 2x2 max-pool + relu -------------------------------------------------
    r = n * 16
    m2 = jnp.maximum(jnp.maximum(acc[:, 0 * r:1 * r], acc[:, 1 * r:2 * r]),
                     jnp.maximum(acc[:, 2 * r:3 * r], acc[:, 3 * r:4 * r]))
    o_ref[...] = jnp.maximum(m2, 0.0).astype(o_ref.dtype)


def _mlp_head_kernel(x_ref, w1_ref, b1_ref, w2_ref, b2_ref, o_ref):
    """fc1 + relu + fc2 + log_softmax, fused."""
    h = jnp.dot(x_ref[...], w1_ref[...], preferred_element_type=jnp.float32) + b1_ref[...]
    h = jnp.maximum(h, 0.0)
    # TODO(synk): functional dropout on the fc1 output is an inference-mode identity.
    logits = jnp.dot(h, w2_ref[...], preferred_element_type=jnp.float32) + b2_ref[...]
    m = jnp.max(logits, axis=-1, keepdims=True)
    s = logits - m
    lse = jnp.log(jnp.sum(jnp.exp(s), axis=-1, keepdims=True))
    o_ref[...] = (s - lse).astype(o_ref.dtype)


# ------------------------------ kernel wrappers -------------------------------

def conv_tower(p1t, w1mat, b1, w2s, b2, gmat):
    n = p1t.shape[1] // 576
    c2 = w2s.shape[1]
    out_cols = n * 16
    kernel = functools.partial(_conv_tower_kernel, n=n)
    return pl.pallas_call(
        kernel,
        grid=(1,),
        in_specs=[
            pl.BlockSpec(p1t.shape, lambda i: (0, 0)),
            pl.BlockSpec(w1mat.shape, lambda i: (0, 0)),
            pl.BlockSpec(b1.shape, lambda i: (0, 0)),
            pl.BlockSpec(w2s.shape, lambda i: (0, 0, 0)),
            pl.BlockSpec(b2.shape, lambda i: (0, 0)),
            pl.BlockSpec(gmat.shape, lambda i: (0, 0, 0)),
        ],
        out_specs=pl.BlockSpec((c2, out_cols), lambda i: (0, 0)),
        out_shape=jax.ShapeDtypeStruct((c2, out_cols), jnp.float32),
        compiler_params=_COMPILER_PARAMS,
    )(p1t, w1mat, b1, w2s, b2, gmat)


def mlp_head(x, w1t, b1, w2t, b2):
    m = x.shape[0]
    nout = w2t.shape[1]
    return pl.pallas_call(
        _mlp_head_kernel,
        grid=(1,),
        in_specs=[
            pl.BlockSpec(x.shape, lambda i: (0, 0)),
            pl.BlockSpec(w1t.shape, lambda i: (0, 0)),
            pl.BlockSpec(b1.shape, lambda i: (0, 0)),
            pl.BlockSpec(w2t.shape, lambda i: (0, 0)),
            pl.BlockSpec(b2.shape, lambda i: (0, 0)),
        ],
        out_specs=pl.BlockSpec((m, nout), lambda i: (0, 0)),
        out_shape=jax.ShapeDtypeStruct((m, nout), jnp.float32),
        compiler_params=_COMPILER_PARAMS,
    )(x, w1t, b1, w2t, b2)


# ------------------------------ glue / forward --------------------------------

def _conv1_patches(x):
    """x: (n,1,28,28) -> (25, n*576); rows = (kh,kw), cols = (dh,dw,img,oh,ow)."""
    n = x.shape[0]
    xs = x[:, 0, :, :]                                        # (n, 28, 28)
    rows = []
    for kh in range(5):
        for kw in range(5):
            sl = xs[:, kh:kh + 24, kw:kw + 24]                # (n, 24, 24)
            sl = sl.reshape(n, 12, 2, 12, 2)                  # (img, oh, dh, ow, dw)
            sl = sl.transpose(2, 4, 0, 1, 3)                  # (dh, dw, img, oh, ow)
            rows.append(sl.reshape(-1))
    return jnp.stack(rows, axis=0)                            # (25, n*576)


@functools.lru_cache(maxsize=None)
def _conv2_gather(n):
    """0/1 matrices mapping pooled conv1 cols (img,oh,ow) -> conv2 tap columns."""
    g = np.zeros((25, n * 144, n * 64), np.float32)
    for kh in range(5):
        for kw in range(5):
            k = kh * 5 + kw
            for dh in range(2):
                for dw in range(2):
                    for img in range(n):
                        for oh in range(4):
                            for ow in range(4):
                                col = ((dh * 2 + dw) * n + img) * 16 + oh * 4 + ow
                                row = img * 144 + (2 * oh + dh + kh) * 12 + (2 * ow + dw + kw)
                                g[k, row, col] = 1.0
    return jnp.asarray(g)


def init_params(key):
    def uniform(k, shape, fan_in):
        bound = 1.0 / math.sqrt(fan_in)
        return jax.random.uniform(k, shape, jnp.float32, -bound, bound)

    ks = jax.random.split(key, 8)
    return {
        "conv1_w": uniform(ks[0], (10, 1, 5, 5), 1 * 5 * 5),
        "conv1_b": uniform(ks[1], (10,), 1 * 5 * 5),
        "conv2_w": uniform(ks[2], (20, 10, 5, 5), 10 * 5 * 5),
        "conv2_b": uniform(ks[3], (20,), 10 * 5 * 5),
        "fc1_w": uniform(ks[4], (50, 320), 320),
        "fc1_b": uniform(ks[5], (50,), 320),
        "fc2_w": uniform(ks[6], (10, 50), 50),
        "fc2_b": uniform(ks[7], (10,), 50),
    }


def net_forward(params, x):
    n = x.shape[0]

    # input-side im2col (XLA glue) + weight/bias re-layout (trace-time constants)
    p1t = _conv1_patches(x)                                          # (25, n*576)
    w1mat = params["conv1_w"].reshape(10, 25)                        # (10, 25)
    b1 = params["conv1_b"].reshape(10, 1)
    w2s = params["conv2_w"].transpose(2, 3, 0, 1).reshape(25, 20, 10)
    b2 = params["conv2_b"].reshape(20, 1)
    gmat = _conv2_gather(n)                                          # (25, n*144, n*64)

    # fused conv1+pool+relu+conv2+pool+relu
    a2 = conv_tower(p1t, w1mat, b1, w2s, b2, gmat)                   # (20, n*16)

    # tiny layout glue: (C, img, oh, ow) -> (img, C*oh*ow) == torch .view(-1, 320)
    flat = a2.reshape(20, n, 4, 4).transpose(1, 0, 2, 3).reshape(n, 320)

    # fused fc1+relu+fc2+log_softmax
    return mlp_head(flat,
                    params["fc1_w"].T, params["fc1_b"].reshape(1, 50),
                    params["fc2_w"].T, params["fc2_b"].reshape(1, 10))


# ------------------------------ pure-JAX reference ----------------------------

def reference_forward(params, x):
    n = x.shape[0]
    hi = lax.Precision.HIGHEST
    y = lax.conv_general_dilated(x, params["conv1_w"], (1, 1), "VALID",
                                 dimension_numbers=("NCHW", "OIHW", "NCHW"),
                                 precision=hi)
    y = y + params["conv1_b"][None, :, None, None]
    y = jax.nn.relu(y.reshape(n, 10, 12, 2, 12, 2).max(axis=(3, 5)))
    y = lax.conv_general_dilated(y, params["conv2_w"], (1, 1), "VALID",
                                 dimension_numbers=("NCHW", "OIHW", "NCHW"),
                                 precision=hi)
    y = y + params["conv2_b"][None, :, None, None]
    y = jax.nn.relu(y.reshape(n, 20, 4, 2, 4, 2).max(axis=(3, 5)))
    flat = y.reshape(n, 320)
    h = jax.nn.relu(jnp.dot(flat, params["fc1_w"].T, precision=hi) + params["fc1_b"])
    logits = jnp.dot(h, params["fc2_w"].T, precision=hi) + params["fc2_b"]
    return jax.nn.log_softmax(logits, axis=-1)


if __name__ == "__main__":
    key = jax.random.PRNGKey(0)
    pkey, xkey = jax.random.split(key)
    params = init_params(pkey)
    # Input shape implied by view(-1, 320) after two 5x5 convs + two 2x pools: 28x28.
    x = jax.random.normal(xkey, (2, 1, 28, 28), dtype=jnp.float32)

    out = jax.jit(net_forward)(params, x)
    out = jax.block_until_ready(out)

    ref = reference_forward(params, x)

    assert out.shape == (2, 10)
    assert bool(jnp.all(jnp.isfinite(out)))
    # log_softmax rows must exponentiate-sum to ~1
    assert bool(jnp.allclose(jnp.sum(jnp.exp(out), axis=-1), 1.0, atol=1e-4))
    # fused Pallas pipeline must match the plain-JAX reference forward
    assert bool(jnp.allclose(out, ref, atol=5e-4, rtol=5e-4))
    print("KERNEL_OK")
</pallas_src>

<mosaic_0001>
module attributes {stable_mosaic.version = 11 : i64} {
  func.func @_conv_tower_kernel(%arg0: i32, %arg1: memref<25x1152xf32, #tpu.memory_space<vmem>>, %arg2: memref<10x25xf32, #tpu.memory_space<vmem>>, %arg3: memref<10x1xf32, #tpu.memory_space<vmem>>, %arg4: memref<25x20x10xf32, #tpu.memory_space<vmem>>, %arg5: memref<20x1xf32, #tpu.memory_space<vmem>>, %arg6: memref<25x288x128xf32, #tpu.memory_space<vmem>>, %arg7: memref<20x32xf32, #tpu.memory_space<vmem>>) attributes {dimension_semantics = [#tpu.dimension_semantics<arbitrary>], iteration_bounds = array<i64: 1>, scalar_prefetch = 0 : i64, scratch_operands = 0 : i64, tpu.core_type = #tpu.core_type<tc>, window_params = [{pipeline_mode = #tpu.pipeline_mode<synchronous>, transform_indices = @transform_0, window_bounds = array<i64: 25, 1152>}, {pipeline_mode = #tpu.pipeline_mode<synchronous>, transform_indices = @transform_1, window_bounds = array<i64: 10, 25>}, {pipeline_mode = #tpu.pipeline_mode<synchronous>, transform_indices = @transform_2, window_bounds = array<i64: 10, 1>}, {pipeline_mode = #tpu.pipeline_mode<synchronous>, transform_indices = @transform_3, window_bounds = array<i64: 25, 20, 10>}, {pipeline_mode = #tpu.pipeline_mode<synchronous>, transform_indices = @transform_4, window_bounds = array<i64: 20, 1>}, {pipeline_mode = #tpu.pipeline_mode<synchronous>, transform_indices = @transform_5, window_bounds = array<i64: 25, 288, 128>}, {pipeline_mode = #tpu.pipeline_mode<synchronous>, transform_indices = @transform_6, window_bounds = array<i64: 20, 32>}]} {
    %c0 = arith.constant 0 : index
    %c0_0 = arith.constant 0 : index
    %0 = vector.load %arg2[%c0, %c0_0] : memref<10x25xf32, #tpu.memory_space<vmem>>, vector<10x25xf32>
    %c0_1 = arith.constant 0 : index
    %c0_2 = arith.constant 0 : index
    %1 = vector.load %arg1[%c0_1, %c0_2] : memref<25x1152xf32, #tpu.memory_space<vmem>>, vector<25x1152xf32>
    %cst = arith.constant dense<0.000000e+00> : vector<10x1152xf32>
    %2 = tpu.matmul %0, %1, %cst {dimension_numbers = #tpu.dot_dimension_numbers<[1], [0], [0], [1], [0, 0, 1, 1], [], []>} : vector<10x25xf32>, vector<25x1152xf32>, vector<10x1152xf32> -> vector<10x1152xf32>
    %c0_3 = arith.constant 0 : index
    %c0_4 = arith.constant 0 : index
    %3 = vector.load %arg3[%c0_3, %c0_4] : memref<10x1xf32, #tpu.memory_space<vmem>>, vector<10x1xf32>
    %4 = vector.broadcast %3 : vector<10x1xf32> to vector<10x1152xf32>
    %5 = arith.addf %2, %4 : vector<10x1152xf32>
    %6 = vector.extract_strided_slice %5 {offsets = [0, 0], sizes = [10, 288], strides = [1, 1]} : vector<10x1152xf32> to vector<10x288xf32>
    %7 = vector.extract_strided_slice %5 {offsets = [0, 288], sizes = [10, 288], strides = [1, 1]} : vector<10x1152xf32> to vector<10x288xf32>
    %8 = arith.maximumf %6, %7 : vector<10x288xf32>
    %9 = vector.extract_strided_slice %5 {offsets = [0, 576], sizes = [10, 288], strides = [1, 1]} : vector<10x1152xf32> to vector<10x288xf32>
    %10 = vector.extract_strided_slice %5 {offsets = [0, 864], sizes = [10, 288], strides = [1, 1]} : vector<10x1152xf32> to vector<10x288xf32>
    %11 = arith.maximumf %9, %10 : vector<10x288xf32>
    %12 = arith.maximumf %8, %11 : vector<10x288xf32>
    %cst_5 = arith.constant 0.000000e+00 : f32
    %13 = vector.broadcast %cst_5 : f32 to vector<10x288xf32>
    %14 = arith.maximumf %12, %13 : vector<10x288xf32>
    %cst_6 = arith.constant 0.000000e+00 : f32
    %15 = vector.broadcast %cst_6 : f32 to vector<20x128xf32>
    %c0_7 = arith.constant 0 : index
    %c0_8 = arith.constant 0 : index
    %c0_9 = arith.constant 0 : index
    %16 = vector.load %arg6[%c0_7, %c0_8, %c0_9] : memref<25x288x128xf32, #tpu.memory_space<vmem>>, vector<1x288x128xf32>
    %17 = vector.shape_cast %16 : vector<1x288x128xf32> to vector<288x128xf32>
    %cst_10 = arith.constant dense<0.000000e+00> : vector<10x128xf32>
    %18 = tpu.matmul %14, %17, %cst_10 {dimension_numbers = #tpu.dot_dimension_numbers<[1], [0], [0], [1], [0, 0, 1, 1], [], []>} : vector<10x288xf32>, vector<288x128xf32>, vector<10x128xf32> -> vector<10x128xf32>
    %c0_11 = arith.constant 0 : index
    %c0_12 = arith.constant 0 : index
    %c0_13 = arith.constant 0 : index
    %19 = vector.load %arg4[%c0_11, %c0_12, %c0_13] : memref<25x20x10xf32, #tpu.memory_space<vmem>>, vector<1x20x10xf32>
    %20 = vector.shape_cast %19 : vector<1x20x10xf32> to vector<20x10xf32>
    %cst_14 = arith.constant dense<0.000000e+00> : vector<20x128xf32>
    %21 = tpu.matmul %20, %18, %cst_14 {dimension_numbers = #tpu.dot_dimension_numbers<[1], [0], [0], [1], [0, 0, 1, 1], [], []>} : vector<20x10xf32>, vector<10x128xf32>, vector<20x128xf32> -> vector<20x128xf32>
    %22 = arith.addf %15, %21 : vector<20x128xf32>
    %c1 = arith.constant 1 : index
    %c0_15 = arith.constant 0 : index
    %c0_16 = arith.constant 0 : index
    %23 = vector.load %arg6[%c1, %c0_15, %c0_16] : memref<25x288x128xf32, #tpu.memory_space<vmem>>, vector<1x288x128xf32>
    %24 = vector.shape_cast %23 : vector<1x288x128xf32> to vector<288x128xf32>
    %cst_17 = arith.constant dense<0.000000e+00> : vector<10x128xf32>
    %25 = tpu.matmul %14, %24, %cst_17 {dimension_numbers = #tpu.dot_dimension_numbers<[1], [0], [0], [1], [0, 0, 1, 1], [], []>} : vector<10x288xf32>, vector<288x128xf32>, vector<10x128xf32> -> vector<10x128xf32>
    %c1_18 = arith.constant 1 : index
    %c0_19 = arith.constant 0 : index
    %c0_20 = arith.constant 0 : index
    %26 = vector.load %arg4[%c1_18, %c0_19, %c0_20] : memref<25x20x10xf32, #tpu.memory_space<vmem>>, vector<1x20x10xf32>
    %27 = vector.shape_cast %26 : vector<1x20x10xf32> to vector<20x10xf32>
    %cst_21 = arith.constant dense<0.000000e+00> : vector<20x128xf32>
    %28 = tpu.matmul %27, %25, %cst_21 {dimension_numbers = #tpu.dot_dimension_numbers<[1], [0], [0], [1], [0, 0, 1, 1], [], []>} : vector<20x10xf32>, vector<10x128xf32>, vector<20x128xf32> -> vector<20x128xf32>
    %29 = arith.addf %22, %28 : vector<20x128xf32>
    %c2 = arith.constant 2 : index
    %c0_22 = arith.constant 0 : index
    %c0_23 = arith.constant 0 : index
    %30 = vector.load %arg6[%c2, %c0_22, %c0_23] : memref<25x288x128xf32, #tpu.memory_space<vmem>>, vector<1x288x128xf32>
    %31 = vector.shape_cast %30 : vector<1x288x128xf32> to vector<288x128xf32>
    %cst_24 = arith.constant dense<0.000000e+00> : vector<10x128xf32>
    %32 = tpu.matmul %14, %31, %cst_24 {dimension_numbers = #tpu.dot_dimension_numbers<[1], [0], [0], [1], [0, 0, 1, 1], [], []>} : vector<10x288xf32>, vector<288x128xf32>, vector<10x128xf32> -> vector<10x128xf32>
    %c2_25 = arith.constant 2 : index
    %c0_26 = arith.constant 0 : index
    %c0_27 = arith.constant 0 : index
    %33 = vector.load %arg4[%c2_25, %c0_26, %c0_27] : memref<25x20x10xf32, #tpu.memory_space<vmem>>, vector<1x20x10xf32>
    %34 = vector.shape_cast %33 : vector<1x20x10xf32> to vector<20x10xf32>
    %cst_28 = arith.constant dense<0.000000e+00> : vector<20x128xf32>
    %35 = tpu.matmul %34, %32, %cst_28 {dimension_numbers = #tpu.dot_dimension_numbers<[1], [0], [0], [1], [0, 0, 1, 1], [], []>} : vector<20x10xf32>, vector<10x128xf32>, vector<20x128xf32> -> vector<20x128xf32>
    %36 = arith.addf %29, %35 : vector<20x128xf32>
    %c3 = arith.constant 3 : index
    %c0_29 = arith.constant 0 : index
    %c0_30 = arith.constant 0 : index
    %37 = vector.load %arg6[%c3, %c0_29, %c0_30] : memref<25x288x128xf32, #tpu.memory_space<vmem>>, vector<1x288x128xf32>
    %38 = vector.shape_cast %37 : vector<1x288x128xf32> to vector<288x128xf32>
    %cst_31 = arith.constant dense<0.000000e+00> : vector<10x128xf32>
    %39 = tpu.matmul %14, %38, %cst_31 {dimension_numbers = #tpu.dot_dimension_numbers<[1], [0], [0], [1], [0, 0, 1, 1], [], []>} : vector<10x288xf32>, vector<288x128xf32>, vector<10x128xf32> -> vector<10x128xf32>
    %c3_32 = arith.constant 3 : index
    %c0_33 = arith.constant 0 : index
    %c0_34 = arith.constant 0 : index
    %40 = vector.load %arg4[%c3_32, %c0_33, %c0_34] : memref<25x20x10xf32, #tpu.memory_space<vmem>>, vector<1x20x10xf32>
    %41 = vector.shape_cast %40 : vector<1x20x10xf32> to vector<20x10xf32>
    %cst_35 = arith.constant dense<0.000000e+00> : vector<20x128xf32>
    %42 = tpu.matmul %41, %39, %cst_35 {dimension_numbers = #tpu.dot_dimension_numbers<[1], [0], [0], [1], [0, 0, 1, 1], [], []>} : vector<20x10xf32>, vector<10x128xf32>, vector<20x128xf32> -> vector<20x128xf32>
    %43 = arith.addf %36, %42 : vector<20x128xf32>
    %c4 = arith.constant 4 : index
    %c0_36 = arith.constant 0 : index
    %c0_37 = arith.constant 0 : index
    %44 = vector.load %arg6[%c4, %c0_36, %c0_37] : memref<25x288x128xf32, #tpu.memory_space<vmem>>, vector<1x288x128xf32>
    %45 = vector.shape_cast %44 : vector<1x288x128xf32> to vector<288x128xf32>
    %cst_38 = arith.constant dense<0.000000e+00> : vector<10x128xf32>
    %46 = tpu.matmul %14, %45, %cst_38 {dimension_numbers = #tpu.dot_dimension_numbers<[1], [0], [0], [1], [0, 0, 1, 1], [], []>} : vector<10x288xf32>, vector<288x128xf32>, vector<10x128xf32> -> vector<10x128xf32>
    %c4_39 = arith.constant 4 : index
    %c0_40 = arith.constant 0 : index
    %c0_41 = arith.constant 0 : index
    %47 = vector.load %arg4[%c4_39, %c0_40, %c0_41] : memref<25x20x10xf32, #tpu.memory_space<vmem>>, vector<1x20x10xf32>
    %48 = vector.shape_cast %47 : vector<1x20x10xf32> to vector<20x10xf32>
    %cst_42 = arith.constant dense<0.000000e+00> : vector<20x128xf32>
    %49 = tpu.matmul %48, %46, %cst_42 {dimension_numbers = #tpu.dot_dimension_numbers<[1], [0], [0], [1], [0, 0, 1, 1], [], []>} : vector<20x10xf32>, vector<10x128xf32>, vector<20x128xf32> -> vector<20x128xf32>
    %50 = arith.addf %43, %49 : vector<20x128xf32>
    %c5 = arith.constant 5 : index
    %c0_43 = arith.constant 0 : index
    %c0_44 = arith.constant 0 : index
    %51 = vector.load %arg6[%c5, %c0_43, %c0_44] : memref<25x288x128xf32, #tpu.memory_space<vmem>>, vector<1x288x128xf32>
    %52 = vector.shape_cast %51 : vector<1x288x128xf32> to vector<288x128xf32>
    %cst_45 = arith.constant dense<0.000000e+00> : vector<10x128xf32>
    %53 = tpu.matmul %14, %52, %cst_45 {dimension_numbers = #tpu.dot_dimension_numbers<[1], [0], [0], [1], [0, 0, 1, 1], [], []>} : vector<10x288xf32>, vector<288x128xf32>, vector<10x128xf32> -> vector<10x128xf32>
    %c5_46 = arith.constant 5 : index
    %c0_47 = arith.constant 0 : index
    %c0_48 = arith.constant 0 : index
    %54 = vector.load %arg4[%c5_46, %c0_47, %c0_48] : memref<25x20x10xf32, #tpu.memory_space<vmem>>, vector<1x20x10xf32>
    %55 = vector.shape_cast %54 : vector<1x20x10xf32> to vector<20x10xf32>
    %cst_49 = arith.constant dense<0.000000e+00> : vector<20x128xf32>
    %56 = tpu.matmul %55, %53, %cst_49 {dimension_numbers = #tpu.dot_dimension_numbers<[1], [0], [0], [1], [0, 0, 1, 1], [], []>} : vector<20x10xf32>, vector<10x128xf32>, vector<20x128xf32> -> vector<20x128xf32>
    %57 = arith.addf %50, %56 : vector<20x128xf32>
    %c6 = arith.constant 6 : index
    %c0_50 = arith.constant 0 : index
    %c0_51 = arith.constant 0 : index
    %58 = vector.load %arg6[%c6, %c0_50, %c0_51] : memref<25x288x128xf32, #tpu.memory_space<vmem>>, vector<1x288x128xf32>
    %59 = vector.shape_cast %58 : vector<1x288x128xf32> to vector<288x128xf32>
    %cst_52 = arith.constant dense<0.000000e+00> : vector<10x128xf32>
    %60 = tpu.matmul %14, %59, %cst_52 {dimension_numbers = #tpu.dot_dimension_numbers<[1], [0], [0], [1], [0, 0, 1, 1], [], []>} : vector<10x288xf32>, vector<288x128xf32>, vector<10x128xf32> -> vector<10x128xf32>
    %c6_53 = arith.constant 6 : index
    %c0_54 = arith.constant 0 : index
    %c0_55 = arith.constant 0 : index
    %61 = vector.load %arg4[%c6_53, %c0_54, %c0_55] : memref<25x20x10xf32, #tpu.memory_space<vmem>>, vector<1x20x10xf32>
    %62 = vector.shape_cast %61 : vector<1x20x10xf32> to vector<20x10xf32>
    %cst_56 = arith.constant dense<0.000000e+00> : vector<20x128xf32>
    %63 = tpu.matmul %62, %60, %cst_56 {dimension_numbers = #tpu.dot_dimension_numbers<[1], [0], [0], [1], [0, 0, 1, 1], [], []>} : vector<20x10xf32>, vector<10x128xf32>, vector<20x128xf32> -> vector<20x128xf32>
    %64 = arith.addf %57, %63 : vector<20x128xf32>
    %c7 = arith.constant 7 : index
    %c0_57 = arith.constant 0 : index
    %c0_58 = arith.constant 0 : index
    %65 = vector.load %arg6[%c7, %c0_57, %c0_58] : memref<25x288x128xf32, #tpu.memory_space<vmem>>, vector<1x288x128xf32>
    %66 = vector.shape_cast %65 : vector<1x288x128xf32> to vector<288x128xf32>
    %cst_59 = arith.constant dense<0.000000e+00> : vector<10x128xf32>
    %67 = tpu.matmul %14, %66, %cst_59 {dimension_numbers = #tpu.dot_dimension_numbers<[1], [0], [0], [1], [0, 0, 1, 1], [], []>} : vector<10x288xf32>, vector<288x128xf32>, vector<10x128xf32> -> vector<10x128xf32>
    %c7_60 = arith.constant 7 : index
    %c0_61 = arith.constant 0 : index
    %c0_62 = arith.constant 0 : index
    %68 = vector.load %arg4[%c7_60, %c0_61, %c0_62] : memref<25x20x10xf32, #tpu.memory_space<vmem>>, vector<1x20x10xf32>
    %69 = vector.shape_cast %68 : vector<1x20x10xf32> to vector<20x10xf32>
    %cst_63 = arith.constant dense<0.000000e+00> : vector<20x128xf32>
    %70 = tpu.matmul %69, %67, %cst_63 {dimension_numbers = #tpu.dot_dimension_numbers<[1], [0], [0], [1], [0, 0, 1, 1], [], []>} : vector<20x10xf32>, vector<10x128xf32>, vector<20x128xf32> -> vector<20x128xf32>
    %71 = arith.addf %64, %70 : vector<20x128xf32>
    %c8 = arith.constant 8 : index
    %c0_64 = arith.constant 0 : index
    %c0_65 = arith.constant 0 : index
    %72 = vector.load %arg6[%c8, %c0_64, %c0_65] : memref<25x288x128xf32, #tpu.memory_space<vmem>>, vector<1x288x128xf32>
    %73 = vector.shape_cast %72 : vector<1x288x128xf32> to vector<288x128xf32>
    %cst_66 = arith.constant dense<0.000000e+00> : vector<10x128xf32>
    %74 = tpu.matmul %14, %73, %cst_66 {dimension_numbers = #tpu.dot_dimension_numbers<[1], [0], [0], [1], [0, 0, 1, 1], [], []>} : vector<10x288xf32>, vector<288x128xf32>, vector<10x128xf32> -> vector<10x128xf32>
    %c8_67 = arith.constant 8 : index
    %c0_68 = arith.constant 0 : index
    %c0_69 = arith.constant 0 : index
    %75 = vector.load %arg4[%c8_67, %c0_68, %c0_69] : memref<25x20x10xf32, #tpu.memory_space<vmem>>, vector<1x20x10xf32>
    %76 = vector.shape_cast %75 : vector<1x20x10xf32> to vector<20x10xf32>
    %cst_70 = arith.constant dense<0.000000e+00> : vector<20x128xf32>
    %77 = tpu.matmul %76, %74, %cst_70 {dimension_numbers = #tpu.dot_dimension_numbers<[1], [0], [0], [1], [0, 0, 1, 1], [], []>} : vector<20x10xf32>, vector<10x128xf32>, vector<20x128xf32> -> vector<20x128xf32>
    %78 = arith.addf %71, %77 : vector<20x128xf32>
    %c9 = arith.constant 9 : index
    %c0_71 = arith.constant 0 : index
    %c0_72 = arith.constant 0 : index
    %79 = vector.load %arg6[%c9, %c0_71, %c0_72] : memref<25x288x128xf32, #tpu.memory_space<vmem>>, vector<1x288x128xf32>
    %80 = vector.shape_cast %79 : vector<1x288x128xf32> to vector<288x128xf32>
    %cst_73 = arith.constant dense<0.000000e+00> : vector<10x128xf32>
    %81 = tpu.matmul %14, %80, %cst_73 {dimension_numbers = #tpu.dot_dimension_numbers<[1], [0], [0], [1], [0, 0, 1, 1], [], []>} : vector<10x288xf32>, vector<288x128xf32>, vector<10x128xf32> -> vector<10x128xf32>
    %c9_74 = arith.constant 9 : index
    %c0_75 = arith.constant 0 : index
    %c0_76 = arith.constant 0 : index
    %82 = vector.load %arg4[%c9_74, %c0_75, %c0_76] : memref<25x20x10xf32, #tpu.memory_space<vmem>>, vector<1x20x10xf32>
    %83 = vector.shape_cast %82 : vector<1x20x10xf32> to vector<20x10xf32>
    %cst_77 = arith.constant dense<0.000000e+00> : vector<20x128xf32>
    %84 = tpu.matmul %83, %81, %cst_77 {dimension_numbers = #tpu.dot_dimension_numbers<[1], [0], [0], [1], [0, 0, 1, 1], [], []>} : vector<20x10xf32>, vector<10x128xf32>, vector<20x128xf32> -> vector<20x128xf32>
    %85 = arith.addf %78, %84 : vector<20x128xf32>
    %c10 = arith.constant 10 : index
    %c0_78 = arith.constant 0 : index
    %c0_79 = arith.constant 0 : index
    %86 = vector.load %arg6[%c10, %c0_78, %c0_79] : memref<25x288x128xf32, #tpu.memory_space<vmem>>, vector<1x288x128xf32>
    %87 = vector.shape_cast %86 : vector<1x288x128xf32> to vector<288x128xf32>
    %cst_80 = arith.constant dense<0.000000e+00> : vector<10x128xf32>
    %88 = tpu.matmul %14, %87, %cst_80 {dimension_numbers = #tpu.dot_dimension_numbers<[1], [0], [0], [1], [0, 0, 1, 1], [], []>} : vector<10x288xf32>, vector<288x128xf32>, vector<10x128xf32> -> vector<10x128xf32>
    %c10_81 = arith.constant 10 : index
    %c0_82 = arith.constant 0 : index
    %c0_83 = arith.constant 0 : index
    %89 = vector.load %arg4[%c10_81, %c0_82, %c0_83] : memref<25x20x10xf32, #tpu.memory_space<vmem>>, vector<1x20x10xf32>
    %90 = vector.shape_cast %89 : vector<1x20x10xf32> to vector<20x10xf32>
    %cst_84 = arith.constant dense<0.000000e+00> : vector<20x128xf32>
    %91 = tpu.matmul %90, %88, %cst_84 {dimension_numbers = #tpu.dot_dimension_numbers<[1], [0], [0], [1], [0, 0, 1, 1], [], []>} : vector<20x10xf32>, vector<10x128xf32>, vector<20x128xf32> -> vector<20x128xf32>
    %92 = arith.addf %85, %91 : vector<20x128xf32>
    %c11 = arith.constant 11 : index
    %c0_85 = arith.constant 0 : index
    %c0_86 = arith.constant 0 : index
    %93 = vector.load %arg6[%c11, %c0_85, %c0_86] : memref<25x288x128xf32, #tpu.memory_space<vmem>>, vector<1x288x128xf32>
    %94 = vector.shape_cast %93 : vector<1x288x128xf32> to vector<288x128xf32>
    %cst_87 = arith.constant dense<0.000000e+00> : vector<10x128xf32>
    %95 = tpu.matmul %14, %94, %cst_87 {dimension_numbers = #tpu.dot_dimension_numbers<[1], [0], [0], [1], [0, 0, 1, 1], [], []>} : vector<10x288xf32>, vector<288x128xf32>, vector<10x128xf32> -> vector<10x128xf32>
    %c11_88 = arith.constant 11 : index
    %c0_89 = arith.constant 0 : index
    %c0_90 = arith.constant 0 : index
    %96 = vector.load %arg4[%c11_88, %c0_89, %c0_90] : memref<25x20x10xf32, #tpu.memory_space<vmem>>, vector<1x20x10xf32>
    %97 = vector.shape_cast %96 : vector<1x20x10xf32> to vector<20x10xf32>
    %cst_91 = arith.constant dense<0.000000e+00> : vector<20x128xf32>
    %98 = tpu.matmul %97, %95, %cst_91 {dimension_numbers = #tpu.dot_dimension_numbers<[1], [0], [0], [1], [0, 0, 1, 1], [], []>} : vector<20x10xf32>, vector<10x128xf32>, vector<20x128xf32> -> vector<20x128xf32>
    %99 = arith.addf %92, %98 : vector<20x128xf32>
    %c12 = arith.constant 12 : index
    %c0_92 = arith.constant 0 : index
    %c0_93 = arith.constant 0 : index
    %100 = vector.load %arg6[%c12, %c0_92, %c0_93] : memref<25x288x128xf32, #tpu.memory_space<vmem>>, vector<1x288x128xf32>
    %101 = vector.shape_cast %100 : vector<1x288x128xf32> to vector<288x128xf32>
    %cst_94 = arith.constant dense<0.000000e+00> : vector<10x128xf32>
    %102 = tpu.matmul %14, %101, %cst_94 {dimension_numbers = #tpu.dot_dimension_numbers<[1], [0], [0], [1], [0, 0, 1, 1], [], []>} : vector<10x288xf32>, vector<288x128xf32>, vector<10x128xf32> -> vector<10x128xf32>
    %c12_95 = arith.constant 12 : index
    %c0_96 = arith.constant 0 : index
    %c0_97 = arith.constant 0 : index
    %103 = vector.load %arg4[%c12_95, %c0_96, %c0_97] : memref<25x20x10xf32, #tpu.memory_space<vmem>>, vector<1x20x10xf32>
    %104 = vector.shape_cast %103 : vector<1x20x10xf32> to vector<20x10xf32>
    %cst_98 = arith.constant dense<0.000000e+00> : vector<20x128xf32>
    %105 = tpu.matmul %104, %102, %cst_98 {dimension_numbers = #tpu.dot_dimension_numbers<[1], [0], [0], [1], [0, 0, 1, 1], [], []>} : vector<20x10xf32>, vector<10x128xf32>, vector<20x128xf32> -> vector<20x128xf32>
    %106 = arith.addf %99, %105 : vector<20x128xf32>
    %c13 = arith.constant 13 : index
    %c0_99 = arith.constant 0 : index
    %c0_100 = arith.constant 0 : index
    %107 = vector.load %arg6[%c13, %c0_99, %c0_100] : memref<25x288x128xf32, #tpu.memory_space<vmem>>, vector<1x288x128xf32>
    %108 = vector.shape_cast %107 : vector<1x288x128xf32> to vector<288x128xf32>
    %cst_101 = arith.constant dense<0.000000e+00> : vector<10x128xf32>
    %109 = tpu.matmul %14, %108, %cst_101 {dimension_numbers = #tpu.dot_dimension_numbers<[1], [0], [0], [1], [0, 0, 1, 1], [], []>} : vector<10x288xf32>, vector<288x128xf32>, vector<10x128xf32> -> vector<10x128xf32>
    %c13_102 = arith.constant 13 : index
    %c0_103 = arith.constant 0 : index
    %c0_104 = arith.constant 0 : index
    %110 = vector.load %arg4[%c13_102, %c0_103, %c0_104] : memref<25x20x10xf32, #tpu.memory_space<vmem>>, vector<1x20x10xf32>
    %111 = vector.shape_cast %110 : vector<1x20x10xf32> to vector<20x10xf32>
    %cst_105 = arith.constant dense<0.000000e+00> : vector<20x128xf32>
    %112 = tpu.matmul %111, %109, %cst_105 {dimension_numbers = #tpu.dot_dimension_numbers<[1], [0], [0], [1], [0, 0, 1, 1], [], []>} : vector<20x10xf32>, vector<10x128xf32>, vector<20x128xf32> -> vector<20x128xf32>
    %113 = arith.addf %106, %112 : vector<20x128xf32>
    %c14 = arith.constant 14 : index
    %c0_106 = arith.constant 0 : index
    %c0_107 = arith.constant 0 : index
    %114 = vector.load %arg6[%c14, %c0_106, %c0_107] : memref<25x288x128xf32, #tpu.memory_space<vmem>>, vector<1x288x128xf32>
    %115 = vector.shape_cast %114 : vector<1x288x128xf32> to vector<288x128xf32>
    %cst_108 = arith.constant dense<0.000000e+00> : vector<10x128xf32>
    %116 = tpu.matmul %14, %115, %cst_108 {dimension_numbers = #tpu.dot_dimension_numbers<[1], [0], [0], [1], [0, 0, 1, 1], [], []>} : vector<10x288xf32>, vector<288x128xf32>, vector<10x128xf32> -> vector<10x128xf32>
    %c14_109 = arith.constant 14 : index
    %c0_110 = arith.constant 0 : index
    %c0_111 = arith.constant 0 : index
    %117 = vector.load %arg4[%c14_109, %c0_110, %c0_111] : memref<25x20x10xf32, #tpu.memory_space<vmem>>, vector<1x20x10xf32>
    %118 = vector.shape_cast %117 : vector<1x20x10xf32> to vector<20x10xf32>
    %cst_112 = arith.constant dense<0.000000e+00> : vector<20x128xf32>
    %119 = tpu.matmul %118, %116, %cst_112 {dimension_numbers = #tpu.dot_dimension_numbers<[1], [0], [0], [1], [0, 0, 1, 1], [], []>} : vector<20x10xf32>, vector<10x128xf32>, vector<20x128xf32> -> vector<20x128xf32>
    %120 = arith.addf %113, %119 : vector<20x128xf32>
    %c15 = arith.constant 15 : index
    %c0_113 = arith.constant 0 : index
    %c0_114 = arith.constant 0 : index
    %121 = vector.load %arg6[%c15, %c0_113, %c0_114] : memref<25x288x128xf32, #tpu.memory_space<vmem>>, vector<1x288x128xf32>
    %122 = vector.shape_cast %121 : vector<1x288x128xf32> to vector<288x128xf32>
    %cst_115 = arith.constant dense<0.000000e+00> : vector<10x128xf32>
    %123 = tpu.matmul %14, %122, %cst_115 {dimension_numbers = #tpu.dot_dimension_numbers<[1], [0], [0], [1], [0, 0, 1, 1], [], []>} : vector<10x288xf32>, vector<288x128xf32>, vector<10x128xf32> -> vector<10x128xf32>
    %c15_116 = arith.constant 15 : index
    %c0_117 = arith.constant 0 : index
    %c0_118 = arith.constant 0 : index
    %124 = vector.load %arg4[%c15_116, %c0_117, %c0_118] : memref<25x20x10xf32, #tpu.memory_space<vmem>>, vector<1x20x10xf32>
    %125 = vector.shape_cast %124 : vector<1x20x10xf32> to vector<20x10xf32>
    %cst_119 = arith.constant dense<0.000000e+00> : vector<20x128xf32>
    %126 = tpu.matmul %125, %123, %cst_119 {dimension_numbers = #tpu.dot_dimension_numbers<[1], [0], [0], [1], [0, 0, 1, 1], [], []>} : vector<20x10xf32>, vector<10x128xf32>, vector<20x128xf32> -> vector<20x128xf32>
    %127 = arith.addf %120, %126 : vector<20x128xf32>
    %c16 = arith.constant 16 : index
    %c0_120 = arith.constant 0 : index
    %c0_121 = arith.constant 0 : index
    %128 = vector.load %arg6[%c16, %c0_120, %c0_121] : memref<25x288x128xf32, #tpu.memory_space<vmem>>, vector<1x288x128xf32>
    %129 = vector.shape_cast %128 : vector<1x288x128xf32> to vector<288x128xf32>
    %cst_122 = arith.constant dense<0.000000e+00> : vector<10x128xf32>
    %130 = tpu.matmul %14, %129, %cst_122 {dimension_numbers = #tpu.dot_dimension_numbers<[1], [0], [0], [1], [0, 0, 1, 1], [], []>} : vector<10x288xf32>, vector<288x128xf32>, vector<10x128xf32> -> vector<10x128xf32>
    %c16_123 = arith.constant 16 : index
    %c0_124 = arith.constant 0 : index
    %c0_125 = arith.constant 0 : index
    %131 = vector.load %arg4[%c16_123, %c0_124, %c0_125] : memref<25x20x10xf32, #tpu.memory_space<vmem>>, vector<1x20x10xf32>
    %132 = vector.shape_cast %131 : vector<1x20x10xf32> to vector<20x10xf32>
    %cst_126 = arith.constant dense<0.000000e+00> : vector<20x128xf32>
    %133 = tpu.matmul %132, %130, %cst_126 {dimension_numbers = #tpu.dot_dimension_numbers<[1], [0], [0], [1], [0, 0, 1, 1], [], []>} : vector<20x10xf32>, vector<10x128xf32>, vector<20x128xf32> -> vector<20x128xf32>
    %134 = arith.addf %127, %133 : vector<20x128xf32>
    %c17 = arith.constant 17 : index
    %c0_127 = arith.constant 0 : index
    %c0_128 = arith.constant 0 : index
    %135 = vector.load %arg6[%c17, %c0_127, %c0_128] : memref<25x288x128xf32, #tpu.memory_space<vmem>>, vector<1x288x128xf32>
    %136 = vector.shape_cast %135 : vector<1x288x128xf32> to vector<288x128xf32>
    %cst_129 = arith.constant dense<0.000000e+00> : vector<10x128xf32>
    %137 = tpu.matmul %14, %136, %cst_129 {dimension_numbers = #tpu.dot_dimension_numbers<[1], [0], [0], [1], [0, 0, 1, 1], [], []>} : vector<10x288xf32>, vector<288x128xf32>, vector<10x128xf32> -> vector<10x128xf32>
    %c17_130 = arith.constant 17 : index
    %c0_131 = arith.constant 0 : index
    %c0_132 = arith.constant 0 : index
    %138 = vector.load %arg4[%c17_130, %c0_131, %c0_132] : memref<25x20x10xf32, #tpu.memory_space<vmem>>, vector<1x20x10xf32>
    %139 = vector.shape_cast %138 : vector<1x20x10xf32> to vector<20x10xf32>
    %cst_133 = arith.constant dense<0.000000e+00> : vector<20x128xf32>
    %140 = tpu.matmul %139, %137, %cst_133 {dimension_numbers = #tpu.dot_dimension_numbers<[1], [0], [0], [1], [0, 0, 1, 1], [], []>} : vector<20x10xf32>, vector<10x128xf32>, vector<20x128xf32> -> vector<20x128xf32>
    %141 = arith.addf %134, %140 : vector<20x128xf32>
    %c18 = arith.constant 18 : index
    %c0_134 = arith.constant 0 : index
    %c0_135 = arith.constant 0 : index
    %142 = vector.load %arg6[%c18, %c0_134, %c0_135] : memref<25x288x128xf32, #tpu.memory_space<vmem>>, vector<1x288x128xf32>
    %143 = vector.shape_cast %142 : vector<1x288x128xf32> to vector<288x128xf32>
    %cst_136 = arith.constant dense<0.000000e+00> : vector<10x128xf32>
    %144 = tpu.matmul %14, %143, %cst_136 {dimension_numbers = #tpu.dot_dimension_numbers<[1], [0], [0], [1], [0, 0, 1, 1], [], []>} : vector<10x288xf32>, vector<288x128xf32>, vector<10x128xf32> -> vector<10x128xf32>
    %c18_137 = arith.constant 18 : index
    %c0_138 = arith.constant 0 : index
    %c0_139 = arith.constant 0 : index
    %145 = vector.load %arg4[%c18_137, %c0_138, %c0_139] : memref<25x20x10xf32, #tpu.memory_space<vmem>>, vector<1x20x10xf32>
    %146 = vector.shape_cast %145 : vector<1x20x10xf32> to vector<20x10xf32>
    %cst_140 = arith.constant dense<0.000000e+00> : vector<20x128xf32>
    %147 = tpu.matmul %146, %144, %cst_140 {dimension_numbers = #tpu.dot_dimension_numbers<[1], [0], [0], [1], [0, 0, 1, 1], [], []>} : vector<20x10xf32>, vector<10x128xf32>, vector<20x128xf32> -> vector<20x128xf32>
    %148 = arith.addf %141, %147 : vector<20x128xf32>
    %c19 = arith.constant 19 : index
    %c0_141 = arith.constant 0 : index
    %c0_142 = arith.constant 0 : index
    %149 = vector.load %arg6[%c19, %c0_141, %c0_142] : memref<25x288x128xf32, #tpu.memory_space<vmem>>, vector<1x288x128xf32>
    %150 = vector.shape_cast %149 : vector<1x288x128xf32> to vector<288x128xf32>
    %cst_143 = arith.constant dense<0.000000e+00> : vector<10x128xf32>
    %151 = tpu.matmul %14, %150, %cst_143 {dimension_numbers = #tpu.dot_dimension_numbers<[1], [0], [0], [1], [0, 0, 1, 1], [], []>} : vector<10x288xf32>, vector<288x128xf32>, vector<10x128xf32> -> vector<10x128xf32>
    %c19_144 = arith.constant 19 : index
    %c0_145 = arith.constant 0 : index
    %c0_146 = arith.constant 0 : index
    %152 = vector.load %arg4[%c19_144, %c0_145, %c0_146] : memref<25x20x10xf32, #tpu.memory_space<vmem>>, vector<1x20x10xf32>
    %153 = vector.shape_cast %152 : vector<1x20x10xf32> to vector<20x10xf32>
    %cst_147 = arith.constant dense<0.000000e+00> : vector<20x128xf32>
    %154 = tpu.matmul %153, %151, %cst_147 {dimension_numbers = #tpu.dot_dimension_numbers<[1], [0], [0], [1], [0, 0, 1, 1], [], []>} : vector<20x10xf32>, vector<10x128xf32>, vector<20x128xf32> -> vector<20x128xf32>
    %155 = arith.addf %148, %154 : vector<20x128xf32>
    %c20 = arith.constant 20 : index
    %c0_148 = arith.constant 0 : index
    %c0_149 = arith.constant 0 : index
    %156 = vector.load %arg6[%c20, %c0_148, %c0_149] : memref<25x288x128xf32, #tpu.memory_space<vmem>>, vector<1x288x128xf32>
    %157 = vector.shape_cast %156 : vector<1x288x128xf32> to vector<288x128xf32>
    %cst_150 = arith.constant dense<0.000000e+00> : vector<10x128xf32>
    %158 = tpu.matmul %14, %157, %cst_150 {dimension_numbers = #tpu.dot_dimension_numbers<[1], [0], [0], [1], [0, 0, 1, 1], [], []>} : vector<10x288xf32>, vector<288x128xf32>, vector<10x128xf32> -> vector<10x128xf32>
    %c20_151 = arith.constant 20 : index
    %c0_152 = arith.constant 0 : index
    %c0_153 = arith.constant 0 : index
    %159 = vector.load %arg4[%c20_151, %c0_152, %c0_153] : memref<25x20x10xf32, #tpu.memory_space<vmem>>, vector<1x20x10xf32>
    %160 = vector.shape_cast %159 : vector<1x20x10xf32> to vector<20x10xf32>
    %cst_154 = arith.constant dense<0.000000e+00> : vector<20x128xf32>
    %161 = tpu.matmul %160, %158, %cst_154 {dimension_numbers = #tpu.dot_dimension_numbers<[1], [0], [0], [1], [0, 0, 1, 1], [], []>} : vector<20x10xf32>, vector<10x128xf32>, vector<20x128xf32> -> vector<20x128xf32>
    %162 = arith.addf %155, %161 : vector<20x128xf32>
    %c21 = arith.constant 21 : index
    %c0_155 = arith.constant 0 : index
    %c0_156 = arith.constant 0 : index
    %163 = vector.load %arg6[%c21, %c0_155, %c0_156] : memref<25x288x128xf32, #tpu.memory_space<vmem>>, vector<1x288x128xf32>
    %164 = vector.shape_cast %163 : vector<1x288x128xf32> to vector<288x128xf32>
    %cst_157 = arith.constant dense<0.000000e+00> : vector<10x128xf32>
    %165 = tpu.matmul %14, %164, %cst_157 {dimension_numbers = #tpu.dot_dimension_numbers<[1], [0], [0], [1], [0, 0, 1, 1], [], []>} : vector<10x288xf32>, vector<288x128xf32>, vector<10x128xf32> -> vector<10x128xf32>
    %c21_158 = arith.constant 21 : index
    %c0_159 = arith.constant 0 : index
    %c0_160 = arith.constant 0 : index
    %166 = vector.load %arg4[%c21_158, %c0_159, %c0_160] : memref<25x20x10xf32, #tpu.memory_space<vmem>>, vector<1x20x10xf32>
    %167 = vector.shape_cast %166 : vector<1x20x10xf32> to vector<20x10xf32>
    %cst_161 = arith.constant dense<0.000000e+00> : vector<20x128xf32>
    %168 = tpu.matmul %167, %165, %cst_161 {dimension_numbers = #tpu.dot_dimension_numbers<[1], [0], [0], [1], [0, 0, 1, 1], [], []>} : vector<20x10xf32>, vector<10x128xf32>, vector<20x128xf32> -> vector<20x128xf32>
    %169 = arith.addf %162, %168 : vector<20x128xf32>
    %c22 = arith.constant 22 : index
    %c0_162 = arith.constant 0 : index
    %c0_163 = arith.constant 0 : index
    %170 = vector.load %arg6[%c22, %c0_162, %c0_163] : memref<25x288x128xf32, #tpu.memory_space<vmem>>, vector<1x288x128xf32>
    %171 = vector.shape_cast %170 : vector<1x288x128xf32> to vector<288x128xf32>
    %cst_164 = arith.constant dense<0.000000e+00> : vector<10x128xf32>
    %172 = tpu.matmul %14, %171, %cst_164 {dimension_numbers = #tpu.dot_dimension_numbers<[1], [0], [0], [1], [0, 0, 1, 1], [], []>} : vector<10x288xf32>, vector<288x128xf32>, vector<10x128xf32> -> vector<10x128xf32>
    %c22_165 = arith.constant 22 : index
    %c0_166 = arith.constant 0 : index
    %c0_167 = arith.constant 0 : index
    %173 = vector.load %arg4[%c22_165, %c0_166, %c0_167] : memref<25x20x10xf32, #tpu.memory_space<vmem>>, vector<1x20x10xf32>
    %174 = vector.shape_cast %173 : vector<1x20x10xf32> to vector<20x10xf32>
    %cst_168 = arith.constant dense<0.000000e+00> : vector<20x128xf32>
    %175 = tpu.matmul %174, %172, %cst_168 {dimension_numbers = #tpu.dot_dimension_numbers<[1], [0], [0], [1], [0, 0, 1, 1], [], []>} : vector<20x10xf32>, vector<10x128xf32>, vector<20x128xf32> -> vector<20x128xf32>
    %176 = arith.addf %169, %175 : vector<20x128xf32>
    %c23 = arith.constant 23 : index
    %c0_169 = arith.constant 0 : index
    %c0_170 = arith.constant 0 : index
    %177 = vector.load %arg6[%c23, %c0_169, %c0_170] : memref<25x288x128xf32, #tpu.memory_space<vmem>>, vector<1x288x128xf32>
    %178 = vector.shape_cast %177 : vector<1x288x128xf32> to vector<288x128xf32>
    %cst_171 = arith.constant dense<0.000000e+00> : vector<10x128xf32>
    %179 = tpu.matmul %14, %178, %cst_171 {dimension_numbers = #tpu.dot_dimension_numbers<[1], [0], [0], [1], [0, 0, 1, 1], [], []>} : vector<10x288xf32>, vector<288x128xf32>, vector<10x128xf32> -> vector<10x128xf32>
    %c23_172 = arith.constant 23 : index
    %c0_173 = arith.constant 0 : index
    %c0_174 = arith.constant 0 : index
    %180 = vector.load %arg4[%c23_172, %c0_173, %c0_174] : memref<25x20x10xf32, #tpu.memory_space<vmem>>, vector<1x20x10xf32>
    %181 = vector.shape_cast %180 : vector<1x20x10xf32> to vector<20x10xf32>
    %cst_175 = arith.constant dense<0.000000e+00> : vector<20x128xf32>
    %182 = tpu.matmul %181, %179, %cst_175 {dimension_numbers = #tpu.dot_dimension_numbers<[1], [0], [0], [1], [0, 0, 1, 1], [], []>} : vector<20x10xf32>, vector<10x128xf32>, vector<20x128xf32> -> vector<20x128xf32>
    %183 = arith.addf %176, %182 : vector<20x128xf32>
    %c24 = arith.constant 24 : index
    %c0_176 = arith.constant 0 : index
    %c0_177 = arith.constant 0 : index
    %184 = vector.load %arg6[%c24, %c0_176, %c0_177] : memref<25x288x128xf32, #tpu.memory_space<vmem>>, vector<1x288x128xf32>
    %185 = vector.shape_cast %184 : vector<1x288x128xf32> to vector<288x128xf32>
    %cst_178 = arith.constant dense<0.000000e+00> : vector<10x128xf32>
    %186 = tpu.matmul %14, %185, %cst_178 {dimension_numbers = #tpu.dot_dimension_numbers<[1], [0], [0], [1], [0, 0, 1, 1], [], []>} : vector<10x288xf32>, vector<288x128xf32>, vector<10x128xf32> -> vector<10x128xf32>
    %c24_179 = arith.constant 24 : index
    %c0_180 = arith.constant 0 : index
    %c0_181 = arith.constant 0 : index
    %187 = vector.load %arg4[%c24_179, %c0_180, %c0_181] : memref<25x20x10xf32, #tpu.memory_space<vmem>>, vector<1x20x10xf32>
    %188 = vector.shape_cast %187 : vector<1x20x10xf32> to vector<20x10xf32>
    %cst_182 = arith.constant dense<0.000000e+00> : vector<20x128xf32>
    %189 = tpu.matmul %188, %186, %cst_182 {dimension_numbers = #tpu.dot_dimension_numbers<[1], [0], [0], [1], [0, 0, 1, 1], [], []>} : vector<20x10xf32>, vector<10x128xf32>, vector<20x128xf32> -> vector<20x128xf32>
    %190 = arith.addf %183, %189 : vector<20x128xf32>
    %c0_183 = arith.constant 0 : index
    %c0_184 = arith.constant 0 : index
    %191 = vector.load %arg5[%c0_183, %c0_184] : memref<20x1xf32, #tpu.memory_space<vmem>>, vector<20x1xf32>
    %192 = vector.broadcast %191 : vector<20x1xf32> to vector<20x128xf32>
    %193 = arith.addf %190, %192 : vector<20x128xf32>
    %194 = vector.extract_strided_slice %193 {offsets = [0, 0], sizes = [20, 32], strides = [1, 1]} : vector<20x128xf32> to vector<20x32xf32>
    %195 = vector.extract_strided_slice %193 {offsets = [0, 32], sizes = [20, 32], strides = [1, 1]} : vector<20x128xf32> to vector<20x32xf32>
    %196 = arith.maximumf %194, %195 : vector<20x32xf32>
    %197 = vector.extract_strided_slice %193 {offsets = [0, 64], sizes = [20, 32], strides = [1, 1]} : vector<20x128xf32> to vector<20x32xf32>
    %198 = vector.extract_strided_slice %193 {offsets = [0, 96], sizes = [20, 32], strides = [1, 1]} : vector<20x128xf32> to vector<20x32xf32>
    %199 = arith.maximumf %197, %198 : vector<20x32xf32>
    %200 = arith.maximumf %196, %199 : vector<20x32xf32>
    %cst_185 = arith.constant 0.000000e+00 : f32
    %201 = vector.broadcast %cst_185 : f32 to vector<20x32xf32>
    %202 = arith.maximumf %200, %201 : vector<20x32xf32>
    %c0_186 = arith.constant 0 : index
    %c0_187 = arith.constant 0 : index
    %203 = vector.load %arg7[%c0_186, %c0_187] : memref<20x32xf32, #tpu.memory_space<vmem>>, vector<20x32xf32>
    tpu.vector_store %arg7[%c0_186, %c0_187], %202 {strides = array<i32>} : memref<20x32xf32, #tpu.memory_space<vmem>>, vector<20x32xf32>,
    return
  }
  func.func @transform_0(%arg0: i32) -> (i32, i32) {
    %c0_i32 = arith.constant 0 : i32
    %c0_i32_0 = arith.constant 0 : i32
    %c0_i32_1 = arith.constant 0 : i32
    return %c0_i32, %c0_i32_0 : i32, i32
  }
  func.func @transform_1(%arg0: i32) -> (i32, i32) {
    %c0_i32 = arith.constant 0 : i32
    %c0_i32_0 = arith.constant 0 : i32
    %c0_i32_1 = arith.constant 0 : i32
    return %c0_i32, %c0_i32_0 : i32, i32
  }
  func.func @transform_2(%arg0: i32) -> (i32, i32) {
    %c0_i32 = arith.constant 0 : i32
    %c0_i32_0 = arith.constant 0 : i32
    %c0_i32_1 = arith.constant 0 : i32
    return %c0_i32, %c0_i32_0 : i32, i32
  }
  func.func @transform_3(%arg0: i32) -> (i32, i32, i32) {
    %c0_i32 = arith.constant 0 : i32
    %c0_i32_0 = arith.constant 0 : i32
    %c0_i32_1 = arith.constant 0 : i32
    %c0_i32_2 = arith.constant 0 : i32
    return %c0_i32, %c0_i32_0, %c0_i32_1 : i32, i32, i32
  }
  func.func @transform_4(%arg0: i32) -> (i32, i32) {
    %c0_i32 = arith.constant 0 : i32
    %c0_i32_0 = arith.constant 0 : i32
    %c0_i32_1 = arith.constant 0 : i32
    return %c0_i32, %c0_i32_0 : i32, i32
  }
  func.func @transform_5(%arg0: i32) -> (i32, i32, i32) {
    %c0_i32 = arith.constant 0 : i32
    %c0_i32_0 = arith.constant 0 : i32
    %c0_i32_1 = arith.constant 0 : i32
    %c0_i32_2 = arith.constant 0 : i32
    return %c0_i32, %c0_i32_0, %c0_i32_1 : i32, i32, i32
  }
  func.func @transform_6(%arg0: i32) -> (i32, i32) {
    %c0_i32 = arith.constant 0 : i32
    %c0_i32_0 = arith.constant 0 : i32
    %c0_i32_1 = arith.constant 0 : i32
    return %c0_i32, %c0_i32_0 : i32, i32
  }
}

module attributes {stable_mosaic.version = 11 : i64} {
  func.func @_mlp_head_kernel(%arg0: i32, %arg1: memref<2x320xf32, #tpu.memory_space<vmem>>, %arg2: memref<320x50xf32, #tpu.memory_space<vmem>>, %arg3: memref<1x50xf32, #tpu.memory_space<vmem>>, %arg4: memref<50x10xf32, #tpu.memory_space<vmem>>, %arg5: memref<1x10xf32, #tpu.memory_space<vmem>>, %arg6: memref<2x10xf32, #tpu.memory_space<vmem>>) attributes {dimension_semantics = [#tpu.dimension_semantics<arbitrary>], iteration_bounds = array<i64: 1>, scalar_prefetch = 0 : i64, scratch_operands = 0 : i64, tpu.core_type = #tpu.core_type<tc>, window_params = [{pipeline_mode = #tpu.pipeline_mode<synchronous>, transform_indices = @transform_0, window_bounds = array<i64: 2, 320>}, {pipeline_mode = #tpu.pipeline_mode<synchronous>, transform_indices = @transform_1, window_bounds = array<i64: 320, 50>}, {pipeline_mode = #tpu.pipeline_mode<synchronous>, transform_indices = @transform_2, window_bounds = array<i64: 1, 50>}, {pipeline_mode = #tpu.pipeline_mode<synchronous>, transform_indices = @transform_3, window_bounds = array<i64: 50, 10>}, {pipeline_mode = #tpu.pipeline_mode<synchronous>, transform_indices = @transform_4, window_bounds = array<i64: 1, 10>}, {pipeline_mode = #tpu.pipeline_mode<synchronous>, transform_indices = @transform_5, window_bounds = array<i64: 2, 10>}]} {
    %c0 = arith.constant 0 : index
    %c0_0 = arith.constant 0 : index
    %0 = vector.load %arg1[%c0, %c0_0] : memref<2x320xf32, #tpu.memory_space<vmem>>, vector<2x320xf32>
    %c0_1 = arith.constant 0 : index
    %c0_2 = arith.constant 0 : index
    %1 = vector.load %arg2[%c0_1, %c0_2] : memref<320x50xf32, #tpu.memory_space<vmem>>, vector<320x50xf32>
    %cst = arith.constant dense<0.000000e+00> : vector<2x50xf32>
    %2 = tpu.matmul %0, %1, %cst {dimension_numbers = #tpu.dot_dimension_numbers<[1], [0], [0], [1], [0, 0, 1, 1], [], []>} : vector<2x320xf32>, vector<320x50xf32>, vector<2x50xf32> -> vector<2x50xf32>
    %c0_3 = arith.constant 0 : index
    %c0_4 = arith.constant 0 : index
    %3 = vector.load %arg3[%c0_3, %c0_4] : memref<1x50xf32, #tpu.memory_space<vmem>>, vector<1x50xf32>
    %4 = vector.broadcast %3 : vector<1x50xf32> to vector<2x50xf32>
    %5 = arith.addf %2, %4 : vector<2x50xf32>
    %cst_5 = arith.constant 0.000000e+00 : f32
    %6 = vector.broadcast %cst_5 : f32 to vector<2x50xf32>
    %7 = arith.maximumf %5, %6 : vector<2x50xf32>
    %c0_6 = arith.constant 0 : index
    %c0_7 = arith.constant 0 : index
    %8 = vector.load %arg4[%c0_6, %c0_7] : memref<50x10xf32, #tpu.memory_space<vmem>>, vector<50x10xf32>
    %cst_8 = arith.constant dense<0.000000e+00> : vector<2x10xf32>
    %9 = tpu.matmul %7, %8, %cst_8 {dimension_numbers = #tpu.dot_dimension_numbers<[1], [0], [0], [1], [0, 0, 1, 1], [], []>} : vector<2x50xf32>, vector<50x10xf32>, vector<2x10xf32> -> vector<2x10xf32>
    %c0_9 = arith.constant 0 : index
    %c0_10 = arith.constant 0 : index
    %10 = vector.load %arg5[%c0_9, %c0_10] : memref<1x10xf32, #tpu.memory_space<vmem>>, vector<1x10xf32>
    %11 = vector.broadcast %10 : vector<1x10xf32> to vector<2x10xf32>
    %12 = arith.addf %9, %11 : vector<2x10xf32>
    %cst_11 = arith.constant dense<0xFF800000> : vector<2xf32>
    %13 = vector.multi_reduction <maximumf>, %12, %cst_11 [1] : vector<2x10xf32> to vector<2xf32>
    %14 = vector.shape_cast %13 : vector<2xf32> to vector<2x1xf32>
    %15 = vector.broadcast %14 : vector<2x1xf32> to vector<2x10xf32>
    %16 = arith.subf %12, %15 : vector<2x10xf32>
    %17 = math.exp %16 : vector<2x10xf32>
    %cst_12 = arith.constant dense<0.000000e+00> : vector<2xf32>
    %18 = vector.multi_reduction <add>, %17, %cst_12 [1] : vector<2x10xf32> to vector<2xf32>
    %19 = vector.shape_cast %18 : vector<2xf32> to vector<2x1xf32>
    %20 = math.log %19 : vector<2x1xf32>
    %21 = vector.broadcast %20 : vector<2x1xf32> to vector<2x10xf32>
    %22 = arith.subf %16, %21 : vector<2x10xf32>
    %c0_13 = arith.constant 0 : index
    %c0_14 = arith.constant 0 : index
    %23 = vector.load %arg6[%c0_13, %c0_14] : memref<2x10xf32, #tpu.memory_space<vmem>>, vector<2x10xf32>
    tpu.vector_store %arg6[%c0_13, %c0_14], %22 {strides = array<i32>} : memref<2x10xf32, #tpu.memory_space<vmem>>, vector<2x10xf32>,
    return
  }
  func.func @transform_0(%arg0: i32) -> (i32, i32) {
    %c0_i32 = arith.constant 0 : i32
    %c0_i32_0 = arith.constant 0 : i32
    %c0_i32_1 = arith.constant 0 : i32
    return %c0_i32, %c0_i32_0 : i32, i32
  }
  func.func @transform_1(%arg0: i32) -> (i32, i32) {
    %c0_i32 = arith.constant 0 : i32
    %c0_i32_0 = arith.constant 0 : i32
    %c0_i32_1 = arith.constant 0 : i32
    return %c0_i32, %c0_i32_0 : i32, i32
  }
  func.func @transform_2(%arg0: i32) -> (i32, i32) {
    %c0_i32 = arith.constant 0 : i32
    %c0_i32_0 = arith.constant 0 : i32
    %c0_i32_1 = arith.constant 0 : i32
    return %c0_i32, %c0_i32_0 : i32, i32
  }
  func.func @transform_3(%arg0: i32) -> (i32, i32) {
    %c0_i32 = arith.constant 0 : i32
    %c0_i32_0 = arith.constant 0 : i32
    %c0_i32_1 = arith.constant 0 : i32
    return %c0_i32, %c0_i32_0 : i32, i32
  }
  func.func @transform_4(%arg0: i32) -> (i32, i32) {
    %c0_i32 = arith.constant 0 : i32
    %c0_i32_0 = arith.constant 0 : i32
    %c0_i32_1 = arith.constant 0 : i32
    return %c0_i32, %c0_i32_0 : i32, i32
  }
  func.func @transform_5(%arg0: i32) -> (i32, i32) {
    %c0_i32 = arith.constant 0 : i32
    %c0_i32_0 = arith.constant 0 : i32
    %c0_i32_1 = arith.constant 0 : i32
    return %c0_i32, %c0_i32_0 : i32, i32
  }
}

</mosaic_0001>

<llo_original>
// kernel: net_forward.3
$region0: #{net_forward.3}
  #allocation0 [shape = 'u32[]', space=smem, size = 0x4, offset = 0x4, fixed_abs, tag = 'smem constant byte address 0x4 - core index']
  #allocation1 [shape = 'u32[144,128]{1,0:T(1,128)}', space=vmem, size = 0x12000, scoped, tag = 'internal scratch']
  %s0 = inlined_call_operand.vmem [shape: f32[2,320], index: 0, kind: input, shape index: {}]
  %s1 = inlined_call_operand.vmem [shape: f32[320,50], index: 1, kind: input, shape index: {}]
  %s2 = inlined_call_operand.vmem [shape: f32[1,50], index: 2, kind: input, shape index: {}]
  %s3 = inlined_call_operand.vmem [shape: f32[50,10], index: 3, kind: input, shape index: {}]
  %s4 = inlined_call_operand.vmem [shape: f32[1,10], index: 4, kind: input, shape index: {}]
  %s5 = inlined_call_operand.hbm [shape: f32[2,10], index: 5, kind: output, shape index: {}]
  %s6 = sld [smem:[#allocation0]]
  $region30: #{net_forward.3} parent=0
    _
  %s8 = ssub.s32 1, %s6
  %s9 = scalar_select 0, %s8, %s6
  $region1: #{net_forward.3} parent=0
    #allocation2 [shape = 'u8[1024]{0}', space=vmem, size = 0x400, scoped, tag = 'output window, operand 0, single buffered']
    #allocation3 [shape = 's32[1]{0}', space=sflag, size = 0x4, scoped, tag = 'scoped memory for net_forward.3']
    %10 = vsyncpa [#allocation3], 0
    // Predicated region
    $region2: #{net_forward.3} parent=1 // pred_check
      _
    $region3: #{net_forward.3} parent=1 // pred_check_branch
      %12 = sbr.rel (0) target = $region5
    $region4: #{net_forward.3} parent=1 // pred_region
      _
    $region5: #{net_forward.3} parent=1 // pred_fallthru
      _
    // Predicated region
    $region6: #{net_forward.3} parent=1 // pred_check
      _
    $region7: #{net_forward.3} parent=1 // pred_check_branch
      %14 = sbr.rel (0) target = $region9
    $region8: #{net_forward.3} parent=1 // pred_region
      _
    $region9: #{net_forward.3} parent=1 // pred_fallthru
      _
    // Predicated region
    $region10: #{net_forward.3} parent=1 // pred_check
      _
    $region11: #{net_forward.3} parent=1 // pred_check_branch
      %16 = sbr.rel (0) target = $region13
    $region12: #{net_forward.3} parent=1 // pred_region
      _
    $region13: #{net_forward.3} parent=1 // pred_fallthru
      _
    // Predicated region
    $region14: #{net_forward.3} parent=1 // pred_check
      _
    $region15: #{net_forward.3} parent=1 // pred_check_branch
      %18 = sbr.rel (0) target = $region17
    $region16: #{net_forward.3} parent=1 // pred_region
      _
    $region17: #{net_forward.3} parent=1 // pred_fallthru
      _
    // Predicated region
    $region18: #{net_forward.3} parent=1 // pred_check
      _
    $region19: #{net_forward.3} parent=1 // pred_check_branch
      %20 = sbr.rel (0) target = $region21
    $region20: #{net_forward.3} parent=1 // pred_region
      _
    $region21: #{net_forward.3} parent=1 // pred_fallthru
      _
    %v21 = vld [vmem:[%s0] sm:$0x3f]
    %v22 = vld [vmem:[%s1] sm:$0xff]
    %v23 = vld [vmem:[%s1 + $0x8] sm:$0xff]
    %v24 = vld [vmem:[%s1 + $0x10] sm:$0xff]
    %v25 = vld [vmem:[%s1 + $0x18] sm:$0xff]
    %v26 = vld [vmem:[%s1 + $0x20] sm:$0xff]
    %v27 = vld [vmem:[%s1 + $0x28] sm:$0xff]
    %v28 = vld [vmem:[%s1 + $0x30] sm:$0xff]
    %v29 = vld [vmem:[%s1 + $0x38] sm:$0xff]
    %v30 = vld [vmem:[%s1 + $0x40] sm:$0xff]
    %v31 = vld [vmem:[%s1 + $0x48] sm:$0xff]
    %v32 = vld [vmem:[%s1 + $0x50] sm:$0xff]
    %v33 = vld [vmem:[%s1 + $0x58] sm:$0xff]
    %v34 = vld [vmem:[%s1 + $0x60] sm:$0xff]
    %v35 = vld [vmem:[%s1 + $0x68] sm:$0xff]
    %v36 = vld [vmem:[%s1 + $0x70] sm:$0xff]
    %v37 = vld [vmem:[%s1 + $0x78] sm:$0xff]
    %v38 = vld [vmem:[%s1 + $0x80] sm:$0xff]
    %v39 = vld [vmem:[%s1 + $0x88] sm:$0xff]
    %v40 = vld [vmem:[%s1 + $0x90] sm:$0xff]
    %v41 = vld [vmem:[%s1 + $0x98] sm:$0xff]
    %v42 = vld [vmem:[%s1 + $0xa0] sm:$0xff]
    %v43 = vld [vmem:[%s1 + $0xa8] sm:$0xff]
    %v44 = vld [vmem:[%s1 + $0xb0] sm:$0xff]
    %v45 = vld [vmem:[%s1 + $0xb8] sm:$0xff]
    %v46 = vld [vmem:[%s1 + $0xc0] sm:$0xff]
    %v47 = vld [vmem:[%s1 + $0xc8] sm:$0xff]
    %v48 = vld [vmem:[%s1 + $0xd0] sm:$0xff]
    %v49 = vld [vmem:[%s1 + $0xd8] sm:$0xff]
    %v50 = vld [vmem:[%s1 + $0xe0] sm:$0xff]
    %v51 = vld [vmem:[%s1 + $0xe8] sm:$0xff]
    %v52 = vld [vmem:[%s1 + $0xf0] sm:$0xff]
    %v53 = vld [vmem:[%s1 + $0xf8] sm:$0xff]
    %v54 = vld [vmem:[%s1 + $0x100] sm:$0xff]
    %v55 = vld [vmem:[%s1 + $0x108] sm:$0xff]
    %v56 = vld [vmem:[%s1 + $0x110] sm:$0xff]
    %v57 = vld [vmem:[%s1 + $0x118] sm:$0xff]
    %v58 = vld [vmem:[%s1 + $0x120] sm:$0xff]
    %v59 = vld [vmem:[%s1 + $0x128] sm:$0xff]
    %v60 = vld [vmem:[%s1 + $0x130] sm:$0xff]
    %v61 = vld [vmem:[%s1 + $0x138] sm:$0xff]
    %v62 = vld [vmem:[%s2] sm:$0x1]
    %v64 = vlaneseq
    %v65 = vshrl.u32 %v64, 7
    %v66 = vsub.s32 0, %v65
    %v67 = vrot.slane %v62, %v66
    %v70 = vcombine.high %v21, %v21
    %v72 = vunpack.c.l.s4 1983009808
    %v73 = vunpack.c.0.s8 %v72
    %v74 = vlaneseq
    %v75 = vshrl.u32 %v74, 7
    %v76 = vsub.s32 %v73, %v75
    %v77 = vrot.slane %v21, %v76
    %v79 = vunpack.c.l.s4 1983009808
    %v80 = vunpack.c.0.s8 %v79
    %v81 = vlaneseq
    %v82 = vshrl.u32 %v81, 7
    %v83 = vsub.s32 %v80, %v82
    %v84 = vrot.slane %v70, %v83
    %v85 = vcombine.high %v77, %v77
    %vm88 = vcmask 523264
    %v89 = vsel %vm88, %v84, 0
    %91 = vmatprep.subr.mxu0 0.0
    %92 = vmatpush1.msra.mxu0 %v37
    %93 = vmatprep.subr.mxu0 0.0
    %94 = vmatpush1.msra.mxu0 %v36
    %95 = vmatprep.subr.mxu0 0.0
    %96 = vmatpush1.msra.mxu0 %v35
    %97 = vmatprep.subr.mxu0 0.0
    %98 = vmatpush1.msra.mxu0 %v34
    %99 = vmatprep.subr.mxu0 0.0
    %100 = vmatpush1.msra.mxu0 %v33
    %101 = vmatprep.subr.mxu0 0.0
    %102 = vmatpush1.msra.mxu0 %v32
    %103 = vmatprep.subr.mxu0 0.0
    %104 = vmatpush1.msra.mxu0 %v31
    %105 = vmatprep.subr.mxu0 0.0
    %106 = vmatpush1.msra.mxu0 %v30
    %107 = vmatprep.subr.mxu0 0.0
    %108 = vmatpush1.msra.mxu0 %v29
    %109 = vmatprep.subr.mxu0 0.0
    %110 = vmatpush1.msra.mxu0 %v28
    %111 = vmatprep.subr.mxu0 0.0
    %112 = vmatpush1.msra.mxu0 %v27
    %113 = vmatprep.subr.mxu0 0.0
    %114 = vmatpush1.msra.mxu0 %v26
    %115 = vmatprep.subr.mxu0 0.0
    %116 = vmatpush1.msra.mxu0 %v25
    %117 = vmatprep.subr.mxu0 0.0
    %118 = vmatpush1.msra.mxu0 %v24
    %119 = vmatprep.subr.mxu0 0.0
    %120 = vmatpush1.msra.mxu0 %v23
    %121 = vmatprep.subr.mxu0 0.0
    %122 = vmatpush1.msra.mxu0 %v22
    %123 = vmatprep.subr.mxu0 0.0
    %124 = vmatpush2.msra.mxu0 %v53
    %125 = vmatprep.subr.mxu0 0.0
    %126 = vmatpush2.msra.mxu0 %v52
    %127 = vmatprep.subr.mxu0 0.0
    %128 = vmatpush2.msra.mxu0 %v51
    %129 = vmatprep.subr.mxu0 0.0
    %130 = vmatpush2.msra.mxu0 %v50
    %131 = vmatprep.subr.mxu0 0.0
    %132 = vmatpush2.msra.mxu0 %v49
    %133 = vmatprep.subr.mxu0 0.0
    %134 = vmatpush2.msra.mxu0 %v48
    %135 = vmatprep.subr.mxu0 0.0
    %136 = vmatpush2.msra.mxu0 %v47
    %137 = vmatprep.subr.mxu0 0.0
    %138 = vmatpush2.msra.mxu0 %v46
    %139 = vmatprep.subr.mxu0 0.0
    %140 = vmatpush2.msra.mxu0 %v45
    %141 = vmatprep.subr.mxu0 0.0
    %142 = vmatpush2.msra.mxu0 %v44
    %143 = vmatprep.subr.mxu0 0.0
    %144 = vmatpush2.msra.mxu0 %v43
    %145 = vmatprep.subr.mxu0 0.0
    %146 = vmatpush2.msra.mxu0 %v42
    %147 = vmatprep.subr.mxu0 0.0
    %148 = vmatpush2.msra.mxu0 %v41
    %149 = vmatprep.subr.mxu0 0.0
    %150 = vmatpush2.msra.mxu0 %v40
    %151 = vmatprep.subr.mxu0 0.0
    %152 = vmatpush2.msra.mxu0 %v39
    %153 = vmatprep.subr.mxu0 0.0
    %154 = vmatpush2.msra.mxu0 %v38
    %155 = vmatprep.mubr.f32.mxu0 %v85
    %156 = vmatmul.mubr.f32.gmra.mxu0 %v77
    %v157 = vpop.f32.mrf.mxu0
    %v158 = vadd.f32 %v67, %v157
    %v159 = vpop.f32.mrf.mxu0
    %160 = vdwg.mxu0
    %161 = vmatprep.subr.mxu0 0.0
    %162 = vmatpush1.msra.mxu0 0.0
    %163 = vmatprep.subr.mxu0 0.0
    %164 = vmatpush1.msra.mxu0 0.0
    %165 = vmatprep.subr.mxu0 0.0
    %166 = vmatpush1.msra.mxu0 0.0
    %167 = vmatprep.subr.mxu0 0.0
    %168 = vmatpush1.msra.mxu0 0.0
    %169 = vmatprep.subr.mxu0 0.0
    %170 = vmatpush1.msra.mxu0 0.0
    %171 = vmatprep.subr.mxu0 0.0
    %172 = vmatpush1.msra.mxu0 0.0
    %173 = vmatprep.subr.mxu0 0.0
    %174 = vmatpush1.msra.mxu0 0.0
    %175 = vmatprep.subr.mxu0 0.0
    %176 = vmatpush1.msra.mxu0 0.0
    %177 = vmatprep.subr.mxu0 0.0
    %178 = vmatpush1.msra.mxu0 %v61
    %179 = vmatprep.subr.mxu0 0.0
    %180 = vmatpush1.msra.mxu0 %v60
    %181 = vmatprep.subr.mxu0 0.0
    %182 = vmatpush1.msra.mxu0 %v59
    %183 = vmatprep.subr.mxu0 0.0
    %184 = vmatpush1.msra.mxu0 %v58
    %185 = vmatprep.subr.mxu0 0.0
    %186 = vmatpush1.msra.mxu0 %v57
    %187 = vmatprep.subr.mxu0 0.0
    %188 = vmatpush1.msra.mxu0 %v56
    %189 = vmatprep.subr.mxu0 0.0
    %190 = vmatpush1.msra.mxu0 %v55
    %191 = vmatprep.subr.mxu0 0.0
    %192 = vmatpush1.msra.mxu0 %v54
    %193 = vmatprep.subr.mxu0 0.0
    %194 = vmatpush2.msra.mxu0 0.0
    %195 = vmatprep.subr.mxu0 0.0
    %196 = vmatpush2.msra.mxu0 0.0
    %197 = vmatprep.subr.mxu0 0.0
    %198 = vmatpush2.msra.mxu0 0.0
    %199 = vmatprep.subr.mxu0 0.0
    %200 = vmatpush2.msra.mxu0 0.0
    %201 = vmatprep.subr.mxu0 0.0
    %202 = vmatpush2.msra.mxu0 0.0
    %203 = vmatprep.subr.mxu0 0.0
    %204 = vmatpush2.msra.mxu0 0.0
    %205 = vmatprep.subr.mxu0 0.0
    %206 = vmatpush2.msra.mxu0 0.0
    %207 = vmatprep.subr.mxu0 0.0
    %208 = vmatpush2.msra.mxu0 0.0
    %209 = vmatprep.subr.mxu0 0.0
    %210 = vmatpush2.msra.mxu0 0.0
    %211 = vmatprep.subr.mxu0 0.0
    %212 = vmatpush2.msra.mxu0 0.0
    %213 = vmatprep.subr.mxu0 0.0
    %214 = vmatpush2.msra.mxu0 0.0
    %215 = vmatprep.subr.mxu0 0.0
    %216 = vmatpush2.msra.mxu0 0.0
    %217 = vmatprep.subr.mxu0 0.0
    %218 = vmatpush2.msra.mxu0 0.0
    %219 = vmatprep.subr.mxu0 0.0
    %220 = vmatpush2.msra.mxu0 0.0
    %221 = vmatprep.subr.mxu0 0.0
    %222 = vmatpush2.msra.mxu0 0.0
    %223 = vmatprep.subr.mxu0 0.0
    %224 = vmatpush2.msra.mxu0 0.0
    %225 = vmatprep.mubr.f32.mxu0 0.0
    %226 = vmatmul.mubr.f32.gmra.mxu0 %v89
    %v227 = vpop.f32.mrf.mxu0
    %v228 = vadd.f32 %v158, %v227
    %v229 = vpop.f32.mrf.mxu0
    %230 = vdwg.mxu0
    %v231 = vmax.f32 %v228, 0.0
    %v232 = vld [vmem:[%s3] sm:$0xff]
    %v233 = vld [vmem:[%s3 + $0x8] sm:$0xff]
    %v234 = vld [vmem:[%s3 + $0x10] sm:$0xff]
    %v235 = vld [vmem:[%s3 + $0x18] sm:$0xff]
    %v236 = vld [vmem:[%s3 + $0x20] sm:$0xff]
    %v237 = vld [vmem:[%s3 + $0x28] sm:$0xff]
    %v238 = vld [vmem:[%s3 + $0x30] sm:$0x3]
    %v239 = vld [vmem:[%s4] sm:$0x1]
    %v241 = vlaneseq
    %v242 = vshrl.u32 %v241, 7
    %v243 = vsub.s32 0, %v242
    %v244 = vrot.slane %v239, %v243
    %vm246 = vcmask 408576
    %v248 = vsel %vm246, %v231, 0
    %vm250 = vcmask 1041408
    %v252 = vsel %vm250, %v238, 0
    %254 = vmatprep.subr.mxu0 0.0
    %255 = vmatpush1.msra.mxu0 0.0
    %256 = vmatprep.subr.mxu0 0.0
    %257 = vmatpush1.msra.mxu0 0.0
    %258 = vmatprep.subr.mxu0 0.0
    %259 = vmatpush1.msra.mxu0 0.0
    %260 = vmatprep.subr.mxu0 0.0
    %261 = vmatpush1.msra.mxu0 0.0
    %262 = vmatprep.subr.mxu0 0.0
    %263 = vmatpush1.msra.mxu0 0.0
    %264 = vmatprep.subr.mxu0 0.0
    %265 = vmatpush1.msra.mxu0 0.0
    %266 = vmatprep.subr.mxu0 0.0
    %267 = vmatpush1.msra.mxu0 0.0
    %268 = vmatprep.subr.mxu0 0.0
    %269 = vmatpush1.msra.mxu0 0.0
    %270 = vmatprep.subr.mxu0 0.0
    %271 = vmatpush1.msra.mxu0 0.0
    %272 = vmatprep.subr.mxu0 0.0
    %273 = vmatpush1.msra.mxu0 %v252
    %274 = vmatprep.subr.mxu0 0.0
    %275 = vmatpush1.msra.mxu0 %v237
    %276 = vmatprep.subr.mxu0 0.0
    %277 = vmatpush1.msra.mxu0 %v236
    %278 = vmatprep.subr.mxu0 0.0
    %279 = vmatpush1.msra.mxu0 %v235
    %280 = vmatprep.subr.mxu0 0.0
    %281 = vmatpush1.msra.mxu0 %v234
    %282 = vmatprep.subr.mxu0 0.0
    %283 = vmatpush1.msra.mxu0 %v233
    %284 = vmatprep.subr.mxu0 0.0
    %285 = vmatpush1.msra.mxu0 %v232
    %286 = vmatprep.subr.mxu0 0.0
    %287 = vmatpush2.msra.mxu0 0.0
    %288 = vmatprep.subr.mxu0 0.0
    %289 = vmatpush2.msra.mxu0 0.0
    %290 = vmatprep.subr.mxu0 0.0
    %291 = vmatpush2.msra.mxu0 0.0
    %292 = vmatprep.subr.mxu0 0.0
    %293 = vmatpush2.msra.mxu0 0.0
    %294 = vmatprep.subr.mxu0 0.0
    %295 = vmatpush2.msra.mxu0 0.0
    %296 = vmatprep.subr.mxu0 0.0
    %297 = vmatpush2.msra.mxu0 0.0
    %298 = vmatprep.subr.mxu0 0.0
    %299 = vmatpush2.msra.mxu0 0.0
    %300 = vmatprep.subr.mxu0 0.0
    %301 = vmatpush2.msra.mxu0 0.0
    %302 = vmatprep.subr.mxu0 0.0
    %303 = vmatpush2.msra.mxu0 0.0
    %304 = vmatprep.subr.mxu0 0.0
    %305 = vmatpush2.msra.mxu0 0.0
    %306 = vmatprep.subr.mxu0 0.0
    %307 = vmatpush2.msra.mxu0 0.0
    %308 = vmatprep.subr.mxu0 0.0
    %309 = vmatpush2.msra.mxu0 0.0
    %310 = vmatprep.subr.mxu0 0.0
    %311 = vmatpush2.msra.mxu0 0.0
    %312 = vmatprep.subr.mxu0 0.0
    %313 = vmatpush2.msra.mxu0 0.0
    %314 = vmatprep.subr.mxu0 0.0
    %315 = vmatpush2.msra.mxu0 0.0
    %316 = vmatprep.subr.mxu0 0.0
    %317 = vmatpush2.msra.mxu0 0.0
    %318 = vmatprep.mubr.f32.mxu0 0.0
    %319 = vmatmul.mubr.f32.gmra.mxu0 %v248
    %v320 = vpop.f32.mrf.mxu0
    %v321 = vadd.f32 %v244, %v320
    %v322 = vpop.f32.mrf.mxu0
    %323 = vdwg.mxu0
    %vm324 = vcmask 74752
    %v325 = vsel %vm324, %v321, -inf
    %326 = vmax.xlane.f32.xlu0 %v325
    %v327 = vpop.xlane.xlu0 %326
    %v328 = vsub.f32 %v321, %v327
    %v329 = vmul.f32 %v328, 1.442695
    %v330 = vpow.pop %v329
    %v331 = vsel %vm324, %v330, 0.0
    %332 = vadd.xlane.f32.xlu0 %v331
    %v333 = vpop.xlane.xlu0 %332
    %v334 = vlog2.pop %v333
    %v335 = vmul.f32 %v334, 0.6931472
    %v336 = vsub.f32 %v328, %v335
    %337 = vst.msk [vmem:[#allocation2] sm:$0x3] %vm324, %v336
    // Predicated region
    $region22: #{net_forward.3} parent=1 // pred_check
      _
    $region23: #{net_forward.3} parent=1 // pred_check_branch
      %339 = sbr.rel (0) target = $region25
    $region24: #{net_forward.3} parent=1 // pred_region
      %s341 = ssub.s32 32, 32
      %342 = vsyncadd [#allocation3], %s341
      %s344 = sshll.u32 [#allocation2], 4
      %s345 = int_to_ptr.vmem [resolvable:$true] %s344
      %347 = dma.vmem_to_hbm [thread:$0]  %s345, 32, %s5, [#allocation3]
    $region25: #{net_forward.3} parent=1 // pred_fallthru
      _
    // Predicated region
    $region26: #{net_forward.3} parent=1 // pred_check
      _
    $region27: #{net_forward.3} parent=1 // pred_check_branch
      %349 = sbr.rel (0) target = $region29
    $region28: #{net_forward.3} parent=1 // pred_region
      %350 = dma.done [#allocation3], 32
    $region29: #{net_forward.3} parent=1 // pred_fallthru
      _
    %351 = vsyncpa [#allocation3], 1

// kernel: net_forward.2
$region0: #{net_forward.2}
  #allocation0 [shape = 'u32[]', space=smem, size = 0x4, offset = 0x4, fixed_abs, tag = 'smem constant byte address 0x4 - core index']
  #allocation1 [shape = 'u32[144,128]{1,0:T(1,128)}', space=vmem, size = 0x12000, scoped, tag = 'internal scratch']
  %s0 = inlined_call_operand.vmem [shape: f32[25,1152], index: 0, kind: input, shape index: {}]
  %s1 = inlined_call_operand.vmem [shape: f32[10,25], index: 1, kind: input, shape index: {}]
  %s2 = inlined_call_operand.vmem [shape: f32[10,1], index: 2, kind: input, shape index: {}]
  %s3 = inlined_call_operand.vmem [shape: f32[25,20,10], index: 3, kind: input, shape index: {}]
  %s4 = inlined_call_operand.vmem [shape: f32[20,1], index: 4, kind: input, shape index: {}]
  %s5 = inlined_call_operand.vmem [shape: f32[25,288,128], index: 5, kind: input, shape index: {}]
  %s6 = inlined_call_operand.vmem [shape: f32[20,32], index: 6, kind: output, shape index: {}]
  %s7 = sld [smem:[#allocation0]]
  $region34: #{net_forward.2} parent=0
    _
  %s9 = ssub.s32 1, %s7
  %s10 = scalar_select 0, %s9, %s7
  // Predicated region
  $region2: #{net_forward.2} parent=0 // pred_check
    _
  $region3: #{net_forward.2} parent=0 // pred_check_branch
    %12 = sbr.rel (0) target = $region5
  $region4: #{net_forward.2} parent=0 // pred_region
    _
  $region5: #{net_forward.2} parent=0 // pred_fallthru
    _
  // Predicated region
  $region6: #{net_forward.2} parent=0 // pred_check
    _
  $region7: #{net_forward.2} parent=0 // pred_check_branch
    %14 = sbr.rel (0) target = $region9
  $region8: #{net_forward.2} parent=0 // pred_region
    _
  $region9: #{net_forward.2} parent=0 // pred_fallthru
    _
  // Predicated region
  $region10: #{net_forward.2} parent=0 // pred_check
    _
  $region11: #{net_forward.2} parent=0 // pred_check_branch
    %16 = sbr.rel (0) target = $region13
  $region12: #{net_forward.2} parent=0 // pred_region
    _
  $region13: #{net_forward.2} parent=0 // pred_fallthru
    _
  // Predicated region
  $region14: #{net_forward.2} parent=0 // pred_check
    _
  $region15: #{net_forward.2} parent=0 // pred_check_branch
    %18 = sbr.rel (0) target = $region17
  $region16: #{net_forward.2} parent=0 // pred_region
    _
  $region17: #{net_forward.2} parent=0 // pred_fallthru
    _
  // Predicated region
  $region18: #{net_forward.2} parent=0 // pred_check
    _
  $region19: #{net_forward.2} parent=0 // pred_check_branch
    %20 = sbr.rel (0) target = $region21
  $region20: #{net_forward.2} parent=0 // pred_region
    _
  $region21: #{net_forward.2} parent=0 // pred_fallthru
    _
  // Predicated region
  $region22: #{net_forward.2} parent=0 // pred_check
    _
  $region23: #{net_forward.2} parent=0 // pred_check_branch
    %22 = sbr.rel (0) target = $region25
  $region24: #{net_forward.2} parent=0 // pred_region
    _
  $region25: #{net_forward.2} parent=0 // pred_fallthru
    _
  %v23 = vld [vmem:[%s1] sm:$0xff]
  %v24 = vld [vmem:[%s1 + $0x8] sm:$0x3]
  %v25 = vld [vmem:[%s0] sm:$0xff]
  %v26 = vld [vmem:[%s0 + $0x8] sm:$0xff]
  %v27 = vld [vmem:[%s0 + $0x10] sm:$0xff]
  %v28 = vld [vmem:[%s0 + $0x18] sm:$0xff]
  %v29 = vld [vmem:[%s0 + $0x20] sm:$0xff]
  %v30 = vld [vmem:[%s0 + $0x28] sm:$0xff]
  %v31 = vld [vmem:[%s0 + $0x30] sm:$0xff]
  %v32 = vld [vmem:[%s0 + $0x38] sm:$0xff]
  %v33 = vld [vmem:[%s0 + $0x40] sm:$0xff]
  %v34 = vld [vmem:[%s0 + $0x48] sm:$0xff]
  %v35 = vld [vmem:[%s0 + $0x50] sm:$0xff]
  %v36 = vld [vmem:[%s0 + $0x58] sm:$0xff]
  %v37 = vld [vmem:[%s0 + $0x60] sm:$0xff]
  %v38 = vld [vmem:[%s0 + $0x68] sm:$0xff]
  %v39 = vld [vmem:[%s0 + $0x70] sm:$0xff]
  %v40 = vld [vmem:[%s0 + $0x78] sm:$0xff]
  %v41 = vld [vmem:[%s0 + $0x80] sm:$0xff]
  %v42 = vld [vmem:[%s0 + $0x88] sm:$0xff]
  %v43 = vld [vmem:[%s0 + $0x90] sm:$0xff]
  %v44 = vld [vmem:[%s0 + $0x98] sm:$0xff]
  %v45 = vld [vmem:[%s0 + $0xa0] sm:$0xff]
  %v46 = vld [vmem:[%s0 + $0xa8] sm:$0xff]
  %v47 = vld [vmem:[%s0 + $0xb0] sm:$0xff]
  %v48 = vld [vmem:[%s0 + $0xb8] sm:$0xff]
  %v49 = vld [vmem:[%s0 + $0xc0] sm:$0xff]
  %v50 = vld [vmem:[%s0 + $0xc8] sm:$0xff]
  %v51 = vld [vmem:[%s0 + $0xd0] sm:$0xff]
  %v52 = vld [vmem:[%s0 + $0xd8] sm:$0x1]
  %v53 = vld [vmem:[%s0 + $0xe0] sm:$0x1]
  %v54 = vld [vmem:[%s0 + $0xe8] sm:$0x1]
  %v55 = vld [vmem:[%s0 + $0xf0] sm:$0x1]
  %v56 = vld [vmem:[%s0 + $0xf8] sm:$0x1]
  %v57 = vld [vmem:[%s0 + $0x100] sm:$0x1]
  %v58 = vld [vmem:[%s0 + $0x108] sm:$0x1]
  %v59 = vld [vmem:[%s0 + $0x110] sm:$0x1]
  %v60 = vld [vmem:[%s0 + $0x118] sm:$0x1]
  %v61 = vld [vmem:[%s2] sm:$0xff]
  %v62 = vld [vmem:[%s2 + $0x8] sm:$0x3]
  %64 = vset.pattern.permute.xlu0 0
  %65 = vperm.xlu0 %64, %v61
  %v66 = vpop.permute.xlu0 %65
  %69 = vset.pattern.permute.xlu0 0
  %70 = vperm.xlu0 %69, %v62
  %v71 = vpop.permute.xlu0 %70
  %vm73 = vcmask 203776
  %v75 = vsel %vm73, %v23, 0
  %v78 = vsel %vm73, %v24, 0
  %vm80 = vcmask 1040384
  %v82 = vsel %vm80, %v52, 0
  %v85 = vsel %vm80, %v53, 0
  %v88 = vsel %vm80, %v54, 0
  %v91 = vsel %vm80, %v55, 0
  %v94 = vsel %vm80, %v56, 0
  %v97 = vsel %vm80, %v57, 0
  %v100 = vsel %vm80, %v58, 0
  %v103 = vsel %vm80, %v59, 0
  %v106 = vsel %vm80, %v60, 0
  %108 = vmatprep.subr.mxu0 0.0
  %109 = vmatpush1.msra.mxu0 0.0
  %110 = vmatprep.subr.mxu0 0.0
  %111 = vmatpush1.msra.mxu0 0.0
  %112 = vmatprep.subr.mxu0 0.0
  %113 = vmatpush1.msra.mxu0 0.0
  %114 = vmatprep.subr.mxu0 0.0
  %115 = vmatpush1.msra.mxu0 0.0
  %116 = vmatprep.subr.mxu0 0.0
  %117 = vmatpush1.msra.mxu0 0.0
  %118 = vmatprep.subr.mxu0 0.0
  %119 = vmatpush1.msra.mxu0 0.0
  %120 = vmatprep.subr.mxu0 0.0
  %121 = vmatpush1.msra.mxu0 0.0
  %122 = vmatprep.subr.mxu0 0.0
  %123 = vmatpush1.msra.mxu0 0.0
  %124 = vmatprep.subr.mxu0 0.0
  %125 = vmatpush1.msra.mxu0 0.0
  %126 = vmatprep.subr.mxu0 0.0
  %127 = vmatpush1.msra.mxu0 0.0
  %128 = vmatprep.subr.mxu0 0.0
  %129 = vmatpush1.msra.mxu0 0.0
  %130 = vmatprep.subr.mxu0 0.0
  %131 = vmatpush1.msra.mxu0 0.0
  %132 = vmatprep.subr.mxu0 %v85
  %133 = vmatpush1.msra.mxu0 %v82
  %134 = vmatprep.subr.mxu0 %v44
  %135 = vmatpush1.msra.mxu0 %v43
  %136 = vmatprep.subr.mxu0 %v35
  %137 = vmatpush1.msra.mxu0 %v34
  %138 = vmatprep.subr.mxu0 %v26
  %139 = vmatpush1.msra.mxu0 %v25
  %140 = vmatprep.subr.mxu0 0.0
  %141 = vmatpush2.msra.mxu0 0.0
  %142 = vmatprep.subr.mxu0 0.0
  %143 = vmatpush2.msra.mxu0 0.0
  %144 = vmatprep.subr.mxu0 0.0
  %145 = vmatpush2.msra.mxu0 0.0
  %146 = vmatprep.subr.mxu0 0.0
  %147 = vmatpush2.msra.mxu0 0.0
  %148 = vmatprep.subr.mxu0 0.0
  %149 = vmatpush2.msra.mxu0 0.0
  %150 = vmatprep.subr.mxu0 0.0
  %151 = vmatpush2.msra.mxu0 0.0
  %152 = vmatprep.subr.mxu0 0.0
  %153 = vmatpush2.msra.mxu0 0.0
  %154 = vmatprep.subr.mxu0 0.0
  %155 = vmatpush2.msra.mxu0 0.0
  %156 = vmatprep.subr.mxu0 0.0
  %157 = vmatpush2.msra.mxu0 0.0
  %158 = vmatprep.subr.mxu0 0.0
  %159 = vmatpush2.msra.mxu0 0.0
  %160 = vmatprep.subr.mxu0 0.0
  %161 = vmatpush2.msra.mxu0 0.0
  %162 = vmatprep.subr.mxu0 0.0
  %163 = vmatpush2.msra.mxu0 0.0
  %164 = vmatprep.subr.mxu0 0.0
  %165 = vmatpush2.msra.mxu0 0.0
  %166 = vmatprep.subr.mxu0 0.0
  %167 = vmatpush2.msra.mxu0 0.0
  %168 = vmatprep.subr.mxu0 0.0
  %169 = vmatpush2.msra.mxu0 0.0
  %170 = vmatprep.subr.mxu0 0.0
  %171 = vmatpush2.msra.mxu0 0.0
  %172 = vmatprep.mubr.f32.mxu0 0.0
  %173 = vmatmul.mubr.f32.gmra.mxu0 %v75
  %v174 = vpop.f32.mrf.mxu0
  %v175 = vadd.f32 %v66, %v174
  %v176 = vpop.f32.mrf.mxu0
  %v177 = vadd.f32 %v66, %v176
  %178 = vmatprep.mubr.f32.mxu0 0.0
  %179 = vmatmul.mubr.f32.gmra.mxu0 %v78
  %v180 = vpop.f32.mrf.mxu0
  %v181 = vadd.f32 %v71, %v180
  %v182 = vpop.f32.mrf.mxu0
  %v183 = vadd.f32 %v71, %v182
  %184 = vdwg.mxu0
  %185 = vmatprep.subr.mxu0 0.0
  %186 = vmatpush1.msra.mxu0 0.0
  %187 = vmatprep.subr.mxu0 0.0
  %188 = vmatpush1.msra.mxu0 0.0
  %189 = vmatprep.subr.mxu0 0.0
  %190 = vmatpush1.msra.mxu0 0.0
  %191 = vmatprep.subr.mxu0 0.0
  %192 = vmatpush1.msra.mxu0 0.0
  %193 = vmatprep.subr.mxu0 0.0
  %194 = vmatpush1.msra.mxu0 0.0
  %195 = vmatprep.subr.mxu0 0.0
  %196 = vmatpush1.msra.mxu0 0.0
  %197 = vmatprep.subr.mxu0 0.0
  %198 = vmatpush1.msra.mxu0 0.0
  %199 = vmatprep.subr.mxu0 0.0
  %200 = vmatpush1.msra.mxu0 0.0
  %201 = vmatprep.subr.mxu0 0.0
  %202 = vmatpush1.msra.mxu0 0.0
  %203 = vmatprep.subr.mxu0 0.0
  %204 = vmatpush1.msra.mxu0 0.0
  %205 = vmatprep.subr.mxu0 0.0
  %206 = vmatpush1.msra.mxu0 0.0
  %207 = vmatprep.subr.mxu0 0.0
  %208 = vmatpush1.msra.mxu0 0.0
  %209 = vmatprep.subr.mxu0 %v91
  %210 = vmatpush1.msra.mxu0 %v88
  %211 = vmatprep.subr.mxu0 %v46
  %212 = vmatpush1.msra.mxu0 %v45
  %213 = vmatprep.subr.mxu0 %v37
  %214 = vmatpush1.msra.mxu0 %v36
  %215 = vmatprep.subr.mxu0 %v28
  %216 = vmatpush1.msra.mxu0 %v27
  %217 = vmatprep.subr.mxu0 0.0
  %218 = vmatpush2.msra.mxu0 0.0
  %219 = vmatprep.subr.mxu0 0.0
  %220 = vmatpush2.msra.mxu0 0.0
  %221 = vmatprep.subr.mxu0 0.0
  %222 = vmatpush2.msra.mxu0 0.0
  %223 = vmatprep.subr.mxu0 0.0
  %224 = vmatpush2.msra.mxu0 0.0
  %225 = vmatprep.subr.mxu0 0.0
  %226 = vmatpush2.msra.mxu0 0.0
  %227 = vmatprep.subr.mxu0 0.0
  %228 = vmatpush2.msra.mxu0 0.0
  %229 = vmatprep.subr.mxu0 0.0
  %230 = vmatpush2.msra.mxu0 0.0
  %231 = vmatprep.subr.mxu0 0.0
  %232 = vmatpush2.msra.mxu0 0.0
  %233 = vmatprep.subr.mxu0 0.0
  %234 = vmatpush2.msra.mxu0 0.0
  %235 = vmatprep.subr.mxu0 0.0
  %236 = vmatpush2.msra.mxu0 0.0
  %237 = vmatprep.subr.mxu0 0.0
  %238 = vmatpush2.msra.mxu0 0.0
  %239 = vmatprep.subr.mxu0 0.0
  %240 = vmatpush2.msra.mxu0 0.0
  %241 = vmatprep.subr.mxu0 0.0
  %242 = vmatpush2.msra.mxu0 0.0
  %243 = vmatprep.subr.mxu0 0.0
  %244 = vmatpush2.msra.mxu0 0.0
  %245 = vmatprep.subr.mxu0 0.0
  %246 = vmatpush2.msra.mxu0 0.0
  %247 = vmatprep.subr.mxu0 0.0
  %248 = vmatpush2.msra.mxu0 0.0
  %249 = vmatprep.mubr.f32.mxu0 0.0
  %250 = vmatmul.mubr.f32.gmra.mxu0 %v75
  %v251 = vpop.f32.mrf.mxu0
  %v252 = vadd.f32 %v66, %v251
  %v253 = vpop.f32.mrf.mxu0
  %v254 = vadd.f32 %v66, %v253
  %255 = vmatprep.mubr.f32.mxu0 0.0
  %256 = vmatmul.mubr.f32.gmra.mxu0 %v78
  %v257 = vpop.f32.mrf.mxu0
  %v258 = vadd.f32 %v71, %v257
  %v259 = vpop.f32.mrf.mxu0
  %v260 = vadd.f32 %v71, %v259
  %261 = vdwg.mxu0
  %262 = vmatprep.subr.mxu0 0.0
  %263 = vmatpush1.msra.mxu0 0.0
  %264 = vmatprep.subr.mxu0 0.0
  %265 = vmatpush1.msra.mxu0 0.0
  %266 = vmatprep.subr.mxu0 0.0
  %267 = vmatpush1.msra.mxu0 0.0
  %268 = vmatprep.subr.mxu0 0.0
  %269 = vmatpush1.msra.mxu0 0.0
  %270 = vmatprep.subr.mxu0 0.0
  %271 = vmatpush1.msra.mxu0 0.0
  %272 = vmatprep.subr.mxu0 0.0
  %273 = vmatpush1.msra.mxu0 0.0
  %274 = vmatprep.subr.mxu0 0.0
  %275 = vmatpush1.msra.mxu0 0.0
  %276 = vmatprep.subr.mxu0 0.0
  %277 = vmatpush1.msra.mxu0 0.0
  %278 = vmatprep.subr.mxu0 0.0
  %279 = vmatpush1.msra.mxu0 0.0
  %280 = vmatprep.subr.mxu0 0.0
  %281 = vmatpush1.msra.mxu0 0.0
  %282 = vmatprep.subr.mxu0 0.0
  %283 = vmatpush1.msra.mxu0 0.0
  %284 = vmatprep.subr.mxu0 0.0
  %285 = vmatpush1.msra.mxu0 0.0
  %286 = vmatprep.subr.mxu0 %v97
  %287 = vmatpush1.msra.mxu0 %v94
  %288 = vmatprep.subr.mxu0 %v48
  %289 = vmatpush1.msra.mxu0 %v47
  %290 = vmatprep.subr.mxu0 %v39
  %291 = vmatpush1.msra.mxu0 %v38
  %292 = vmatprep.subr.mxu0 %v30
  %293 = vmatpush1.msra.mxu0 %v29
  %294 = vmatprep.subr.mxu0 0.0
  %295 = vmatpush2.msra.mxu0 0.0
  %296 = vmatprep.subr.mxu0 0.0
  %297 = vmatpush2.msra.mxu0 0.0
  %298 = vmatprep.subr.mxu0 0.0
  %299 = vmatpush2.msra.mxu0 0.0
  %300 = vmatprep.subr.mxu0 0.0
  %301 = vmatpush2.msra.mxu0 0.0
  %302 = vmatprep.subr.mxu0 0.0
  %303 = vmatpush2.msra.mxu0 0.0
  %304 = vmatprep.subr.mxu0 0.0
  %305 = vmatpush2.msra.mxu0 0.0
  %306 = vmatprep.subr.mxu0 0.0
  %307 = vmatpush2.msra.mxu0 0.0
  %308 = vmatprep.subr.mxu0 0.0
  %309 = vmatpush2.msra.mxu0 0.0
  %310 = vmatprep.subr.mxu0 0.0
  %311 = vmatpush2.msra.mxu0 0.0
  %312 = vmatprep.subr.mxu0 0.0
  %313 = vmatpush2.msra.mxu0 0.0
  %314 = vmatprep.subr.mxu0 0.0
  %315 = vmatpush2.msra.mxu0 0.0
  %316 = vmatprep.subr.mxu0 0.0
  %317 = vmatpush2.msra.mxu0 0.0
  %318 = vmatprep.subr.mxu0 0.0
  %319 = vmatpush2.msra.mxu0 0.0
  %320 = vmatprep.subr.mxu0 0.0
  %321 = vmatpush2.msra.mxu0 0.0
  %322 = vmatprep.subr.mxu0 0.0
  %323 = vmatpush2.msra.mxu0 0.0
  %324 = vmatprep.subr.mxu0 0.0
  %325 = vmatpush2.msra.mxu0 0.0
  %326 = vmatprep.mubr.f32.mxu0 0.0
  %327 = vmatmul.mubr.f32.gmra.mxu0 %v75
  %v328 = vpop.f32.mrf.mxu0
  %v329 = vadd.f32 %v66, %v328
  %v330 = vpop.f32.mrf.mxu0
  %v331 = vadd.f32 %v66, %v330
  %332 = vmatprep.mubr.f32.mxu0 0.0
  %333 = vmatmul.mubr.f32.gmra.mxu0 %v78
  %v334 = vpop.f32.mrf.mxu0
  %v335 = vadd.f32 %v71, %v334
  %v336 = vpop.f32.mrf.mxu0
  %v337 = vadd.f32 %v71, %v336
  %338 = vdwg.mxu0
  %339 = vmatprep.subr.mxu0 0.0
  %340 = vmatpush1.msra.mxu0 0.0
  %341 = vmatprep.subr.mxu0 0.0
  %342 = vmatpush1.msra.mxu0 0.0
  %343 = vmatprep.subr.mxu0 0.0
  %344 = vmatpush1.msra.mxu0 0.0
  %345 = vmatprep.subr.mxu0 0.0
  %346 = vmatpush1.msra.mxu0 0.0
  %347 = vmatprep.subr.mxu0 0.0
  %348 = vmatpush1.msra.mxu0 0.0
  %349 = vmatprep.subr.mxu0 0.0
  %350 = vmatpush1.msra.mxu0 0.0
  %351 = vmatprep.subr.mxu0 0.0
  %352 = vmatpush1.msra.mxu0 0.0
  %353 = vmatprep.subr.mxu0 0.0
  %354 = vmatpush1.msra.mxu0 0.0
  %355 = vmatprep.subr.mxu0 0.0
  %356 = vmatpush1.msra.mxu0 0.0
  %357 = vmatprep.subr.mxu0 0.0
  %358 = vmatpush1.msra.mxu0 0.0
  %359 = vmatprep.subr.mxu0 0.0
  %360 = vmatpush1.msra.mxu0 0.0
  %361 = vmatprep.subr.mxu0 0.0
  %362 = vmatpush1.msra.mxu0 0.0
  %363 = vmatprep.subr.mxu0 %v103
  %364 = vmatpush1.msra.mxu0 %v100
  %365 = vmatprep.subr.mxu0 %v50
  %366 = vmatpush1.msra.mxu0 %v49
  %367 = vmatprep.subr.mxu0 %v41
  %368 = vmatpush1.msra.mxu0 %v40
  %369 = vmatprep.subr.mxu0 %v32
  %370 = vmatpush1.msra.mxu0 %v31
  %371 = vmatprep.subr.mxu0 0.0
  %372 = vmatpush2.msra.mxu0 0.0
  %373 = vmatprep.subr.mxu0 0.0
  %374 = vmatpush2.msra.mxu0 0.0
  %375 = vmatprep.subr.mxu0 0.0
  %376 = vmatpush2.msra.mxu0 0.0
  %377 = vmatprep.subr.mxu0 0.0
  %378 = vmatpush2.msra.mxu0 0.0
  %379 = vmatprep.subr.mxu0 0.0
  %380 = vmatpush2.msra.mxu0 0.0
  %381 = vmatprep.subr.mxu0 0.0
  %382 = vmatpush2.msra.mxu0 0.0
  %383 = vmatprep.subr.mxu0 0.0
  %384 = vmatpush2.msra.mxu0 0.0
  %385 = vmatprep.subr.mxu0 0.0
  %386 = vmatpush2.msra.mxu0 0.0
  %387 = vmatprep.subr.mxu0 0.0
  %388 = vmatpush2.msra.mxu0 0.0
  %389 = vmatprep.subr.mxu0 0.0
  %390 = vmatpush2.msra.mxu0 0.0
  %391 = vmatprep.subr.mxu0 0.0
  %392 = vmatpush2.msra.mxu0 0.0
  %393 = vmatprep.subr.mxu0 0.0
  %394 = vmatpush2.msra.mxu0 0.0
  %395 = vmatprep.subr.mxu0 0.0
  %396 = vmatpush2.msra.mxu0 0.0
  %397 = vmatprep.subr.mxu0 0.0
  %398 = vmatpush2.msra.mxu0 0.0
  %399 = vmatprep.subr.mxu0 0.0
  %400 = vmatpush2.msra.mxu0 0.0
  %401 = vmatprep.subr.mxu0 0.0
  %402 = vmatpush2.msra.mxu0 0.0
  %403 = vmatprep.mubr.f32.mxu0 0.0
  %404 = vmatmul.mubr.f32.gmra.mxu0 %v75
  %v405 = vpop.f32.mrf.mxu0
  %v406 = vadd.f32 %v66, %v405
  %v407 = vpop.f32.mrf.mxu0
  %v408 = vadd.f32 %v66, %v407
  %409 = vmatprep.mubr.f32.mxu0 0.0
  %410 = vmatmul.mubr.f32.gmra.mxu0 %v78
  %v411 = vpop.f32.mrf.mxu0
  %v412 = vadd.f32 %v71, %v411
  %v413 = vpop.f32.mrf.mxu0
  %v414 = vadd.f32 %v71, %v413
  %415 = vdwg.mxu0
  %416 = vmatprep.subr.mxu0 0.0
  %417 = vmatpush1.msra.mxu0 0.0
  %418 = vmatprep.subr.mxu0 0.0
  %419 = vmatpush1.msra.mxu0 0.0
  %420 = vmatprep.subr.mxu0 0.0
  %421 = vmatpush1.msra.mxu0 0.0
  %422 = vmatprep.subr.mxu0 0.0
  %423 = vmatpush1.msra.mxu0 0.0
  %424 = vmatprep.subr.mxu0 0.0
  %425 = vmatpush1.msra.mxu0 0.0
  %426 = vmatprep.subr.mxu0 0.0
  %427 = vmatpush1.msra.mxu0 0.0
  %428 = vmatprep.subr.mxu0 0.0
  %429 = vmatpush1.msra.mxu0 0.0
  %430 = vmatprep.subr.mxu0 0.0
  %431 = vmatpush1.msra.mxu0 0.0
  %432 = vmatprep.subr.mxu0 0.0
  %433 = vmatpush1.msra.mxu0 0.0
  %434 = vmatprep.subr.mxu0 0.0
  %435 = vmatpush1.msra.mxu0 0.0
  %436 = vmatprep.subr.mxu0 0.0
  %437 = vmatpush1.msra.mxu0 0.0
  %438 = vmatprep.subr.mxu0 0.0
  %439 = vmatpush1.msra.mxu0 0.0
  %440 = vmatprep.subr.mxu0 0.0
  %441 = vmatpush1.msra.mxu0 %v106
  %442 = vmatprep.subr.mxu0 0.0
  %443 = vmatpush1.msra.mxu0 %v51
  %444 = vmatprep.subr.mxu0 0.0
  %445 = vmatpush1.msra.mxu0 %v42
  %446 = vmatprep.subr.mxu0 0.0
  %447 = vmatpush1.msra.mxu0 %v33
  %448 = vmatprep.subr.mxu0 0.0
  %449 = vmatpush2.msra.mxu0 0.0
  %450 = vmatprep.subr.mxu0 0.0
  %451 = vmatpush2.msra.mxu0 0.0
  %452 = vmatprep.subr.mxu0 0.0
  %453 = vmatpush2.msra.mxu0 0.0
  %454 = vmatprep.subr.mxu0 0.0
  %455 = vmatpush2.msra.mxu0 0.0
  %456 = vmatprep.subr.mxu0 0.0
  %457 = vmatpush2.msra.mxu0 0.0
  %458 = vmatprep.subr.mxu0 0.0
  %459 = vmatpush2.msra.mxu0 0.0
  %460 = vmatprep.subr.mxu0 0.0
  %461 = vmatpush2.msra.mxu0 0.0
  %462 = vmatprep.subr.mxu0 0.0
  %463 = vmatpush2.msra.mxu0 0.0
  %464 = vmatprep.subr.mxu0 0.0
  %465 = vmatpush2.msra.mxu0 0.0
  %466 = vmatprep.subr.mxu0 0.0
  %467 = vmatpush2.msra.mxu0 0.0
  %468 = vmatprep.subr.mxu0 0.0
  %469 = vmatpush2.msra.mxu0 0.0
  %470 = vmatprep.subr.mxu0 0.0
  %471 = vmatpush2.msra.mxu0 0.0
  %472 = vmatprep.subr.mxu0 0.0
  %473 = vmatpush2.msra.mxu0 0.0
  %474 = vmatprep.subr.mxu0 0.0
  %475 = vmatpush2.msra.mxu0 0.0
  %476 = vmatprep.subr.mxu0 0.0
  %477 = vmatpush2.msra.mxu0 0.0
  %478 = vmatprep.subr.mxu0 0.0
  %479 = vmatpush2.msra.mxu0 0.0
  %480 = vmatprep.mubr.f32.mxu0 0.0
  %481 = vmatmul.mubr.f32.gmra.mxu0 %v75
  %v482 = vpop.f32.mrf.mxu0
  %v483 = vadd.f32 %v66, %v482
  %v484 = vpop.f32.mrf.mxu0
  %485 = vmatprep.mubr.f32.mxu0 0.0
  %486 = vmatmul.mubr.f32.gmra.mxu0 %v78
  %v487 = vpop.f32.mrf.mxu0
  %v488 = vadd.f32 %v71, %v487
  %v489 = vpop.f32.mrf.mxu0
  %490 = vdwg.mxu0
  %497 = vrot.lane.b32.xlu0 %v252, 96
  %v498 = vpop.permute.xlu0 %497
  %499 = vrot.lane.b32.xlu0 %v254, 96
  %v500 = vpop.permute.xlu0 %499
  %501 = vrot.lane.b32.xlu0 %v329, 96
  %v502 = vpop.permute.xlu0 %501
  %503 = vrot.lane.b32.xlu0 %v258, 96
  %v504 = vpop.permute.xlu0 %503
  %505 = vrot.lane.b32.xlu0 %v260, 96
  %v506 = vpop.permute.xlu0 %505
  %507 = vrot.lane.b32.xlu0 %v335, 96
  %v508 = vpop.permute.xlu0 %507
  %vm509 = vcmask 785408
  %v510 = vsel %vm509, %v498, %v500
  %v511 = vsel %vm509, %v500, %v502
  %v512 = vsel %vm509, %v504, %v506
  %v513 = vsel %vm509, %v506, %v508
  %v520 = vmax.f32 %v175, %v510
  %v521 = vmax.f32 %v177, %v511
  %v522 = vmax.f32 %v252, %v502
  %v523 = vmax.f32 %v181, %v512
  %v524 = vmax.f32 %v183, %v513
  %v525 = vmax.f32 %v258, %v508
  %532 = vrot.lane.b32.xlu0 %v406, 96
  %v533 = vpop.permute.xlu0 %532
  %534 = vrot.lane.b32.xlu0 %v408, 96
  %v535 = vpop.permute.xlu0 %534
  %536 = vrot.lane.b32.xlu0 %v483, 96
  %v537 = vpop.permute.xlu0 %536
  %538 = vrot.lane.b32.xlu0 %v412, 96
  %v539 = vpop.permute.xlu0 %538
  %540 = vrot.lane.b32.xlu0 %v414, 96
  %v541 = vpop.permute.xlu0 %540
  %542 = vrot.lane.b32.xlu0 %v488, 96
  %v543 = vpop.permute.xlu0 %542
  %v544 = vsel %vm509, %v533, %v535
  %v545 = vsel %vm509, %v535, %v537
  %v546 = vsel %vm509, %v539, %v541
  %v547 = vsel %vm509, %v541, %v543
  %v554 = vmax.f32 %v329, %v544
  %v555 = vmax.f32 %v331, %v545
  %v556 = vmax.f32 %v406, %v537
  %v557 = vmax.f32 %v335, %v546
  %v558 = vmax.f32 %v337, %v547
  %v559 = vmax.f32 %v412, %v543
  %566 = vrot.lane.b32.xlu0 %v554, 64
  %v567 = vpop.permute.xlu0 %566
  %568 = vrot.lane.b32.xlu0 %v555, 64
  %v569 = vpop.permute.xlu0 %568
  %570 = vrot.lane.b32.xlu0 %v556, 64
  %v571 = vpop.permute.xlu0 %570
  %572 = vrot.lane.b32.xlu0 %v557, 64
  %v573 = vpop.permute.xlu0 %572
  %574 = vrot.lane.b32.xlu0 %v558, 64
  %v575 = vpop.permute.xlu0 %574
  %576 = vrot.lane.b32.xlu0 %v559, 64
  %v577 = vpop.permute.xlu0 %576
  %vm578 = vcmask 523264
  %v579 = vsel %vm578, %v567, %v569
  %v580 = vsel %vm578, %v569, %v571
  %v581 = vsel %vm578, %v573, %v575
  %v582 = vsel %vm578, %v575, %v577
  %v589 = vmax.f32 %v520, %v579
  %v590 = vmax.f32 %v521, %v580
  %v591 = vmax.f32 %v522, %v571
  %v592 = vmax.f32 %v523, %v581
  %v593 = vmax.f32 %v524, %v582
  %v594 = vmax.f32 %v525, %v577
  %v595 = vmax.f32 %v589, 0.0
  %v596 = vmax.f32 %v590, 0.0
  %v597 = vmax.f32 %v591, 0.0
  %v598 = vmax.f32 %v592, 0.0
  %v599 = vmax.f32 %v593, 0.0
  %v600 = vmax.f32 %v594, 0.0
  %v601 = vld [vmem:[%s5] sm:$0xff]
  %v602 = vld [vmem:[%s5 + $0x8] sm:$0xff]
  %v603 = vld [vmem:[%s5 + $0x10] sm:$0xff]
  %v604 = vld [vmem:[%s5 + $0x18] sm:$0xff]
  %v605 = vld [vmem:[%s5 + $0x20] sm:$0xff]
  %v606 = vld [vmem:[%s5 + $0x28] sm:$0xff]
  %v607 = vld [vmem:[%s5 + $0x30] sm:$0xff]
  %v608 = vld [vmem:[%s5 + $0x38] sm:$0xff]
  %v609 = vld [vmem:[%s5 + $0x40] sm:$0xff]
  %v610 = vld [vmem:[%s5 + $0x48] sm:$0xff]
  %v611 = vld [vmem:[%s5 + $0x50] sm:$0xff]
  %v612 = vld [vmem:[%s5 + $0x58] sm:$0xff]
  %v613 = vld [vmem:[%s5 + $0x60] sm:$0xff]
  %v614 = vld [vmem:[%s5 + $0x68] sm:$0xff]
  %v615 = vld [vmem:[%s5 + $0x70] sm:$0xff]
  %v616 = vld [vmem:[%s5 + $0x78] sm:$0xff]
  %v617 = vld [vmem:[%s5 + $0x80] sm:$0xff]
  %v618 = vld [vmem:[%s5 + $0x88] sm:$0xff]
  %v619 = vld [vmem:[%s5 + $0x90] sm:$0xff]
  %v620 = vld [vmem:[%s5 + $0x98] sm:$0xff]
  %v621 = vld [vmem:[%s5 + $0xa0] sm:$0xff]
  %v622 = vld [vmem:[%s5 + $0xa8] sm:$0xff]
  %v623 = vld [vmem:[%s5 + $0xb0] sm:$0xff]
  %v624 = vld [vmem:[%s5 + $0xb8] sm:$0xff]
  %v625 = vld [vmem:[%s5 + $0xc0] sm:$0xff]
  %v626 = vld [vmem:[%s5 + $0xc8] sm:$0xff]
  %v627 = vld [vmem:[%s5 + $0xd0] sm:$0xff]
  %v628 = vld [vmem:[%s5 + $0xd8] sm:$0xff]
  %v629 = vld [vmem:[%s5 + $0xe0] sm:$0xff]
  %v630 = vld [vmem:[%s5 + $0xe8] sm:$0xff]
  %v631 = vld [vmem:[%s5 + $0xf0] sm:$0xff]
  %v632 = vld [vmem:[%s5 + $0xf8] sm:$0xff]
  %v633 = vld [vmem:[%s5 + $0x100] sm:$0xff]
  %v634 = vld [vmem:[%s5 + $0x108] sm:$0xff]
  %v635 = vld [vmem:[%s5 + $0x110] sm:$0xff]
  %v636 = vld [vmem:[%s5 + $0x118] sm:$0xff]
  %vm637 = vcmask 261120
  %v639 = vsel %vm637, %v597, 0
  %v642 = vsel %vm637, %v600, 0
  %644 = vmatprep.subr.mxu0 0.0
  %645 = vmatpush1.msra.mxu0 %v616
  %646 = vmatprep.subr.mxu0 0.0
  %647 = vmatpush1.msra.mxu0 %v615
  %648 = vmatprep.subr.mxu0 0.0
  %649 = vmatpush1.msra.mxu0 %v614
  %650 = vmatprep.subr.mxu0 0.0
  %651 = vmatpush1.msra.mxu0 %v613
  %652 = vmatprep.subr.mxu0 0.0
  %653 = vmatpush1.msra.mxu0 %v612
  %654 = vmatprep.subr.mxu0 0.0
  %655 = vmatpush1.msra.mxu0 %v611
  %656 = vmatprep.subr.mxu0 0.0
  %657 = vmatpush1.msra.mxu0 %v610
  %658 = vmatprep.subr.mxu0 0.0
  %659 = vmatpush1.msra.mxu0 %v609
  %660 = vmatprep.subr.mxu0 0.0
  %661 = vmatpush1.msra.mxu0 %v608
  %662 = vmatprep.subr.mxu0 0.0
  %663 = vmatpush1.msra.mxu0 %v607
  %664 = vmatprep.subr.mxu0 0.0
  %665 = vmatpush1.msra.mxu0 %v606
  %666 = vmatprep.subr.mxu0 0.0
  %667 = vmatpush1.msra.mxu0 %v605
  %668 = vmatprep.subr.mxu0 0.0
  %669 = vmatpush1.msra.mxu0 %v604
  %670 = vmatprep.subr.mxu0 0.0
  %671 = vmatpush1.msra.mxu0 %v603
  %672 = vmatprep.subr.mxu0 0.0
  %673 = vmatpush1.msra.mxu0 %v602
  %674 = vmatprep.subr.mxu0 0.0
  %675 = vmatpush1.msra.mxu0 %v601
  %676 = vmatprep.subr.mxu0 0.0
  %677 = vmatpush2.msra.mxu0 %v632
  %678 = vmatprep.subr.mxu0 0.0
  %679 = vmatpush2.msra.mxu0 %v631
  %680 = vmatprep.subr.mxu0 0.0
  %681 = vmatpush2.msra.mxu0 %v630
  %682 = vmatprep.subr.mxu0 0.0
  %683 = vmatpush2.msra.mxu0 %v629
  %684 = vmatprep.subr.mxu0 0.0
  %685 = vmatpush2.msra.mxu0 %v628
  %686 = vmatprep.subr.mxu0 0.0
  %687 = vmatpush2.msra.mxu0 %v627
  %688 = vmatprep.subr.mxu0 0.0
  %689 = vmatpush2.msra.mxu0 %v626
  %690 = vmatprep.subr.mxu0 0.0
  %691 = vmatpush2.msra.mxu0 %v625
  %692 = vmatprep.subr.mxu0 0.0
  %693 = vmatpush2.msra.mxu0 %v624
  %694 = vmatprep.subr.mxu0 0.0
  %695 = vmatpush2.msra.mxu0 %v623
  %696 = vmatprep.subr.mxu0 0.0
  %697 = vmatpush2.msra.mxu0 %v622
  %698 = vmatprep.subr.mxu0 0.0
  %699 = vmatpush2.msra.mxu0 %v621
  %700 = vmatprep.subr.mxu0 0.0
  %701 = vmatpush2.msra.mxu0 %v620
  %702 = vmatprep.subr.mxu0 0.0
  %703 = vmatpush2.msra.mxu0 %v619
  %704 = vmatprep.subr.mxu0 0.0
  %705 = vmatpush2.msra.mxu0 %v618
  %706 = vmatprep.subr.mxu0 0.0
  %707 = vmatpush2.msra.mxu0 %v617
  %708 = vmatprep.mubr.f32.mxu0 %v596
  %709 = vmatmul.mubr.f32.gmra.mxu0 %v595
  %v710 = vpop.f32.mrf.mxu0
  %v711 = vadd.f32 0.0, %v710
  %v712 = vpop.f32.mrf.mxu0
  %713 = vmatprep.mubr.f32.mxu0 %v599
  %714 = vmatmul.mubr.f32.gmra.mxu0 %v598
  %v715 = vpop.f32.mrf.mxu0
  %v716 = vadd.f32 0.0, %v715
  %v717 = vpop.f32.mrf.mxu0
  %718 = vdwg.mxu0
  %719 = vmatprep.subr.mxu0 0.0
  %720 = vmatpush1.msra.mxu0 0.0
  %721 = vmatprep.subr.mxu0 0.0
  %722 = vmatpush1.msra.mxu0 0.0
  %723 = vmatprep.subr.mxu0 0.0
  %724 = vmatpush1.msra.mxu0 0.0
  %725 = vmatprep.subr.mxu0 0.0
  %726 = vmatpush1.msra.mxu0 0.0
  %727 = vmatprep.subr.mxu0 0.0
  %728 = vmatpush1.msra.mxu0 0.0
  %729 = vmatprep.subr.mxu0 0.0
  %730 = vmatpush1.msra.mxu0 0.0
  %731 = vmatprep.subr.mxu0 0.0
  %732 = vmatpush1.msra.mxu0 0.0
  %733 = vmatprep.subr.mxu0 0.0
  %734 = vmatpush1.msra.mxu0 0.0
  %735 = vmatprep.subr.mxu0 0.0
  %736 = vmatpush1.msra.mxu0 0.0
  %737 = vmatprep.subr.mxu0 0.0
  %738 = vmatpush1.msra.mxu0 0.0
  %739 = vmatprep.subr.mxu0 0.0
  %740 = vmatpush1.msra.mxu0 0.0
  %741 = vmatprep.subr.mxu0 0.0
  %742 = vmatpush1.msra.mxu0 0.0
  %743 = vmatprep.subr.mxu0 0.0
  %744 = vmatpush1.msra.mxu0 %v636
  %745 = vmatprep.subr.mxu0 0.0
  %746 = vmatpush1.msra.mxu0 %v635
  %747 = vmatprep.subr.mxu0 0.0
  %748 = vmatpush1.msra.mxu0 %v634
  %749 = vmatprep.subr.mxu0 0.0
  %750 = vmatpush1.msra.mxu0 %v633
  %751 = vmatprep.subr.mxu0 0.0
  %752 = vmatpush2.msra.mxu0 0.0
  %753 = vmatprep.subr.mxu0 0.0
  %754 = vmatpush2.msra.mxu0 0.0
  %755 = vmatprep.subr.mxu0 0.0
  %756 = vmatpush2.msra.mxu0 0.0
  %757 = vmatprep.subr.mxu0 0.0
  %758 = vmatpush2.msra.mxu0 0.0
  %759 = vmatprep.subr.mxu0 0.0
  %760 = vmatpush2.msra.mxu0 0.0
  %761 = vmatprep.subr.mxu0 0.0
  %762 = vmatpush2.msra.mxu0 0.0
  %763 = vmatprep.subr.mxu0 0.0
  %764 = vmatpush2.msra.mxu0 0.0
  %765 = vmatprep.subr.mxu0 0.0
  %766 = vmatpush2.msra.mxu0 0.0
  %767 = vmatprep.subr.mxu0 0.0
  %768 = vmatpush2.msra.mxu0 0.0
  %769 = vmatprep.subr.mxu0 0.0
  %770 = vmatpush2.msra.mxu0 0.0
  %771 = vmatprep.subr.mxu0 0.0
  %772 = vmatpush2.msra.mxu0 0.0
  %773 = vmatprep.subr.mxu0 0.0
  %774 = vmatpush2.msra.mxu0 0.0
  %775 = vmatprep.subr.mxu0 0.0
  %776 = vmatpush2.msra.mxu0 0.0
  %777 = vmatprep.subr.mxu0 0.0
  %778 = vmatpush2.msra.mxu0 0.0
  %779 = vmatprep.subr.mxu0 0.0
  %780 = vmatpush2.msra.mxu0 0.0
  %781 = vmatprep.subr.mxu0 0.0
  %782 = vmatpush2.msra.mxu0 0.0
  %783 = vmatprep.mubr.f32.mxu0 0.0
  %784 = vmatmul.mubr.f32.gmra.mxu0 %v639
  %v785 = vpop.f32.mrf.mxu0
  %v786 = vadd.f32 %v711, %v785
  %v787 = vpop.f32.mrf.mxu0
  %788 = vmatprep.mubr.f32.mxu0 0.0
  %789 = vmatmul.mubr.f32.gmra.mxu0 %v642
  %v790 = vpop.f32.mrf.mxu0
  %v791 = vadd.f32 %v716, %v790
  %v792 = vpop.f32.mrf.mxu0
  %793 = vdwg.mxu0
  %v794 = vld [vmem:[%s3] sm:$0xff]
  %v795 = vld [vmem:[%s3 + $0x8] sm:$0xff]
  %v796 = vld [vmem:[%s3 + $0x10] sm:$0xf]
  %s797 = scalar_lea.vmem %s5, 288
  %v798 = vld [vmem:[%s797] sm:$0xff]
  %v799 = vld [vmem:[%s797 + $0x8] sm:$0xff]
  %v800 = vld [vmem:[%s797 + $0x10] sm:$0xff]
  %v801 = vld [vmem:[%s797 + $0x18] sm:$0xff]
  %v802 = vld [vmem:[%s797 + $0x20] sm:$0xff]
  %v803 = vld [vmem:[%s797 + $0x28] sm:$0xff]
  %v804 = vld [vmem:[%s797 + $0x30] sm:$0xff]
  %v805 = vld [vmem:[%s797 + $0x38] sm:$0xff]
  %v806 = vld [vmem:[%s797 + $0x40] sm:$0xff]
  %v807 = vld [vmem:[%s797 + $0x48] sm:$0xff]
  %v808 = vld [vmem:[%s797 + $0x50] sm:$0xff]
  %v809 = vld [vmem:[%s797 + $0x58] sm:$0xff]
  %v810 = vld [vmem:[%s797 + $0x60] sm:$0xff]
  %v811 = vld [vmem:[%s797 + $0x68] sm:$0xff]
  %v812 = vld [vmem:[%s797 + $0x70] sm:$0xff]
  %v813 = vld [vmem:[%s797 + $0x78] sm:$0xff]
  %v814 = vld [vmem:[%s797 + $0x80] sm:$0xff]
  %v815 = vld [vmem:[%s797 + $0x88] sm:$0xff]
  %v816 = vld [vmem:[%s797 + $0x90] sm:$0xff]
  %v817 = vld [vmem:[%s797 + $0x98] sm:$0xff]
  %v818 = vld [vmem:[%s797 + $0xa0] sm:$0xff]
  %v819 = vld [vmem:[%s797 + $0xa8] sm:$0xff]
  %v820 = vld [vmem:[%s797 + $0xb0] sm:$0xff]
  %v821 = vld [vmem:[%s797 + $0xb8] sm:$0xff]
  %v822 = vld [vmem:[%s797 + $0xc0] sm:$0xff]
  %v823 = vld [vmem:[%s797 + $0xc8] sm:$0xff]
  %v824 = vld [vmem:[%s797 + $0xd0] sm:$0xff]
  %v825 = vld [vmem:[%s797 + $0xd8] sm:$0xff]
  %v826 = vld [vmem:[%s797 + $0xe0] sm:$0xff]
  %v827 = vld [vmem:[%s797 + $0xe8] sm:$0xff]
  %v828 = vld [vmem:[%s797 + $0xf0] sm:$0xff]
  %v829 = vld [vmem:[%s797 + $0xf8] sm:$0xff]
  %v830 = vld [vmem:[%s797 + $0x100] sm:$0xff]
  %v831 = vld [vmem:[%s797 + $0x108] sm:$0xff]
  %v832 = vld [vmem:[%s797 + $0x110] sm:$0xff]
  %v833 = vld [vmem:[%s797 + $0x118] sm:$0xff]
  %834 = vmatprep.subr.mxu0 0.0
  %835 = vmatpush1.msra.mxu0 %v813
  %836 = vmatprep.subr.mxu0 0.0
  %837 = vmatpush1.msra.mxu0 %v812
  %838 = vmatprep.subr.mxu0 0.0
  %839 = vmatpush1.msra.mxu0 %v811
  %840 = vmatprep.subr.mxu0 0.0
  %841 = vmatpush1.msra.mxu0 %v810
  %842 = vmatprep.subr.mxu0 0.0
  %843 = vmatpush1.msra.mxu0 %v809
  %844 = vmatprep.subr.mxu0 0.0
  %845 = vmatpush1.msra.mxu0 %v808
  %846 = vmatprep.subr.mxu0 0.0
  %847 = vmatpush1.msra.mxu0 %v807
  %848 = vmatprep.subr.mxu0 0.0
  %849 = vmatpush1.msra.mxu0 %v806
  %850 = vmatprep.subr.mxu0 0.0
  %851 = vmatpush1.msra.mxu0 %v805
  %852 = vmatprep.subr.mxu0 0.0
  %853 = vmatpush1.msra.mxu0 %v804
  %854 = vmatprep.subr.mxu0 0.0
  %855 = vmatpush1.msra.mxu0 %v803
  %856 = vmatprep.subr.mxu0 0.0
  %857 = vmatpush1.msra.mxu0 %v802
  %858 = vmatprep.subr.mxu0 0.0
  %859 = vmatpush1.msra.mxu0 %v801
  %860 = vmatprep.subr.mxu0 0.0
  %861 = vmatpush1.msra.mxu0 %v800
  %862 = vmatprep.subr.mxu0 0.0
  %863 = vmatpush1.msra.mxu0 %v799
  %864 = vmatprep.subr.mxu0 0.0
  %865 = vmatpush1.msra.mxu0 %v798
  %866 = vmatprep.subr.mxu0 0.0
  %867 = vmatpush2.msra.mxu0 %v829
  %868 = vmatprep.subr.mxu0 0.0
  %869 = vmatpush2.msra.mxu0 %v828
  %870 = vmatprep.subr.mxu0 0.0
  %871 = vmatpush2.msra.mxu0 %v827
  %872 = vmatprep.subr.mxu0 0.0
  %873 = vmatpush2.msra.mxu0 %v826
  %874 = vmatprep.subr.mxu0 0.0
  %875 = vmatpush2.msra.mxu0 %v825
  %876 = vmatprep.subr.mxu0 0.0
  %877 = vmatpush2.msra.mxu0 %v824
  %878 = vmatprep.subr.mxu0 0.0
  %879 = vmatpush2.msra.mxu0 %v823
  %880 = vmatprep.subr.mxu0 0.0
  %881 = vmatpush2.msra.mxu0 %v822
  %882 = vmatprep.subr.mxu0 0.0
  %883 = vmatpush2.msra.mxu0 %v821
  %884 = vmatprep.subr.mxu0 0.0
  %885 = vmatpush2.msra.mxu0 %v820
  %886 = vmatprep.subr.mxu0 0.0
  %887 = vmatpush2.msra.mxu0 %v819
  %888 = vmatprep.subr.mxu0 0.0
  %889 = vmatpush2.msra.mxu0 %v818
  %890 = vmatprep.subr.mxu0 0.0
  %891 = vmatpush2.msra.mxu0 %v817
  %892 = vmatprep.subr.mxu0 0.0
  %893 = vmatpush2.msra.mxu0 %v816
  %894 = vmatprep.subr.mxu0 0.0
  %895 = vmatpush2.msra.mxu0 %v815
  %896 = vmatprep.subr.mxu0 0.0
  %897 = vmatpush2.msra.mxu0 %v814
  %898 = vmatprep.mubr.f32.mxu0 %v596
  %899 = vmatmul.mubr.f32.gmra.mxu0 %v595
  %v900 = vpop.f32.mrf.mxu0
  %v901 = vadd.f32 0.0, %v900
  %v902 = vpop.f32.mrf.mxu0
  %903 = vmatprep.mubr.f32.mxu0 %v599
  %904 = vmatmul.mubr.f32.gmra.mxu0 %v598
  %v905 = vpop.f32.mrf.mxu0
  %v906 = vadd.f32 0.0, %v905
  %v907 = vpop.f32.mrf.mxu0
  %908 = vdwg.mxu0
  %909 = vmatprep.subr.mxu0 0.0
  %910 = vmatpush1.msra.mxu0 0.0
  %911 = vmatprep.subr.mxu0 0.0
  %912 = vmatpush1.msra.mxu0 0.0
  %913 = vmatprep.subr.mxu0 0.0
  %914 = vmatpush1.msra.mxu0 0.0
  %915 = vmatprep.subr.mxu0 0.0
  %916 = vmatpush1.msra.mxu0 0.0
  %917 = vmatprep.subr.mxu0 0.0
  %918 = vmatpush1.msra.mxu0 0.0
  %919 = vmatprep.subr.mxu0 0.0
  %920 = vmatpush1.msra.mxu0 0.0
  %921 = vmatprep.subr.mxu0 0.0
  %922 = vmatpush1.msra.mxu0 0.0
  %923 = vmatprep.subr.mxu0 0.0
  %924 = vmatpush1.msra.mxu0 0.0
  %925 = vmatprep.subr.mxu0 0.0
  %926 = vmatpush1.msra.mxu0 0.0
  %927 = vmatprep.subr.mxu0 0.0
  %928 = vmatpush1.msra.mxu0 0.0
  %929 = vmatprep.subr.mxu0 0.0
  %930 = vmatpush1.msra.mxu0 0.0
  %931 = vmatprep.subr.mxu0 0.0
  %932 = vmatpush1.msra.mxu0 0.0
  %933 = vmatprep.subr.mxu0 0.0
  %934 = vmatpush1.msra.mxu0 %v833
  %935 = vmatprep.subr.mxu0 0.0
  %936 = vmatpush1.msra.mxu0 %v832
  %937 = vmatprep.subr.mxu0 0.0
  %938 = vmatpush1.msra.mxu0 %v831
  %939 = vmatprep.subr.mxu0 0.0
  %940 = vmatpush1.msra.mxu0 %v830
  %941 = vmatprep.subr.mxu0 0.0
  %942 = vmatpush2.msra.mxu0 0.0
  %943 = vmatprep.subr.mxu0 0.0
  %944 = vmatpush2.msra.mxu0 0.0
  %945 = vmatprep.subr.mxu0 0.0
  %946 = vmatpush2.msra.mxu0 0.0
  %947 = vmatprep.subr.mxu0 0.0
  %948 = vmatpush2.msra.mxu0 0.0
  %949 = vmatprep.subr.mxu0 0.0
  %950 = vmatpush2.msra.mxu0 0.0
  %951 = vmatprep.subr.mxu0 0.0
  %952 = vmatpush2.msra.mxu0 0.0
  %953 = vmatprep.subr.mxu0 0.0
  %954 = vmatpush2.msra.mxu0 0.0
  %955 = vmatprep.subr.mxu0 0.0
  %956 = vmatpush2.msra.mxu0 0.0
  %957 = vmatprep.subr.mxu0 0.0
  %958 = vmatpush2.msra.mxu0 0.0
  %959 = vmatprep.subr.mxu0 0.0
  %960 = vmatpush2.msra.mxu0 0.0
  %961 = vmatprep.subr.mxu0 0.0
  %962 = vmatpush2.msra.mxu0 0.0
  %963 = vmatprep.subr.mxu0 0.0
  %964 = vmatpush2.msra.mxu0 0.0
  %965 = vmatprep.subr.mxu0 0.0
  %966 = vmatpush2.msra.mxu0 0.0
  %967 = vmatprep.subr.mxu0 0.0
  %968 = vmatpush2.msra.mxu0 0.0
  %969 = vmatprep.subr.mxu0 0.0
  %970 = vmatpush2.msra.mxu0 0.0
  %971 = vmatprep.subr.mxu0 0.0
  %972 = vmatpush2.msra.mxu0 0.0
  %973 = vmatprep.mubr.f32.mxu0 0.0
  %974 = vmatmul.mubr.f32.gmra.mxu0 %v639
  %v975 = vpop.f32.mrf.mxu0
  %v976 = vadd.f32 %v901, %v975
  %v977 = vpop.f32.mrf.mxu0
  %978 = vmatprep.mubr.f32.mxu0 0.0
  %979 = vmatmul.mubr.f32.gmra.mxu0 %v642
  %v980 = vpop.f32.mrf.mxu0
  %v981 = vadd.f32 %v906, %v980
  %v982 = vpop.f32.mrf.mxu0
  %983 = vdwg.mxu0
  %s984 = scalar_lea.vmem %s3, 24
  %v985 = vld [vmem:[%s984] sm:$0xff]
  %v986 = vld [vmem:[%s984 + $0x8] sm:$0xff]
  %v987 = vld [vmem:[%s984 + $0x10] sm:$0xf]
  %vm988 = vcmask 80896
  %v990 = vsel %vm988, %v985, 0
  %v993 = vsel %vm988, %v986, 0
  %v996 = vsel %vm988, %v987, 0
  %vm998 = vcmask 1041408
  %v1000 = vsel %vm998, %v981, 0
  %1002 = vmatprep.subr.mxu0 0.0
  %1003 = vmatpush1.msra.mxu0 0.0
  %1004 = vmatprep.subr.mxu0 0.0
  %1005 = vmatpush1.msra.mxu0 0.0
  %1006 = vmatprep.subr.mxu0 0.0
  %1007 = vmatpush1.msra.mxu0 0.0
  %1008 = vmatprep.subr.mxu0 0.0
  %1009 = vmatpush1.msra.mxu0 0.0
  %1010 = vmatprep.subr.mxu0 0.0
  %1011 = vmatpush1.msra.mxu0 0.0
  %1012 = vmatprep.subr.mxu0 0.0
  %1013 = vmatpush1.msra.mxu0 0.0
  %1014 = vmatprep.subr.mxu0 0.0
  %1015 = vmatpush1.msra.mxu0 0.0
  %1016 = vmatprep.subr.mxu0 0.0
  %1017 = vmatpush1.msra.mxu0 0.0
  %1018 = vmatprep.subr.mxu0 0.0
  %1019 = vmatpush1.msra.mxu0 0.0
  %1020 = vmatprep.subr.mxu0 0.0
  %1021 = vmatpush1.msra.mxu0 0.0
  %1022 = vmatprep.subr.mxu0 0.0
  %1023 = vmatpush1.msra.mxu0 0.0
  %1024 = vmatprep.subr.mxu0 0.0
  %1025 = vmatpush1.msra.mxu0 0.0
  %1026 = vmatprep.subr.mxu0 0.0
  %1027 = vmatpush1.msra.mxu0 0.0
  %1028 = vmatprep.subr.mxu0 0.0
  %1029 = vmatpush1.msra.mxu0 0.0
  %1030 = vmatprep.subr.mxu0 0.0
  %1031 = vmatpush1.msra.mxu0 %v1000
  %1032 = vmatprep.subr.mxu0 0.0
  %1033 = vmatpush1.msra.mxu0 %v976
  %1034 = vmatprep.subr.mxu0 0.0
  %1035 = vmatpush2.msra.mxu0 0.0
  %1036 = vmatprep.subr.mxu0 0.0
  %1037 = vmatpush2.msra.mxu0 0.0
  %1038 = vmatprep.subr.mxu0 0.0
  %1039 = vmatpush2.msra.mxu0 0.0
  %1040 = vmatprep.subr.mxu0 0.0
  %1041 = vmatpush2.msra.mxu0 0.0
  %1042 = vmatprep.subr.mxu0 0.0
  %1043 = vmatpush2.msra.mxu0 0.0
  %1044 = vmatprep.subr.mxu0 0.0
  %1045 = vmatpush2.msra.mxu0 0.0
  %1046 = vmatprep.subr.mxu0 0.0
  %1047 = vmatpush2.msra.mxu0 0.0
  %1048 = vmatprep.subr.mxu0 0.0
  %1049 = vmatpush2.msra.mxu0 0.0
  %1050 = vmatprep.subr.mxu0 0.0
  %1051 = vmatpush2.msra.mxu0 0.0
  %1052 = vmatprep.subr.mxu0 0.0
  %1053 = vmatpush2.msra.mxu0 0.0
  %1054 = vmatprep.subr.mxu0 0.0
  %1055 = vmatpush2.msra.mxu0 0.0
  %1056 = vmatprep.subr.mxu0 0.0
  %1057 = vmatpush2.msra.mxu0 0.0
  %1058 = vmatprep.subr.mxu0 0.0
  %1059 = vmatpush2.msra.mxu0 0.0
  %1060 = vmatprep.subr.mxu0 0.0
  %1061 = vmatpush2.msra.mxu0 0.0
  %1062 = vmatprep.subr.mxu0 0.0
  %1063 = vmatpush2.msra.mxu0 0.0
  %1064 = vmatprep.subr.mxu0 0.0
  %1065 = vmatpush2.msra.mxu0 0.0
  %1066 = vmatprep.mubr.f32.mxu0 0.0
  %1067 = vmatmul.mubr.f32.gmra.mxu0 %v990
  %v1068 = vpop.f32.mrf.mxu0
  %v1069 = vadd.f32 0.0, %v1068
  %v1070 = vpop.f32.mrf.mxu0
  %1071 = vmatprep.mubr.f32.mxu0 0.0
  %1072 = vmatmul.mubr.f32.gmra.mxu0 %v993
  %v1073 = vpop.f32.mrf.mxu0
  %v1074 = vadd.f32 0.0, %v1073
  %v1075 = vpop.f32.mrf.mxu0
  %1076 = vmatprep.mubr.f32.mxu0 0.0
  %1077 = vmatmul.mubr.f32.gmra.mxu0 %v996
  %v1078 = vpop.f32.mrf.mxu0
  %v1079 = vadd.f32 0.0, %v1078
  %v1080 = vpop.f32.mrf.mxu0
  %1081 = vdwg.mxu0
  %v1083 = vsel %vm988, %v794, 0
  %v1086 = vsel %vm988, %v795, 0
  %v1089 = vsel %vm988, %v796, 0
  %v1092 = vsel %vm998, %v791, 0
  %1094 = vmatprep.subr.mxu0 0.0
  %1095 = vmatpush1.msra.mxu0 0.0
  %1096 = vmatprep.subr.mxu0 0.0
  %1097 = vmatpush1.msra.mxu0 0.0
  %1098 = vmatprep.subr.mxu0 0.0
  %1099 = vmatpush1.msra.mxu0 0.0
  %1100 = vmatprep.subr.mxu0 0.0
  %1101 = vmatpush1.msra.mxu0 0.0
  %1102 = vmatprep.subr.mxu0 0.0
  %1103 = vmatpush1.msra.mxu0 0.0
  %1104 = vmatprep.subr.mxu0 0.0
  %1105 = vmatpush1.msra.mxu0 0.0
  %1106 = vmatprep.subr.mxu0 0.0
  %1107 = vmatpush1.msra.mxu0 0.0
  %1108 = vmatprep.subr.mxu0 0.0
  %1109 = vmatpush1.msra.mxu0 0.0
  %1110 = vmatprep.subr.mxu0 0.0
  %1111 = vmatpush1.msra.mxu0 0.0
  %1112 = vmatprep.subr.mxu0 0.0
  %1113 = vmatpush1.msra.mxu0 0.0
  %1114 = vmatprep.subr.mxu0 0.0
  %1115 = vmatpush1.msra.mxu0 0.0
  %1116 = vmatprep.subr.mxu0 0.0
  %1117 = vmatpush1.msra.mxu0 0.0
  %1118 = vmatprep.subr.mxu0 0.0
  %1119 = vmatpush1.msra.mxu0 0.0
  %1120 = vmatprep.subr.mxu0 0.0
  %1121 = vmatpush1.msra.mxu0 0.0
  %1122 = vmatprep.subr.mxu0 0.0
  %1123 = vmatpush1.msra.mxu0 %v1092
  %1124 = vmatprep.subr.mxu0 0.0
  %1125 = vmatpush1.msra.mxu0 %v786
  %1126 = vmatprep.subr.mxu0 0.0
  %1127 = vmatpush2.msra.mxu0 0.0
  %1128 = vmatprep.subr.mxu0 0.0
  %1129 = vmatpush2.msra.mxu0 0.0
  %1130 = vmatprep.subr.mxu0 0.0
  %1131 = vmatpush2.msra.mxu0 0.0
  %1132 = vmatprep.subr.mxu0 0.0
  %1133 = vmatpush2.msra.mxu0 0.0
  %1134 = vmatprep.subr.mxu0 0.0
  %1135 = vmatpush2.msra.mxu0 0.0
  %1136 = vmatprep.subr.mxu0 0.0
  %1137 = vmatpush2.msra.mxu0 0.0
  %1138 = vmatprep.subr.mxu0 0.0
  %1139 = vmatpush2.msra.mxu0 0.0
  %1140 = vmatprep.subr.mxu0 0.0
  %1141 = vmatpush2.msra.mxu0 0.0
  %1142 = vmatprep.subr.mxu0 0.0
  %1143 = vmatpush2.msra.mxu0 0.0
  %1144 = vmatprep.subr.mxu0 0.0
  %1145 = vmatpush2.msra.mxu0 0.0
  %1146 = vmatprep.subr.mxu0 0.0
  %1147 = vmatpush2.msra.mxu0 0.0
  %1148 = vmatprep.subr.mxu0 0.0
  %1149 = vmatpush2.msra.mxu0 0.0
  %1150 = vmatprep.subr.mxu0 0.0
  %1151 = vmatpush2.msra.mxu0 0.0
  %1152 = vmatprep.subr.mxu0 0.0
  %1153 = vmatpush2.msra.mxu0 0.0
  %1154 = vmatprep.subr.mxu0 0.0
  %1155 = vmatpush2.msra.mxu0 0.0
  %1156 = vmatprep.subr.mxu0 0.0
  %1157 = vmatpush2.msra.mxu0 0.0
  %1158 = vmatprep.mubr.f32.mxu0 0.0
  %1159 = vmatmul.mubr.f32.gmra.mxu0 %v1083
  %v1160 = vpop.f32.mrf.mxu0
  %v1161 = vadd.f32 %v1069, %v1160
  %v1162 = vpop.f32.mrf.mxu0
  %1163 = vmatprep.mubr.f32.mxu0 0.0
  %1164 = vmatmul.mubr.f32.gmra.mxu0 %v1086
  %v1165 = vpop.f32.mrf.mxu0
  %v1166 = vadd.f32 %v1074, %v1165
  %v1167 = vpop.f32.mrf.mxu0
  %1168 = vmatprep.mubr.f32.mxu0 0.0
  %1169 = vmatmul.mubr.f32.gmra.mxu0 %v1089
  %v1170 = vpop.f32.mrf.mxu0
  %v1171 = vadd.f32 %v1079, %v1170
  %v1172 = vpop.f32.mrf.mxu0
  %1173 = vdwg.mxu0
  %s1174 = scalar_lea.vmem %s5, 576
  %v1175 = vld [vmem:[%s1174] sm:$0xff]
  %v1176 = vld [vmem:[%s1174 + $0x8] sm:$0xff]
  %v1177 = vld [vmem:[%s1174 + $0x10] sm:$0xff]
  %v1178 = vld [vmem:[%s1174 + $0x18] sm:$0xff]
  %v1179 = vld [vmem:[%s1174 + $0x20] sm:$0xff]
  %v1180 = vld [vmem:[%s1174 + $0x28] sm:$0xff]
  %v1181 = vld [vmem:[%s1174 + $0x30] sm:$0xff]
  %v1182 = vld [vmem:[%s1174 + $0x38] sm:$0xff]
  %v1183 = vld [vmem:[%s1174 + $0x40] sm:$0xff]
  %v1184 = vld [vmem:[%s1174 + $0x48] sm:$0xff]
  %v1185 = vld [vmem:[%s1174 + $0x50] sm:$0xff]
  %v1186 = vld [vmem:[%s1174 + $0x58] sm:$0xff]
  %v1187 = vld [vmem:[%s1174 + $0x60] sm:$0xff]
  %v1188 = vld [vmem:[%s1174 + $0x68] sm:$0xff]
  %v1189 = vld [vmem:[%s1174 + $0x70] sm:$0xff]
  %v1190 = vld [vmem:[%s1174 + $0x78] sm:$0xff]
  %v1191 = vld [vmem:[%s1174 + $0x80] sm:$0xff]
  %v1192 = vld [vmem:[%s1174 + $0x88] sm:$0xff]
  %v1193 = vld [vmem:[%s1174 + $0x90] sm:$0xff]
  %v1194 = vld [vmem:[%s1174 + $0x98] sm:$0xff]
  %v1195 = vld [vmem:[%s1174 + $0xa0] sm:$0xff]
  %v1196 = vld [vmem:[%s1174 + $0xa8] sm:$0xff]
  %v1197 = vld [vmem:[%s1174 + $0xb0] sm:$0xff]
  %v1198 = vld [vmem:[%s1174 + $0xb8] sm:$0xff]
  %v1199 = vld [vmem:[%s1174 + $0xc0] sm:$0xff]
  %v1200 = vld [vmem:[%s1174 + $0xc8] sm:$0xff]
  %v1201 = vld [vmem:[%s1174 + $0xd0] sm:$0xff]
  %v1202 = vld [vmem:[%s1174 + $0xd8] sm:$0xff]
  %v1203 = vld [vmem:[%s1174 + $0xe0] sm:$0xff]
  %v1204 = vld [vmem:[%s1174 + $0xe8] sm:$0xff]
  %v1205 = vld [vmem:[%s1174 + $0xf0] sm:$0xff]
  %v1206 = vld [vmem:[%s1174 + $0xf8] sm:$0xff]
  %v1207 = vld [vmem:[%s1174 + $0x100] sm:$0xff]
  %v1208 = vld [vmem:[%s1174 + $0x108] sm:$0xff]
  %v1209 = vld [vmem:[%s1174 + $0x110] sm:$0xff]
  %v1210 = vld [vmem:[%s1174 + $0x118] sm:$0xff]
  %1211 = vmatprep.subr.mxu0 0.0
  %1212 = vmatpush1.msra.mxu0 %v1190
  %1213 = vmatprep.subr.mxu0 0.0
  %1214 = vmatpush1.msra.mxu0 %v1189
  %1215 = vmatprep.subr.mxu0 0.0
  %1216 = vmatpush1.msra.mxu0 %v1188
  %1217 = vmatprep.subr.mxu0 0.0
  %1218 = vmatpush1.msra.mxu0 %v1187
  %1219 = vmatprep.subr.mxu0 0.0
  %1220 = vmatpush1.msra.mxu0 %v1186
  %1221 = vmatprep.subr.mxu0 0.0
  %1222 = vmatpush1.msra.mxu0 %v1185
  %1223 = vmatprep.subr.mxu0 0.0
  %1224 = vmatpush1.msra.mxu0 %v1184
  %1225 = vmatprep.subr.mxu0 0.0
  %1226 = vmatpush1.msra.mxu0 %v1183
  %1227 = vmatprep.subr.mxu0 0.0
  %1228 = vmatpush1.msra.mxu0 %v1182
  %1229 = vmatprep.subr.mxu0 0.0
  %1230 = vmatpush1.msra.mxu0 %v1181
  %1231 = vmatprep.subr.mxu0 0.0
  %1232 = vmatpush1.msra.mxu0 %v1180
  %1233 = vmatprep.subr.mxu0 0.0
  %1234 = vmatpush1.msra.mxu0 %v1179
  %1235 = vmatprep.subr.mxu0 0.0
  %1236 = vmatpush1.msra.mxu0 %v1178
  %1237 = vmatprep.subr.mxu0 0.0
  %1238 = vmatpush1.msra.mxu0 %v1177
  %1239 = vmatprep.subr.mxu0 0.0
  %1240 = vmatpush1.msra.mxu0 %v1176
  %1241 = vmatprep.subr.mxu0 0.0
  %1242 = vmatpush1.msra.mxu0 %v1175
  %1243 = vmatprep.subr.mxu0 0.0
  %1244 = vmatpush2.msra.mxu0 %v1206
  %1245 = vmatprep.subr.mxu0 0.0
  %1246 = vmatpush2.msra.mxu0 %v1205
  %1247 = vmatprep.subr.mxu0 0.0
  %1248 = vmatpush2.msra.mxu0 %v1204
  %1249 = vmatprep.subr.mxu0 0.0
  %1250 = vmatpush2.msra.mxu0 %v1203
  %1251 = vmatprep.subr.mxu0 0.0
  %1252 = vmatpush2.msra.mxu0 %v1202
  %1253 = vmatprep.subr.mxu0 0.0
  %1254 = vmatpush2.msra.mxu0 %v1201
  %1255 = vmatprep.subr.mxu0 0.0
  %1256 = vmatpush2.msra.mxu0 %v1200
  %1257 = vmatprep.subr.mxu0 0.0
  %1258 = vmatpush2.msra.mxu0 %v1199
  %1259 = vmatprep.subr.mxu0 0.0
  %1260 = vmatpush2.msra.mxu0 %v1198
  %1261 = vmatprep.subr.mxu0 0.0
  %1262 = vmatpush2.msra.mxu0 %v1197
  %1263 = vmatprep.subr.mxu0 0.0
  %1264 = vmatpush2.msra.mxu0 %v1196
  %1265 = vmatprep.subr.mxu0 0.0
  %1266 = vmatpush2.msra.mxu0 %v1195
  %1267 = vmatprep.subr.mxu0 0.0
  %1268 = vmatpush2.msra.mxu0 %v1194
  %1269 = vmatprep.subr.mxu0 0.0
  %1270 = vmatpush2.msra.mxu0 %v1193
  %1271 = vmatprep.subr.mxu0 0.0
  %1272 = vmatpush2.msra.mxu0 %v1192
  %1273 = vmatprep.subr.mxu0 0.0
  %1274 = vmatpush2.msra.mxu0 %v1191
  %1275 = vmatprep.mubr.f32.mxu0 %v596
  %1276 = vmatmul.mubr.f32.gmra.mxu0 %v595
  %v1277 = vpop.f32.mrf.mxu0
  %v1278 = vadd.f32 0.0, %v1277
  %v1279 = vpop.f32.mrf.mxu0
  %1280 = vmatprep.mubr.f32.mxu0 %v599
  %1281 = vmatmul.mubr.f32.gmra.mxu0 %v598
  %v1282 = vpop.f32.mrf.mxu0
  %v1283 = vadd.f32 0.0, %v1282
  %v1284 = vpop.f32.mrf.mxu0
  %1285 = vdwg.mxu0
  %1286 = vmatprep.subr.mxu0 0.0
  %1287 = vmatpush1.msra.mxu0 0.0
  %1288 = vmatprep.subr.mxu0 0.0
  %1289 = vmatpush1.msra.mxu0 0.0
  %1290 = vmatprep.subr.mxu0 0.0
  %1291 = vmatpush1.msra.mxu0 0.0
  %1292 = vmatprep.subr.mxu0 0.0
  %1293 = vmatpush1.msra.mxu0 0.0
  %1294 = vmatprep.subr.mxu0 0.0
  %1295 = vmatpush1.msra.mxu0 0.0
  %1296 = vmatprep.subr.mxu0 0.0
  %1297 = vmatpush1.msra.mxu0 0.0
  %1298 = vmatprep.subr.mxu0 0.0
  %1299 = vmatpush1.msra.mxu0 0.0
  %1300 = vmatprep.subr.mxu0 0.0
  %1301 = vmatpush1.msra.mxu0 0.0
  %1302 = vmatprep.subr.mxu0 0.0
  %1303 = vmatpush1.msra.mxu0 0.0
  %1304 = vmatprep.subr.mxu0 0.0
  %1305 = vmatpush1.msra.mxu0 0.0
  %1306 = vmatprep.subr.mxu0 0.0
  %1307 = vmatpush1.msra.mxu0 0.0
  %1308 = vmatprep.subr.mxu0 0.0
  %1309 = vmatpush1.msra.mxu0 0.0
  %1310 = vmatprep.subr.mxu0 0.0
  %1311 = vmatpush1.msra.mxu0 %v1210
  %1312 = vmatprep.subr.mxu0 0.0
  %1313 = vmatpush1.msra.mxu0 %v1209
  %1314 = vmatprep.subr.mxu0 0.0
  %1315 = vmatpush1.msra.mxu0 %v1208
  %1316 = vmatprep.subr.mxu0 0.0
  %1317 = vmatpush1.msra.mxu0 %v1207
  %1318 = vmatprep.subr.mxu0 0.0
  %1319 = vmatpush2.msra.mxu0 0.0
  %1320 = vmatprep.subr.mxu0 0.0
  %1321 = vmatpush2.msra.mxu0 0.0
  %1322 = vmatprep.subr.mxu0 0.0
  %1323 = vmatpush2.msra.mxu0 0.0
  %1324 = vmatprep.subr.mxu0 0.0
  %1325 = vmatpush2.msra.mxu0 0.0
  %1326 = vmatprep.subr.mxu0 0.0
  %1327 = vmatpush2.msra.mxu0 0.0
  %1328 = vmatprep.subr.mxu0 0.0
  %1329 = vmatpush2.msra.mxu0 0.0
  %1330 = vmatprep.subr.mxu0 0.0
  %1331 = vmatpush2.msra.mxu0 0.0
  %1332 = vmatprep.subr.mxu0 0.0
  %1333 = vmatpush2.msra.mxu0 0.0
  %1334 = vmatprep.subr.mxu0 0.0
  %1335 = vmatpush2.msra.mxu0 0.0
  %1336 = vmatprep.subr.mxu0 0.0
  %1337 = vmatpush2.msra.mxu0 0.0
  %1338 = vmatprep.subr.mxu0 0.0
  %1339 = vmatpush2.msra.mxu0 0.0
  %1340 = vmatprep.subr.mxu0 0.0
  %1341 = vmatpush2.msra.mxu0 0.0
  %1342 = vmatprep.subr.mxu0 0.0
  %1343 = vmatpush2.msra.mxu0 0.0
  %1344 = vmatprep.subr.mxu0 0.0
  %1345 = vmatpush2.msra.mxu0 0.0
  %1346 = vmatprep.subr.mxu0 0.0
  %1347 = vmatpush2.msra.mxu0 0.0
  %1348 = vmatprep.subr.mxu0 0.0
  %1349 = vmatpush2.msra.mxu0 0.0
  %1350 = vmatprep.mubr.f32.mxu0 0.0
  %1351 = vmatmul.mubr.f32.gmra.mxu0 %v639
  %v1352 = vpop.f32.mrf.mxu0
  %v1353 = vadd.f32 %v1278, %v1352
  %v1354 = vpop.f32.mrf.mxu0
  %1355 = vmatprep.mubr.f32.mxu0 0.0
  %1356 = vmatmul.mubr.f32.gmra.mxu0 %v642
  %v1357 = vpop.f32.mrf.mxu0
  %v1358 = vadd.f32 %v1283, %v1357
  %v1359 = vpop.f32.mrf.mxu0
  %1360 = vdwg.mxu0
  %s1361 = scalar_lea.vmem %s3, 48
  %v1362 = vld [vmem:[%s1361] sm:$0xff]
  %v1363 = vld [vmem:[%s1361 + $0x8] sm:$0xff]
  %v1364 = vld [vmem:[%s1361 + $0x10] sm:$0xf]
  %v1366 = vsel %vm988, %v1362, 0
  %v1369 = vsel %vm988, %v1363, 0
  %v1372 = vsel %vm988, %v1364, 0
  %v1375 = vsel %vm998, %v1358, 0
  %1377 = vmatprep.subr.mxu0 0.0
  %1378 = vmatpush1.msra.mxu0 0.0
  %1379 = vmatprep.subr.mxu0 0.0
  %1380 = vmatpush1.msra.mxu0 0.0
  %1381 = vmatprep.subr.mxu0 0.0
  %1382 = vmatpush1.msra.mxu0 0.0
  %1383 = vmatprep.subr.mxu0 0.0
  %1384 = vmatpush1.msra.mxu0 0.0
  %1385 = vmatprep.subr.mxu0 0.0
  %1386 = vmatpush1.msra.mxu0 0.0
  %1387 = vmatprep.subr.mxu0 0.0
  %1388 = vmatpush1.msra.mxu0 0.0
  %1389 = vmatprep.subr.mxu0 0.0
  %1390 = vmatpush1.msra.mxu0 0.0
  %1391 = vmatprep.subr.mxu0 0.0
  %1392 = vmatpush1.msra.mxu0 0.0
  %1393 = vmatprep.subr.mxu0 0.0
  %1394 = vmatpush1.msra.mxu0 0.0
  %1395 = vmatprep.subr.mxu0 0.0
  %1396 = vmatpush1.msra.mxu0 0.0
  %1397 = vmatprep.subr.mxu0 0.0
  %1398 = vmatpush1.msra.mxu0 0.0
  %1399 = vmatprep.subr.mxu0 0.0
  %1400 = vmatpush1.msra.mxu0 0.0
  %1401 = vmatprep.subr.mxu0 0.0
  %1402 = vmatpush1.msra.mxu0 0.0
  %1403 = vmatprep.subr.mxu0 0.0
  %1404 = vmatpush1.msra.mxu0 0.0
  %1405 = vmatprep.subr.mxu0 0.0
  %1406 = vmatpush1.msra.mxu0 %v1375
  %1407 = vmatprep.subr.mxu0 0.0
  %1408 = vmatpush1.msra.mxu0 %v1353
  %1409 = vmatprep.subr.mxu0 0.0
  %1410 = vmatpush2.msra.mxu0 0.0
  %1411 = vmatprep.subr.mxu0 0.0
  %1412 = vmatpush2.msra.mxu0 0.0
  %1413 = vmatprep.subr.mxu0 0.0
  %1414 = vmatpush2.msra.mxu0 0.0
  %1415 = vmatprep.subr.mxu0 0.0
  %1416 = vmatpush2.msra.mxu0 0.0
  %1417 = vmatprep.subr.mxu0 0.0
  %1418 = vmatpush2.msra.mxu0 0.0
  %1419 = vmatprep.subr.mxu0 0.0
  %1420 = vmatpush2.msra.mxu0 0.0
  %1421 = vmatprep.subr.mxu0 0.0
  %1422 = vmatpush2.msra.mxu0 0.0
  %1423 = vmatprep.subr.mxu0 0.0
  %1424 = vmatpush2.msra.mxu0 0.0
  %1425 = vmatprep.subr.mxu0 0.0
  %1426 = vmatpush2.msra.mxu0 0.0
  %1427 = vmatprep.subr.mxu0 0.0
  %1428 = vmatpush2.msra.mxu0 0.0
  %1429 = vmatprep.subr.mxu0 0.0
  %1430 = vmatpush2.msra.mxu0 0.0
  %1431 = vmatprep.subr.mxu0 0.0
  %1432 = vmatpush2.msra.mxu0 0.0
  %1433 = vmatprep.subr.mxu0 0.0
  %1434 = vmatpush2.msra.mxu0 0.0
  %1435 = vmatprep.subr.mxu0 0.0
  %1436 = vmatpush2.msra.mxu0 0.0
  %1437 = vmatprep.subr.mxu0 0.0
  %1438 = vmatpush2.msra.mxu0 0.0
  %1439 = vmatprep.subr.mxu0 0.0
  %1440 = vmatpush2.msra.mxu0 0.0
  %1441 = vmatprep.mubr.f32.mxu0 0.0
  %1442 = vmatmul.mubr.f32.gmra.mxu0 %v1366
  %v1443 = vpop.f32.mrf.mxu0
  %v1444 = vadd.f32 0.0, %v1443
  %v1445 = vpop.f32.mrf.mxu0
  %1446 = vmatprep.mubr.f32.mxu0 0.0
  %1447 = vmatmul.mubr.f32.gmra.mxu0 %v1369
  %v1448 = vpop.f32.mrf.mxu0
  %v1449 = vadd.f32 0.0, %v1448
  %v1450 = vpop.f32.mrf.mxu0
  %1451 = vmatprep.mubr.f32.mxu0 0.0
  %1452 = vmatmul.mubr.f32.gmra.mxu0 %v1372
  %v1453 = vpop.f32.mrf.mxu0
  %v1454 = vadd.f32 0.0, %v1453
  %v1455 = vpop.f32.mrf.mxu0
  %1456 = vdwg.mxu0
  %v1457 = vadd.f32 %v1161, %v1444
  %v1458 = vadd.f32 %v1166, %v1449
  %v1459 = vadd.f32 %v1171, %v1454
  %s1460 = scalar_lea.vmem %s5, 864
  %v1461 = vld [vmem:[%s1460] sm:$0xff]
  %v1462 = vld [vmem:[%s1460 + $0x8] sm:$0xff]
  %v1463 = vld [vmem:[%s1460 + $0x10] sm:$0xff]
  %v1464 = vld [vmem:[%s1460 + $0x18] sm:$0xff]
  %v1465 = vld [vmem:[%s1460 + $0x20] sm:$0xff]
  %v1466 = vld [vmem:[%s1460 + $0x28] sm:$0xff]
  %v1467 = vld [vmem:[%s1460 + $0x30] sm:$0xff]
  %v1468 = vld [vmem:[%s1460 + $0x38] sm:$0xff]
  %v1469 = vld [vmem:[%s1460 + $0x40] sm:$0xff]
  %v1470 = vld [vmem:[%s1460 + $0x48] sm:$0xff]
  %v1471 = vld [vmem:[%s1460 + $0x50] sm:$0xff]
  %v1472 = vld [vmem:[%s1460 + $0x58] sm:$0xff]
  %v1473 = vld [vmem:[%s1460 + $0x60] sm:$0xff]
  %v1474 = vld [vmem:[%s1460 + $0x68] sm:$0xff]
  %v1475 = vld [vmem:[%s1460 + $0x70] sm:$0xff]
  %v1476 = vld [vmem:[%s1460 + $0x78] sm:$0xff]
  %v1477 = vld [vmem:[%s1460 + $0x80] sm:$0xff]
  %v1478 = vld [vmem:[%s1460 + $0x88] sm:$0xff]
  %v1479 = vld [vmem:[%s1460 + $0x90] sm:$0xff]
  %v1480 = vld [vmem:[%s1460 + $0x98] sm:$0xff]
  %v1481 = vld [vmem:[%s1460 + $0xa0] sm:$0xff]
  %v1482 = vld [vmem:[%s1460 + $0xa8] sm:$0xff]
  %v1483 = vld [vmem:[%s1460 + $0xb0] sm:$0xff]
  %v1484 = vld [vmem:[%s1460 + $0xb8] sm:$0xff]
  %v1485 = vld [vmem:[%s1460 + $0xc0] sm:$0xff]
  %v1486 = vld [vmem:[%s1460 + $0xc8] sm:$0xff]
  %v1487 = vld [vmem:[%s1460 + $0xd0] sm:$0xff]
  %v1488 = vld [vmem:[%s1460 + $0xd8] sm:$0xff]
  %v1489 = vld [vmem:[%s1460 + $0xe0] sm:$0xff]
  %v1490 = vld [vmem:[%s1460 + $0xe8] sm:$0xff]
  %v1491 = vld [vmem:[%s1460 + $0xf0] sm:$0xff]
  %v1492 = vld [vmem:[%s1460 + $0xf8] sm:$0xff]
  %v1493 = vld [vmem:[%s1460 + $0x100] sm:$0xff]
  %v1494 = vld [vmem:[%s1460 + $0x108] sm:$0xff]
  %v1495 = vld [vmem:[%s1460 + $0x110] sm:$0xff]
  %v1496 = vld [vmem:[%s1460 + $0x118] sm:$0xff]
  %1497 = vmatprep.subr.mxu0 0.0
  %1498 = vmatpush1.msra.mxu0 %v1476
  %1499 = vmatprep.subr.mxu0 0.0
  %1500 = vmatpush1.msra.mxu0 %v1475
  %1501 = vmatprep.subr.mxu0 0.0
  %1502 = vmatpush1.msra.mxu0 %v1474
  %1503 = vmatprep.subr.mxu0 0.0
  %1504 = vmatpush1.msra.mxu0 %v1473
  %1505 = vmatprep.subr.mxu0 0.0
  %1506 = vmatpush1.msra.mxu0 %v1472
  %1507 = vmatprep.subr.mxu0 0.0
  %1508 = vmatpush1.msra.mxu0 %v1471
  %1509 = vmatprep.subr.mxu0 0.0
  %1510 = vmatpush1.msra.mxu0 %v1470
  %1511 = vmatprep.subr.mxu0 0.0
  %1512 = vmatpush1.msra.mxu0 %v1469
  %1513 = vmatprep.subr.mxu0 0.0
  %1514 = vmatpush1.msra.mxu0 %v1468
  %1515 = vmatprep.subr.mxu0 0.0
  %1516 = vmatpush1.msra.mxu0 %v1467
  %1517 = vmatprep.subr.mxu0 0.0
  %1518 = vmatpush1.msra.mxu0 %v1466
  %1519 = vmatprep.subr.mxu0 0.0
  %1520 = vmatpush1.msra.mxu0 %v1465
  %1521 = vmatprep.subr.mxu0 0.0
  %1522 = vmatpush1.msra.mxu0 %v1464
  %1523 = vmatprep.subr.mxu0 0.0
  %1524 = vmatpush1.msra.mxu0 %v1463
  %1525 = vmatprep.subr.mxu0 0.0
  %1526 = vmatpush1.msra.mxu0 %v1462
  %1527 = vmatprep.subr.mxu0 0.0
  %1528 = vmatpush1.msra.mxu0 %v1461
  %1529 = vmatprep.subr.mxu0 0.0
  %1530 = vmatpush2.msra.mxu0 %v1492
  %1531 = vmatprep.subr.mxu0 0.0
  %1532 = vmatpush2.msra.mxu0 %v1491
  %1533 = vmatprep.subr.mxu0 0.0
  %1534 = vmatpush2.msra.mxu0 %v1490
  %1535 = vmatprep.subr.mxu0 0.0
  %1536 = vmatpush2.msra.mxu0 %v1489
  %1537 = vmatprep.subr.mxu0 0.0
  %1538 = vmatpush2.msra.mxu0 %v1488
  %1539 = vmatprep.subr.mxu0 0.0
  %1540 = vmatpush2.msra.mxu0 %v1487
  %1541 = vmatprep.subr.mxu0 0.0
  %1542 = vmatpush2.msra.mxu0 %v1486
  %1543 = vmatprep.subr.mxu0 0.0
  %1544 = vmatpush2.msra.mxu0 %v1485
  %1545 = vmatprep.subr.mxu0 0.0
  %1546 = vmatpush2.msra.mxu0 %v1484
  %1547 = vmatprep.subr.mxu0 0.0
  %1548 = vmatpush2.msra.mxu0 %v1483
  %1549 = vmatprep.subr.mxu0 0.0
  %1550 = vmatpush2.msra.mxu0 %v1482
  %1551 = vmatprep.subr.mxu0 0.0
  %1552 = vmatpush2.msra.mxu0 %v1481
  %1553 = vmatprep.subr.mxu0 0.0
  %1554 = vmatpush2.msra.mxu0 %v1480
  %1555 = vmatprep.subr.mxu0 0.0
  %1556 = vmatpush2.msra.mxu0 %v1479
  %1557 = vmatprep.subr.mxu0 0.0
  %1558 = vmatpush2.msra.mxu0 %v1478
  %1559 = vmatprep.subr.mxu0 0.0
  %1560 = vmatpush2.msra.mxu0 %v1477
  %1561 = vmatprep.mubr.f32.mxu0 %v596
  %1562 = vmatmul.mubr.f32.gmra.mxu0 %v595
  %v1563 = vpop.f32.mrf.mxu0
  %v1564 = vadd.f32 0.0, %v1563
  %v1565 = vpop.f32.mrf.mxu0
  %1566 = vmatprep.mubr.f32.mxu0 %v599
  %1567 = vmatmul.mubr.f32.gmra.mxu0 %v598
  %v1568 = vpop.f32.mrf.mxu0
  %v1569 = vadd.f32 0.0, %v1568
  %v1570 = vpop.f32.mrf.mxu0
  %1571 = vdwg.mxu0
  %1572 = vmatprep.subr.mxu0 0.0
  %1573 = vmatpush1.msra.mxu0 0.0
  %1574 = vmatprep.subr.mxu0 0.0
  %1575 = vmatpush1.msra.mxu0 0.0
  %1576 = vmatprep.subr.mxu0 0.0
  %1577 = vmatpush1.msra.mxu0 0.0
  %1578 = vmatprep.subr.mxu0 0.0
  %1579 = vmatpush1.msra.mxu0 0.0
  %1580 = vmatprep.subr.mxu0 0.0
  %1581 = vmatpush1.msra.mxu0 0.0
  %1582 = vmatprep.subr.mxu0 0.0
  %1583 = vmatpush1.msra.mxu0 0.0
  %1584 = vmatprep.subr.mxu0 0.0
  %1585 = vmatpush1.msra.mxu0 0.0
  %1586 = vmatprep.subr.mxu0 0.0
  %1587 = vmatpush1.msra.mxu0 0.0
  %1588 = vmatprep.subr.mxu0 0.0
  %1589 = vmatpush1.msra.mxu0 0.0
  %1590 = vmatprep.subr.mxu0 0.0
  %1591 = vmatpush1.msra.mxu0 0.0
  %1592 = vmatprep.subr.mxu0 0.0
  %1593 = vmatpush1.msra.mxu0 0.0
  %1594 = vmatprep.subr.mxu0 0.0
  %1595 = vmatpush1.msra.mxu0 0.0
  %1596 = vmatprep.subr.mxu0 0.0
  %1597 = vmatpush1.msra.mxu0 %v1496
  %1598 = vmatprep.subr.mxu0 0.0
  %1599 = vmatpush1.msra.mxu0 %v1495
  %1600 = vmatprep.subr.mxu0 0.0
  %1601 = vmatpush1.msra.mxu0 %v1494
  %1602 = vmatprep.subr.mxu0 0.0
  %1603 = vmatpush1.msra.mxu0 %v1493
  %1604 = vmatprep.subr.mxu0 0.0
  %1605 = vmatpush2.msra.mxu0 0.0
  %1606 = vmatprep.subr.mxu0 0.0
  %1607 = vmatpush2.msra.mxu0 0.0
  %1608 = vmatprep.subr.mxu0 0.0
  %1609 = vmatpush2.msra.mxu0 0.0
  %1610 = vmatprep.subr.mxu0 0.0
  %1611 = vmatpush2.msra.mxu0 0.0
  %1612 = vmatprep.subr.mxu0 0.0
  %1613 = vmatpush2.msra.mxu0 0.0
  %1614 = vmatprep.subr.mxu0 0.0
  %1615 = vmatpush2.msra.mxu0 0.0
  %1616 = vmatprep.subr.mxu0 0.0
  %1617 = vmatpush2.msra.mxu0 0.0
  %1618 = vmatprep.subr.mxu0 0.0
  %1619 = vmatpush2.msra.mxu0 0.0
  %1620 = vmatprep.subr.mxu0 0.0
  %1621 = vmatpush2.msra.mxu0 0.0
  %1622 = vmatprep.subr.mxu0 0.0
  %1623 = vmatpush2.msra.mxu0 0.0
  %1624 = vmatprep.subr.mxu0 0.0
  %1625 = vmatpush2.msra.mxu0 0.0
  %1626 = vmatprep.subr.mxu0 0.0
  %1627 = vmatpush2.msra.mxu0 0.0
  %1628 = vmatprep.subr.mxu0 0.0
  %1629 = vmatpush2.msra.mxu0 0.0
  %1630 = vmatprep.subr.mxu0 0.0
  %1631 = vmatpush2.msra.mxu0 0.0
  %1632 = vmatprep.subr.mxu0 0.0
  %1633 = vmatpush2.msra.mxu0 0.0
  %1634 = vmatprep.subr.mxu0 0.0
  %1635 = vmatpush2.msra.mxu0 0.0
  %1636 = vmatprep.mubr.f32.mxu0 0.0
  %1637 = vmatmul.mubr.f32.gmra.mxu0 %v639
  %v1638 = vpop.f32.mrf.mxu0
  %v1639 = vadd.f32 %v1564, %v1638
  %v1640 = vpop.f32.mrf.mxu0
  %1641 = vmatprep.mubr.f32.mxu0 0.0
  %1642 = vmatmul.mubr.f32.gmra.mxu0 %v642
  %v1643 = vpop.f32.mrf.mxu0
  %v1644 = vadd.f32 %v1569, %v1643
  %v1645 = vpop.f32.mrf.mxu0
  %1646 = vdwg.mxu0
  %s1647 = scalar_lea.vmem %s3, 72
  %v1648 = vld [vmem:[%s1647] sm:$0xff]
  %v1649 = vld [vmem:[%s1647 + $0x8] sm:$0xff]
  %v1650 = vld [vmem:[%s1647 + $0x10] sm:$0xf]
  %v1652 = vsel %vm988, %v1648, 0
  %v1655 = vsel %vm988, %v1649, 0
  %v1658 = vsel %vm988, %v1650, 0
  %v1661 = vsel %vm998, %v1644, 0
  %1663 = vmatprep.subr.mxu0 0.0
  %1664 = vmatpush1.msra.mxu0 0.0
  %1665 = vmatprep.subr.mxu0 0.0
  %1666 = vmatpush1.msra.mxu0 0.0
  %1667 = vmatprep.subr.mxu0 0.0
  %1668 = vmatpush1.msra.mxu0 0.0
  %1669 = vmatprep.subr.mxu0 0.0
  %1670 = vmatpush1.msra.mxu0 0.0
  %1671 = vmatprep.subr.mxu0 0.0
  %1672 = vmatpush1.msra.mxu0 0.0
  %1673 = vmatprep.subr.mxu0 0.0
  %1674 = vmatpush1.msra.mxu0 0.0
  %1675 = vmatprep.subr.mxu0 0.0
  %1676 = vmatpush1.msra.mxu0 0.0
  %1677 = vmatprep.subr.mxu0 0.0
  %1678 = vmatpush1.msra.mxu0 0.0
  %1679 = vmatprep.subr.mxu0 0.0
  %1680 = vmatpush1.msra.mxu0 0.0
  %1681 = vmatprep.subr.mxu0 0.0
  %1682 = vmatpush1.msra.mxu0 0.0
  %1683 = vmatprep.subr.mxu0 0.0
  %1684 = vmatpush1.msra.mxu0 0.0
  %1685 = vmatprep.subr.mxu0 0.0
  %1686 = vmatpush1.msra.mxu0 0.0
  %1687 = vmatprep.subr.mxu0 0.0
  %1688 = vmatpush1.msra.mxu0 0.0
  %1689 = vmatprep.subr.mxu0 0.0
  %1690 = vmatpush1.msra.mxu0 0.0
  %1691 = vmatprep.subr.mxu0 0.0
  %1692 = vmatpush1.msra.mxu0 %v1661
  %1693 = vmatprep.subr.mxu0 0.0
  %1694 = vmatpush1.msra.mxu0 %v1639
  %1695 = vmatprep.subr.mxu0 0.0
  %1696 = vmatpush2.msra.mxu0 0.0
  %1697 = vmatprep.subr.mxu0 0.0
  %1698 = vmatpush2.msra.mxu0 0.0
  %1699 = vmatprep.subr.mxu0 0.0
  %1700 = vmatpush2.msra.mxu0 0.0
  %1701 = vmatprep.subr.mxu0 0.0
  %1702 = vmatpush2.msra.mxu0 0.0
  %1703 = vmatprep.subr.mxu0 0.0
  %1704 = vmatpush2.msra.mxu0 0.0
  %1705 = vmatprep.subr.mxu0 0.0
  %1706 = vmatpush2.msra.mxu0 0.0
  %1707 = vmatprep.subr.mxu0 0.0
  %1708 = vmatpush2.msra.mxu0 0.0
  %1709 = vmatprep.subr.mxu0 0.0
  %1710 = vmatpush2.msra.mxu0 0.0
  %1711 = vmatprep.subr.mxu0 0.0
  %1712 = vmatpush2.msra.mxu0 0.0
  %1713 = vmatprep.subr.mxu0 0.0
  %1714 = vmatpush2.msra.mxu0 0.0
  %1715 = vmatprep.subr.mxu0 0.0
  %1716 = vmatpush2.msra.mxu0 0.0
  %1717 = vmatprep.subr.mxu0 0.0
  %1718 = vmatpush2.msra.mxu0 0.0
  %1719 = vmatprep.subr.mxu0 0.0
  %1720 = vmatpush2.msra.mxu0 0.0
  %1721 = vmatprep.subr.mxu0 0.0
  %1722 = vmatpush2.msra.mxu0 0.0
  %1723 = vmatprep.subr.mxu0 0.0
  %1724 = vmatpush2.msra.mxu0 0.0
  %1725 = vmatprep.subr.mxu0 0.0
  %1726 = vmatpush2.msra.mxu0 0.0
  %1727 = vmatprep.mubr.f32.mxu0 0.0
  %1728 = vmatmul.mubr.f32.gmra.mxu0 %v1652
  %v1729 = vpop.f32.mrf.mxu0
  %v1730 = vadd.f32 0.0, %v1729
  %v1731 = vpop.f32.mrf.mxu0
  %1732 = vmatprep.mubr.f32.mxu0 0.0
  %1733 = vmatmul.mubr.f32.gmra.mxu0 %v1655
  %v1734 = vpop.f32.mrf.mxu0
  %v1735 = vadd.f32 0.0, %v1734
  %v1736 = vpop.f32.mrf.mxu0
  %1737 = vmatprep.mubr.f32.mxu0 0.0
  %1738 = vmatmul.mubr.f32.gmra.mxu0 %v1658
  %v1739 = vpop.f32.mrf.mxu0
  %v1740 = vadd.f32 0.0, %v1739
  %v1741 = vpop.f32.mrf.mxu0
  %1742 = vdwg.mxu0
  %v1743 = vadd.f32 %v1457, %v1730
  %v1744 = vadd.f32 %v1458, %v1735
  %v1745 = vadd.f32 %v1459, %v1740
  %s1746 = scalar_lea.vmem %s5, 1152
  %v1747 = vld [vmem:[%s1746] sm:$0xff]
  %v1748 = vld [vmem:[%s1746 + $0x8] sm:$0xff]
  %v1749 = vld [vmem:[%s1746 + $0x10] sm:$0xff]
  %v1750 = vld [vmem:[%s1746 + $0x18] sm:$0xff]
  %v1751 = vld [vmem:[%s1746 + $0x20] sm:$0xff]
  %v1752 = vld [vmem:[%s1746 + $0x28] sm:$0xff]
  %v1753 = vld [vmem:[%s1746 + $0x30] sm:$0xff]
  %v1754 = vld [vmem:[%s1746 + $0x38] sm:$0xff]
  %v1755 = vld [vmem:[%s1746 + $0x40] sm:$0xff]
  %v1756 = vld [vmem:[%s1746 + $0x48] sm:$0xff]
  %v1757 = vld [vmem:[%s1746 + $0x50] sm:$0xff]
  %v1758 = vld [vmem:[%s1746 + $0x58] sm:$0xff]
  %v1759 = vld [vmem:[%s1746 + $0x60] sm:$0xff]
  %v1760 = vld [vmem:[%s1746 + $0x68] sm:$0xff]
  %v1761 = vld [vmem:[%s1746 + $0x70] sm:$0xff]
  %v1762 = vld [vmem:[%s1746 + $0x78] sm:$0xff]
  %v1763 = vld [vmem:[%s1746 + $0x80] sm:$0xff]
  %v1764 = vld [vmem:[%s1746 + $0x88] sm:$0xff]
  %v1765 = vld [vmem:[%s1746 + $0x90] sm:$0xff]
  %v1766 = vld [vmem:[%s1746 + $0x98] sm:$0xff]
  %v1767 = vld [vmem:[%s1746 + $0xa0] sm:$0xff]
  %v1768 = vld [vmem:[%s1746 + $0xa8] sm:$0xff]
  %v1769 = vld [vmem:[%s1746 + $0xb0] sm:$0xff]
  %v1770 = vld [vmem:[%s1746 + $0xb8] sm:$0xff]
  %v1771 = vld [vmem:[%s1746 + $0xc0] sm:$0xff]
  %v1772 = vld [vmem:[%s1746 + $0xc8] sm:$0xff]
  %v1773 = vld [vmem:[%s1746 + $0xd0] sm:$0xff]
  %v1774 = vld [vmem:[%s1746 + $0xd8] sm:$0xff]
  %v1775 = vld [vmem:[%s1746 + $0xe0] sm:$0xff]
  %v1776 = vld [vmem:[%s1746 + $0xe8] sm:$0xff]
  %v1777 = vld [vmem:[%s1746 + $0xf0] sm:$0xff]
  %v1778 = vld [vmem:[%s1746 + $0xf8] sm:$0xff]
  %v1779 = vld [vmem:[%s1746 + $0x100] sm:$0xff]
  %v1780 = vld [vmem:[%s1746 + $0x108] sm:$0xff]
  %v1781 = vld [vmem:[%s1746 + $0x110] sm:$0xff]
  %v1782 = vld [vmem:[%s1746 + $0x118] sm:$0xff]
  %1783 = vmatprep.subr.mxu0 0.0
  %1784 = vmatpush1.msra.mxu0 %v1762
  %1785 = vmatprep.subr.mxu0 0.0
  %1786 = vmatpush1.msra.mxu0 %v1761
  %1787 = vmatprep.subr.mxu0 0.0
  %1788 = vmatpush1.msra.mxu0 %v1760
  %1789 = vmatprep.subr.mxu0 0.0
  %1790 = vmatpush1.msra.mxu0 %v1759
  %1791 = vmatprep.subr.mxu0 0.0
  %1792 = vmatpush1.msra.mxu0 %v1758
  %1793 = vmatprep.subr.mxu0 0.0
  %1794 = vmatpush1.msra.mxu0 %v1757
  %1795 = vmatprep.subr.mxu0 0.0
  %1796 = vmatpush1.msra.mxu0 %v1756
  %1797 = vmatprep.subr.mxu0 0.0
  %1798 = vmatpush1.msra.mxu0 %v1755
  %1799 = vmatprep.subr.mxu0 0.0
  %1800 = vmatpush1.msra.mxu0 %v1754
  %1801 = vmatprep.subr.mxu0 0.0
  %1802 = vmatpush1.msra.mxu0 %v1753
  %1803 = vmatprep.subr.mxu0 0.0
  %1804 = vmatpush1.msra.mxu0 %v1752
  %1805 = vmatprep.subr.mxu0 0.0
  %1806 = vmatpush1.msra.mxu0 %v1751
  %1807 = vmatprep.subr.mxu0 0.0
  %1808 = vmatpush1.msra.mxu0 %v1750
  %1809 = vmatprep.subr.mxu0 0.0
  %1810 = vmatpush1.msra.mxu0 %v1749
  %1811 = vmatprep.subr.mxu0 0.0
  %1812 = vmatpush1.msra.mxu0 %v1748
  %1813 = vmatprep.subr.mxu0 0.0
  %1814 = vmatpush1.msra.mxu0 %v1747
  %1815 = vmatprep.subr.mxu0 0.0
  %1816 = vmatpush2.msra.mxu0 %v1778
  %1817 = vmatprep.subr.mxu0 0.0
  %1818 = vmatpush2.msra.mxu0 %v1777
  %1819 = vmatprep.subr.mxu0 0.0
  %1820 = vmatpush2.msra.mxu0 %v1776
  %1821 = vmatprep.subr.mxu0 0.0
  %1822 = vmatpush2.msra.mxu0 %v1775
  %1823 = vmatprep.subr.mxu0 0.0
  %1824 = vmatpush2.msra.mxu0 %v1774
  %1825 = vmatprep.subr.mxu0 0.0
  %1826 = vmatpush2.msra.mxu0 %v1773
  %1827 = vmatprep.subr.mxu0 0.0
  %1828 = vmatpush2.msra.mxu0 %v1772
  %1829 = vmatprep.subr.mxu0 0.0
  %1830 = vmatpush2.msra.mxu0 %v1771
  %1831 = vmatprep.subr.mxu0 0.0
  %1832 = vmatpush2.msra.mxu0 %v1770
  %1833 = vmatprep.subr.mxu0 0.0
  %1834 = vmatpush2.msra.mxu0 %v1769
  %1835 = vmatprep.subr.mxu0 0.0
  %1836 = vmatpush2.msra.mxu0 %v1768
  %1837 = vmatprep.subr.mxu0 0.0
  %1838 = vmatpush2.msra.mxu0 %v1767
  %1839 = vmatprep.subr.mxu0 0.0
  %1840 = vmatpush2.msra.mxu0 %v1766
  %1841 = vmatprep.subr.mxu0 0.0
  %1842 = vmatpush2.msra.mxu0 %v1765
  %1843 = vmatprep.subr.mxu0 0.0
  %1844 = vmatpush2.msra.mxu0 %v1764
  %1845 = vmatprep.subr.mxu0 0.0
  %1846 = vmatpush2.msra.mxu0 %v1763
  %1847 = vmatprep.mubr.f32.mxu0 %v596
  %1848 = vmatmul.mubr.f32.gmra.mxu0 %v595
  %v1849 = vpop.f32.mrf.mxu0
  %v1850 = vadd.f32 0.0, %v1849
  %v1851 = vpop.f32.mrf.mxu0
  %1852 = vmatprep.mubr.f32.mxu0 %v599
  %1853 = vmatmul.mubr.f32.gmra.mxu0 %v598
  %v1854 = vpop.f32.mrf.mxu0
  %v1855 = vadd.f32 0.0, %v1854
  %v1856 = vpop.f32.mrf.mxu0
  %1857 = vdwg.mxu0
  %1858 = vmatprep.subr.mxu0 0.0
  %1859 = vmatpush1.msra.mxu0 0.0
  %1860 = vmatprep.subr.mxu0 0.0
  %1861 = vmatpush1.msra.mxu0 0.0
  %1862 = vmatprep.subr.mxu0 0.0
  %1863 = vmatpush1.msra.mxu0 0.0
  %1864 = vmatprep.subr.mxu0 0.0
  %1865 = vmatpush1.msra.mxu0 0.0
  %1866 = vmatprep.subr.mxu0 0.0
  %1867 = vmatpush1.msra.mxu0 0.0
  %1868 = vmatprep.subr.mxu0 0.0
  %1869 = vmatpush1.msra.mxu0 0.0
  %1870 = vmatprep.subr.mxu0 0.0
  %1871 = vmatpush1.msra.mxu0 0.0
  %1872 = vmatprep.subr.mxu0 0.0
  %1873 = vmatpush1.msra.mxu0 0.0
  %1874 = vmatprep.subr.mxu0 0.0
  %1875 = vmatpush1.msra.mxu0 0.0
  %1876 = vmatprep.subr.mxu0 0.0
  %1877 = vmatpush1.msra.mxu0 0.0
  %1878 = vmatprep.subr.mxu0 0.0
  %1879 = vmatpush1.msra.mxu0 0.0
  %1880 = vmatprep.subr.mxu0 0.0
  %1881 = vmatpush1.msra.mxu0 0.0
  %1882 = vmatprep.subr.mxu0 0.0
  %1883 = vmatpush1.msra.mxu0 %v1782
  %1884 = vmatprep.subr.mxu0 0.0
  %1885 = vmatpush1.msra.mxu0 %v1781
  %1886 = vmatprep.subr.mxu0 0.0
  %1887 = vmatpush1.msra.mxu0 %v1780
  %1888 = vmatprep.subr.mxu0 0.0
  %1889 = vmatpush1.msra.mxu0 %v1779
  %1890 = vmatprep.subr.mxu0 0.0
  %1891 = vmatpush2.msra.mxu0 0.0
  %1892 = vmatprep.subr.mxu0 0.0
  %1893 = vmatpush2.msra.mxu0 0.0
  %1894 = vmatprep.subr.mxu0 0.0
  %1895 = vmatpush2.msra.mxu0 0.0
  %1896 = vmatprep.subr.mxu0 0.0
  %1897 = vmatpush2.msra.mxu0 0.0
  %1898 = vmatprep.subr.mxu0 0.0
  %1899 = vmatpush2.msra.mxu0 0.0
  %1900 = vmatprep.subr.mxu0 0.0
  %1901 = vmatpush2.msra.mxu0 0.0
  %1902 = vmatprep.subr.mxu0 0.0
  %1903 = vmatpush2.msra.mxu0 0.0
  %1904 = vmatprep.subr.mxu0 0.0
  %1905 = vmatpush2.msra.mxu0 0.0
  %1906 = vmatprep.subr.mxu0 0.0
  %1907 = vmatpush2.msra.mxu0 0.0
  %1908 = vmatprep.subr.mxu0 0.0
  %1909 = vmatpush2.msra.mxu0 0.0
  %1910 = vmatprep.subr.mxu0 0.0
  %1911 = vmatpush2.msra.mxu0 0.0
  %1912 = vmatprep.subr.mxu0 0.0
  %1913 = vmatpush2.msra.mxu0 0.0
  %1914 = vmatprep.subr.mxu0 0.0
  %1915 = vmatpush2.msra.mxu0 0.0
  %1916 = vmatprep.subr.mxu0 0.0
  %1917 = vmatpush2.msra.mxu0 0.0
  %1918 = vmatprep.subr.mxu0 0.0
  %1919 = vmatpush2.msra.mxu0 0.0
  %1920 = vmatprep.subr.mxu0 0.0
  %1921 = vmatpush2.msra.mxu0 0.0
  %1922 = vmatprep.mubr.f32.mxu0 0.0
  %1923 = vmatmul.mubr.f32.gmra.mxu0 %v639
  %v1924 = vpop.f32.mrf.mxu0
  %v1925 = vadd.f32 %v1850, %v1924
  %v1926 = vpop.f32.mrf.mxu0
  %1927 = vmatprep.mubr.f32.mxu0 0.0
  %1928 = vmatmul.mubr.f32.gmra.mxu0 %v642
  %v1929 = vpop.f32.mrf.mxu0
  %v1930 = vadd.f32 %v1855, %v1929
  %v1931 = vpop.f32.mrf.mxu0
  %1932 = vdwg.mxu0
  %s1933 = scalar_lea.vmem %s3, 96
  %v1934 = vld [vmem:[%s1933] sm:$0xff]
  %v1935 = vld [vmem:[%s1933 + $0x8] sm:$0xff]
  %v1936 = vld [vmem:[%s1933 + $0x10] sm:$0xf]
  %v1938 = vsel %vm988, %v1934, 0
  %v1941 = vsel %vm988, %v1935, 0
  %v1944 = vsel %vm988, %v1936, 0
  %v1947 = vsel %vm998, %v1930, 0
  %1949 = vmatprep.subr.mxu0 0.0
  %1950 = vmatpush1.msra.mxu0 0.0
  %1951 = vmatprep.subr.mxu0 0.0
  %1952 = vmatpush1.msra.mxu0 0.0
  %1953 = vmatprep.subr.mxu0 0.0
  %1954 = vmatpush1.msra.mxu0 0.0
  %1955 = vmatprep.subr.mxu0 0.0
  %1956 = vmatpush1.msra.mxu0 0.0
  %1957 = vmatprep.subr.mxu0 0.0
  %1958 = vmatpush1.msra.mxu0 0.0
  %1959 = vmatprep.subr.mxu0 0.0
  %1960 = vmatpush1.msra.mxu0 0.0
  %1961 = vmatprep.subr.mxu0 0.0
  %1962 = vmatpush1.msra.mxu0 0.0
  %1963 = vmatprep.subr.mxu0 0.0
  %1964 = vmatpush1.msra.mxu0 0.0
  %1965 = vmatprep.subr.mxu0 0.0
  %1966 = vmatpush1.msra.mxu0 0.0
  %1967 = vmatprep.subr.mxu0 0.0
  %1968 = vmatpush1.msra.mxu0 0.0
  %1969 = vmatprep.subr.mxu0 0.0
  %1970 = vmatpush1.msra.mxu0 0.0
  %1971 = vmatprep.subr.mxu0 0.0
  %1972 = vmatpush1.msra.mxu0 0.0
  %1973 = vmatprep.subr.mxu0 0.0
  %1974 = vmatpush1.msra.mxu0 0.0
  %1975 = vmatprep.subr.mxu0 0.0
  %1976 = vmatpush1.msra.mxu0 0.0
  %1977 = vmatprep.subr.mxu0 0.0
  %1978 = vmatpush1.msra.mxu0 %v1947
  %1979 = vmatprep.subr.mxu0 0.0
  %1980 = vmatpush1.msra.mxu0 %v1925
  %1981 = vmatprep.subr.mxu0 0.0
  %1982 = vmatpush2.msra.mxu0 0.0
  %1983 = vmatprep.subr.mxu0 0.0
  %1984 = vmatpush2.msra.mxu0 0.0
  %1985 = vmatprep.subr.mxu0 0.0
  %1986 = vmatpush2.msra.mxu0 0.0
  %1987 = vmatprep.subr.mxu0 0.0
  %1988 = vmatpush2.msra.mxu0 0.0
  %1989 = vmatprep.subr.mxu0 0.0
  %1990 = vmatpush2.msra.mxu0 0.0
  %1991 = vmatprep.subr.mxu0 0.0
  %1992 = vmatpush2.msra.mxu0 0.0
  %1993 = vmatprep.subr.mxu0 0.0
  %1994 = vmatpush2.msra.mxu0 0.0
  %1995 = vmatprep.subr.mxu0 0.0
  %1996 = vmatpush2.msra.mxu0 0.0
  %1997 = vmatprep.subr.mxu0 0.0
  %1998 = vmatpush2.msra.mxu0 0.0
  %1999 = vmatprep.subr.mxu0 0.0
  %2000 = vmatpush2.msra.mxu0 0.0
  %2001 = vmatprep.subr.mxu0 0.0
  %2002 = vmatpush2.msra.mxu0 0.0
  %2003 = vmatprep.subr.mxu0 0.0
  %2004 = vmatpush2.msra.mxu0 0.0
  %2005 = vmatprep.subr.mxu0 0.0
  %2006 = vmatpush2.msra.mxu0 0.0
  %2007 = vmatprep.subr.mxu0 0.0
  %2008 = vmatpush2.msra.mxu0 0.0
  %2009 = vmatprep.subr.mxu0 0.0
  %2010 = vmatpush2.msra.mxu0 0.0
  %2011 = vmatprep.subr.mxu0 0.0
  %2012 = vmatpush2.msra.mxu0 0.0
  %2013 = vmatprep.mubr.f32.mxu0 0.0
  %2014 = vmatmul.mubr.f32.gmra.mxu0 %v1938
  %v2015 = vpop.f32.mrf.mxu0
  %v2016 = vadd.f32 0.0, %v2015
  %v2017 = vpop.f32.mrf.mxu0
  %2018 = vmatprep.mubr.f32.mxu0 0.0
  %2019 = vmatmul.mubr.f32.gmra.mxu0 %v1941
  %v2020 = vpop.f32.mrf.mxu0
  %v2021 = vadd.f32 0.0, %v2020
  %v2022 = vpop.f32.mrf.mxu0
  %2023 = vmatprep.mubr.f32.mxu0 0.0
  %2024 = vmatmul.mubr.f32.gmra.mxu0 %v1944
  %v2025 = vpop.f32.mrf.mxu0
  %v2026 = vadd.f32 0.0, %v2025
  %v2027 = vpop.f32.mrf.mxu0
  %2028 = vdwg.mxu0
  %v2029 = vadd.f32 %v1743, %v2016
  %v2030 = vadd.f32 %v1744, %v2021
  %v2031 = vadd.f32 %v1745, %v2026
  %s2032 = scalar_lea.vmem %s5, 1440
  %v2033 = vld [vmem:[%s2032] sm:$0xff]
  %v2034 = vld [vmem:[%s2032 + $0x8] sm:$0xff]
  %v2035 = vld [vmem:[%s2032 + $0x10] sm:$0xff]
  %v2036 = vld [vmem:[%s2032 + $0x18] sm:$0xff]
  %v2037 = vld [vmem:[%s2032 + $0x20] sm:$0xff]
  %v2038 = vld [vmem:[%s2032 + $0x28] sm:$0xff]
  %v2039 = vld [vmem:[%s2032 + $0x30] sm:$0xff]
  %v2040 = vld [vmem:[%s2032 + $0x38] sm:$0xff]
  %v2041 = vld [vmem:[%s2032 + $0x40] sm:$0xff]
  %v2042 = vld [vmem:[%s2032 + $0x48] sm:$0xff]
  %v2043 = vld [vmem:[%s2032 + $0x50] sm:$0xff]
  %v2044 = vld [vmem:[%s2032 + $0x58] sm:$0xff]
  %v2045 = vld [vmem:[%s2032 + $0x60] sm:$0xff]
  %v2046 = vld [vmem:[%s2032 + $0x68] sm:$0xff]
  %v2047 = vld [vmem:[%s2032 + $0x70] sm:$0xff]
  %v2048 = vld [vmem:[%s2032 + $0x78] sm:$0xff]
  %v2049 = vld [vmem:[%s2032 + $0x80] sm:$0xff]
  %v2050 = vld [vmem:[%s2032 + $0x88] sm:$0xff]
  %v2051 = vld [vmem:[%s2032 + $0x90] sm:$0xff]
  %v2052 = vld [vmem:[%s2032 + $0x98] sm:$0xff]
  %v2053 = vld [vmem:[%s2032 + $0xa0] sm:$0xff]
  %v2054 = vld [vmem:[%s2032 + $0xa8] sm:$0xff]
  %v2055 = vld [vmem:[%s2032 + $0xb0] sm:$0xff]
  %v2056 = vld [vmem:[%s2032 + $0xb8] sm:$0xff]
  %v2057 = vld [vmem:[%s2032 + $0xc0] sm:$0xff]
  %v2058 = vld [vmem:[%s2032 + $0xc8] sm:$0xff]
  %v2059 = vld [vmem:[%s2032 + $0xd0] sm:$0xff]
  %v2060 = vld [vmem:[%s2032 + $0xd8] sm:$0xff]
  %v2061 = vld [vmem:[%s2032 + $0xe0] sm:$0xff]
  %v2062 = vld [vmem:[%s2032 + $0xe8] sm:$0xff]
  %v2063 = vld [vmem:[%s2032 + $0xf0] sm:$0xff]
  %v2064 = vld [vmem:[%s2032 + $0xf8] sm:$0xff]
  %v2065 = vld [vmem:[%s2032 + $0x100] sm:$0xff]
  %v2066 = vld [vmem:[%s2032 + $0x108] sm:$0xff]
  %v2067 = vld [vmem:[%s2032 + $0x110] sm:$0xff]
  %v2068 = vld [vmem:[%s2032 + $0x118] sm:$0xff]
  %2069 = vmatprep.subr.mxu0 0.0
  %2070 = vmatpush1.msra.mxu0 %v2048
  %2071 = vmatprep.subr.mxu0 0.0
  %2072 = vmatpush1.msra.mxu0 %v2047
  %2073 = vmatprep.subr.mxu0 0.0
  %2074 = vmatpush1.msra.mxu0 %v2046
  %2075 = vmatprep.subr.mxu0 0.0
  %2076 = vmatpush1.msra.mxu0 %v2045
  %2077 = vmatprep.subr.mxu0 0.0
  %2078 = vmatpush1.msra.mxu0 %v2044
  %2079 = vmatprep.subr.mxu0 0.0
  %2080 = vmatpush1.msra.mxu0 %v2043
  %2081 = vmatprep.subr.mxu0 0.0
  %2082 = vmatpush1.msra.mxu0 %v2042
  %2083 = vmatprep.subr.mxu0 0.0
  %2084 = vmatpush1.msra.mxu0 %v2041
  %2085 = vmatprep.subr.mxu0 0.0
  %2086 = vmatpush1.msra.mxu0 %v2040
  %2087 = vmatprep.subr.mxu0 0.0
  %2088 = vmatpush1.msra.mxu0 %v2039
  %2089 = vmatprep.subr.mxu0 0.0
  %2090 = vmatpush1.msra.mxu0 %v2038
  %2091 = vmatprep.subr.mxu0 0.0
  %2092 = vmatpush1.msra.mxu0 %v2037
  %2093 = vmatprep.subr.mxu0 0.0
  %2094 = vmatpush1.msra.mxu0 %v2036
  %2095 = vmatprep.subr.mxu0 0.0
  %2096 = vmatpush1.msra.mxu0 %v2035
  %2097 = vmatprep.subr.mxu0 0.0
  %2098 = vmatpush1.msra.mxu0 %v2034
  %2099 = vmatprep.subr.mxu0 0.0
  %2100 = vmatpush1.msra.mxu0 %v2033
  %2101 = vmatprep.subr.mxu0 0.0
  %2102 = vmatpush2.msra.mxu0 %v2064
  %2103 = vmatprep.subr.mxu0 0.0
  %2104 = vmatpush2.msra.mxu0 %v2063
  %2105 = vmatprep.subr.mxu0 0.0
  %2106 = vmatpush2.msra.mxu0 %v2062
  %2107 = vmatprep.subr.mxu0 0.0
  %2108 = vmatpush2.msra.mxu0 %v2061
  %2109 = vmatprep.subr.mxu0 0.0
  %2110 = vmatpush2.msra.mxu0 %v2060
  %2111 = vmatprep.subr.mxu0 0.0
  %2112 = vmatpush2.msra.mxu0 %v2059
  %2113 = vmatprep.subr.mxu0 0.0
  %2114 = vmatpush2.msra.mxu0 %v2058
  %2115 = vmatprep.subr.mxu0 0.0
  %2116 = vmatpush2.msra.mxu0 %v2057
  %2117 = vmatprep.subr.mxu0 0.0
  %2118 = vmatpush2.msra.mxu0 %v2056
  %2119 = vmatprep.subr.mxu0 0.0
  %2120 = vmatpush2.msra.mxu0 %v2055
  %2121 = vmatprep.subr.mxu0 0.0
  %2122 = vmatpush2.msra.mxu0 %v2054
  %2123 = vmatprep.subr.mxu0 0.0
  %2124 = vmatpush2.msra.mxu0 %v2053
  %2125 = vmatprep.subr.mxu0 0.0
  %2126 = vmatpush2.msra.mxu0 %v2052
  %2127 = vmatprep.subr.mxu0 0.0
  %2128 = vmatpush2.msra.mxu0 %v2051
  %2129 = vmatprep.subr.mxu0 0.0
  %2130 = vmatpush2.msra.mxu0 %v2050
  %2131 = vmatprep.subr.mxu0 0.0
  %2132 = vmatpush2.msra.mxu0 %v2049
  %2133 = vmatprep.mubr.f32.mxu0 %v596
  %2134 = vmatmul.mubr.f32.gmra.mxu0 %v595
  %v2135 = vpop.f32.mrf.mxu0
  %v2136 = vadd.f32 0.0, %v2135
  %v2137 = vpop.f32.mrf.mxu0
  %2138 = vmatprep.mubr.f32.mxu0 %v599
  %2139 = vmatmul.mubr.f32.gmra.mxu0 %v598
  %v2140 = vpop.f32.mrf.mxu0
  %v2141 = vadd.f32 0.0, %v2140
  %v2142 = vpop.f32.mrf.mxu0
  %2143 = vdwg.mxu0
  %2144 = vmatprep.subr.mxu0 0.0
  %2145 = vmatpush1.msra.mxu0 0.0
  %2146 = vmatprep.subr.mxu0 0.0
  %2147 = vmatpush1.msra.mxu0 0.0
  %2148 = vmatprep.subr.mxu0 0.0
  %2149 = vmatpush1.msra.mxu0 0.0
  %2150 = vmatprep.subr.mxu0 0.0
  %2151 = vmatpush1.msra.mxu0 0.0
  %2152 = vmatprep.subr.mxu0 0.0
  %2153 = vmatpush1.msra.mxu0 0.0
  %2154 = vmatprep.subr.mxu0 0.0
  %2155 = vmatpush1.msra.mxu0 0.0
  %2156 = vmatprep.subr.mxu0 0.0
  %2157 = vmatpush1.msra.mxu0 0.0
  %2158 = vmatprep.subr.mxu0 0.0
  %2159 = vmatpush1.msra.mxu0 0.0
  %2160 = vmatprep.subr.mxu0 0.0
  %2161 = vmatpush1.msra.mxu0 0.0
  %2162 = vmatprep.subr.mxu0 0.0
  %2163 = vmatpush1.msra.mxu0 0.0
  %2164 = vmatprep.subr.mxu0 0.0
  %2165 = vmatpush1.msra.mxu0 0.0
  %2166 = vmatprep.subr.mxu0 0.0
  %2167 = vmatpush1.msra.mxu0 0.0
  %2168 = vmatprep.subr.mxu0 0.0
  %2169 = vmatpush1.msra.mxu0 %v2068
  %2170 = vmatprep.subr.mxu0 0.0
  %2171 = vmatpush1.msra.mxu0 %v2067
  %2172 = vmatprep.subr.mxu0 0.0
  %2173 = vmatpush1.msra.mxu0 %v2066
  %2174 = vmatprep.subr.mxu0 0.0
  %2175 = vmatpush1.msra.mxu0 %v2065
  %2176 = vmatprep.subr.mxu0 0.0
  %2177 = vmatpush2.msra.mxu0 0.0
  %2178 = vmatprep.subr.mxu0 0.0
  %2179 = vmatpush2.msra.mxu0 0.0
  %2180 = vmatprep.subr.mxu0 0.0
  %2181 = vmatpush2.msra.mxu0 0.0
  %2182 = vmatprep.subr.mxu0 0.0
  %2183 = vmatpush2.msra.mxu0 0.0
  %2184 = vmatprep.subr.mxu0 0.0
  %2185 = vmatpush2.msra.mxu0 0.0
  %2186 = vmatprep.subr.mxu0 0.0
  %2187 = vmatpush2.msra.mxu0 0.0
  %2188 = vmatprep.subr.mxu0 0.0
  %2189 = vmatpush2.msra.mxu0 0.0
  %2190 = vmatprep.subr.mxu0 0.0
  %2191 = vmatpush2.msra.mxu0 0.0
  %2192 = vmatprep.subr.mxu0 0.0
  %2193 = vmatpush2.msra.mxu0 0.0
  %2194 = vmatprep.subr.mxu0 0.0
  %2195 = vmatpush2.msra.mxu0 0.0
  %2196 = vmatprep.subr.mxu0 0.0
  %2197 = vmatpush2.msra.mxu0 0.0
  %2198 = vmatprep.subr.mxu0 0.0
  %2199 = vmatpush2.msra.mxu0 0.0
  %2200 = vmatprep.subr.mxu0 0.0
  %2201 = vmatpush2.msra.mxu0 0.0
  %2202 = vmatprep.subr.mxu0 0.0
  %2203 = vmatpush2.msra.mxu0 0.0
  %2204 = vmatprep.subr.mxu0 0.0
  %2205 = vmatpush2.msra.mxu0 0.0
  %2206 = vmatprep.subr.mxu0 0.0
  %2207 = vmatpush2.msra.mxu0 0.0
  %2208 = vmatprep.mubr.f32.mxu0 0.0
  %2209 = vmatmul.mubr.f32.gmra.mxu0 %v639
  %v2210 = vpop.f32.mrf.mxu0
  %v2211 = vadd.f32 %v2136, %v2210
  %v2212 = vpop.f32.mrf.mxu0
  %2213 = vmatprep.mubr.f32.mxu0 0.0
  %2214 = vmatmul.mubr.f32.gmra.mxu0 %v642
  %v2215 = vpop.f32.mrf.mxu0
  %v2216 = vadd.f32 %v2141, %v2215
  %v2217 = vpop.f32.mrf.mxu0
  %2218 = vdwg.mxu0
  %s2219 = scalar_lea.vmem %s3, 120
  %v2220 = vld [vmem:[%s2219] sm:$0xff]
  %v2221 = vld [vmem:[%s2219 + $0x8] sm:$0xff]
  %v2222 = vld [vmem:[%s2219 + $0x10] sm:$0xf]
  %v2224 = vsel %vm988, %v2220, 0
  %v2227 = vsel %vm988, %v2221, 0
  %v2230 = vsel %vm988, %v2222, 0
  %v2233 = vsel %vm998, %v2216, 0
  %2235 = vmatprep.subr.mxu0 0.0
  %2236 = vmatpush1.msra.mxu0 0.0
  %2237 = vmatprep.subr.mxu0 0.0
  %2238 = vmatpush1.msra.mxu0 0.0
  %2239 = vmatprep.subr.mxu0 0.0
  %2240 = vmatpush1.msra.mxu0 0.0
  %2241 = vmatprep.subr.mxu0 0.0
  %2242 = vmatpush1.msra.mxu0 0.0
  %2243 = vmatprep.subr.mxu0 0.0
  %2244 = vmatpush1.msra.mxu0 0.0
  %2245 = vmatprep.subr.mxu0 0.0
  %2246 = vmatpush1.msra.mxu0 0.0
  %2247 = vmatprep.subr.mxu0 0.0
  %2248 = vmatpush1.msra.mxu0 0.0
  %2249 = vmatprep.subr.mxu0 0.0
  %2250 = vmatpush1.msra.mxu0 0.0
  %2251 = vmatprep.subr.mxu0 0.0
  %2252 = vmatpush1.msra.mxu0 0.0
  %2253 = vmatprep.subr.mxu0 0.0
  %2254 = vmatpush1.msra.mxu0 0.0
  %2255 = vmatprep.subr.mxu0 0.0
  %2256 = vmatpush1.msra.mxu0 0.0
  %2257 = vmatprep.subr.mxu0 0.0
  %2258 = vmatpush1.msra.mxu0 0.0
  %2259 = vmatprep.subr.mxu0 0.0
  %2260 = vmatpush1.msra.mxu0 0.0
  %2261 = vmatprep.subr.mxu0 0.0
  %2262 = vmatpush1.msra.mxu0 0.0
  %2263 = vmatprep.subr.mxu0 0.0
  %2264 = vmatpush1.msra.mxu0 %v2233
  %2265 = vmatprep.subr.mxu0 0.0
  %2266 = vmatpush1.msra.mxu0 %v2211
  %2267 = vmatprep.subr.mxu0 0.0
  %2268 = vmatpush2.msra.mxu0 0.0
  %2269 = vmatprep.subr.mxu0 0.0
  %2270 = vmatpush2.msra.mxu0 0.0
  %2271 = vmatprep.subr.mxu0 0.0
  %2272 = vmatpush2.msra.mxu0 0.0
  %2273 = vmatprep.subr.mxu0 0.0
  %2274 = vmatpush2.msra.mxu0 0.0
  %2275 = vmatprep.subr.mxu0 0.0
  %2276 = vmatpush2.msra.mxu0 0.0
  %2277 = vmatprep.subr.mxu0 0.0
  %2278 = vmatpush2.msra.mxu0 0.0
  %2279 = vmatprep.subr.mxu0 0.0
  %2280 = vmatpush2.msra.mxu0 0.0
  %2281 = vmatprep.subr.mxu0 0.0
  %2282 = vmatpush2.msra.mxu0 0.0
  %2283 = vmatprep.subr.mxu0 0.0
  %2284 = vmatpush2.msra.mxu0 0.0
  %2285 = vmatprep.subr.mxu0 0.0
  %2286 = vmatpush2.msra.mxu0 0.0
  %2287 = vmatprep.subr.mxu0 0.0
  %2288 = vmatpush2.msra.mxu0 0.0
  %2289 = vmatprep.subr.mxu0 0.0
  %2290 = vmatpush2.msra.mxu0 0.0
  %2291 = vmatprep.subr.mxu0 0.0
  %2292 = vmatpush2.msra.mxu0 0.0
  %2293 = vmatprep.subr.mxu0 0.0
  %2294 = vmatpush2.msra.mxu0 0.0
  %2295 = vmatprep.subr.mxu0 0.0
  %2296 = vmatpush2.msra.mxu0 0.0
  %2297 = vmatprep.subr.mxu0 0.0
  %2298 = vmatpush2.msra.mxu0 0.0
  %2299 = vmatprep.mubr.f32.mxu0 0.0
  %2300 = vmatmul.mubr.f32.gmra.mxu0 %v2224
  %v2301 = vpop.f32.mrf.mxu0
  %v2302 = vadd.f32 0.0, %v2301
  %v2303 = vpop.f32.mrf.mxu0
  %2304 = vmatprep.mubr.f32.mxu0 0.0
  %2305 = vmatmul.mubr.f32.gmra.mxu0 %v2227
  %v2306 = vpop.f32.mrf.mxu0
  %v2307 = vadd.f32 0.0, %v2306
  %v2308 = vpop.f32.mrf.mxu0
  %2309 = vmatprep.mubr.f32.mxu0 0.0
  %2310 = vmatmul.mubr.f32.gmra.mxu0 %v2230
  %v2311 = vpop.f32.mrf.mxu0
  %v2312 = vadd.f32 0.0, %v2311
  %v2313 = vpop.f32.mrf.mxu0
  %2314 = vdwg.mxu0
  %v2315 = vadd.f32 %v2029, %v2302
  %v2316 = vadd.f32 %v2030, %v2307
  %v2317 = vadd.f32 %v2031, %v2312
  %s2318 = scalar_lea.vmem %s5, 1728
  %v2319 = vld [vmem:[%s2318] sm:$0xff]
  %v2320 = vld [vmem:[%s2318 + $0x8] sm:$0xff]
  %v2321 = vld [vmem:[%s2318 + $0x10] sm:$0xff]
  %v2322 = vld [vmem:[%s2318 + $0x18] sm:$0xff]
  %v2323 = vld [vmem:[%s2318 + $0x20] sm:$0xff]
  %v2324 = vld [vmem:[%s2318 + $0x28] sm:$0xff]
  %v2325 = vld [vmem:[%s2318 + $0x30] sm:$0xff]
  %v2326 = vld [vmem:[%s2318 + $0x38] sm:$0xff]
  %v2327 = vld [vmem:[%s2318 + $0x40] sm:$0xff]
  %v2328 = vld [vmem:[%s2318 + $0x48] sm:$0xff]
  %v2329 = vld [vmem:[%s2318 + $0x50] sm:$0xff]
  %v2330 = vld [vmem:[%s2318 + $0x58] sm:$0xff]
  %v2331 = vld [vmem:[%s2318 + $0x60] sm:$0xff]
  %v2332 = vld [vmem:[%s2318 + $0x68] sm:$0xff]
  %v2333 = vld [vmem:[%s2318 + $0x70] sm:$0xff]
  %v2334 = vld [vmem:[%s2318 + $0x78] sm:$0xff]
  %v2335 = vld [vmem:[%s2318 + $0x80] sm:$0xff]
  %v2336 = vld [vmem:[%s2318 + $0x88] sm:$0xff]
  %v2337 = vld [vmem:[%s2318 + $0x90] sm:$0xff]
  %v2338 = vld [vmem:[%s2318 + $0x98] sm:$0xff]
  %v2339 = vld [vmem:[%s2318 + $0xa0] sm:$0xff]
  %v2340 = vld [vmem:[%s2318 + $0xa8] sm:$0xff]
  %v2341 = vld [vmem:[%s2318 + $0xb0] sm:$0xff]
  %v2342 = vld [vmem:[%s2318 + $0xb8] sm:$0xff]
  %v2343 = vld [vmem:[%s2318 + $0xc0] sm:$0xff]
  %v2344 = vld [vmem:[%s2318 + $0xc8] sm:$0xff]
  %v2345 = vld [vmem:[%s2318 + $0xd0] sm:$0xff]
  %v2346 = vld [vmem:[%s2318 + $0xd8] sm:$0xff]
  %v2347 = vld [vmem:[%s2318 + $0xe0] sm:$0xff]
  %v2348 = vld [vmem:[%s2318 + $0xe8] sm:$0xff]
  %v2349 = vld [vmem:[%s2318 + $0xf0] sm:$0xff]
  %v2350 = vld [vmem:[%s2318 + $0xf8] sm:$0xff]
  %v2351 = vld [vmem:[%s2318 + $0x100] sm:$0xff]
  %v2352 = vld [vmem:[%s2318 + $0x108] sm:$0xff]
  %v2353 = vld [vmem:[%s2318 + $0x110] sm:$0xff]
  %v2354 = vld [vmem:[%s2318 + $0x118] sm:$0xff]
  %2355 = vmatprep.subr.mxu0 0.0
  %2356 = vmatpush1.msra.mxu0 %v2334
  %2357 = vmatprep.subr.mxu0 0.0
  %2358 = vmatpush1.msra.mxu0 %v2333
  %2359 = vmatprep.subr.mxu0 0.0
  %2360 = vmatpush1.msra.mxu0 %v2332
  %2361 = vmatprep.subr.mxu0 0.0
  %2362 = vmatpush1.msra.mxu0 %v2331
  %2363 = vmatprep.subr.mxu0 0.0
  %2364 = vmatpush1.msra.mxu0 %v2330
  %2365 = vmatprep.subr.mxu0 0.0
  %2366 = vmatpush1.msra.mxu0 %v2329
  %2367 = vmatprep.subr.mxu0 0.0
  %2368 = vmatpush1.msra.mxu0 %v2328
  %2369 = vmatprep.subr.mxu0 0.0
  %2370 = vmatpush1.msra.mxu0 %v2327
  %2371 = vmatprep.subr.mxu0 0.0
  %2372 = vmatpush1.msra.mxu0 %v2326
  %2373 = vmatprep.subr.mxu0 0.0
  %2374 = vmatpush1.msra.mxu0 %v2325
  %2375 = vmatprep.subr.mxu0 0.0
  %2376 = vmatpush1.msra.mxu0 %v2324
  %2377 = vmatprep.subr.mxu0 0.0
  %2378 = vmatpush1.msra.mxu0 %v2323
  %2379 = vmatprep.subr.mxu0 0.0
  %2380 = vmatpush1.msra.mxu0 %v2322
  %2381 = vmatprep.subr.mxu0 0.0
  %2382 = vmatpush1.msra.mxu0 %v2321
  %2383 = vmatprep.subr.mxu0 0.0
  %2384 = vmatpush1.msra.mxu0 %v2320
  %2385 = vmatprep.subr.mxu0 0.0
  %2386 = vmatpush1.msra.mxu0 %v2319
  %2387 = vmatprep.subr.mxu0 0.0
  %2388 = vmatpush2.msra.mxu0 %v2350
  %2389 = vmatprep.subr.mxu0 0.0
  %2390 = vmatpush2.msra.mxu0 %v2349
  %2391 = vmatprep.subr.mxu0 0.0
  %2392 = vmatpush2.msra.mxu0 %v2348
  %2393 = vmatprep.subr.mxu0 0.0
  %2394 = vmatpush2.msra.mxu0 %v2347
  %2395 = vmatprep.subr.mxu0 0.0
  %2396 = vmatpush2.msra.mxu0 %v2346
  %2397 = vmatprep.subr.mxu0 0.0
  %2398 = vmatpush2.msra.mxu0 %v2345
  %2399 = vmatprep.subr.mxu0 0.0
  %2400 = vmatpush2.msra.mxu0 %v2344
  %2401 = vmatprep.subr.mxu0 0.0
  %2402 = vmatpush2.msra.mxu0 %v2343
  %2403 = vmatprep.subr.mxu0 0.0
  %2404 = vmatpush2.msra.mxu0 %v2342
  %2405 = vmatprep.subr.mxu0 0.0
  %2406 = vmatpush2.msra.mxu0 %v2341
  %2407 = vmatprep.subr.mxu0 0.0
  %2408 = vmatpush2.msra.mxu0 %v2340
  %2409 = vmatprep.subr.mxu0 0.0
  %2410 = vmatpush2.msra.mxu0 %v2339
  %2411 = vmatprep.subr.mxu0 0.0
  %2412 = vmatpush2.msra.mxu0 %v2338
  %2413 = vmatprep.subr.mxu0 0.0
  %2414 = vmatpush2.msra.mxu0 %v2337
  %2415 = vmatprep.subr.mxu0 0.0
  %2416 = vmatpush2.msra.mxu0 %v2336
  %2417 = vmatprep.subr.mxu0 0.0
  %2418 = vmatpush2.msra.mxu0 %v2335
  %2419 = vmatprep.mubr.f32.mxu0 %v596
  %2420 = vmatmul.mubr.f32.gmra.mxu0 %v595
  %v2421 = vpop.f32.mrf.mxu0
  %v2422 = vadd.f32 0.0, %v2421
  %v2423 = vpop.f32.mrf.mxu0
  %2424 = vmatprep.mubr.f32.mxu0 %v599
  %2425 = vmatmul.mubr.f32.gmra.mxu0 %v598
  %v2426 = vpop.f32.mrf.mxu0
  %v2427 = vadd.f32 0.0, %v2426
  %v2428 = vpop.f32.mrf.mxu0
  %2429 = vdwg.mxu0
  %2430 = vmatprep.subr.mxu0 0.0
  %2431 = vmatpush1.msra.mxu0 0.0
  %2432 = vmatprep.subr.mxu0 0.0
  %2433 = vmatpush1.msra.mxu0 0.0
  %2434 = vmatprep.subr.mxu0 0.0
  %2435 = vmatpush1.msra.mxu0 0.0
  %2436 = vmatprep.subr.mxu0 0.0
  %2437 = vmatpush1.msra.mxu0 0.0
  %2438 = vmatprep.subr.mxu0 0.0
  %2439 = vmatpush1.msra.mxu0 0.0
  %2440 = vmatprep.subr.mxu0 0.0
  %2441 = vmatpush1.msra.mxu0 0.0
  %2442 = vmatprep.subr.mxu0 0.0
  %2443 = vmatpush1.msra.mxu0 0.0
  %2444 = vmatprep.subr.mxu0 0.0
  %2445 = vmatpush1.msra.mxu0 0.0
  %2446 = vmatprep.subr.mxu0 0.0
  %2447 = vmatpush1.msra.mxu0 0.0
  %2448 = vmatprep.subr.mxu0 0.0
  %2449 = vmatpush1.msra.mxu0 0.0
  %2450 = vmatprep.subr.mxu0 0.0
  %2451 = vmatpush1.msra.mxu0 0.0
  %2452 = vmatprep.subr.mxu0 0.0
  %2453 = vmatpush1.msra.mxu0 0.0
  %2454 = vmatprep.subr.mxu0 0.0
  %2455 = vmatpush1.msra.mxu0 %v2354
  %2456 = vmatprep.subr.mxu0 0.0
  %2457 = vmatpush1.msra.mxu0 %v2353
  %2458 = vmatprep.subr.mxu0 0.0
  %2459 = vmatpush1.msra.mxu0 %v2352
  %2460 = vmatprep.subr.mxu0 0.0
  %2461 = vmatpush1.msra.mxu0 %v2351
  %2462 = vmatprep.subr.mxu0 0.0
  %2463 = vmatpush2.msra.mxu0 0.0
  %2464 = vmatprep.subr.mxu0 0.0
  %2465 = vmatpush2.msra.mxu0 0.0
  %2466 = vmatprep.subr.mxu0 0.0
  %2467 = vmatpush2.msra.mxu0 0.0
  %2468 = vmatprep.subr.mxu0 0.0
  %2469 = vmatpush2.msra.mxu0 0.0
  %2470 = vmatprep.subr.mxu0 0.0
  %2471 = vmatpush2.msra.mxu0 0.0
  %2472 = vmatprep.subr.mxu0 0.0
  %2473 = vmatpush2.msra.mxu0 0.0
  %2474 = vmatprep.subr.mxu0 0.0
  %2475 = vmatpush2.msra.mxu0 0.0
  %2476 = vmatprep.subr.mxu0 0.0
  %2477 = vmatpush2.msra.mxu0 0.0
  %2478 = vmatprep.subr.mxu0 0.0
  %2479 = vmatpush2.msra.mxu0 0.0
  %2480 = vmatprep.subr.mxu0 0.0
  %2481 = vmatpush2.msra.mxu0 0.0
  %2482 = vmatprep.subr.mxu0 0.0
  %2483 = vmatpush2.msra.mxu0 0.0
  %2484 = vmatprep.subr.mxu0 0.0
  %2485 = vmatpush2.msra.mxu0 0.0
  %2486 = vmatprep.subr.mxu0 0.0
  %2487 = vmatpush2.msra.mxu0 0.0
  %2488 = vmatprep.subr.mxu0 0.0
  %2489 = vmatpush2.msra.mxu0 0.0
  %2490 = vmatprep.subr.mxu0 0.0
  %2491 = vmatpush2.msra.mxu0 0.0
  %2492 = vmatprep.subr.mxu0 0.0
  %2493 = vmatpush2.msra.mxu0 0.0
  %2494 = vmatprep.mubr.f32.mxu0 0.0
  %2495 = vmatmul.mubr.f32.gmra.mxu0 %v639
  %v2496 = vpop.f32.mrf.mxu0
  %v2497 = vadd.f32 %v2422, %v2496
  %v2498 = vpop.f32.mrf.mxu0
  %2499 = vmatprep.mubr.f32.mxu0 0.0
  %2500 = vmatmul.mubr.f32.gmra.mxu0 %v642
  %v2501 = vpop.f32.mrf.mxu0
  %v2502 = vadd.f32 %v2427, %v2501
  %v2503 = vpop.f32.mrf.mxu0
  %2504 = vdwg.mxu0
  %s2505 = scalar_lea.vmem %s3, 144
  %v2506 = vld [vmem:[%s2505] sm:$0xff]
  %v2507 = vld [vmem:[%s2505 + $0x8] sm:$0xff]
  %v2508 = vld [vmem:[%s2505 + $0x10] sm:$0xf]
  %v2510 = vsel %vm988, %v2506, 0
  %v2513 = vsel %vm988, %v2507, 0
  %v2516 = vsel %vm988, %v2508, 0
  %v2519 = vsel %vm998, %v2502, 0
  %2521 = vmatprep.subr.mxu0 0.0
  %2522 = vmatpush1.msra.mxu0 0.0
  %2523 = vmatprep.subr.mxu0 0.0
  %2524 = vmatpush1.msra.mxu0 0.0
  %2525 = vmatprep.subr.mxu0 0.0
  %2526 = vmatpush1.msra.mxu0 0.0
  %2527 = vmatprep.subr.mxu0 0.0
  %2528 = vmatpush1.msra.mxu0 0.0
  %2529 = vmatprep.subr.mxu0 0.0
  %2530 = vmatpush1.msra.mxu0 0.0
  %2531 = vmatprep.subr.mxu0 0.0
  %2532 = vmatpush1.msra.mxu0 0.0
  %2533 = vmatprep.subr.mxu0 0.0
  %2534 = vmatpush1.msra.mxu0 0.0
  %2535 = vmatprep.subr.mxu0 0.0
  %2536 = vmatpush1.msra.mxu0 0.0
  %2537 = vmatprep.subr.mxu0 0.0
  %2538 = vmatpush1.msra.mxu0 0.0
  %2539 = vmatprep.subr.mxu0 0.0
  %2540 = vmatpush1.msra.mxu0 0.0
  %2541 = vmatprep.subr.mxu0 0.0
  %2542 = vmatpush1.msra.mxu0 0.0
  %2543 = vmatprep.subr.mxu0 0.0
  %2544 = vmatpush1.msra.mxu0 0.0
  %2545 = vmatprep.subr.mxu0 0.0
  %2546 = vmatpush1.msra.mxu0 0.0
  %2547 = vmatprep.subr.mxu0 0.0
  %2548 = vmatpush1.msra.mxu0 0.0
  %2549 = vmatprep.subr.mxu0 0.0
  %2550 = vmatpush1.msra.mxu0 %v2519
  %2551 = vmatprep.subr.mxu0 0.0
  %2552 = vmatpush1.msra.mxu0 %v2497
  %2553 = vmatprep.subr.mxu0 0.0
  %2554 = vmatpush2.msra.mxu0 0.0
  %2555 = vmatprep.subr.mxu0 0.0
  %2556 = vmatpush2.msra.mxu0 0.0
  %2557 = vmatprep.subr.mxu0 0.0
  %2558 = vmatpush2.msra.mxu0 0.0
  %2559 = vmatprep.subr.mxu0 0.0
  %2560 = vmatpush2.msra.mxu0 0.0
  %2561 = vmatprep.subr.mxu0 0.0
  %2562 = vmatpush2.msra.mxu0 0.0
  %2563 = vmatprep.subr.mxu0 0.0
  %2564 = vmatpush2.msra.mxu0 0.0
  %2565 = vmatprep.subr.mxu0 0.0
  %2566 = vmatpush2.msra.mxu0 0.0
  %2567 = vmatprep.subr.mxu0 0.0
  %2568 = vmatpush2.msra.mxu0 0.0
  %2569 = vmatprep.subr.mxu0 0.0
  %2570 = vmatpush2.msra.mxu0 0.0
  %2571 = vmatprep.subr.mxu0 0.0
  %2572 = vmatpush2.msra.mxu0 0.0
  %2573 = vmatprep.subr.mxu0 0.0
  %2574 = vmatpush2.msra.mxu0 0.0
  %2575 = vmatprep.subr.mxu0 0.0
  %2576 = vmatpush2.msra.mxu0 0.0
  %2577 = vmatprep.subr.mxu0 0.0
  %2578 = vmatpush2.msra.mxu0 0.0
  %2579 = vmatprep.subr.mxu0 0.0
  %2580 = vmatpush2.msra.mxu0 0.0
  %2581 = vmatprep.subr.mxu0 0.0
  %2582 = vmatpush2.msra.mxu0 0.0
  %2583 = vmatprep.subr.mxu0 0.0
  %2584 = vmatpush2.msra.mxu0 0.0
  %2585 = vmatprep.mubr.f32.mxu0 0.0
  %2586 = vmatmul.mubr.f32.gmra.mxu0 %v2510
  %v2587 = vpop.f32.mrf.mxu0
  %v2588 = vadd.f32 0.0, %v2587
  %v2589 = vpop.f32.mrf.mxu0
  %2590 = vmatprep.mubr.f32.mxu0 0.0
  %2591 = vmatmul.mubr.f32.gmra.mxu0 %v2513
  %v2592 = vpop.f32.mrf.mxu0
  %v2593 = vadd.f32 0.0, %v2592
  %v2594 = vpop.f32.mrf.mxu0
  %2595 = vmatprep.mubr.f32.mxu0 0.0
  %2596 = vmatmul.mubr.f32.gmra.mxu0 %v2516
  %v2597 = vpop.f32.mrf.mxu0
  %v2598 = vadd.f32 0.0, %v2597
  %v2599 = vpop.f32.mrf.mxu0
  %2600 = vdwg.mxu0
  %v2601 = vadd.f32 %v2315, %v2588
  %v2602 = vadd.f32 %v2316, %v2593
  %v2603 = vadd.f32 %v2317, %v2598
  %s2604 = scalar_lea.vmem %s5, 2016
  %v2605 = vld [vmem:[%s2604] sm:$0xff]
  %v2606 = vld [vmem:[%s2604 + $0x8] sm:$0xff]
  %v2607 = vld [vmem:[%s2604 + $0x10] sm:$0xff]
  %v2608 = vld [vmem:[%s2604 + $0x18] sm:$0xff]
  %v2609 = vld [vmem:[%s2604 + $0x20] sm:$0xff]
  %v2610 = vld [vmem:[%s2604 + $0x28] sm:$0xff]
  %v2611 = vld [vmem:[%s2604 + $0x30] sm:$0xff]
  %v2612 = vld [vmem:[%s2604 + $0x38] sm:$0xff]
  %v2613 = vld [vmem:[%s2604 + $0x40] sm:$0xff]
  %v2614 = vld [vmem:[%s2604 + $0x48] sm:$0xff]
  %v2615 = vld [vmem:[%s2604 + $0x50] sm:$0xff]
  %v2616 = vld [vmem:[%s2604 + $0x58] sm:$0xff]
  %v2617 = vld [vmem:[%s2604 + $0x60] sm:$0xff]
  %v2618 = vld [vmem:[%s2604 + $0x68] sm:$0xff]
  %v2619 = vld [vmem:[%s2604 + $0x70] sm:$0xff]
  %v2620 = vld [vmem:[%s2604 + $0x78] sm:$0xff]
  %v2621 = vld [vmem:[%s2604 + $0x80] sm:$0xff]
  %v2622 = vld [vmem:[%s2604 + $0x88] sm:$0xff]
  %v2623 = vld [vmem:[%s2604 + $0x90] sm:$0xff]
  %v2624 = vld [vmem:[%s2604 + $0x98] sm:$0xff]
  %v2625 = vld [vmem:[%s2604 + $0xa0] sm:$0xff]
  %v2626 = vld [vmem:[%s2604 + $0xa8] sm:$0xff]
  %v2627 = vld [vmem:[%s2604 + $0xb0] sm:$0xff]
  %v2628 = vld [vmem:[%s2604 + $0xb8] sm:$0xff]
  %v2629 = vld [vmem:[%s2604 + $0xc0] sm:$0xff]
  %v2630 = vld [vmem:[%s2604 + $0xc8] sm:$0xff]
  %v2631 = vld [vmem:[%s2604 + $0xd0] sm:$0xff]
  %v2632 = vld [vmem:[%s2604 + $0xd8] sm:$0xff]
  %v2633 = vld [vmem:[%s2604 + $0xe0] sm:$0xff]
  %v2634 = vld [vmem:[%s2604 + $0xe8] sm:$0xff]
  %v2635 = vld [vmem:[%s2604 + $0xf0] sm:$0xff]
  %v2636 = vld [vmem:[%s2604 + $0xf8] sm:$0xff]
  %v2637 = vld [vmem:[%s2604 + $0x100] sm:$0xff]
  %v2638 = vld [vmem:[%s2604 + $0x108] sm:$0xff]
  %v2639 = vld [vmem:[%s2604 + $0x110] sm:$0xff]
  %v2640 = vld [vmem:[%s2604 + $0x118] sm:$0xff]
  %2641 = vmatprep.subr.mxu0 0.0
  %2642 = vmatpush1.msra.mxu0 %v2620
  %2643 = vmatprep.subr.mxu0 0.0
  %2644 = vmatpush1.msra.mxu0 %v2619
  %2645 = vmatprep.subr.mxu0 0.0
  %2646 = vmatpush1.msra.mxu0 %v2618
  %2647 = vmatprep.subr.mxu0 0.0
  %2648 = vmatpush1.msra.mxu0 %v2617
  %2649 = vmatprep.subr.mxu0 0.0
  %2650 = vmatpush1.msra.mxu0 %v2616
  %2651 = vmatprep.subr.mxu0 0.0
  %2652 = vmatpush1.msra.mxu0 %v2615
  %2653 = vmatprep.subr.mxu0 0.0
  %2654 = vmatpush1.msra.mxu0 %v2614
  %2655 = vmatprep.subr.mxu0 0.0
  %2656 = vmatpush1.msra.mxu0 %v2613
  %2657 = vmatprep.subr.mxu0 0.0
  %2658 = vmatpush1.msra.mxu0 %v2612
  %2659 = vmatprep.subr.mxu0 0.0
  %2660 = vmatpush1.msra.mxu0 %v2611
  %2661 = vmatprep.subr.mxu0 0.0
  %2662 = vmatpush1.msra.mxu0 %v2610
  %2663 = vmatprep.subr.mxu0 0.0
  %2664 = vmatpush1.msra.mxu0 %v2609
  %2665 = vmatprep.subr.mxu0 0.0
  %2666 = vmatpush1.msra.mxu0 %v2608
  %2667 = vmatprep.subr.mxu0 0.0
  %2668 = vmatpush1.msra.mxu0 %v2607
  %2669 = vmatprep.subr.mxu0 0.0
  %2670 = vmatpush1.msra.mxu0 %v2606
  %2671 = vmatprep.subr.mxu0 0.0
  %2672 = vmatpush1.msra.mxu0 %v2605
  %2673 = vmatprep.subr.mxu0 0.0
  %2674 = vmatpush2.msra.mxu0 %v2636
  %2675 = vmatprep.subr.mxu0 0.0
  %2676 = vmatpush2.msra.mxu0 %v2635
  %2677 = vmatprep.subr.mxu0 0.0
  %2678 = vmatpush2.msra.mxu0 %v2634
  %2679 = vmatprep.subr.mxu0 0.0
  %2680 = vmatpush2.msra.mxu0 %v2633
  %2681 = vmatprep.subr.mxu0 0.0
  %2682 = vmatpush2.msra.mxu0 %v2632
  %2683 = vmatprep.subr.mxu0 0.0
  %2684 = vmatpush2.msra.mxu0 %v2631
  %2685 = vmatprep.subr.mxu0 0.0
  %2686 = vmatpush2.msra.mxu0 %v2630
  %2687 = vmatprep.subr.mxu0 0.0
  %2688 = vmatpush2.msra.mxu0 %v2629
  %2689 = vmatprep.subr.mxu0 0.0
  %2690 = vmatpush2.msra.mxu0 %v2628
  %2691 = vmatprep.subr.mxu0 0.0
  %2692 = vmatpush2.msra.mxu0 %v2627
  %2693 = vmatprep.subr.mxu0 0.0
  %2694 = vmatpush2.msra.mxu0 %v2626
  %2695 = vmatprep.subr.mxu0 0.0
  %2696 = vmatpush2.msra.mxu0 %v2625
  %2697 = vmatprep.subr.mxu0 0.0
  %2698 = vmatpush2.msra.mxu0 %v2624
  %2699 = vmatprep.subr.mxu0 0.0
  %2700 = vmatpush2.msra.mxu0 %v2623
  %2701 = vmatprep.subr.mxu0 0.0
  %2702 = vmatpush2.msra.mxu0 %v2622
  %2703 = vmatprep.subr.mxu0 0.0
  %2704 = vmatpush2.msra.mxu0 %v2621
  %2705 = vmatprep.mubr.f32.mxu0 %v596
  %2706 = vmatmul.mubr.f32.gmra.mxu0 %v595
  %v2707 = vpop.f32.mrf.mxu0
  %v2708 = vadd.f32 0.0, %v2707
  %v2709 = vpop.f32.mrf.mxu0
  %2710 = vmatprep.mubr.f32.mxu0 %v599
  %2711 = vmatmul.mubr.f32.gmra.mxu0 %v598
  %v2712 = vpop.f32.mrf.mxu0
  %v2713 = vadd.f32 0.0, %v2712
  %v2714 = vpop.f32.mrf.mxu0
  %2715 = vdwg.mxu0
  %2716 = vmatprep.subr.mxu0 0.0
  %2717 = vmatpush1.msra.mxu0 0.0
  %2718 = vmatprep.subr.mxu0 0.0
  %2719 = vmatpush1.msra.mxu0 0.0
  %2720 = vmatprep.subr.mxu0 0.0
  %2721 = vmatpush1.msra.mxu0 0.0
  %2722 = vmatprep.subr.mxu0 0.0
  %2723 = vmatpush1.msra.mxu0 0.0
  %2724 = vmatprep.subr.mxu0 0.0
  %2725 = vmatpush1.msra.mxu0 0.0
  %2726 = vmatprep.subr.mxu0 0.0
  %2727 = vmatpush1.msra.mxu0 0.0
  %2728 = vmatprep.subr.mxu0 0.0
  %2729 = vmatpush1.msra.mxu0 0.0
  %2730 = vmatprep.subr.mxu0 0.0
  %2731 = vmatpush1.msra.mxu0 0.0
  %2732 = vmatprep.subr.mxu0 0.0
  %2733 = vmatpush1.msra.mxu0 0.0
  %2734 = vmatprep.subr.mxu0 0.0
  %2735 = vmatpush1.msra.mxu0 0.0
  %2736 = vmatprep.subr.mxu0 0.0
  %2737 = vmatpush1.msra.mxu0 0.0
  %2738 = vmatprep.subr.mxu0 0.0
  %2739 = vmatpush1.msra.mxu0 0.0
  %2740 = vmatprep.subr.mxu0 0.0
  %2741 = vmatpush1.msra.mxu0 %v2640
  %2742 = vmatprep.subr.mxu0 0.0
  %2743 = vmatpush1.msra.mxu0 %v2639
  %2744 = vmatprep.subr.mxu0 0.0
  %2745 = vmatpush1.msra.mxu0 %v2638
  %2746 = vmatprep.subr.mxu0 0.0
  %2747 = vmatpush1.msra.mxu0 %v2637
  %2748 = vmatprep.subr.mxu0 0.0
  %2749 = vmatpush2.msra.mxu0 0.0
  %2750 = vmatprep.subr.mxu0 0.0
  %2751 = vmatpush2.msra.mxu0 0.0
  %2752 = vmatprep.subr.mxu0 0.0
  %2753 = vmatpush2.msra.mxu0 0.0
  %2754 = vmatprep.subr.mxu0 0.0
  %2755 = vmatpush2.msra.mxu0 0.0
  %2756 = vmatprep.subr.mxu0 0.0
  %2757 = vmatpush2.msra.mxu0 0.0
  %2758 = vmatprep.subr.mxu0 0.0
  %2759 = vmatpush2.msra.mxu0 0.0
  %2760 = vmatprep.subr.mxu0 0.0
  %2761 = vmatpush2.msra.mxu0 0.0
  %2762 = vmatprep.subr.mxu0 0.0
  %2763 = vmatpush2.msra.mxu0 0.0
  %2764 = vmatprep.subr.mxu0 0.0
  %2765 = vmatpush2.msra.mxu0 0.0
  %2766 = vmatprep.subr.mxu0 0.0
  %2767 = vmatpush2.msra.mxu0 0.0
  %2768 = vmatprep.subr.mxu0 0.0
  %2769 = vmatpush2.msra.mxu0 0.0
  %2770 = vmatprep.subr.mxu0 0.0
  %2771 = vmatpush2.msra.mxu0 0.0
  %2772 = vmatprep.subr.mxu0 0.0
  %2773 = vmatpush2.msra.mxu0 0.0
  %2774 = vmatprep.subr.mxu0 0.0
  %2775 = vmatpush2.msra.mxu0 0.0
  %2776 = vmatprep.subr.mxu0 0.0
  %2777 = vmatpush2.msra.mxu0 0.0
  %2778 = vmatprep.subr.mxu0 0.0
  %2779 = vmatpush2.msra.mxu0 0.0
  %2780 = vmatprep.mubr.f32.mxu0 0.0
  %2781 = vmatmul.mubr.f32.gmra.mxu0 %v639
  %v2782 = vpop.f32.mrf.mxu0
  %v2783 = vadd.f32 %v2708, %v2782
  %v2784 = vpop.f32.mrf.mxu0
  %2785 = vmatprep.mubr.f32.mxu0 0.0
  %2786 = vmatmul.mubr.f32.gmra.mxu0 %v642
  %v2787 = vpop.f32.mrf.mxu0
  %v2788 = vadd.f32 %v2713, %v2787
  %v2789 = vpop.f32.mrf.mxu0
  %2790 = vdwg.mxu0
  %s2791 = scalar_lea.vmem %s3, 168
  %v2792 = vld [vmem:[%s2791] sm:$0xff]
  %v2793 = vld [vmem:[%s2791 + $0x8] sm:$0xff]
  %v2794 = vld [vmem:[%s2791 + $0x10] sm:$0xf]
  %v2796 = vsel %vm988, %v2792, 0
  %v2799 = vsel %vm988, %v2793, 0
  %v2802 = vsel %vm988, %v2794, 0
  %v2805 = vsel %vm998, %v2788, 0
  %2807 = vmatprep.subr.mxu0 0.0
  %2808 = vmatpush1.msra.mxu0 0.0
  %2809 = vmatprep.subr.mxu0 0.0
  %2810 = vmatpush1.msra.mxu0 0.0
  %2811 = vmatprep.subr.mxu0 0.0
  %2812 = vmatpush1.msra.mxu0 0.0
  %2813 = vmatprep.subr.mxu0 0.0
  %2814 = vmatpush1.msra.mxu0 0.0
  %2815 = vmatprep.subr.mxu0 0.0
  %2816 = vmatpush1.msra.mxu0 0.0
  %2817 = vmatprep.subr.mxu0 0.0
  %2818 = vmatpush1.msra.mxu0 0.0
  %2819 = vmatprep.subr.mxu0 0.0
  %2820 = vmatpush1.msra.mxu0 0.0
  %2821 = vmatprep.subr.mxu0 0.0
  %2822 = vmatpush1.msra.mxu0 0.0
  %2823 = vmatprep.subr.mxu0 0.0
  %2824 = vmatpush1.msra.mxu0 0.0
  %2825 = vmatprep.subr.mxu0 0.0
  %2826 = vmatpush1.msra.mxu0 0.0
  %2827 = vmatprep.subr.mxu0 0.0
  %2828 = vmatpush1.msra.mxu0 0.0
  %2829 = vmatprep.subr.mxu0 0.0
  %2830 = vmatpush1.msra.mxu0 0.0
  %2831 = vmatprep.subr.mxu0 0.0
  %2832 = vmatpush1.msra.mxu0 0.0
  %2833 = vmatprep.subr.mxu0 0.0
  %2834 = vmatpush1.msra.mxu0 0.0
  %2835 = vmatprep.subr.mxu0 0.0
  %2836 = vmatpush1.msra.mxu0 %v2805
  %2837 = vmatprep.subr.mxu0 0.0
  %2838 = vmatpush1.msra.mxu0 %v2783
  %2839 = vmatprep.subr.mxu0 0.0
  %2840 = vmatpush2.msra.mxu0 0.0
  %2841 = vmatprep.subr.mxu0 0.0
  %2842 = vmatpush2.msra.mxu0 0.0
  %2843 = vmatprep.subr.mxu0 0.0
  %2844 = vmatpush2.msra.mxu0 0.0
  %2845 = vmatprep.subr.mxu0 0.0
  %2846 = vmatpush2.msra.mxu0 0.0
  %2847 = vmatprep.subr.mxu0 0.0
  %2848 = vmatpush2.msra.mxu0 0.0
  %2849 = vmatprep.subr.mxu0 0.0
  %2850 = vmatpush2.msra.mxu0 0.0
  %2851 = vmatprep.subr.mxu0 0.0
  %2852 = vmatpush2.msra.mxu0 0.0
  %2853 = vmatprep.subr.mxu0 0.0
  %2854 = vmatpush2.msra.mxu0 0.0
  %2855 = vmatprep.subr.mxu0 0.0
  %2856 = vmatpush2.msra.mxu0 0.0
  %2857 = vmatprep.subr.mxu0 0.0
  %2858 = vmatpush2.msra.mxu0 0.0
  %2859 = vmatprep.subr.mxu0 0.0
  %2860 = vmatpush2.msra.mxu0 0.0
  %2861 = vmatprep.subr.mxu0 0.0
  %2862 = vmatpush2.msra.mxu0 0.0
  %2863 = vmatprep.subr.mxu0 0.0
  %2864 = vmatpush2.msra.mxu0 0.0
  %2865 = vmatprep.subr.mxu0 0.0
  %2866 = vmatpush2.msra.mxu0 0.0
  %2867 = vmatprep.subr.mxu0 0.0
  %2868 = vmatpush2.msra.mxu0 0.0
  %2869 = vmatprep.subr.mxu0 0.0
  %2870 = vmatpush2.msra.mxu0 0.0
  %2871 = vmatprep.mubr.f32.mxu0 0.0
  %2872 = vmatmul.mubr.f32.gmra.mxu0 %v2796
  %v2873 = vpop.f32.mrf.mxu0
  %v2874 = vadd.f32 0.0, %v2873
  %v2875 = vpop.f32.mrf.mxu0
  %2876 = vmatprep.mubr.f32.mxu0 0.0
  %2877 = vmatmul.mubr.f32.gmra.mxu0 %v2799
  %v2878 = vpop.f32.mrf.mxu0
  %v2879 = vadd.f32 0.0, %v2878
  %v2880 = vpop.f32.mrf.mxu0
  %2881 = vmatprep.mubr.f32.mxu0 0.0
  %2882 = vmatmul.mubr.f32.gmra.mxu0 %v2802
  %v2883 = vpop.f32.mrf.mxu0
  %v2884 = vadd.f32 0.0, %v2883
  %v2885 = vpop.f32.mrf.mxu0
  %2886 = vdwg.mxu0
  %v2887 = vadd.f32 %v2601, %v2874
  %v2888 = vadd.f32 %v2602, %v2879
  %v2889 = vadd.f32 %v2603, %v2884
  %s2890 = scalar_lea.vmem %s5, 2304
  %v2891 = vld [vmem:[%s2890] sm:$0xff]
  %v2892 = vld [vmem:[%s2890 + $0x8] sm:$0xff]
  %v2893 = vld [vmem:[%s2890 + $0x10] sm:$0xff]
  %v2894 = vld [vmem:[%s2890 + $0x18] sm:$0xff]
  %v2895 = vld [vmem:[%s2890 + $0x20] sm:$0xff]
  %v2896 = vld [vmem:[%s2890 + $0x28] sm:$0xff]
  %v2897 = vld [vmem:[%s2890 + $0x30] sm:$0xff]
  %v2898 = vld [vmem:[%s2890 + $0x38] sm:$0xff]
  %v2899 = vld [vmem:[%s2890 + $0x40] sm:$0xff]
  %v2900 = vld [vmem:[%s2890 + $0x48] sm:$0xff]
  %v2901 = vld [vmem:[%s2890 + $0x50] sm:$0xff]
  %v2902 = vld [vmem:[%s2890 + $0x58] sm:$0xff]
  %v2903 = vld [vmem:[%s2890 + $0x60] sm:$0xff]
  %v2904 = vld [vmem:[%s2890 + $0x68] sm:$0xff]
  %v2905 = vld [vmem:[%s2890 + $0x70] sm:$0xff]
  %v2906 = vld [vmem:[%s2890 + $0x78] sm:$0xff]
  %v2907 = vld [vmem:[%s2890 + $0x80] sm:$0xff]
  %v2908 = vld [vmem:[%s2890 + $0x88] sm:$0xff]
  %v2909 = vld [vmem:[%s2890 + $0x90] sm:$0xff]
  %v2910 = vld [vmem:[%s2890 + $0x98] sm:$0xff]
  %v2911 = vld [vmem:[%s2890 + $0xa0] sm:$0xff]
  %v2912 = vld [vmem:[%s2890 + $0xa8] sm:$0xff]
  %v2913 = vld [vmem:[%s2890 + $0xb0] sm:$0xff]
  %v2914 = vld [vmem:[%s2890 + $0xb8] sm:$0xff]
  %v2915 = vld [vmem:[%s2890 + $0xc0] sm:$0xff]
  %v2916 = vld [vmem:[%s2890 + $0xc8] sm:$0xff]
  %v2917 = vld [vmem:[%s2890 + $0xd0] sm:$0xff]
  %v2918 = vld [vmem:[%s2890 + $0xd8] sm:$0xff]
  %v2919 = vld [vmem:[%s2890 + $0xe0] sm:$0xff]
  %v2920 = vld [vmem:[%s2890 + $0xe8] sm:$0xff]
  %v2921 = vld [vmem:[%s2890 + $0xf0] sm:$0xff]
  %v2922 = vld [vmem:[%s2890 + $0xf8] sm:$0xff]
  %v2923 = vld [vmem:[%s2890 + $0x100] sm:$0xff]
  %v2924 = vld [vmem:[%s2890 + $0x108] sm:$0xff]
  %v2925 = vld [vmem:[%s2890 + $0x110] sm:$0xff]
  %v2926 = vld [vmem:[%s2890 + $0x118] sm:$0xff]
  %2927 = vmatprep.subr.mxu0 0.0
  %2928 = vmatpush1.msra.mxu0 %v2906
  %2929 = vmatprep.subr.mxu0 0.0
  %2930 = vmatpush1.msra.mxu0 %v2905
  %2931 = vmatprep.subr.mxu0 0.0
  %2932 = vmatpush1.msra.mxu0 %v2904
  %2933 = vmatprep.subr.mxu0 0.0
  %2934 = vmatpush1.msra.mxu0 %v2903
  %2935 = vmatprep.subr.mxu0 0.0
  %2936 = vmatpush1.msra.mxu0 %v2902
  %2937 = vmatprep.subr.mxu0 0.0
  %2938 = vmatpush1.msra.mxu0 %v2901
  %2939 = vmatprep.subr.mxu0 0.0
  %2940 = vmatpush1.msra.mxu0 %v2900
  %2941 = vmatprep.subr.mxu0 0.0
  %2942 = vmatpush1.msra.mxu0 %v2899
  %2943 = vmatprep.subr.mxu0 0.0
  %2944 = vmatpush1.msra.mxu0 %v2898
  %2945 = vmatprep.subr.mxu0 0.0
  %2946 = vmatpush1.msra.mxu0 %v2897
  %2947 = vmatprep.subr.mxu0 0.0
  %2948 = vmatpush1.msra.mxu0 %v2896
  %2949 = vmatprep.subr.mxu0 0.0
  %2950 = vmatpush1.msra.mxu0 %v2895
  %2951 = vmatprep.subr.mxu0 0.0
  %2952 = vmatpush1.msra.mxu0 %v2894
  %2953 = vmatprep.subr.mxu0 0.0
  %2954 = vmatpush1.msra.mxu0 %v2893
  %2955 = vmatprep.subr.mxu0 0.0
  %2956 = vmatpush1.msra.mxu0 %v2892
  %2957 = vmatprep.subr.mxu0 0.0
  %2958 = vmatpush1.msra.mxu0 %v2891
  %2959 = vmatprep.subr.mxu0 0.0
  %2960 = vmatpush2.msra.mxu0 %v2922
  %2961 = vmatprep.subr.mxu0 0.0
  %2962 = vmatpush2.msra.mxu0 %v2921
  %2963 = vmatprep.subr.mxu0 0.0
  %2964 = vmatpush2.msra.mxu0 %v2920
  %2965 = vmatprep.subr.mxu0 0.0
  %2966 = vmatpush2.msra.mxu0 %v2919
  %2967 = vmatprep.subr.mxu0 0.0
  %2968 = vmatpush2.msra.mxu0 %v2918
  %2969 = vmatprep.subr.mxu0 0.0
  %2970 = vmatpush2.msra.mxu0 %v2917
  %2971 = vmatprep.subr.mxu0 0.0
  %2972 = vmatpush2.msra.mxu0 %v2916
  %2973 = vmatprep.subr.mxu0 0.0
  %2974 = vmatpush2.msra.mxu0 %v2915
  %2975 = vmatprep.subr.mxu0 0.0
  %2976 = vmatpush2.msra.mxu0 %v2914
  %2977 = vmatprep.subr.mxu0 0.0
  %2978 = vmatpush2.msra.mxu0 %v2913
  %2979 = vmatprep.subr.mxu0 0.0
  %2980 = vmatpush2.msra.mxu0 %v2912
  %2981 = vmatprep.subr.mxu0 0.0
  %2982 = vmatpush2.msra.mxu0 %v2911
  %2983 = vmatprep.subr.mxu0 0.0
  %2984 = vmatpush2.msra.mxu0 %v2910
  %2985 = vmatprep.subr.mxu0 0.0
  %2986 = vmatpush2.msra.mxu0 %v2909
  %2987 = vmatprep.subr.mxu0 0.0
  %2988 = vmatpush2.msra.mxu0 %v2908
  %2989 = vmatprep.subr.mxu0 0.0
  %2990 = vmatpush2.msra.mxu0 %v2907
  %2991 = vmatprep.mubr.f32.mxu0 %v596
  %2992 = vmatmul.mubr.f32.gmra.mxu0 %v595
  %v2993 = vpop.f32.mrf.mxu0
  %v2994 = vadd.f32 0.0, %v2993
  %v2995 = vpop.f32.mrf.mxu0
  %2996 = vmatprep.mubr.f32.mxu0 %v599
  %2997 = vmatmul.mubr.f32.gmra.mxu0 %v598
  %v2998 = vpop.f32.mrf.mxu0
  %v2999 = vadd.f32 0.0, %v2998
  %v3000 = vpop.f32.mrf.mxu0
  %3001 = vdwg.mxu0
  %3002 = vmatprep.subr.mxu0 0.0
  %3003 = vmatpush1.msra.mxu0 0.0
  %3004 = vmatprep.subr.mxu0 0.0
  %3005 = vmatpush1.msra.mxu0 0.0
  %3006 = vmatprep.subr.mxu0 0.0
  %3007 = vmatpush1.msra.mxu0 0.0
  %3008 = vmatprep.subr.mxu0 0.0
  %3009 = vmatpush1.msra.mxu0 0.0
  %3010 = vmatprep.subr.mxu0 0.0
  %3011 = vmatpush1.msra.mxu0 0.0
  %3012 = vmatprep.subr.mxu0 0.0
  %3013 = vmatpush1.msra.mxu0 0.0
  %3014 = vmatprep.subr.mxu0 0.0
  %3015 = vmatpush1.msra.mxu0 0.0
  %3016 = vmatprep.subr.mxu0 0.0
  %3017 = vmatpush1.msra.mxu0 0.0
  %3018 = vmatprep.subr.mxu0 0.0
  %3019 = vmatpush1.msra.mxu0 0.0
  %3020 = vmatprep.subr.mxu0 0.0
  %3021 = vmatpush1.msra.mxu0 0.0
  %3022 = vmatprep.subr.mxu0 0.0
  %3023 = vmatpush1.msra.mxu0 0.0
  %3024 = vmatprep.subr.mxu0 0.0
  %3025 = vmatpush1.msra.mxu0 0.0
  %3026 = vmatprep.subr.mxu0 0.0
  %3027 = vmatpush1.msra.mxu0 %v2926
  %3028 = vmatprep.subr.mxu0 0.0
  %3029 = vmatpush1.msra.mxu0 %v2925
  %3030 = vmatprep.subr.mxu0 0.0
  %3031 = vmatpush1.msra.mxu0 %v2924
  %3032 = vmatprep.subr.mxu0 0.0
  %3033 = vmatpush1.msra.mxu0 %v2923
  %3034 = vmatprep.subr.mxu0 0.0
  %3035 = vmatpush2.msra.mxu0 0.0
  %3036 = vmatprep.subr.mxu0 0.0
  %3037 = vmatpush2.msra.mxu0 0.0
  %3038 = vmatprep.subr.mxu0 0.0
  %3039 = vmatpush2.msra.mxu0 0.0
  %3040 = vmatprep.subr.mxu0 0.0
  %3041 = vmatpush2.msra.mxu0 0.0
  %3042 = vmatprep.subr.mxu0 0.0
  %3043 = vmatpush2.msra.mxu0 0.0
  %3044 = vmatprep.subr.mxu0 0.0
  %3045 = vmatpush2.msra.mxu0 0.0
  %3046 = vmatprep.subr.mxu0 0.0
  %3047 = vmatpush2.msra.mxu0 0.0
  %3048 = vmatprep.subr.mxu0 0.0
  %3049 = vmatpush2.msra.mxu0 0.0
  %3050 = vmatprep.subr.mxu0 0.0
  %3051 = vmatpush2.msra.mxu0 0.0
  %3052 = vmatprep.subr.mxu0 0.0
  %3053 = vmatpush2.msra.mxu0 0.0
  %3054 = vmatprep.subr.mxu0 0.0
  %3055 = vmatpush2.msra.mxu0 0.0
  %3056 = vmatprep.subr.mxu0 0.0
  %3057 = vmatpush2.msra.mxu0 0.0
  %3058 = vmatprep.subr.mxu0 0.0
  %3059 = vmatpush2.msra.mxu0 0.0
  %3060 = vmatprep.subr.mxu0 0.0
  %3061 = vmatpush2.msra.mxu0 0.0
  %3062 = vmatprep.subr.mxu0 0.0
  %3063 = vmatpush2.msra.mxu0 0.0
  %3064 = vmatprep.subr.mxu0 0.0
  %3065 = vmatpush2.msra.mxu0 0.0
  %3066 = vmatprep.mubr.f32.mxu0 0.0
  %3067 = vmatmul.mubr.f32.gmra.mxu0 %v639
  %v3068 = vpop.f32.mrf.mxu0
  %v3069 = vadd.f32 %v2994, %v3068
  %v3070 = vpop.f32.mrf.mxu0
  %3071 = vmatprep.mubr.f32.mxu0 0.0
  %3072 = vmatmul.mubr.f32.gmra.mxu0 %v642
  %v3073 = vpop.f32.mrf.mxu0
  %v3074 = vadd.f32 %v2999, %v3073
  %v3075 = vpop.f32.mrf.mxu0
  %3076 = vdwg.mxu0
  %s3077 = scalar_lea.vmem %s3, 192
  %v3078 = vld [vmem:[%s3077] sm:$0xff]
  %v3079 = vld [vmem:[%s3077 + $0x8] sm:$0xff]
  %v3080 = vld [vmem:[%s3077 + $0x10] sm:$0xf]
  %v3082 = vsel %vm988, %v3078, 0
  %v3085 = vsel %vm988, %v3079, 0
  %v3088 = vsel %vm988, %v3080, 0
  %v3091 = vsel %vm998, %v3074, 0
  %3093 = vmatprep.subr.mxu0 0.0
  %3094 = vmatpush1.msra.mxu0 0.0
  %3095 = vmatprep.subr.mxu0 0.0
  %3096 = vmatpush1.msra.mxu0 0.0
  %3097 = vmatprep.subr.mxu0 0.0
  %3098 = vmatpush1.msra.mxu0 0.0
  %3099 = vmatprep.subr.mxu0 0.0
  %3100 = vmatpush1.msra.mxu0 0.0
  %3101 = vmatprep.subr.mxu0 0.0
  %3102 = vmatpush1.msra.mxu0 0.0
  %3103 = vmatprep.subr.mxu0 0.0
  %3104 = vmatpush1.msra.mxu0 0.0
  %3105 = vmatprep.subr.mxu0 0.0
  %3106 = vmatpush1.msra.mxu0 0.0
  %3107 = vmatprep.subr.mxu0 0.0
  %3108 = vmatpush1.msra.mxu0 0.0
  %3109 = vmatprep.subr.mxu0 0.0
  %3110 = vmatpush1.msra.mxu0 0.0
  %3111 = vmatprep.subr.mxu0 0.0
  %3112 = vmatpush1.msra.mxu0 0.0
  %3113 = vmatprep.subr.mxu0 0.0
  %3114 = vmatpush1.msra.mxu0 0.0
  %3115 = vmatprep.subr.mxu0 0.0
  %3116 = vmatpush1.msra.mxu0 0.0
  %3117 = vmatprep.subr.mxu0 0.0
  %3118 = vmatpush1.msra.mxu0 0.0
  %3119 = vmatprep.subr.mxu0 0.0
  %3120 = vmatpush1.msra.mxu0 0.0
  %3121 = vmatprep.subr.mxu0 0.0
  %3122 = vmatpush1.msra.mxu0 %v3091
  %3123 = vmatprep.subr.mxu0 0.0
  %3124 = vmatpush1.msra.mxu0 %v3069
  %3125 = vmatprep.subr.mxu0 0.0
  %3126 = vmatpush2.msra.mxu0 0.0
  %3127 = vmatprep.subr.mxu0 0.0
  %3128 = vmatpush2.msra.mxu0 0.0
  %3129 = vmatprep.subr.mxu0 0.0
  %3130 = vmatpush2.msra.mxu0 0.0
  %3131 = vmatprep.subr.mxu0 0.0
  %3132 = vmatpush2.msra.mxu0 0.0
  %3133 = vmatprep.subr.mxu0 0.0
  %3134 = vmatpush2.msra.mxu0 0.0
  %3135 = vmatprep.subr.mxu0 0.0
  %3136 = vmatpush2.msra.mxu0 0.0
  %3137 = vmatprep.subr.mxu0 0.0
  %3138 = vmatpush2.msra.mxu0 0.0
  %3139 = vmatprep.subr.mxu0 0.0
  %3140 = vmatpush2.msra.mxu0 0.0
  %3141 = vmatprep.subr.mxu0 0.0
  %3142 = vmatpush2.msra.mxu0 0.0
  %3143 = vmatprep.subr.mxu0 0.0
  %3144 = vmatpush2.msra.mxu0 0.0
  %3145 = vmatprep.subr.mxu0 0.0
  %3146 = vmatpush2.msra.mxu0 0.0
  %3147 = vmatprep.subr.mxu0 0.0
  %3148 = vmatpush2.msra.mxu0 0.0
  %3149 = vmatprep.subr.mxu0 0.0
  %3150 = vmatpush2.msra.mxu0 0.0
  %3151 = vmatprep.subr.mxu0 0.0
  %3152 = vmatpush2.msra.mxu0 0.0
  %3153 = vmatprep.subr.mxu0 0.0
  %3154 = vmatpush2.msra.mxu0 0.0
  %3155 = vmatprep.subr.mxu0 0.0
  %3156 = vmatpush2.msra.mxu0 0.0
  %3157 = vmatprep.mubr.f32.mxu0 0.0
  %3158 = vmatmul.mubr.f32.gmra.mxu0 %v3082
  %v3159 = vpop.f32.mrf.mxu0
  %v3160 = vadd.f32 0.0, %v3159
  %v3161 = vpop.f32.mrf.mxu0
  %3162 = vmatprep.mubr.f32.mxu0 0.0
  %3163 = vmatmul.mubr.f32.gmra.mxu0 %v3085
  %v3164 = vpop.f32.mrf.mxu0
  %v3165 = vadd.f32 0.0, %v3164
  %v3166 = vpop.f32.mrf.mxu0
  %3167 = vmatprep.mubr.f32.mxu0 0.0
  %3168 = vmatmul.mubr.f32.gmra.mxu0 %v3088
  %v3169 = vpop.f32.mrf.mxu0
  %v3170 = vadd.f32 0.0, %v3169
  %v3171 = vpop.f32.mrf.mxu0
  %3172 = vdwg.mxu0
  %v3173 = vadd.f32 %v2887, %v3160
  %v3174 = vadd.f32 %v2888, %v3165
  %v3175 = vadd.f32 %v2889, %v3170
  %s3176 = scalar_lea.vmem %s5, 2592
  %v3177 = vld [vmem:[%s3176] sm:$0xff]
  %v3178 = vld [vmem:[%s3176 + $0x8] sm:$0xff]
  %v3179 = vld [vmem:[%s3176 + $0x10] sm:$0xff]
  %v3180 = vld [vmem:[%s3176 + $0x18] sm:$0xff]
  %v3181 = vld [vmem:[%s3176 + $0x20] sm:$0xff]
  %v3182 = vld [vmem:[%s3176 + $0x28] sm:$0xff]
  %v3183 = vld [vmem:[%s3176 + $0x30] sm:$0xff]
  %v3184 = vld [vmem:[%s3176 + $0x38] sm:$0xff]
  %v3185 = vld [vmem:[%s3176 + $0x40] sm:$0xff]
  %v3186 = vld [vmem:[%s3176 + $0x48] sm:$0xff]
  %v3187 = vld [vmem:[%s3176 + $0x50] sm:$0xff]
  %v3188 = vld [vmem:[%s3176 + $0x58] sm:$0xff]
  %v3189 = vld [vmem:[%s3176 + $0x60] sm:$0xff]
  %v3190 = vld [vmem:[%s3176 + $0x68] sm:$0xff]
  %v3191 = vld [vmem:[%s3176 + $0x70] sm:$0xff]
  %v3192 = vld [vmem:[%s3176 + $0x78] sm:$0xff]
  %v3193 = vld [vmem:[%s3176 + $0x80] sm:$0xff]
  %v3194 = vld [vmem:[%s3176 + $0x88] sm:$0xff]
  %v3195 = vld [vmem:[%s3176 + $0x90] sm:$0xff]
  %v3196 = vld [vmem:[%s3176 + $0x98] sm:$0xff]
  %v3197 = vld [vmem:[%s3176 + $0xa0] sm:$0xff]
  %v3198 = vld [vmem:[%s3176 + $0xa8] sm:$0xff]
  %v3199 = vld [vmem:[%s3176 + $0xb0] sm:$0xff]
  %v3200 = vld [vmem:[%s3176 + $0xb8] sm:$0xff]
  %v3201 = vld [vmem:[%s3176 + $0xc0] sm:$0xff]
  %v3202 = vld [vmem:[%s3176 + $0xc8] sm:$0xff]
  %v3203 = vld [vmem:[%s3176 + $0xd0] sm:$0xff]
  %v3204 = vld [vmem:[%s3176 + $0xd8] sm:$0xff]
  %v3205 = vld [vmem:[%s3176 + $0xe0] sm:$0xff]
  %v3206 = vld [vmem:[%s3176 + $0xe8] sm:$0xff]
  %v3207 = vld [vmem:[%s3176 + $0xf0] sm:$0xff]
  %v3208 = vld [vmem:[%s3176 + $0xf8] sm:$0xff]
  %v3209 = vld [vmem:[%s3176 + $0x100] sm:$0xff]
  %v3210 = vld [vmem:[%s3176 + $0x108] sm:$0xff]
  %v3211 = vld [vmem:[%s3176 + $0x110] sm:$0xff]
  %v3212 = vld [vmem:[%s3176 + $0x118] sm:$0xff]
  %3213 = vmatprep.subr.mxu0 0.0
  %3214 = vmatpush1.msra.mxu0 %v3192
  %3215 = vmatprep.subr.mxu0 0.0
  %3216 = vmatpush1.msra.mxu0 %v3191
  %3217 = vmatprep.subr.mxu0 0.0
  %3218 = vmatpush1.msra.mxu0 %v3190
  %3219 = vmatprep.subr.mxu0 0.0
  %3220 = vmatpush1.msra.mxu0 %v3189
  %3221 = vmatprep.subr.mxu0 0.0
  %3222 = vmatpush1.msra.mxu0 %v3188
  %3223 = vmatprep.subr.mxu0 0.0
  %3224 = vmatpush1.msra.mxu0 %v3187
  %3225 = vmatprep.subr.mxu0 0.0
  %3226 = vmatpush1.msra.mxu0 %v3186
  %3227 = vmatprep.subr.mxu0 0.0
  %3228 = vmatpush1.msra.mxu0 %v3185
  %3229 = vmatprep.subr.mxu0 0.0
  %3230 = vmatpush1.msra.mxu0 %v3184
  %3231 = vmatprep.subr.mxu0 0.0
  %3232 = vmatpush1.msra.mxu0 %v3183
  %3233 = vmatprep.subr.mxu0 0.0
  %3234 = vmatpush1.msra.mxu0 %v3182
  %3235 = vmatprep.subr.mxu0 0.0
  %3236 = vmatpush1.msra.mxu0 %v3181
  %3237 = vmatprep.subr.mxu0 0.0
  %3238 = vmatpush1.msra.mxu0 %v3180
  %3239 = vmatprep.subr.mxu0 0.0
  %3240 = vmatpush1.msra.mxu0 %v3179
  %3241 = vmatprep.subr.mxu0 0.0
  %3242 = vmatpush1.msra.mxu0 %v3178
  %3243 = vmatprep.subr.mxu0 0.0
  %3244 = vmatpush1.msra.mxu0 %v3177
  %3245 = vmatprep.subr.mxu0 0.0
  %3246 = vmatpush2.msra.mxu0 %v3208
  %3247 = vmatprep.subr.mxu0 0.0
  %3248 = vmatpush2.msra.mxu0 %v3207
  %3249 = vmatprep.subr.mxu0 0.0
  %3250 = vmatpush2.msra.mxu0 %v3206
  %3251 = vmatprep.subr.mxu0 0.0
  %3252 = vmatpush2.msra.mxu0 %v3205
  %3253 = vmatprep.subr.mxu0 0.0
  %3254 = vmatpush2.msra.mxu0 %v3204
  %3255 = vmatprep.subr.mxu0 0.0
  %3256 = vmatpush2.msra.mxu0 %v3203
  %3257 = vmatprep.subr.mxu0 0.0
  %3258 = vmatpush2.msra.mxu0 %v3202
  %3259 = vmatprep.subr.mxu0 0.0
  %3260 = vmatpush2.msra.mxu0 %v3201
  %3261 = vmatprep.subr.mxu0 0.0
  %3262 = vmatpush2.msra.mxu0 %v3200
  %3263 = vmatprep.subr.mxu0 0.0
  %3264 = vmatpush2.msra.mxu0 %v3199
  %3265 = vmatprep.subr.mxu0 0.0
  %3266 = vmatpush2.msra.mxu0 %v3198
  %3267 = vmatprep.subr.mxu0 0.0
  %3268 = vmatpush2.msra.mxu0 %v3197
  %3269 = vmatprep.subr.mxu0 0.0
  %3270 = vmatpush2.msra.mxu0 %v3196
  %3271 = vmatprep.subr.mxu0 0.0
  %3272 = vmatpush2.msra.mxu0 %v3195
  %3273 = vmatprep.subr.mxu0 0.0
  %3274 = vmatpush2.msra.mxu0 %v3194
  %3275 = vmatprep.subr.mxu0 0.0
  %3276 = vmatpush2.msra.mxu0 %v3193
  %3277 = vmatprep.mubr.f32.mxu0 %v596
  %3278 = vmatmul.mubr.f32.gmra.mxu0 %v595
  %v3279 = vpop.f32.mrf.mxu0
  %v3280 = vadd.f32 0.0, %v3279
  %v3281 = vpop.f32.mrf.mxu0
  %3282 = vmatprep.mubr.f32.mxu0 %v599
  %3283 = vmatmul.mubr.f32.gmra.mxu0 %v598
  %v3284 = vpop.f32.mrf.mxu0
  %v3285 = vadd.f32 0.0, %v3284
  %v3286 = vpop.f32.mrf.mxu0
  %3287 = vdwg.mxu0
  %3288 = vmatprep.subr.mxu0 0.0
  %3289 = vmatpush1.msra.mxu0 0.0
  %3290 = vmatprep.subr.mxu0 0.0
  %3291 = vmatpush1.msra.mxu0 0.0
  %3292 = vmatprep.subr.mxu0 0.0
  %3293 = vmatpush1.msra.mxu0 0.0
  %3294 = vmatprep.subr.mxu0 0.0
  %3295 = vmatpush1.msra.mxu0 0.0
  %3296 = vmatprep.subr.mxu0 0.0
  %3297 = vmatpush1.msra.mxu0 0.0
  %3298 = vmatprep.subr.mxu0 0.0
  %3299 = vmatpush1.msra.mxu0 0.0
  %3300 = vmatprep.subr.mxu0 0.0
  %3301 = vmatpush1.msra.mxu0 0.0
  %3302 = vmatprep.subr.mxu0 0.0
  %3303 = vmatpush1.msra.mxu0 0.0
  %3304 = vmatprep.subr.mxu0 0.0
  %3305 = vmatpush1.msra.mxu0 0.0
  %3306 = vmatprep.subr.mxu0 0.0
  %3307 = vmatpush1.msra.mxu0 0.0
  %3308 = vmatprep.subr.mxu0 0.0
  %3309 = vmatpush1.msra.mxu0 0.0
  %3310 = vmatprep.subr.mxu0 0.0
  %3311 = vmatpush1.msra.mxu0 0.0
  %3312 = vmatprep.subr.mxu0 0.0
  %3313 = vmatpush1.msra.mxu0 %v3212
  %3314 = vmatprep.subr.mxu0 0.0
  %3315 = vmatpush1.msra.mxu0 %v3211
  %3316 = vmatprep.subr.mxu0 0.0
  %3317 = vmatpush1.msra.mxu0 %v3210
  %3318 = vmatprep.subr.mxu0 0.0
  %3319 = vmatpush1.msra.mxu0 %v3209
  %3320 = vmatprep.subr.mxu0 0.0
  %3321 = vmatpush2.msra.mxu0 0.0
  %3322 = vmatprep.subr.mxu0 0.0
  %3323 = vmatpush2.msra.mxu0 0.0
  %3324 = vmatprep.subr.mxu0 0.0
  %3325 = vmatpush2.msra.mxu0 0.0
  %3326 = vmatprep.subr.mxu0 0.0
  %3327 = vmatpush2.msra.mxu0 0.0
  %3328 = vmatprep.subr.mxu0 0.0
  %3329 = vmatpush2.msra.mxu0 0.0
  %3330 = vmatprep.subr.mxu0 0.0
  %3331 = vmatpush2.msra.mxu0 0.0
  %3332 = vmatprep.subr.mxu0 0.0
  %3333 = vmatpush2.msra.mxu0 0.0
  %3334 = vmatprep.subr.mxu0 0.0
  %3335 = vmatpush2.msra.mxu0 0.0
  %3336 = vmatprep.subr.mxu0 0.0
  %3337 = vmatpush2.msra.mxu0 0.0
  %3338 = vmatprep.subr.mxu0 0.0
  %3339 = vmatpush2.msra.mxu0 0.0
  %3340 = vmatprep.subr.mxu0 0.0
  %3341 = vmatpush2.msra.mxu0 0.0
  %3342 = vmatprep.subr.mxu0 0.0
  %3343 = vmatpush2.msra.mxu0 0.0
  %3344 = vmatprep.subr.mxu0 0.0
  %3345 = vmatpush2.msra.mxu0 0.0
  %3346 = vmatprep.subr.mxu0 0.0
  %3347 = vmatpush2.msra.mxu0 0.0
  %3348 = vmatprep.subr.mxu0 0.0
  %3349 = vmatpush2.msra.mxu0 0.0
  %3350 = vmatprep.subr.mxu0 0.0
  %3351 = vmatpush2.msra.mxu0 0.0
  %3352 = vmatprep.mubr.f32.mxu0 0.0
  %3353 = vmatmul.mubr.f32.gmra.mxu0 %v639
  %v3354 = vpop.f32.mrf.mxu0
  %v3355 = vadd.f32 %v3280, %v3354
  %v3356 = vpop.f32.mrf.mxu0
  %3357 = vmatprep.mubr.f32.mxu0 0.0
  %3358 = vmatmul.mubr.f32.gmra.mxu0 %v642
  %v3359 = vpop.f32.mrf.mxu0
  %v3360 = vadd.f32 %v3285, %v3359
  %v3361 = vpop.f32.mrf.mxu0
  %3362 = vdwg.mxu0
  %s3363 = scalar_lea.vmem %s3, 216
  %v3364 = vld [vmem:[%s3363] sm:$0xff]
  %v3365 = vld [vmem:[%s3363 + $0x8] sm:$0xff]
  %v3366 = vld [vmem:[%s3363 + $0x10] sm:$0xf]
  %v3368 = vsel %vm988, %v3364, 0
  %v3371 = vsel %vm988, %v3365, 0
  %v3374 = vsel %vm988, %v3366, 0
  %v3377 = vsel %vm998, %v3360, 0
  %3379 = vmatprep.subr.mxu0 0.0
  %3380 = vmatpush1.msra.mxu0 0.0
  %3381 = vmatprep.subr.mxu0 0.0
  %3382 = vmatpush1.msra.mxu0 0.0
  %3383 = vmatprep.subr.mxu0 0.0
  %3384 = vmatpush1.msra.mxu0 0.0
  %3385 = vmatprep.subr.mxu0 0.0
  %3386 = vmatpush1.msra.mxu0 0.0
  %3387 = vmatprep.subr.mxu0 0.0
  %3388 = vmatpush1.msra.mxu0 0.0
  %3389 = vmatprep.subr.mxu0 0.0
  %3390 = vmatpush1.msra.mxu0 0.0
  %3391 = vmatprep.subr.mxu0 0.0
  %3392 = vmatpush1.msra.mxu0 0.0
  %3393 = vmatprep.subr.mxu0 0.0
  %3394 = vmatpush1.msra.mxu0 0.0
  %3395 = vmatprep.subr.mxu0 0.0
  %3396 = vmatpush1.msra.mxu0 0.0
  %3397 = vmatprep.subr.mxu0 0.0
  %3398 = vmatpush1.msra.mxu0 0.0
  %3399 = vmatprep.subr.mxu0 0.0
  %3400 = vmatpush1.msra.mxu0 0.0
  %3401 = vmatprep.subr.mxu0 0.0
  %3402 = vmatpush1.msra.mxu0 0.0
  %3403 = vmatprep.subr.mxu0 0.0
  %3404 = vmatpush1.msra.mxu0 0.0
  %3405 = vmatprep.subr.mxu0 0.0
  %3406 = vmatpush1.msra.mxu0 0.0
  %3407 = vmatprep.subr.mxu0 0.0
  %3408 = vmatpush1.msra.mxu0 %v3377
  %3409 = vmatprep.subr.mxu0 0.0
  %3410 = vmatpush1.msra.mxu0 %v3355
  %3411 = vmatprep.subr.mxu0 0.0
  %3412 = vmatpush2.msra.mxu0 0.0
  %3413 = vmatprep.subr.mxu0 0.0
  %3414 = vmatpush2.msra.mxu0 0.0
  %3415 = vmatprep.subr.mxu0 0.0
  %3416 = vmatpush2.msra.mxu0 0.0
  %3417 = vmatprep.subr.mxu0 0.0
  %3418 = vmatpush2.msra.mxu0 0.0
  %3419 = vmatprep.subr.mxu0 0.0
  %3420 = vmatpush2.msra.mxu0 0.0
  %3421 = vmatprep.subr.mxu0 0.0
  %3422 = vmatpush2.msra.mxu0 0.0
  %3423 = vmatprep.subr.mxu0 0.0
  %3424 = vmatpush2.msra.mxu0 0.0
  %3425 = vmatprep.subr.mxu0 0.0
  %3426 = vmatpush2.msra.mxu0 0.0
  %3427 = vmatprep.subr.mxu0 0.0
  %3428 = vmatpush2.msra.mxu0 0.0
  %3429 = vmatprep.subr.mxu0 0.0
  %3430 = vmatpush2.msra.mxu0 0.0
  %3431 = vmatprep.subr.mxu0 0.0
  %3432 = vmatpush2.msra.mxu0 0.0
  %3433 = vmatprep.subr.mxu0 0.0
  %3434 = vmatpush2.msra.mxu0 0.0
  %3435 = vmatprep.subr.mxu0 0.0
  %3436 = vmatpush2.msra.mxu0 0.0
  %3437 = vmatprep.subr.mxu0 0.0
  %3438 = vmatpush2.msra.mxu0 0.0
  %3439 = vmatprep.subr.mxu0 0.0
  %3440 = vmatpush2.msra.mxu0 0.0
  %3441 = vmatprep.subr.mxu0 0.0
  %3442 = vmatpush2.msra.mxu0 0.0
  %3443 = vmatprep.mubr.f32.mxu0 0.0
  %3444 = vmatmul.mubr.f32.gmra.mxu0 %v3368
  %v3445 = vpop.f32.mrf.mxu0
  %v3446 = vadd.f32 0.0, %v3445
  %v3447 = vpop.f32.mrf.mxu0
  %3448 = vmatprep.mubr.f32.mxu0 0.0
  %3449 = vmatmul.mubr.f32.gmra.mxu0 %v3371
  %v3450 = vpop.f32.mrf.mxu0
  %v3451 = vadd.f32 0.0, %v3450
  %v3452 = vpop.f32.mrf.mxu0
  %3453 = vmatprep.mubr.f32.mxu0 0.0
  %3454 = vmatmul.mubr.f32.gmra.mxu0 %v3374
  %v3455 = vpop.f32.mrf.mxu0
  %v3456 = vadd.f32 0.0, %v3455
  %v3457 = vpop.f32.mrf.mxu0
  %3458 = vdwg.mxu0
  %v3459 = vadd.f32 %v3173, %v3446
  %v3460 = vadd.f32 %v3174, %v3451
  %v3461 = vadd.f32 %v3175, %v3456
  %s3462 = scalar_lea.vmem %s5, 2880
  %v3463 = vld [vmem:[%s3462] sm:$0xff]
  %v3464 = vld [vmem:[%s3462 + $0x8] sm:$0xff]
  %v3465 = vld [vmem:[%s3462 + $0x10] sm:$0xff]
  %v3466 = vld [vmem:[%s3462 + $0x18] sm:$0xff]
  %v3467 = vld [vmem:[%s3462 + $0x20] sm:$0xff]
  %v3468 = vld [vmem:[%s3462 + $0x28] sm:$0xff]
  %v3469 = vld [vmem:[%s3462 + $0x30] sm:$0xff]
  %v3470 = vld [vmem:[%s3462 + $0x38] sm:$0xff]
  %v3471 = vld [vmem:[%s3462 + $0x40] sm:$0xff]
  %v3472 = vld [vmem:[%s3462 + $0x48] sm:$0xff]
  %v3473 = vld [vmem:[%s3462 + $0x50] sm:$0xff]
  %v3474 = vld [vmem:[%s3462 + $0x58] sm:$0xff]
  %v3475 = vld [vmem:[%s3462 + $0x60] sm:$0xff]
  %v3476 = vld [vmem:[%s3462 + $0x68] sm:$0xff]
  %v3477 = vld [vmem:[%s3462 + $0x70] sm:$0xff]
  %v3478 = vld [vmem:[%s3462 + $0x78] sm:$0xff]
  %v3479 = vld [vmem:[%s3462 + $0x80] sm:$0xff]
  %v3480 = vld [vmem:[%s3462 + $0x88] sm:$0xff]
  %v3481 = vld [vmem:[%s3462 + $0x90] sm:$0xff]
  %v3482 = vld [vmem:[%s3462 + $0x98] sm:$0xff]
  %v3483 = vld [vmem:[%s3462 + $0xa0] sm:$0xff]
  %v3484 = vld [vmem:[%s3462 + $0xa8] sm:$0xff]
  %v3485 = vld [vmem:[%s3462 + $0xb0] sm:$0xff]
  %v3486 = vld [vmem:[%s3462 + $0xb8] sm:$0xff]
  %v3487 = vld [vmem:[%s3462 + $0xc0] sm:$0xff]
  %v3488 = vld [vmem:[%s3462 + $0xc8] sm:$0xff]
  %v3489 = vld [vmem:[%s3462 + $0xd0] sm:$0xff]
  %v3490 = vld [vmem:[%s3462 + $0xd8] sm:$0xff]
  %v3491 = vld [vmem:[%s3462 + $0xe0] sm:$0xff]
  %v3492 = vld [vmem:[%s3462 + $0xe8] sm:$0xff]
  %v3493 = vld [vmem:[%s3462 + $0xf0] sm:$0xff]
  %v3494 = vld [vmem:[%s3462 + $0xf8] sm:$0xff]
  %v3495 = vld [vmem:[%s3462 + $0x100] sm:$0xff]
  %v3496 = vld [vmem:[%s3462 + $0x108] sm:$0xff]
  %v3497 = vld [vmem:[%s3462 + $0x110] sm:$0xff]
  %v3498 = vld [vmem:[%s3462 + $0x118] sm:$0xff]
  %3499 = vmatprep.subr.mxu0 0.0
  %3500 = vmatpush1.msra.mxu0 %v3478
  %3501 = vmatprep.subr.mxu0 0.0
  %3502 = vmatpush1.msra.mxu0 %v3477
  %3503 = vmatprep.subr.mxu0 0.0
  %3504 = vmatpush1.msra.mxu0 %v3476
  %3505 = vmatprep.subr.mxu0 0.0
  %3506 = vmatpush1.msra.mxu0 %v3475
  %3507 = vmatprep.subr.mxu0 0.0
  %3508 = vmatpush1.msra.mxu0 %v3474
  %3509 = vmatprep.subr.mxu0 0.0
  %3510 = vmatpush1.msra.mxu0 %v3473
  %3511 = vmatprep.subr.mxu0 0.0
  %3512 = vmatpush1.msra.mxu0 %v3472
  %3513 = vmatprep.subr.mxu0 0.0
  %3514 = vmatpush1.msra.mxu0 %v3471
  %3515 = vmatprep.subr.mxu0 0.0
  %3516 = vmatpush1.msra.mxu0 %v3470
  %3517 = vmatprep.subr.mxu0 0.0
  %3518 = vmatpush1.msra.mxu0 %v3469
  %3519 = vmatprep.subr.mxu0 0.0
  %3520 = vmatpush1.msra.mxu0 %v3468
  %3521 = vmatprep.subr.mxu0 0.0
  %3522 = vmatpush1.msra.mxu0 %v3467
  %3523 = vmatprep.subr.mxu0 0.0
  %3524 = vmatpush1.msra.mxu0 %v3466
  %3525 = vmatprep.subr.mxu0 0.0
  %3526 = vmatpush1.msra.mxu0 %v3465
  %3527 = vmatprep.subr.mxu0 0.0
  %3528 = vmatpush1.msra.mxu0 %v3464
  %3529 = vmatprep.subr.mxu0 0.0
  %3530 = vmatpush1.msra.mxu0 %v3463
  %3531 = vmatprep.subr.mxu0 0.0
  %3532 = vmatpush2.msra.mxu0 %v3494
  %3533 = vmatprep.subr.mxu0 0.0
  %3534 = vmatpush2.msra.mxu0 %v3493
  %3535 = vmatprep.subr.mxu0 0.0
  %3536 = vmatpush2.msra.mxu0 %v3492
  %3537 = vmatprep.subr.mxu0 0.0
  %3538 = vmatpush2.msra.mxu0 %v3491
  %3539 = vmatprep.subr.mxu0 0.0
  %3540 = vmatpush2.msra.mxu0 %v3490
  %3541 = vmatprep.subr.mxu0 0.0
  %3542 = vmatpush2.msra.mxu0 %v3489
  %3543 = vmatprep.subr.mxu0 0.0
  %3544 = vmatpush2.msra.mxu0 %v3488
  %3545 = vmatprep.subr.mxu0 0.0
  %3546 = vmatpush2.msra.mxu0 %v3487
  %3547 = vmatprep.subr.mxu0 0.0
  %3548 = vmatpush2.msra.mxu0 %v3486
  %3549 = vmatprep.subr.mxu0 0.0
  %3550 = vmatpush2.msra.mxu0 %v3485
  %3551 = vmatprep.subr.mxu0 0.0
  %3552 = vmatpush2.msra.mxu0 %v3484
  %3553 = vmatprep.subr.mxu0 0.0
  %3554 = vmatpush2.msra.mxu0 %v3483
  %3555 = vmatprep.subr.mxu0 0.0
  %3556 = vmatpush2.msra.mxu0 %v3482
  %3557 = vmatprep.subr.mxu0 0.0
  %3558 = vmatpush2.msra.mxu0 %v3481
  %3559 = vmatprep.subr.mxu0 0.0
  %3560 = vmatpush2.msra.mxu0 %v3480
  %3561 = vmatprep.subr.mxu0 0.0
  %3562 = vmatpush2.msra.mxu0 %v3479
  %3563 = vmatprep.mubr.f32.mxu0 %v596
  %3564 = vmatmul.mubr.f32.gmra.mxu0 %v595
  %v3565 = vpop.f32.mrf.mxu0
  %v3566 = vadd.f32 0.0, %v3565
  %v3567 = vpop.f32.mrf.mxu0
  %3568 = vmatprep.mubr.f32.mxu0 %v599
  %3569 = vmatmul.mubr.f32.gmra.mxu0 %v598
  %v3570 = vpop.f32.mrf.mxu0
  %v3571 = vadd.f32 0.0, %v3570
  %v3572 = vpop.f32.mrf.mxu0
  %3573 = vdwg.mxu0
  %3574 = vmatprep.subr.mxu0 0.0
  %3575 = vmatpush1.msra.mxu0 0.0
  %3576 = vmatprep.subr.mxu0 0.0
  %3577 = vmatpush1.msra.mxu0 0.0
  %3578 = vmatprep.subr.mxu0 0.0
  %3579 = vmatpush1.msra.mxu0 0.0
  %3580 = vmatprep.subr.mxu0 0.0
  %3581 = vmatpush1.msra.mxu0 0.0
  %3582 = vmatprep.subr.mxu0 0.0
  %3583 = vmatpush1.msra.mxu0 0.0
  %3584 = vmatprep.subr.mxu0 0.0
  %3585 = vmatpush1.msra.mxu0 0.0
  %3586 = vmatprep.subr.mxu0 0.0
  %3587 = vmatpush1.msra.mxu0 0.0
  %3588 = vmatprep.subr.mxu0 0.0
  %3589 = vmatpush1.msra.mxu0 0.0
  %3590 = vmatprep.subr.mxu0 0.0
  %3591 = vmatpush1.msra.mxu0 0.0
  %3592 = vmatprep.subr.mxu0 0.0
  %3593 = vmatpush1.msra.mxu0 0.0
  %3594 = vmatprep.subr.mxu0 0.0
  %3595 = vmatpush1.msra.mxu0 0.0
  %3596 = vmatprep.subr.mxu0 0.0
  %3597 = vmatpush1.msra.mxu0 0.0
  %3598 = vmatprep.subr.mxu0 0.0
  %3599 = vmatpush1.msra.mxu0 %v3498
  %3600 = vmatprep.subr.mxu0 0.0
  %3601 = vmatpush1.msra.mxu0 %v3497
  %3602 = vmatprep.subr.mxu0 0.0
  %3603 = vmatpush1.msra.mxu0 %v3496
  %3604 = vmatprep.subr.mxu0 0.0
  %3605 = vmatpush1.msra.mxu0 %v3495
  %3606 = vmatprep.subr.mxu0 0.0
  %3607 = vmatpush2.msra.mxu0 0.0
  %3608 = vmatprep.subr.mxu0 0.0
  %3609 = vmatpush2.msra.mxu0 0.0
  %3610 = vmatprep.subr.mxu0 0.0
  %3611 = vmatpush2.msra.mxu0 0.0
  %3612 = vmatprep.subr.mxu0 0.0
  %3613 = vmatpush2.msra.mxu0 0.0
  %3614 = vmatprep.subr.mxu0 0.0
  %3615 = vmatpush2.msra.mxu0 0.0
  %3616 = vmatprep.subr.mxu0 0.0
  %3617 = vmatpush2.msra.mxu0 0.0
  %3618 = vmatprep.subr.mxu0 0.0
  %3619 = vmatpush2.msra.mxu0 0.0
  %3620 = vmatprep.subr.mxu0 0.0
  %3621 = vmatpush2.msra.mxu0 0.0
  %3622 = vmatprep.subr.mxu0 0.0
  %3623 = vmatpush2.msra.mxu0 0.0
  %3624 = vmatprep.subr.mxu0 0.0
  %3625 = vmatpush2.msra.mxu0 0.0
  %3626 = vmatprep.subr.mxu0 0.0
  %3627 = vmatpush2.msra.mxu0 0.0
  %3628 = vmatprep.subr.mxu0 0.0
  %3629 = vmatpush2.msra.mxu0 0.0
  %3630 = vmatprep.subr.mxu0 0.0
  %3631 = vmatpush2.msra.mxu0 0.0
  %3632 = vmatprep.subr.mxu0 0.0
  %3633 = vmatpush2.msra.mxu0 0.0
  %3634 = vmatprep.subr.mxu0 0.0
  %3635 = vmatpush2.msra.mxu0 0.0
  %3636 = vmatprep.subr.mxu0 0.0
  %3637 = vmatpush2.msra.mxu0 0.0
  %3638 = vmatprep.mubr.f32.mxu0 0.0
  %3639 = vmatmul.mubr.f32.gmra.mxu0 %v639
  %v3640 = vpop.f32.mrf.mxu0
  %v3641 = vadd.f32 %v3566, %v3640
  %v3642 = vpop.f32.mrf.mxu0
  %3643 = vmatprep.mubr.f32.mxu0 0.0
  %3644 = vmatmul.mubr.f32.gmra.mxu0 %v642
  %v3645 = vpop.f32.mrf.mxu0
  %v3646 = vadd.f32 %v3571, %v3645
  %v3647 = vpop.f32.mrf.mxu0
  %3648 = vdwg.mxu0
  %s3649 = scalar_lea.vmem %s3, 240
  %v3650 = vld [vmem:[%s3649] sm:$0xff]
  %v3651 = vld [vmem:[%s3649 + $0x8] sm:$0xff]
  %v3652 = vld [vmem:[%s3649 + $0x10] sm:$0xf]
  %v3654 = vsel %vm988, %v3650, 0
  %v3657 = vsel %vm988, %v3651, 0
  %v3660 = vsel %vm988, %v3652, 0
  %v3663 = vsel %vm998, %v3646, 0
  %3665 = vmatprep.subr.mxu0 0.0
  %3666 = vmatpush1.msra.mxu0 0.0
  %3667 = vmatprep.subr.mxu0 0.0
  %3668 = vmatpush1.msra.mxu0 0.0
  %3669 = vmatprep.subr.mxu0 0.0
  %3670 = vmatpush1.msra.mxu0 0.0
  %3671 = vmatprep.subr.mxu0 0.0
  %3672 = vmatpush1.msra.mxu0 0.0
  %3673 = vmatprep.subr.mxu0 0.0
  %3674 = vmatpush1.msra.mxu0 0.0
  %3675 = vmatprep.subr.mxu0 0.0
  %3676 = vmatpush1.msra.mxu0 0.0
  %3677 = vmatprep.subr.mxu0 0.0
  %3678 = vmatpush1.msra.mxu0 0.0
  %3679 = vmatprep.subr.mxu0 0.0
  %3680 = vmatpush1.msra.mxu0 0.0
  %3681 = vmatprep.subr.mxu0 0.0
  %3682 = vmatpush1.msra.mxu0 0.0
  %3683 = vmatprep.subr.mxu0 0.0
  %3684 = vmatpush1.msra.mxu0 0.0
  %3685 = vmatprep.subr.mxu0 0.0
  %3686 = vmatpush1.msra.mxu0 0.0
  %3687 = vmatprep.subr.mxu0 0.0
  %3688 = vmatpush1.msra.mxu0 0.0
  %3689 = vmatprep.subr.mxu0 0.0
  %3690 = vmatpush1.msra.mxu0 0.0
  %3691 = vmatprep.subr.mxu0 0.0
  %3692 = vmatpush1.msra.mxu0 0.0
  %3693 = vmatprep.subr.mxu0 0.0
  %3694 = vmatpush1.msra.mxu0 %v3663
  %3695 = vmatprep.subr.mxu0 0.0
  %3696 = vmatpush1.msra.mxu0 %v3641
  %3697 = vmatprep.subr.mxu0 0.0
  %3698 = vmatpush2.msra.mxu0 0.0
  %3699 = vmatprep.subr.mxu0 0.0
  %3700 = vmatpush2.msra.mxu0 0.0
  %3701 = vmatprep.subr.mxu0 0.0
  %3702 = vmatpush2.msra.mxu0 0.0
  %3703 = vmatprep.subr.mxu0 0.0
  %3704 = vmatpush2.msra.mxu0 0.0
  %3705 = vmatprep.subr.mxu0 0.0
  %3706 = vmatpush2.msra.mxu0 0.0
  %3707 = vmatprep.subr.mxu0 0.0
  %3708 = vmatpush2.msra.mxu0 0.0
  %3709 = vmatprep.subr.mxu0 0.0
  %3710 = vmatpush2.msra.mxu0 0.0
  %3711 = vmatprep.subr.mxu0 0.0
  %3712 = vmatpush2.msra.mxu0 0.0
  %3713 = vmatprep.subr.mxu0 0.0
  %3714 = vmatpush2.msra.mxu0 0.0
  %3715 = vmatprep.subr.mxu0 0.0
  %3716 = vmatpush2.msra.mxu0 0.0
  %3717 = vmatprep.subr.mxu0 0.0
  %3718 = vmatpush2.msra.mxu0 0.0
  %3719 = vmatprep.subr.mxu0 0.0
  %3720 = vmatpush2.msra.mxu0 0.0
  %3721 = vmatprep.subr.mxu0 0.0
  %3722 = vmatpush2.msra.mxu0 0.0
  %3723 = vmatprep.subr.mxu0 0.0
  %3724 = vmatpush2.msra.mxu0 0.0
  %3725 = vmatprep.subr.mxu0 0.0
  %3726 = vmatpush2.msra.mxu0 0.0
  %3727 = vmatprep.subr.mxu0 0.0
  %3728 = vmatpush2.msra.mxu0 0.0
  %3729 = vmatprep.mubr.f32.mxu0 0.0
  %3730 = vmatmul.mubr.f32.gmra.mxu0 %v3654
  %v3731 = vpop.f32.mrf.mxu0
  %v3732 = vadd.f32 0.0, %v3731
  %v3733 = vpop.f32.mrf.mxu0
  %3734 = vmatprep.mubr.f32.mxu0 0.0
  %3735 = vmatmul.mubr.f32.gmra.mxu0 %v3657
  %v3736 = vpop.f32.mrf.mxu0
  %v3737 = vadd.f32 0.0, %v3736
  %v3738 = vpop.f32.mrf.mxu0
  %3739 = vmatprep.mubr.f32.mxu0 0.0
  %3740 = vmatmul.mubr.f32.gmra.mxu0 %v3660
  %v3741 = vpop.f32.mrf.mxu0
  %v3742 = vadd.f32 0.0, %v3741
  %v3743 = vpop.f32.mrf.mxu0
  %3744 = vdwg.mxu0
  %v3745 = vadd.f32 %v3459, %v3732
  %v3746 = vadd.f32 %v3460, %v3737
  %v3747 = vadd.f32 %v3461, %v3742
  %s3748 = scalar_lea.vmem %s5, 3168
  %v3749 = vld [vmem:[%s3748] sm:$0xff]
  %v3750 = vld [vmem:[%s3748 + $0x8] sm:$0xff]
  %v3751 = vld [vmem:[%s3748 + $0x10] sm:$0xff]
  %v3752 = vld [vmem:[%s3748 + $0x18] sm:$0xff]
  %v3753 = vld [vmem:[%s3748 + $0x20] sm:$0xff]
  %v3754 = vld [vmem:[%s3748 + $0x28] sm:$0xff]
  %v3755 = vld [vmem:[%s3748 + $0x30] sm:$0xff]
  %v3756 = vld [vmem:[%s3748 + $0x38] sm:$0xff]
  %v3757 = vld [vmem:[%s3748 + $0x40] sm:$0xff]
  %v3758 = vld [vmem:[%s3748 + $0x48] sm:$0xff]
  %v3759 = vld [vmem:[%s3748 + $0x50] sm:$0xff]
  %v3760 = vld [vmem:[%s3748 + $0x58] sm:$0xff]
  %v3761 = vld [vmem:[%s3748 + $0x60] sm:$0xff]
  %v3762 = vld [vmem:[%s3748 + $0x68] sm:$0xff]
  %v3763 = vld [vmem:[%s3748 + $0x70] sm:$0xff]
  %v3764 = vld [vmem:[%s3748 + $0x78] sm:$0xff]
  %v3765 = vld [vmem:[%s3748 + $0x80] sm:$0xff]
  %v3766 = vld [vmem:[%s3748 + $0x88] sm:$0xff]
  %v3767 = vld [vmem:[%s3748 + $0x90] sm:$0xff]
  %v3768 = vld [vmem:[%s3748 + $0x98] sm:$0xff]
  %v3769 = vld [vmem:[%s3748 + $0xa0] sm:$0xff]
  %v3770 = vld [vmem:[%s3748 + $0xa8] sm:$0xff]
  %v3771 = vld [vmem:[%s3748 + $0xb0] sm:$0xff]
  %v3772 = vld [vmem:[%s3748 + $0xb8] sm:$0xff]
  %v3773 = vld [vmem:[%s3748 + $0xc0] sm:$0xff]
  %v3774 = vld [vmem:[%s3748 + $0xc8] sm:$0xff]
  %v3775 = vld [vmem:[%s3748 + $0xd0] sm:$0xff]
  %v3776 = vld [vmem:[%s3748 + $0xd8] sm:$0xff]
  %v3777 = vld [vmem:[%s3748 + $0xe0] sm:$0xff]
  %v3778 = vld [vmem:[%s3748 + $0xe8] sm:$0xff]
  %v3779 = vld [vmem:[%s3748 + $0xf0] sm:$0xff]
  %v3780 = vld [vmem:[%s3748 + $0xf8] sm:$0xff]
  %v3781 = vld [vmem:[%s3748 + $0x100] sm:$0xff]
  %v3782 = vld [vmem:[%s3748 + $0x108] sm:$0xff]
  %v3783 = vld [vmem:[%s3748 + $0x110] sm:$0xff]
  %v3784 = vld [vmem:[%s3748 + $0x118] sm:$0xff]
  %3785 = vmatprep.subr.mxu0 0.0
  %3786 = vmatpush1.msra.mxu0 %v3764
  %3787 = vmatprep.subr.mxu0 0.0
  %3788 = vmatpush1.msra.mxu0 %v3763
  %3789 = vmatprep.subr.mxu0 0.0
  %3790 = vmatpush1.msra.mxu0 %v3762
  %3791 = vmatprep.subr.mxu0 0.0
  %3792 = vmatpush1.msra.mxu0 %v3761
  %3793 = vmatprep.subr.mxu0 0.0
  %3794 = vmatpush1.msra.mxu0 %v3760
  %3795 = vmatprep.subr.mxu0 0.0
  %3796 = vmatpush1.msra.mxu0 %v3759
  %3797 = vmatprep.subr.mxu0 0.0
  %3798 = vmatpush1.msra.mxu0 %v3758
  %3799 = vmatprep.subr.mxu0 0.0
  %3800 = vmatpush1.msra.mxu0 %v3757
  %3801 = vmatprep.subr.mxu0 0.0
  %3802 = vmatpush1.msra.mxu0 %v3756
  %3803 = vmatprep.subr.mxu0 0.0
  %3804 = vmatpush1.msra.mxu0 %v3755
  %3805 = vmatprep.subr.mxu0 0.0
  %3806 = vmatpush1.msra.mxu0 %v3754
  %3807 = vmatprep.subr.mxu0 0.0
  %3808 = vmatpush1.msra.mxu0 %v3753
  %3809 = vmatprep.subr.mxu0 0.0
  %3810 = vmatpush1.msra.mxu0 %v3752
  %3811 = vmatprep.subr.mxu0 0.0
  %3812 = vmatpush1.msra.mxu0 %v3751
  %3813 = vmatprep.subr.mxu0 0.0
  %3814 = vmatpush1.msra.mxu0 %v3750
  %3815 = vmatprep.subr.mxu0 0.0
  %3816 = vmatpush1.msra.mxu0 %v3749
  %3817 = vmatprep.subr.mxu0 0.0
  %3818 = vmatpush2.msra.mxu0 %v3780
  %3819 = vmatprep.subr.mxu0 0.0
  %3820 = vmatpush2.msra.mxu0 %v3779
  %3821 = vmatprep.subr.mxu0 0.0
  %3822 = vmatpush2.msra.mxu0 %v3778
  %3823 = vmatprep.subr.mxu0 0.0
  %3824 = vmatpush2.msra.mxu0 %v3777
  %3825 = vmatprep.subr.mxu0 0.0
  %3826 = vmatpush2.msra.mxu0 %v3776
  %3827 = vmatprep.subr.mxu0 0.0
  %3828 = vmatpush2.msra.mxu0 %v3775
  %3829 = vmatprep.subr.mxu0 0.0
  %3830 = vmatpush2.msra.mxu0 %v3774
  %3831 = vmatprep.subr.mxu0 0.0
  %3832 = vmatpush2.msra.mxu0 %v3773
  %3833 = vmatprep.subr.mxu0 0.0
  %3834 = vmatpush2.msra.mxu0 %v3772
  %3835 = vmatprep.subr.mxu0 0.0
  %3836 = vmatpush2.msra.mxu0 %v3771
  %3837 = vmatprep.subr.mxu0 0.0
  %3838 = vmatpush2.msra.mxu0 %v3770
  %3839 = vmatprep.subr.mxu0 0.0
  %3840 = vmatpush2.msra.mxu0 %v3769
  %3841 = vmatprep.subr.mxu0 0.0
  %3842 = vmatpush2.msra.mxu0 %v3768
  %3843 = vmatprep.subr.mxu0 0.0
  %3844 = vmatpush2.msra.mxu0 %v3767
  %3845 = vmatprep.subr.mxu0 0.0
  %3846 = vmatpush2.msra.mxu0 %v3766
  %3847 = vmatprep.subr.mxu0 0.0
  %3848 = vmatpush2.msra.mxu0 %v3765
  %3849 = vmatprep.mubr.f32.mxu0 %v596
  %3850 = vmatmul.mubr.f32.gmra.mxu0 %v595
  %v3851 = vpop.f32.mrf.mxu0
  %v3852 = vadd.f32 0.0, %v3851
  %v3853 = vpop.f32.mrf.mxu0
  %3854 = vmatprep.mubr.f32.mxu0 %v599
  %3855 = vmatmul.mubr.f32.gmra.mxu0 %v598
  %v3856 = vpop.f32.mrf.mxu0
  %v3857 = vadd.f32 0.0, %v3856
  %v3858 = vpop.f32.mrf.mxu0
  %3859 = vdwg.mxu0
  %3860 = vmatprep.subr.mxu0 0.0
  %3861 = vmatpush1.msra.mxu0 0.0
  %3862 = vmatprep.subr.mxu0 0.0
  %3863 = vmatpush1.msra.mxu0 0.0
  %3864 = vmatprep.subr.mxu0 0.0
  %3865 = vmatpush1.msra.mxu0 0.0
  %3866 = vmatprep.subr.mxu0 0.0
  %3867 = vmatpush1.msra.mxu0 0.0
  %3868 = vmatprep.subr.mxu0 0.0
  %3869 = vmatpush1.msra.mxu0 0.0
  %3870 = vmatprep.subr.mxu0 0.0
  %3871 = vmatpush1.msra.mxu0 0.0
  %3872 = vmatprep.subr.mxu0 0.0
  %3873 = vmatpush1.msra.mxu0 0.0
  %3874 = vmatprep.subr.mxu0 0.0
  %3875 = vmatpush1.msra.mxu0 0.0
  %3876 = vmatprep.subr.mxu0 0.0
  %3877 = vmatpush1.msra.mxu0 0.0
  %3878 = vmatprep.subr.mxu0 0.0
  %3879 = vmatpush1.msra.mxu0 0.0
  %3880 = vmatprep.subr.mxu0 0.0
  %3881 = vmatpush1.msra.mxu0 0.0
  %3882 = vmatprep.subr.mxu0 0.0
  %3883 = vmatpush1.msra.mxu0 0.0
  %3884 = vmatprep.subr.mxu0 0.0
  %3885 = vmatpush1.msra.mxu0 %v3784
  %3886 = vmatprep.subr.mxu0 0.0
  %3887 = vmatpush1.msra.mxu0 %v3783
  %3888 = vmatprep.subr.mxu0 0.0
  %3889 = vmatpush1.msra.mxu0 %v3782
  %3890 = vmatprep.subr.mxu0 0.0
  %3891 = vmatpush1.msra.mxu0 %v3781
  %3892 = vmatprep.subr.mxu0 0.0
  %3893 = vmatpush2.msra.mxu0 0.0
  %3894 = vmatprep.subr.mxu0 0.0
  %3895 = vmatpush2.msra.mxu0 0.0
  %3896 = vmatprep.subr.mxu0 0.0
  %3897 = vmatpush2.msra.mxu0 0.0
  %3898 = vmatprep.subr.mxu0 0.0
  %3899 = vmatpush2.msra.mxu0 0.0
  %3900 = vmatprep.subr.mxu0 0.0
  %3901 = vmatpush2.msra.mxu0 0.0
  %3902 = vmatprep.subr.mxu0 0.0
  %3903 = vmatpush2.msra.mxu0 0.0
  %3904 = vmatprep.subr.mxu0 0.0
  %3905 = vmatpush2.msra.mxu0 0.0
  %3906 = vmatprep.subr.mxu0 0.0
  %3907 = vmatpush2.msra.mxu0 0.0
  %3908 = vmatprep.subr.mxu0 0.0
  %3909 = vmatpush2.msra.mxu0 0.0
  %3910 = vmatprep.subr.mxu0 0.0
  %3911 = vmatpush2.msra.mxu0 0.0
  %3912 = vmatprep.subr.mxu0 0.0
  %3913 = vmatpush2.msra.mxu0 0.0
  %3914 = vmatprep.subr.mxu0 0.0
  %3915 = vmatpush2.msra.mxu0 0.0
  %3916 = vmatprep.subr.mxu0 0.0
  %3917 = vmatpush2.msra.mxu0 0.0
  %3918 = vmatprep.subr.mxu0 0.0
  %3919 = vmatpush2.msra.mxu0 0.0
  %3920 = vmatprep.subr.mxu0 0.0
  %3921 = vmatpush2.msra.mxu0 0.0
  %3922 = vmatprep.subr.mxu0 0.0
  %3923 = vmatpush2.msra.mxu0 0.0
  %3924 = vmatprep.mubr.f32.mxu0 0.0
  %3925 = vmatmul.mubr.f32.gmra.mxu0 %v639
  %v3926 = vpop.f32.mrf.mxu0
  %v3927 = vadd.f32 %v3852, %v3926
  %v3928 = vpop.f32.mrf.mxu0
  %3929 = vmatprep.mubr.f32.mxu0 0.0
  %3930 = vmatmul.mubr.f32.gmra.mxu0 %v642
  %v3931 = vpop.f32.mrf.mxu0
  %v3932 = vadd.f32 %v3857, %v3931
  %v3933 = vpop.f32.mrf.mxu0
  %3934 = vdwg.mxu0
  %s3935 = scalar_lea.vmem %s3, 264
  %v3936 = vld [vmem:[%s3935] sm:$0xff]
  %v3937 = vld [vmem:[%s3935 + $0x8] sm:$0xff]
  %v3938 = vld [vmem:[%s3935 + $0x10] sm:$0xf]
  %v3940 = vsel %vm988, %v3936, 0
  %v3943 = vsel %vm988, %v3937, 0
  %v3946 = vsel %vm988, %v3938, 0
  %v3949 = vsel %vm998, %v3932, 0
  %3951 = vmatprep.subr.mxu0 0.0
  %3952 = vmatpush1.msra.mxu0 0.0
  %3953 = vmatprep.subr.mxu0 0.0
  %3954 = vmatpush1.msra.mxu0 0.0
  %3955 = vmatprep.subr.mxu0 0.0
  %3956 = vmatpush1.msra.mxu0 0.0
  %3957 = vmatprep.subr.mxu0 0.0
  %3958 = vmatpush1.msra.mxu0 0.0
  %3959 = vmatprep.subr.mxu0 0.0
  %3960 = vmatpush1.msra.mxu0 0.0
  %3961 = vmatprep.subr.mxu0 0.0
  %3962 = vmatpush1.msra.mxu0 0.0
  %3963 = vmatprep.subr.mxu0 0.0
  %3964 = vmatpush1.msra.mxu0 0.0
  %3965 = vmatprep.subr.mxu0 0.0
  %3966 = vmatpush1.msra.mxu0 0.0
  %3967 = vmatprep.subr.mxu0 0.0
  %3968 = vmatpush1.msra.mxu0 0.0
  %3969 = vmatprep.subr.mxu0 0.0
  %3970 = vmatpush1.msra.mxu0 0.0
  %3971 = vmatprep.subr.mxu0 0.0
  %3972 = vmatpush1.msra.mxu0 0.0
  %3973 = vmatprep.subr.mxu0 0.0
  %3974 = vmatpush1.msra.mxu0 0.0
  %3975 = vmatprep.subr.mxu0 0.0
  %3976 = vmatpush1.msra.mxu0 0.0
  %3977 = vmatprep.subr.mxu0 0.0
  %3978 = vmatpush1.msra.mxu0 0.0
  %3979 = vmatprep.subr.mxu0 0.0
  %3980 = vmatpush1.msra.mxu0 %v3949
  %3981 = vmatprep.subr.mxu0 0.0
  %3982 = vmatpush1.msra.mxu0 %v3927
  %3983 = vmatprep.subr.mxu0 0.0
  %3984 = vmatpush2.msra.mxu0 0.0
  %3985 = vmatprep.subr.mxu0 0.0
  %3986 = vmatpush2.msra.mxu0 0.0
  %3987 = vmatprep.subr.mxu0 0.0
  %3988 = vmatpush2.msra.mxu0 0.0
  %3989 = vmatprep.subr.mxu0 0.0
  %3990 = vmatpush2.msra.mxu0 0.0
  %3991 = vmatprep.subr.mxu0 0.0
  %3992 = vmatpush2.msra.mxu0 0.0
  %3993 = vmatprep.subr.mxu0 0.0
  %3994 = vmatpush2.msra.mxu0 0.0
  %3995 = vmatprep.subr.mxu0 0.0
  %3996 = vmatpush2.msra.mxu0 0.0
  %3997 = vmatprep.subr.mxu0 0.0
  %3998 = vmatpush2.msra.mxu0 0.0
  %3999 = vmatprep.subr.mxu0 0.0
  %4000 = vmatpush2.msra.mxu0 0.0
  %4001 = vmatprep.subr.mxu0 0.0
  %4002 = vmatpush2.msra.mxu0 0.0
  %4003 = vmatprep.subr.mxu0 0.0
  %4004 = vmatpush2.msra.mxu0 0.0
  %4005 = vmatprep.subr.mxu0 0.0
  %4006 = vmatpush2.msra.mxu0 0.0
  %4007 = vmatprep.subr.mxu0 0.0
  %4008 = vmatpush2.msra.mxu0 0.0
  %4009 = vmatprep.subr.mxu0 0.0
  %4010 = vmatpush2.msra.mxu0 0.0
  %4011 = vmatprep.subr.mxu0 0.0
  %4012 = vmatpush2.msra.mxu0 0.0
  %4013 = vmatprep.subr.mxu0 0.0
  %4014 = vmatpush2.msra.mxu0 0.0
  %4015 = vmatprep.mubr.f32.mxu0 0.0
  %4016 = vmatmul.mubr.f32.gmra.mxu0 %v3940
  %v4017 = vpop.f32.mrf.mxu0
  %v4018 = vadd.f32 0.0, %v4017
  %v4019 = vpop.f32.mrf.mxu0
  %4020 = vmatprep.mubr.f32.mxu0 0.0
  %4021 = vmatmul.mubr.f32.gmra.mxu0 %v3943
  %v4022 = vpop.f32.mrf.mxu0
  %v4023 = vadd.f32 0.0, %v4022
  %v4024 = vpop.f32.mrf.mxu0
  %4025 = vmatprep.mubr.f32.mxu0 0.0
  %4026 = vmatmul.mubr.f32.gmra.mxu0 %v3946
  %v4027 = vpop.f32.mrf.mxu0
  %v4028 = vadd.f32 0.0, %v4027
  %v4029 = vpop.f32.mrf.mxu0
  %4030 = vdwg.mxu0
  %v4031 = vadd.f32 %v3745, %v4018
  %v4032 = vadd.f32 %v3746, %v4023
  %v4033 = vadd.f32 %v3747, %v4028
  %s4034 = scalar_lea.vmem %s5, 3456
  %v4035 = vld [vmem:[%s4034] sm:$0xff]
  %v4036 = vld [vmem:[%s4034 + $0x8] sm:$0xff]
  %v4037 = vld [vmem:[%s4034 + $0x10] sm:$0xff]
  %v4038 = vld [vmem:[%s4034 + $0x18] sm:$0xff]
  %v4039 = vld [vmem:[%s4034 + $0x20] sm:$0xff]
  %v4040 = vld [vmem:[%s4034 + $0x28] sm:$0xff]
  %v4041 = vld [vmem:[%s4034 + $0x30] sm:$0xff]
  %v4042 = vld [vmem:[%s4034 + $0x38] sm:$0xff]
  %v4043 = vld [vmem:[%s4034 + $0x40] sm:$0xff]
  %v4044 = vld [vmem:[%s4034 + $0x48] sm:$0xff]
  %v4045 = vld [vmem:[%s4034 + $0x50] sm:$0xff]
  %v4046 = vld [vmem:[%s4034 + $0x58] sm:$0xff]
  %v4047 = vld [vmem:[%s4034 + $0x60] sm:$0xff]
  %v4048 = vld [vmem:[%s4034 + $0x68] sm:$0xff]
  %v4049 = vld [vmem:[%s4034 + $0x70] sm:$0xff]
  %v4050 = vld [vmem:[%s4034 + $0x78] sm:$0xff]
  %v4051 = vld [vmem:[%s4034 + $0x80] sm:$0xff]
  %v4052 = vld [vmem:[%s4034 + $0x88] sm:$0xff]
  %v4053 = vld [vmem:[%s4034 + $0x90] sm:$0xff]
  %v4054 = vld [vmem:[%s4034 + $0x98] sm:$0xff]
  %v4055 = vld [vmem:[%s4034 + $0xa0] sm:$0xff]
  %v4056 = vld [vmem:[%s4034 + $0xa8] sm:$0xff]
  %v4057 = vld [vmem:[%s4034 + $0xb0] sm:$0xff]
  %v4058 = vld [vmem:[%s4034 + $0xb8] sm:$0xff]
  %v4059 = vld [vmem:[%s4034 + $0xc0] sm:$0xff]
  %v4060 = vld [vmem:[%s4034 + $0xc8] sm:$0xff]
  %v4061 = vld [vmem:[%s4034 + $0xd0] sm:$0xff]
  %v4062 = vld [vmem:[%s4034 + $0xd8] sm:$0xff]
  %v4063 = vld [vmem:[%s4034 + $0xe0] sm:$0xff]
  %v4064 = vld [vmem:[%s4034 + $0xe8] sm:$0xff]
  %v4065 = vld [vmem:[%s4034 + $0xf0] sm:$0xff]
  %v4066 = vld [vmem:[%s4034 + $0xf8] sm:$0xff]
  %v4067 = vld [vmem:[%s4034 + $0x100] sm:$0xff]
  %v4068 = vld [vmem:[%s4034 + $0x108] sm:$0xff]
  %v4069 = vld [vmem:[%s4034 + $0x110] sm:$0xff]
  %v4070 = vld [vmem:[%s4034 + $0x118] sm:$0xff]
  %4071 = vmatprep.subr.mxu0 0.0
  %4072 = vmatpush1.msra.mxu0 %v4050
  %4073 = vmatprep.subr.mxu0 0.0
  %4074 = vmatpush1.msra.mxu0 %v4049
  %4075 = vmatprep.subr.mxu0 0.0
  %4076 = vmatpush1.msra.mxu0 %v4048
  %4077 = vmatprep.subr.mxu0 0.0
  %4078 = vmatpush1.msra.mxu0 %v4047
  %4079 = vmatprep.subr.mxu0 0.0
  %4080 = vmatpush1.msra.mxu0 %v4046
  %4081 = vmatprep.subr.mxu0 0.0
  %4082 = vmatpush1.msra.mxu0 %v4045
  %4083 = vmatprep.subr.mxu0 0.0
  %4084 = vmatpush1.msra.mxu0 %v4044
  %4085 = vmatprep.subr.mxu0 0.0
  %4086 = vmatpush1.msra.mxu0 %v4043
  %4087 = vmatprep.subr.mxu0 0.0
  %4088 = vmatpush1.msra.mxu0 %v4042
  %4089 = vmatprep.subr.mxu0 0.0
  %4090 = vmatpush1.msra.mxu0 %v4041
  %4091 = vmatprep.subr.mxu0 0.0
  %4092 = vmatpush1.msra.mxu0 %v4040
  %4093 = vmatprep.subr.mxu0 0.0
  %4094 = vmatpush1.msra.mxu0 %v4039
  %4095 = vmatprep.subr.mxu0 0.0
  %4096 = vmatpush1.msra.mxu0 %v4038
  %4097 = vmatprep.subr.mxu0 0.0
  %4098 = vmatpush1.msra.mxu0 %v4037
  %4099 = vmatprep.subr.mxu0 0.0
  %4100 = vmatpush1.msra.mxu0 %v4036
  %4101 = vmatprep.subr.mxu0 0.0
  %4102 = vmatpush1.msra.mxu0 %v4035
  %4103 = vmatprep.subr.mxu0 0.0
  %4104 = vmatpush2.msra.mxu0 %v4066
  %4105 = vmatprep.subr.mxu0 0.0
  %4106 = vmatpush2.msra.mxu0 %v4065
  %4107 = vmatprep.subr.mxu0 0.0
  %4108 = vmatpush2.msra.mxu0 %v4064
  %4109 = vmatprep.subr.mxu0 0.0
  %4110 = vmatpush2.msra.mxu0 %v4063
  %4111 = vmatprep.subr.mxu0 0.0
  %4112 = vmatpush2.msra.mxu0 %v4062
  %4113 = vmatprep.subr.mxu0 0.0
  %4114 = vmatpush2.msra.mxu0 %v4061
  %4115 = vmatprep.subr.mxu0 0.0
  %4116 = vmatpush2.msra.mxu0 %v4060
  %4117 = vmatprep.subr.mxu0 0.0
  %4118 = vmatpush2.msra.mxu0 %v4059
  %4119 = vmatprep.subr.mxu0 0.0
  %4120 = vmatpush2.msra.mxu0 %v4058
  %4121 = vmatprep.subr.mxu0 0.0
  %4122 = vmatpush2.msra.mxu0 %v4057
  %4123 = vmatprep.subr.mxu0 0.0
  %4124 = vmatpush2.msra.mxu0 %v4056
  %4125 = vmatprep.subr.mxu0 0.0
  %4126 = vmatpush2.msra.mxu0 %v4055
  %4127 = vmatprep.subr.mxu0 0.0
  %4128 = vmatpush2.msra.mxu0 %v4054
  %4129 = vmatprep.subr.mxu0 0.0
  %4130 = vmatpush2.msra.mxu0 %v4053
  %4131 = vmatprep.subr.mxu0 0.0
  %4132 = vmatpush2.msra.mxu0 %v4052
  %4133 = vmatprep.subr.mxu0 0.0
  %4134 = vmatpush2.msra.mxu0 %v4051
  %4135 = vmatprep.mubr.f32.mxu0 %v596
  %4136 = vmatmul.mubr.f32.gmra.mxu0 %v595
  %v4137 = vpop.f32.mrf.mxu0
  %v4138 = vadd.f32 0.0, %v4137
  %v4139 = vpop.f32.mrf.mxu0
  %4140 = vmatprep.mubr.f32.mxu0 %v599
  %4141 = vmatmul.mubr.f32.gmra.mxu0 %v598
  %v4142 = vpop.f32.mrf.mxu0
  %v4143 = vadd.f32 0.0, %v4142
  %v4144 = vpop.f32.mrf.mxu0
  %4145 = vdwg.mxu0
  %4146 = vmatprep.subr.mxu0 0.0
  %4147 = vmatpush1.msra.mxu0 0.0
  %4148 = vmatprep.subr.mxu0 0.0
  %4149 = vmatpush1.msra.mxu0 0.0
  %4150 = vmatprep.subr.mxu0 0.0
  %4151 = vmatpush1.msra.mxu0 0.0
  %4152 = vmatprep.subr.mxu0 0.0
  %4153 = vmatpush1.msra.mxu0 0.0
  %4154 = vmatprep.subr.mxu0 0.0
  %4155 = vmatpush1.msra.mxu0 0.0
  %4156 = vmatprep.subr.mxu0 0.0
  %4157 = vmatpush1.msra.mxu0 0.0
  %4158 = vmatprep.subr.mxu0 0.0
  %4159 = vmatpush1.msra.mxu0 0.0
  %4160 = vmatprep.subr.mxu0 0.0
  %4161 = vmatpush1.msra.mxu0 0.0
  %4162 = vmatprep.subr.mxu0 0.0
  %4163 = vmatpush1.msra.mxu0 0.0
  %4164 = vmatprep.subr.mxu0 0.0
  %4165 = vmatpush1.msra.mxu0 0.0
  %4166 = vmatprep.subr.mxu0 0.0
  %4167 = vmatpush1.msra.mxu0 0.0
  %4168 = vmatprep.subr.mxu0 0.0
  %4169 = vmatpush1.msra.mxu0 0.0
  %4170 = vmatprep.subr.mxu0 0.0
  %4171 = vmatpush1.msra.mxu0 %v4070
  %4172 = vmatprep.subr.mxu0 0.0
  %4173 = vmatpush1.msra.mxu0 %v4069
  %4174 = vmatprep.subr.mxu0 0.0
  %4175 = vmatpush1.msra.mxu0 %v4068
  %4176 = vmatprep.subr.mxu0 0.0
  %4177 = vmatpush1.msra.mxu0 %v4067
  %4178 = vmatprep.subr.mxu0 0.0
  %4179 = vmatpush2.msra.mxu0 0.0
  %4180 = vmatprep.subr.mxu0 0.0
  %4181 = vmatpush2.msra.mxu0 0.0
  %4182 = vmatprep.subr.mxu0 0.0
  %4183 = vmatpush2.msra.mxu0 0.0
  %4184 = vmatprep.subr.mxu0 0.0
  %4185 = vmatpush2.msra.mxu0 0.0
  %4186 = vmatprep.subr.mxu0 0.0
  %4187 = vmatpush2.msra.mxu0 0.0
  %4188 = vmatprep.subr.mxu0 0.0
  %4189 = vmatpush2.msra.mxu0 0.0
  %4190 = vmatprep.subr.mxu0 0.0
  %4191 = vmatpush2.msra.mxu0 0.0
  %4192 = vmatprep.subr.mxu0 0.0
  %4193 = vmatpush2.msra.mxu0 0.0
  %4194 = vmatprep.subr.mxu0 0.0
  %4195 = vmatpush2.msra.mxu0 0.0
  %4196 = vmatprep.subr.mxu0 0.0
  %4197 = vmatpush2.msra.mxu0 0.0
  %4198 = vmatprep.subr.mxu0 0.0
  %4199 = vmatpush2.msra.mxu0 0.0
  %4200 = vmatprep.subr.mxu0 0.0
  %4201 = vmatpush2.msra.mxu0 0.0
  %4202 = vmatprep.subr.mxu0 0.0
  %4203 = vmatpush2.msra.mxu0 0.0
  %4204 = vmatprep.subr.mxu0 0.0
  %4205 = vmatpush2.msra.mxu0 0.0
  %4206 = vmatprep.subr.mxu0 0.0
  %4207 = vmatpush2.msra.mxu0 0.0
  %4208 = vmatprep.subr.mxu0 0.0
  %4209 = vmatpush2.msra.mxu0 0.0
  %4210 = vmatprep.mubr.f32.mxu0 0.0
  %4211 = vmatmul.mubr.f32.gmra.mxu0 %v639
  %v4212 = vpop.f32.mrf.mxu0
  %v4213 = vadd.f32 %v4138, %v4212
  %v4214 = vpop.f32.mrf.mxu0
  %4215 = vmatprep.mubr.f32.mxu0 0.0
  %4216 = vmatmul.mubr.f32.gmra.mxu0 %v642
  %v4217 = vpop.f32.mrf.mxu0
  %v4218 = vadd.f32 %v4143, %v4217
  %v4219 = vpop.f32.mrf.mxu0
  %4220 = vdwg.mxu0
  %s4221 = scalar_lea.vmem %s3, 288
  %v4222 = vld [vmem:[%s4221] sm:$0xff]
  %v4223 = vld [vmem:[%s4221 + $0x8] sm:$0xff]
  %v4224 = vld [vmem:[%s4221 + $0x10] sm:$0xf]
  %v4226 = vsel %vm988, %v4222, 0
  %v4229 = vsel %vm988, %v4223, 0
  %v4232 = vsel %vm988, %v4224, 0
  %v4235 = vsel %vm998, %v4218, 0
  %4237 = vmatprep.subr.mxu0 0.0
  %4238 = vmatpush1.msra.mxu0 0.0
  %4239 = vmatprep.subr.mxu0 0.0
  %4240 = vmatpush1.msra.mxu0 0.0
  %4241 = vmatprep.subr.mxu0 0.0
  %4242 = vmatpush1.msra.mxu0 0.0
  %4243 = vmatprep.subr.mxu0 0.0
  %4244 = vmatpush1.msra.mxu0 0.0
  %4245 = vmatprep.subr.mxu0 0.0
  %4246 = vmatpush1.msra.mxu0 0.0
  %4247 = vmatprep.subr.mxu0 0.0
  %4248 = vmatpush1.msra.mxu0 0.0
  %4249 = vmatprep.subr.mxu0 0.0
  %4250 = vmatpush1.msra.mxu0 0.0
  %4251 = vmatprep.subr.mxu0 0.0
  %4252 = vmatpush1.msra.mxu0 0.0
  %4253 = vmatprep.subr.mxu0 0.0
  %4254 = vmatpush1.msra.mxu0 0.0
  %4255 = vmatprep.subr.mxu0 0.0
  %4256 = vmatpush1.msra.mxu0 0.0
  %4257 = vmatprep.subr.mxu0 0.0
  %4258 = vmatpush1.msra.mxu0 0.0
  %4259 = vmatprep.subr.mxu0 0.0
  %4260 = vmatpush1.msra.mxu0 0.0
  %4261 = vmatprep.subr.mxu0 0.0
  %4262 = vmatpush1.msra.mxu0 0.0
  %4263 = vmatprep.subr.mxu0 0.0
  %4264 = vmatpush1.msra.mxu0 0.0
  %4265 = vmatprep.subr.mxu0 0.0
  %4266 = vmatpush1.msra.mxu0 %v4235
  %4267 = vmatprep.subr.mxu0 0.0
  %4268 = vmatpush1.msra.mxu0 %v4213
  %4269 = vmatprep.subr.mxu0 0.0
  %4270 = vmatpush2.msra.mxu0 0.0
  %4271 = vmatprep.subr.mxu0 0.0
  %4272 = vmatpush2.msra.mxu0 0.0
  %4273 = vmatprep.subr.mxu0 0.0
  %4274 = vmatpush2.msra.mxu0 0.0
  %4275 = vmatprep.subr.mxu0 0.0
  %4276 = vmatpush2.msra.mxu0 0.0
  %4277 = vmatprep.subr.mxu0 0.0
  %4278 = vmatpush2.msra.mxu0 0.0
  %4279 = vmatprep.subr.mxu0 0.0
  %4280 = vmatpush2.msra.mxu0 0.0
  %4281 = vmatprep.subr.mxu0 0.0
  %4282 = vmatpush2.msra.mxu0 0.0
  %4283 = vmatprep.subr.mxu0 0.0
  %4284 = vmatpush2.msra.mxu0 0.0
  %4285 = vmatprep.subr.mxu0 0.0
  %4286 = vmatpush2.msra.mxu0 0.0
  %4287 = vmatprep.subr.mxu0 0.0
  %4288 = vmatpush2.msra.mxu0 0.0
  %4289 = vmatprep.subr.mxu0 0.0
  %4290 = vmatpush2.msra.mxu0 0.0
  %4291 = vmatprep.subr.mxu0 0.0
  %4292 = vmatpush2.msra.mxu0 0.0
  %4293 = vmatprep.subr.mxu0 0.0
  %4294 = vmatpush2.msra.mxu0 0.0
  %4295 = vmatprep.subr.mxu0 0.0
  %4296 = vmatpush2.msra.mxu0 0.0
  %4297 = vmatprep.subr.mxu0 0.0
  %4298 = vmatpush2.msra.mxu0 0.0
  %4299 = vmatprep.subr.mxu0 0.0
  %4300 = vmatpush2.msra.mxu0 0.0
  %4301 = vmatprep.mubr.f32.mxu0 0.0
  %4302 = vmatmul.mubr.f32.gmra.mxu0 %v4226
  %v4303 = vpop.f32.mrf.mxu0
  %v4304 = vadd.f32 0.0, %v4303
  %v4305 = vpop.f32.mrf.mxu0
  %4306 = vmatprep.mubr.f32.mxu0 0.0
  %4307 = vmatmul.mubr.f32.gmra.mxu0 %v4229
  %v4308 = vpop.f32.mrf.mxu0
  %v4309 = vadd.f32 0.0, %v4308
  %v4310 = vpop.f32.mrf.mxu0
  %4311 = vmatprep.mubr.f32.mxu0 0.0
  %4312 = vmatmul.mubr.f32.gmra.mxu0 %v4232
  %v4313 = vpop.f32.mrf.mxu0
  %v4314 = vadd.f32 0.0, %v4313
  %v4315 = vpop.f32.mrf.mxu0
  %4316 = vdwg.mxu0
  %v4317 = vadd.f32 %v4031, %v4304
  %v4318 = vadd.f32 %v4032, %v4309
  %v4319 = vadd.f32 %v4033, %v4314
  %s4320 = scalar_lea.vmem %s5, 3744
  %v4321 = vld [vmem:[%s4320] sm:$0xff]
  %v4322 = vld [vmem:[%s4320 + $0x8] sm:$0xff]
  %v4323 = vld [vmem:[%s4320 + $0x10] sm:$0xff]
  %v4324 = vld [vmem:[%s4320 + $0x18] sm:$0xff]
  %v4325 = vld [vmem:[%s4320 + $0x20] sm:$0xff]
  %v4326 = vld [vmem:[%s4320 + $0x28] sm:$0xff]
  %v4327 = vld [vmem:[%s4320 + $0x30] sm:$0xff]
  %v4328 = vld [vmem:[%s4320 + $0x38] sm:$0xff]
  %v4329 = vld [vmem:[%s4320 + $0x40] sm:$0xff]
  %v4330 = vld [vmem:[%s4320 + $0x48] sm:$0xff]
  %v4331 = vld [vmem:[%s4320 + $0x50] sm:$0xff]
  %v4332 = vld [vmem:[%s4320 + $0x58] sm:$0xff]
  %v4333 = vld [vmem:[%s4320 + $0x60] sm:$0xff]
  %v4334 = vld [vmem:[%s4320 + $0x68] sm:$0xff]
  %v4335 = vld [vmem:[%s4320 + $0x70] sm:$0xff]
  %v4336 = vld [vmem:[%s4320 + $0x78] sm:$0xff]
  %v4337 = vld [vmem:[%s4320 + $0x80] sm:$0xff]
  %v4338 = vld [vmem:[%s4320 + $0x88] sm:$0xff]
  %v4339 = vld [vmem:[%s4320 + $0x90] sm:$0xff]
  %v4340 = vld [vmem:[%s4320 + $0x98] sm:$0xff]
  %v4341 = vld [vmem:[%s4320 + $0xa0] sm:$0xff]
  %v4342 = vld [vmem:[%s4320 + $0xa8] sm:$0xff]
  %v4343 = vld [vmem:[%s4320 + $0xb0] sm:$0xff]
  %v4344 = vld [vmem:[%s4320 + $0xb8] sm:$0xff]
  %v4345 = vld [vmem:[%s4320 + $0xc0] sm:$0xff]
  %v4346 = vld [vmem:[%s4320 + $0xc8] sm:$0xff]
  %v4347 = vld [vmem:[%s4320 + $0xd0] sm:$0xff]
  %v4348 = vld [vmem:[%s4320 + $0xd8] sm:$0xff]
  %v4349 = vld [vmem:[%s4320 + $0xe0] sm:$0xff]
  %v4350 = vld [vmem:[%s4320 + $0xe8] sm:$0xff]
  %v4351 = vld [vmem:[%s4320 + $0xf0] sm:$0xff]
  %v4352 = vld [vmem:[%s4320 + $0xf8] sm:$0xff]
  %v4353 = vld [vmem:[%s4320 + $0x100] sm:$0xff]
  %v4354 = vld [vmem:[%s4320 + $0x108] sm:$0xff]
  %v4355 = vld [vmem:[%s4320 + $0x110] sm:$0xff]
  %v4356 = vld [vmem:[%s4320 + $0x118] sm:$0xff]
  %4357 = vmatprep.subr.mxu0 0.0
  %4358 = vmatpush1.msra.mxu0 %v4336
  %4359 = vmatprep.subr.mxu0 0.0
  %4360 = vmatpush1.msra.mxu0 %v4335
  %4361 = vmatprep.subr.mxu0 0.0
  %4362 = vmatpush1.msra.mxu0 %v4334
  %4363 = vmatprep.subr.mxu0 0.0
  %4364 = vmatpush1.msra.mxu0 %v4333
  %4365 = vmatprep.subr.mxu0 0.0
  %4366 = vmatpush1.msra.mxu0 %v4332
  %4367 = vmatprep.subr.mxu0 0.0
  %4368 = vmatpush1.msra.mxu0 %v4331
  %4369 = vmatprep.subr.mxu0 0.0
  %4370 = vmatpush1.msra.mxu0 %v4330
  %4371 = vmatprep.subr.mxu0 0.0
  %4372 = vmatpush1.msra.mxu0 %v4329
  %4373 = vmatprep.subr.mxu0 0.0
  %4374 = vmatpush1.msra.mxu0 %v4328
  %4375 = vmatprep.subr.mxu0 0.0
  %4376 = vmatpush1.msra.mxu0 %v4327
  %4377 = vmatprep.subr.mxu0 0.0
  %4378 = vmatpush1.msra.mxu0 %v4326
  %4379 = vmatprep.subr.mxu0 0.0
  %4380 = vmatpush1.msra.mxu0 %v4325
  %4381 = vmatprep.subr.mxu0 0.0
  %4382 = vmatpush1.msra.mxu0 %v4324
  %4383 = vmatprep.subr.mxu0 0.0
  %4384 = vmatpush1.msra.mxu0 %v4323
  %4385 = vmatprep.subr.mxu0 0.0
  %4386 = vmatpush1.msra.mxu0 %v4322
  %4387 = vmatprep.subr.mxu0 0.0
  %4388 = vmatpush1.msra.mxu0 %v4321
  %4389 = vmatprep.subr.mxu0 0.0
  %4390 = vmatpush2.msra.mxu0 %v4352
  %4391 = vmatprep.subr.mxu0 0.0
  %4392 = vmatpush2.msra.mxu0 %v4351
  %4393 = vmatprep.subr.mxu0 0.0
  %4394 = vmatpush2.msra.mxu0 %v4350
  %4395 = vmatprep.subr.mxu0 0.0
  %4396 = vmatpush2.msra.mxu0 %v4349
  %4397 = vmatprep.subr.mxu0 0.0
  %4398 = vmatpush2.msra.mxu0 %v4348
  %4399 = vmatprep.subr.mxu0 0.0
  %4400 = vmatpush2.msra.mxu0 %v4347
  %4401 = vmatprep.subr.mxu0 0.0
  %4402 = vmatpush2.msra.mxu0 %v4346
  %4403 = vmatprep.subr.mxu0 0.0
  %4404 = vmatpush2.msra.mxu0 %v4345
  %4405 = vmatprep.subr.mxu0 0.0
  %4406 = vmatpush2.msra.mxu0 %v4344
  %4407 = vmatprep.subr.mxu0 0.0
  %4408 = vmatpush2.msra.mxu0 %v4343
  %4409 = vmatprep.subr.mxu0 0.0
  %4410 = vmatpush2.msra.mxu0 %v4342
  %4411 = vmatprep.subr.mxu0 0.0
  %4412 = vmatpush2.msra.mxu0 %v4341
  %4413 = vmatprep.subr.mxu0 0.0
  %4414 = vmatpush2.msra.mxu0 %v4340
  %4415 = vmatprep.subr.mxu0 0.0
  %4416 = vmatpush2.msra.mxu0 %v4339
  %4417 = vmatprep.subr.mxu0 0.0
  %4418 = vmatpush2.msra.mxu0 %v4338
  %4419 = vmatprep.subr.mxu0 0.0
  %4420 = vmatpush2.msra.mxu0 %v4337
  %4421 = vmatprep.mubr.f32.mxu0 %v596
  %4422 = vmatmul.mubr.f32.gmra.mxu0 %v595
  %v4423 = vpop.f32.mrf.mxu0
  %v4424 = vadd.f32 0.0, %v4423
  %v4425 = vpop.f32.mrf.mxu0
  %4426 = vmatprep.mubr.f32.mxu0 %v599
  %4427 = vmatmul.mubr.f32.gmra.mxu0 %v598
  %v4428 = vpop.f32.mrf.mxu0
  %v4429 = vadd.f32 0.0, %v4428
  %v4430 = vpop.f32.mrf.mxu0
  %4431 = vdwg.mxu0
  %4432 = vmatprep.subr.mxu0 0.0
  %4433 = vmatpush1.msra.mxu0 0.0
  %4434 = vmatprep.subr.mxu0 0.0
  %4435 = vmatpush1.msra.mxu0 0.0
  %4436 = vmatprep.subr.mxu0 0.0
  %4437 = vmatpush1.msra.mxu0 0.0
  %4438 = vmatprep.subr.mxu0 0.0
  %4439 = vmatpush1.msra.mxu0 0.0
  %4440 = vmatprep.subr.mxu0 0.0
  %4441 = vmatpush1.msra.mxu0 0.0
  %4442 = vmatprep.subr.mxu0 0.0
  %4443 = vmatpush1.msra.mxu0 0.0
  %4444 = vmatprep.subr.mxu0 0.0
  %4445 = vmatpush1.msra.mxu0 0.0
  %4446 = vmatprep.subr.mxu0 0.0
  %4447 = vmatpush1.msra.mxu0 0.0
  %4448 = vmatprep.subr.mxu0 0.0
  %4449 = vmatpush1.msra.mxu0 0.0
  %4450 = vmatprep.subr.mxu0 0.0
  %4451 = vmatpush1.msra.mxu0 0.0
  %4452 = vmatprep.subr.mxu0 0.0
  %4453 = vmatpush1.msra.mxu0 0.0
  %4454 = vmatprep.subr.mxu0 0.0
  %4455 = vmatpush1.msra.mxu0 0.0
  %4456 = vmatprep.subr.mxu0 0.0
  %4457 = vmatpush1.msra.mxu0 %v4356
  %4458 = vmatprep.subr.mxu0 0.0
  %4459 = vmatpush1.msra.mxu0 %v4355
  %4460 = vmatprep.subr.mxu0 0.0
  %4461 = vmatpush1.msra.mxu0 %v4354
  %4462 = vmatprep.subr.mxu0 0.0
  %4463 = vmatpush1.msra.mxu0 %v4353
  %4464 = vmatprep.subr.mxu0 0.0
  %4465 = vmatpush2.msra.mxu0 0.0
  %4466 = vmatprep.subr.mxu0 0.0
  %4467 = vmatpush2.msra.mxu0 0.0
  %4468 = vmatprep.subr.mxu0 0.0
  %4469 = vmatpush2.msra.mxu0 0.0
  %4470 = vmatprep.subr.mxu0 0.0
  %4471 = vmatpush2.msra.mxu0 0.0
  %4472 = vmatprep.subr.mxu0 0.0
  %4473 = vmatpush2.msra.mxu0 0.0
  %4474 = vmatprep.subr.mxu0 0.0
  %4475 = vmatpush2.msra.mxu0 0.0
  %4476 = vmatprep.subr.mxu0 0.0
  %4477 = vmatpush2.msra.mxu0 0.0
  %4478 = vmatprep.subr.mxu0 0.0
  %4479 = vmatpush2.msra.mxu0 0.0
  %4480 = vmatprep.subr.mxu0 0.0
  %4481 = vmatpush2.msra.mxu0 0.0
  %4482 = vmatprep.subr.mxu0 0.0
  %4483 = vmatpush2.msra.mxu0 0.0
  %4484 = vmatprep.subr.mxu0 0.0
  %4485 = vmatpush2.msra.mxu0 0.0
  %4486 = vmatprep.subr.mxu0 0.0
  %4487 = vmatpush2.msra.mxu0 0.0
  %4488 = vmatprep.subr.mxu0 0.0
  %4489 = vmatpush2.msra.mxu0 0.0
  %4490 = vmatprep.subr.mxu0 0.0
  %4491 = vmatpush2.msra.mxu0 0.0
  %4492 = vmatprep.subr.mxu0 0.0
  %4493 = vmatpush2.msra.mxu0 0.0
  %4494 = vmatprep.subr.mxu0 0.0
  %4495 = vmatpush2.msra.mxu0 0.0
  %4496 = vmatprep.mubr.f32.mxu0 0.0
  %4497 = vmatmul.mubr.f32.gmra.mxu0 %v639
  %v4498 = vpop.f32.mrf.mxu0
  %v4499 = vadd.f32 %v4424, %v4498
  %v4500 = vpop.f32.mrf.mxu0
  %4501 = vmatprep.mubr.f32.mxu0 0.0
  %4502 = vmatmul.mubr.f32.gmra.mxu0 %v642
  %v4503 = vpop.f32.mrf.mxu0
  %v4504 = vadd.f32 %v4429, %v4503
  %v4505 = vpop.f32.mrf.mxu0
  %4506 = vdwg.mxu0
  %s4507 = scalar_lea.vmem %s3, 312
  %v4508 = vld [vmem:[%s4507] sm:$0xff]
  %v4509 = vld [vmem:[%s4507 + $0x8] sm:$0xff]
  %v4510 = vld [vmem:[%s4507 + $0x10] sm:$0xf]
  %v4512 = vsel %vm988, %v4508, 0
  %v4515 = vsel %vm988, %v4509, 0
  %v4518 = vsel %vm988, %v4510, 0
  %v4521 = vsel %vm998, %v4504, 0
  %4523 = vmatprep.subr.mxu0 0.0
  %4524 = vmatpush1.msra.mxu0 0.0
  %4525 = vmatprep.subr.mxu0 0.0
  %4526 = vmatpush1.msra.mxu0 0.0
  %4527 = vmatprep.subr.mxu0 0.0
  %4528 = vmatpush1.msra.mxu0 0.0
  %4529 = vmatprep.subr.mxu0 0.0
  %4530 = vmatpush1.msra.mxu0 0.0
  %4531 = vmatprep.subr.mxu0 0.0
  %4532 = vmatpush1.msra.mxu0 0.0
  %4533 = vmatprep.subr.mxu0 0.0
  %4534 = vmatpush1.msra.mxu0 0.0
  %4535 = vmatprep.subr.mxu0 0.0
  %4536 = vmatpush1.msra.mxu0 0.0
  %4537 = vmatprep.subr.mxu0 0.0
  %4538 = vmatpush1.msra.mxu0 0.0
  %4539 = vmatprep.subr.mxu0 0.0
  %4540 = vmatpush1.msra.mxu0 0.0
  %4541 = vmatprep.subr.mxu0 0.0
  %4542 = vmatpush1.msra.mxu0 0.0
  %4543 = vmatprep.subr.mxu0 0.0
  %4544 = vmatpush1.msra.mxu0 0.0
  %4545 = vmatprep.subr.mxu0 0.0
  %4546 = vmatpush1.msra.mxu0 0.0
  %4547 = vmatprep.subr.mxu0 0.0
  %4548 = vmatpush1.msra.mxu0 0.0
  %4549 = vmatprep.subr.mxu0 0.0
  %4550 = vmatpush1.msra.mxu0 0.0
  %4551 = vmatprep.subr.mxu0 0.0
  %4552 = vmatpush1.msra.mxu0 %v4521
  %4553 = vmatprep.subr.mxu0 0.0
  %4554 = vmatpush1.msra.mxu0 %v4499
  %4555 = vmatprep.subr.mxu0 0.0
  %4556 = vmatpush2.msra.mxu0 0.0
  %4557 = vmatprep.subr.mxu0 0.0
  %4558 = vmatpush2.msra.mxu0 0.0
  %4559 = vmatprep.subr.mxu0 0.0
  %4560 = vmatpush2.msra.mxu0 0.0
  %4561 = vmatprep.subr.mxu0 0.0
  %4562 = vmatpush2.msra.mxu0 0.0
  %4563 = vmatprep.subr.mxu0 0.0
  %4564 = vmatpush2.msra.mxu0 0.0
  %4565 = vmatprep.subr.mxu0 0.0
  %4566 = vmatpush2.msra.mxu0 0.0
  %4567 = vmatprep.subr.mxu0 0.0
  %4568 = vmatpush2.msra.mxu0 0.0
  %4569 = vmatprep.subr.mxu0 0.0
  %4570 = vmatpush2.msra.mxu0 0.0
  %4571 = vmatprep.subr.mxu0 0.0
  %4572 = vmatpush2.msra.mxu0 0.0
  %4573 = vmatprep.subr.mxu0 0.0
  %4574 = vmatpush2.msra.mxu0 0.0
  %4575 = vmatprep.subr.mxu0 0.0
  %4576 = vmatpush2.msra.mxu0 0.0
  %4577 = vmatprep.subr.mxu0 0.0
  %4578 = vmatpush2.msra.mxu0 0.0
  %4579 = vmatprep.subr.mxu0 0.0
  %4580 = vmatpush2.msra.mxu0 0.0
  %4581 = vmatprep.subr.mxu0 0.0
  %4582 = vmatpush2.msra.mxu0 0.0
  %4583 = vmatprep.subr.mxu0 0.0
  %4584 = vmatpush2.msra.mxu0 0.0
  %4585 = vmatprep.subr.mxu0 0.0
  %4586 = vmatpush2.msra.mxu0 0.0
  %4587 = vmatprep.mubr.f32.mxu0 0.0
  %4588 = vmatmul.mubr.f32.gmra.mxu0 %v4512
  %v4589 = vpop.f32.mrf.mxu0
  %v4590 = vadd.f32 0.0, %v4589
  %v4591 = vpop.f32.mrf.mxu0
  %4592 = vmatprep.mubr.f32.mxu0 0.0
  %4593 = vmatmul.mubr.f32.gmra.mxu0 %v4515
  %v4594 = vpop.f32.mrf.mxu0
  %v4595 = vadd.f32 0.0, %v4594
  %v4596 = vpop.f32.mrf.mxu0
  %4597 = vmatprep.mubr.f32.mxu0 0.0
  %4598 = vmatmul.mubr.f32.gmra.mxu0 %v4518
  %v4599 = vpop.f32.mrf.mxu0
  %v4600 = vadd.f32 0.0, %v4599
  %v4601 = vpop.f32.mrf.mxu0
  %4602 = vdwg.mxu0
  %v4603 = vadd.f32 %v4317, %v4590
  %v4604 = vadd.f32 %v4318, %v4595
  %v4605 = vadd.f32 %v4319, %v4600
  %s4606 = scalar_lea.vmem %s5, 4032
  %v4607 = vld [vmem:[%s4606] sm:$0xff]
  %v4608 = vld [vmem:[%s4606 + $0x8] sm:$0xff]
  %v4609 = vld [vmem:[%s4606 + $0x10] sm:$0xff]
  %v4610 = vld [vmem:[%s4606 + $0x18] sm:$0xff]
  %v4611 = vld [vmem:[%s4606 + $0x20] sm:$0xff]
  %v4612 = vld [vmem:[%s4606 + $0x28] sm:$0xff]
  %v4613 = vld [vmem:[%s4606 + $0x30] sm:$0xff]
  %v4614 = vld [vmem:[%s4606 + $0x38] sm:$0xff]
  %v4615 = vld [vmem:[%s4606 + $0x40] sm:$0xff]
  %v4616 = vld [vmem:[%s4606 + $0x48] sm:$0xff]
  %v4617 = vld [vmem:[%s4606 + $0x50] sm:$0xff]
  %v4618 = vld [vmem:[%s4606 + $0x58] sm:$0xff]
  %v4619 = vld [vmem:[%s4606 + $0x60] sm:$0xff]
  %v4620 = vld [vmem:[%s4606 + $0x68] sm:$0xff]
  %v4621 = vld [vmem:[%s4606 + $0x70] sm:$0xff]
  %v4622 = vld [vmem:[%s4606 + $0x78] sm:$0xff]
  %v4623 = vld [vmem:[%s4606 + $0x80] sm:$0xff]
  %v4624 = vld [vmem:[%s4606 + $0x88] sm:$0xff]
  %v4625 = vld [vmem:[%s4606 + $0x90] sm:$0xff]
  %v4626 = vld [vmem:[%s4606 + $0x98] sm:$0xff]
  %v4627 = vld [vmem:[%s4606 + $0xa0] sm:$0xff]
  %v4628 = vld [vmem:[%s4606 + $0xa8] sm:$0xff]
  %v4629 = vld [vmem:[%s4606 + $0xb0] sm:$0xff]
  %v4630 = vld [vmem:[%s4606 + $0xb8] sm:$0xff]
  %v4631 = vld [vmem:[%s4606 + $0xc0] sm:$0xff]
  %v4632 = vld [vmem:[%s4606 + $0xc8] sm:$0xff]
  %v4633 = vld [vmem:[%s4606 + $0xd0] sm:$0xff]
  %v4634 = vld [vmem:[%s4606 + $0xd8] sm:$0xff]
  %v4635 = vld [vmem:[%s4606 + $0xe0] sm:$0xff]
  %v4636 = vld [vmem:[%s4606 + $0xe8] sm:$0xff]
  %v4637 = vld [vmem:[%s4606 + $0xf0] sm:$0xff]
  %v4638 = vld [vmem:[%s4606 + $0xf8] sm:$0xff]
  %v4639 = vld [vmem:[%s4606 + $0x100] sm:$0xff]
  %v4640 = vld [vmem:[%s4606 + $0x108] sm:$0xff]
  %v4641 = vld [vmem:[%s4606 + $0x110] sm:$0xff]
  %v4642 = vld [vmem:[%s4606 + $0x118] sm:$0xff]
  %4643 = vmatprep.subr.mxu0 0.0
  %4644 = vmatpush1.msra.mxu0 %v4622
  %4645 = vmatprep.subr.mxu0 0.0
  %4646 = vmatpush1.msra.mxu0 %v4621
  %4647 = vmatprep.subr.mxu0 0.0
  %4648 = vmatpush1.msra.mxu0 %v4620
  %4649 = vmatprep.subr.mxu0 0.0
  %4650 = vmatpush1.msra.mxu0 %v4619
  %4651 = vmatprep.subr.mxu0 0.0
  %4652 = vmatpush1.msra.mxu0 %v4618
  %4653 = vmatprep.subr.mxu0 0.0
  %4654 = vmatpush1.msra.mxu0 %v4617
  %4655 = vmatprep.subr.mxu0 0.0
  %4656 = vmatpush1.msra.mxu0 %v4616
  %4657 = vmatprep.subr.mxu0 0.0
  %4658 = vmatpush1.msra.mxu0 %v4615
  %4659 = vmatprep.subr.mxu0 0.0
  %4660 = vmatpush1.msra.mxu0 %v4614
  %4661 = vmatprep.subr.mxu0 0.0
  %4662 = vmatpush1.msra.mxu0 %v4613
  %4663 = vmatprep.subr.mxu0 0.0
  %4664 = vmatpush1.msra.mxu0 %v4612
  %4665 = vmatprep.subr.mxu0 0.0
  %4666 = vmatpush1.msra.mxu0 %v4611
  %4667 = vmatprep.subr.mxu0 0.0
  %4668 = vmatpush1.msra.mxu0 %v4610
  %4669 = vmatprep.subr.mxu0 0.0
  %4670 = vmatpush1.msra.mxu0 %v4609
  %4671 = vmatprep.subr.mxu0 0.0
  %4672 = vmatpush1.msra.mxu0 %v4608
  %4673 = vmatprep.subr.mxu0 0.0
  %4674 = vmatpush1.msra.mxu0 %v4607
  %4675 = vmatprep.subr.mxu0 0.0
  %4676 = vmatpush2.msra.mxu0 %v4638
  %4677 = vmatprep.subr.mxu0 0.0
  %4678 = vmatpush2.msra.mxu0 %v4637
  %4679 = vmatprep.subr.mxu0 0.0
  %4680 = vmatpush2.msra.mxu0 %v4636
  %4681 = vmatprep.subr.mxu0 0.0
  %4682 = vmatpush2.msra.mxu0 %v4635
  %4683 = vmatprep.subr.mxu0 0.0
  %4684 = vmatpush2.msra.mxu0 %v4634
  %4685 = vmatprep.subr.mxu0 0.0
  %4686 = vmatpush2.msra.mxu0 %v4633
  %4687 = vmatprep.subr.mxu0 0.0
  %4688 = vmatpush2.msra.mxu0 %v4632
  %4689 = vmatprep.subr.mxu0 0.0
  %4690 = vmatpush2.msra.mxu0 %v4631
  %4691 = vmatprep.subr.mxu0 0.0
  %4692 = vmatpush2.msra.mxu0 %v4630
  %4693 = vmatprep.subr.mxu0 0.0
  %4694 = vmatpush2.msra.mxu0 %v4629
  %4695 = vmatprep.subr.mxu0 0.0
  %4696 = vmatpush2.msra.mxu0 %v4628
  %4697 = vmatprep.subr.mxu0 0.0
  %4698 = vmatpush2.msra.mxu0 %v4627
  %4699 = vmatprep.subr.mxu0 0.0
  %4700 = vmatpush2.msra.mxu0 %v4626
  %4701 = vmatprep.subr.mxu0 0.0
  %4702 = vmatpush2.msra.mxu0 %v4625
  %4703 = vmatprep.subr.mxu0 0.0
  %4704 = vmatpush2.msra.mxu0 %v4624
  %4705 = vmatprep.subr.mxu0 0.0
  %4706 = vmatpush2.msra.mxu0 %v4623
  %4707 = vmatprep.mubr.f32.mxu0 %v596
  %4708 = vmatmul.mubr.f32.gmra.mxu0 %v595
  %v4709 = vpop.f32.mrf.mxu0
  %v4710 = vadd.f32 0.0, %v4709
  %v4711 = vpop.f32.mrf.mxu0
  %4712 = vmatprep.mubr.f32.mxu0 %v599
  %4713 = vmatmul.mubr.f32.gmra.mxu0 %v598
  %v4714 = vpop.f32.mrf.mxu0
  %v4715 = vadd.f32 0.0, %v4714
  %v4716 = vpop.f32.mrf.mxu0
  %4717 = vdwg.mxu0
  %4718 = vmatprep.subr.mxu0 0.0
  %4719 = vmatpush1.msra.mxu0 0.0
  %4720 = vmatprep.subr.mxu0 0.0
  %4721 = vmatpush1.msra.mxu0 0.0
  %4722 = vmatprep.subr.mxu0 0.0
  %4723 = vmatpush1.msra.mxu0 0.0
  %4724 = vmatprep.subr.mxu0 0.0
  %4725 = vmatpush1.msra.mxu0 0.0
  %4726 = vmatprep.subr.mxu0 0.0
  %4727 = vmatpush1.msra.mxu0 0.0
  %4728 = vmatprep.subr.mxu0 0.0
  %4729 = vmatpush1.msra.mxu0 0.0
  %4730 = vmatprep.subr.mxu0 0.0
  %4731 = vmatpush1.msra.mxu0 0.0
  %4732 = vmatprep.subr.mxu0 0.0
  %4733 = vmatpush1.msra.mxu0 0.0
  %4734 = vmatprep.subr.mxu0 0.0
  %4735 = vmatpush1.msra.mxu0 0.0
  %4736 = vmatprep.subr.mxu0 0.0
  %4737 = vmatpush1.msra.mxu0 0.0
  %4738 = vmatprep.subr.mxu0 0.0
  %4739 = vmatpush1.msra.mxu0 0.0
  %4740 = vmatprep.subr.mxu0 0.0
  %4741 = vmatpush1.msra.mxu0 0.0
  %4742 = vmatprep.subr.mxu0 0.0
  %4743 = vmatpush1.msra.mxu0 %v4642
  %4744 = vmatprep.subr.mxu0 0.0
  %4745 = vmatpush1.msra.mxu0 %v4641
  %4746 = vmatprep.subr.mxu0 0.0
  %4747 = vmatpush1.msra.mxu0 %v4640
  %4748 = vmatprep.subr.mxu0 0.0
  %4749 = vmatpush1.msra.mxu0 %v4639
  %4750 = vmatprep.subr.mxu0 0.0
  %4751 = vmatpush2.msra.mxu0 0.0
  %4752 = vmatprep.subr.mxu0 0.0
  %4753 = vmatpush2.msra.mxu0 0.0
  %4754 = vmatprep.subr.mxu0 0.0
  %4755 = vmatpush2.msra.mxu0 0.0
  %4756 = vmatprep.subr.mxu0 0.0
  %4757 = vmatpush2.msra.mxu0 0.0
  %4758 = vmatprep.subr.mxu0 0.0
  %4759 = vmatpush2.msra.mxu0 0.0
  %4760 = vmatprep.subr.mxu0 0.0
  %4761 = vmatpush2.msra.mxu0 0.0
  %4762 = vmatprep.subr.mxu0 0.0
  %4763 = vmatpush2.msra.mxu0 0.0
  %4764 = vmatprep.subr.mxu0 0.0
  %4765 = vmatpush2.msra.mxu0 0.0
  %4766 = vmatprep.subr.mxu0 0.0
  %4767 = vmatpush2.msra.mxu0 0.0
  %4768 = vmatprep.subr.mxu0 0.0
  %4769 = vmatpush2.msra.mxu0 0.0
  %4770 = vmatprep.subr.mxu0 0.0
  %4771 = vmatpush2.msra.mxu0 0.0
  %4772 = vmatprep.subr.mxu0 0.0
  %4773 = vmatpush2.msra.mxu0 0.0
  %4774 = vmatprep.subr.mxu0 0.0
  %4775 = vmatpush2.msra.mxu0 0.0
  %4776 = vmatprep.subr.mxu0 0.0
  %4777 = vmatpush2.msra.mxu0 0.0
  %4778 = vmatprep.subr.mxu0 0.0
  %4779 = vmatpush2.msra.mxu0 0.0
  %4780 = vmatprep.subr.mxu0 0.0
  %4781 = vmatpush2.msra.mxu0 0.0
  %4782 = vmatprep.mubr.f32.mxu0 0.0
  %4783 = vmatmul.mubr.f32.gmra.mxu0 %v639
  %v4784 = vpop.f32.mrf.mxu0
  %v4785 = vadd.f32 %v4710, %v4784
  %v4786 = vpop.f32.mrf.mxu0
  %4787 = vmatprep.mubr.f32.mxu0 0.0
  %4788 = vmatmul.mubr.f32.gmra.mxu0 %v642
  %v4789 = vpop.f32.mrf.mxu0
  %v4790 = vadd.f32 %v4715, %v4789
  %v4791 = vpop.f32.mrf.mxu0
  %4792 = vdwg.mxu0
  %s4793 = scalar_lea.vmem %s3, 336
  %v4794 = vld [vmem:[%s4793] sm:$0xff]
  %v4795 = vld [vmem:[%s4793 + $0x8] sm:$0xff]
  %v4796 = vld [vmem:[%s4793 + $0x10] sm:$0xf]
  %v4798 = vsel %vm988, %v4794, 0
  %v4801 = vsel %vm988, %v4795, 0
  %v4804 = vsel %vm988, %v4796, 0
  %v4807 = vsel %vm998, %v4790, 0
  %4809 = vmatprep.subr.mxu0 0.0
  %4810 = vmatpush1.msra.mxu0 0.0
  %4811 = vmatprep.subr.mxu0 0.0
  %4812 = vmatpush1.msra.mxu0 0.0
  %4813 = vmatprep.subr.mxu0 0.0
  %4814 = vmatpush1.msra.mxu0 0.0
  %4815 = vmatprep.subr.mxu0 0.0
  %4816 = vmatpush1.msra.mxu0 0.0
  %4817 = vmatprep.subr.mxu0 0.0
  %4818 = vmatpush1.msra.mxu0 0.0
  %4819 = vmatprep.subr.mxu0 0.0
  %4820 = vmatpush1.msra.mxu0 0.0
  %4821 = vmatprep.subr.mxu0 0.0
  %4822 = vmatpush1.msra.mxu0 0.0
  %4823 = vmatprep.subr.mxu0 0.0
  %4824 = vmatpush1.msra.mxu0 0.0
  %4825 = vmatprep.subr.mxu0 0.0
  %4826 = vmatpush1.msra.mxu0 0.0
  %4827 = vmatprep.subr.mxu0 0.0
  %4828 = vmatpush1.msra.mxu0 0.0
  %4829 = vmatprep.subr.mxu0 0.0
  %4830 = vmatpush1.msra.mxu0 0.0
  %4831 = vmatprep.subr.mxu0 0.0
  %4832 = vmatpush1.msra.mxu0 0.0
  %4833 = vmatprep.subr.mxu0 0.0
  %4834 = vmatpush1.msra.mxu0 0.0
  %4835 = vmatprep.subr.mxu0 0.0
  %4836 = vmatpush1.msra.mxu0 0.0
  %4837 = vmatprep.subr.mxu0 0.0
  %4838 = vmatpush1.msra.mxu0 %v4807
  %4839 = vmatprep.subr.mxu0 0.0
  %4840 = vmatpush1.msra.mxu0 %v4785
  %4841 = vmatprep.subr.mxu0 0.0
  %4842 = vmatpush2.msra.mxu0 0.0
  %4843 = vmatprep.subr.mxu0 0.0
  %4844 = vmatpush2.msra.mxu0 0.0
  %4845 = vmatprep.subr.mxu0 0.0
  %4846 = vmatpush2.msra.mxu0 0.0
  %4847 = vmatprep.subr.mxu0 0.0
  %4848 = vmatpush2.msra.mxu0 0.0
  %4849 = vmatprep.subr.mxu0 0.0
  %4850 = vmatpush2.msra.mxu0 0.0
  %4851 = vmatprep.subr.mxu0 0.0
  %4852 = vmatpush2.msra.mxu0 0.0
  %4853 = vmatprep.subr.mxu0 0.0
  %4854 = vmatpush2.msra.mxu0 0.0
  %4855 = vmatprep.subr.mxu0 0.0
  %4856 = vmatpush2.msra.mxu0 0.0
  %4857 = vmatprep.subr.mxu0 0.0
  %4858 = vmatpush2.msra.mxu0 0.0
  %4859 = vmatprep.subr.mxu0 0.0
  %4860 = vmatpush2.msra.mxu0 0.0
  %4861 = vmatprep.subr.mxu0 0.0
  %4862 = vmatpush2.msra.mxu0 0.0
  %4863 = vmatprep.subr.mxu0 0.0
  %4864 = vmatpush2.msra.mxu0 0.0
  %4865 = vmatprep.subr.mxu0 0.0
  %4866 = vmatpush2.msra.mxu0 0.0
  %4867 = vmatprep.subr.mxu0 0.0
  %4868 = vmatpush2.msra.mxu0 0.0
  %4869 = vmatprep.subr.mxu0 0.0
  %4870 = vmatpush2.msra.mxu0 0.0
  %4871 = vmatprep.subr.mxu0 0.0
  %4872 = vmatpush2.msra.mxu0 0.0
  %4873 = vmatprep.mubr.f32.mxu0 0.0
  %4874 = vmatmul.mubr.f32.gmra.mxu0 %v4798
  %v4875 = vpop.f32.mrf.mxu0
  %v4876 = vadd.f32 0.0, %v4875
  %v4877 = vpop.f32.mrf.mxu0
  %4878 = vmatprep.mubr.f32.mxu0 0.0
  %4879 = vmatmul.mubr.f32.gmra.mxu0 %v4801
  %v4880 = vpop.f32.mrf.mxu0
  %v4881 = vadd.f32 0.0, %v4880
  %v4882 = vpop.f32.mrf.mxu0
  %4883 = vmatprep.mubr.f32.mxu0 0.0
  %4884 = vmatmul.mubr.f32.gmra.mxu0 %v4804
  %v4885 = vpop.f32.mrf.mxu0
  %v4886 = vadd.f32 0.0, %v4885
  %v4887 = vpop.f32.mrf.mxu0
  %4888 = vdwg.mxu0
  %v4889 = vadd.f32 %v4603, %v4876
  %v4890 = vadd.f32 %v4604, %v4881
  %v4891 = vadd.f32 %v4605, %v4886
  %s4892 = scalar_lea.vmem %s5, 4320
  %v4893 = vld [vmem:[%s4892] sm:$0xff]
  %v4894 = vld [vmem:[%s4892 + $0x8] sm:$0xff]
  %v4895 = vld [vmem:[%s4892 + $0x10] sm:$0xff]
  %v4896 = vld [vmem:[%s4892 + $0x18] sm:$0xff]
  %v4897 = vld [vmem:[%s4892 + $0x20] sm:$0xff]
  %v4898 = vld [vmem:[%s4892 + $0x28] sm:$0xff]
  %v4899 = vld [vmem:[%s4892 + $0x30] sm:$0xff]
  %v4900 = vld [vmem:[%s4892 + $0x38] sm:$0xff]
  %v4901 = vld [vmem:[%s4892 + $0x40] sm:$0xff]
  %v4902 = vld [vmem:[%s4892 + $0x48] sm:$0xff]
  %v4903 = vld [vmem:[%s4892 + $0x50] sm:$0xff]
  %v4904 = vld [vmem:[%s4892 + $0x58] sm:$0xff]
  %v4905 = vld [vmem:[%s4892 + $0x60] sm:$0xff]
  %v4906 = vld [vmem:[%s4892 + $0x68] sm:$0xff]
  %v4907 = vld [vmem:[%s4892 + $0x70] sm:$0xff]
  %v4908 = vld [vmem:[%s4892 + $0x78] sm:$0xff]
  %v4909 = vld [vmem:[%s4892 + $0x80] sm:$0xff]
  %v4910 = vld [vmem:[%s4892 + $0x88] sm:$0xff]
  %v4911 = vld [vmem:[%s4892 + $0x90] sm:$0xff]
  %v4912 = vld [vmem:[%s4892 + $0x98] sm:$0xff]
  %v4913 = vld [vmem:[%s4892 + $0xa0] sm:$0xff]
  %v4914 = vld [vmem:[%s4892 + $0xa8] sm:$0xff]
  %v4915 = vld [vmem:[%s4892 + $0xb0] sm:$0xff]
  %v4916 = vld [vmem:[%s4892 + $0xb8] sm:$0xff]
  %v4917 = vld [vmem:[%s4892 + $0xc0] sm:$0xff]
  %v4918 = vld [vmem:[%s4892 + $0xc8] sm:$0xff]
  %v4919 = vld [vmem:[%s4892 + $0xd0] sm:$0xff]
  %v4920 = vld [vmem:[%s4892 + $0xd8] sm:$0xff]
  %v4921 = vld [vmem:[%s4892 + $0xe0] sm:$0xff]
  %v4922 = vld [vmem:[%s4892 + $0xe8] sm:$0xff]
  %v4923 = vld [vmem:[%s4892 + $0xf0] sm:$0xff]
  %v4924 = vld [vmem:[%s4892 + $0xf8] sm:$0xff]
  %v4925 = vld [vmem:[%s4892 + $0x100] sm:$0xff]
  %v4926 = vld [vmem:[%s4892 + $0x108] sm:$0xff]
  %v4927 = vld [vmem:[%s4892 + $0x110] sm:$0xff]
  %v4928 = vld [vmem:[%s4892 + $0x118] sm:$0xff]
  %4929 = vmatprep.subr.mxu0 0.0
  %4930 = vmatpush1.msra.mxu0 %v4908
  %4931 = vmatprep.subr.mxu0 0.0
  %4932 = vmatpush1.msra.mxu0 %v4907
  %4933 = vmatprep.subr.mxu0 0.0
  %4934 = vmatpush1.msra.mxu0 %v4906
  %4935 = vmatprep.subr.mxu0 0.0
  %4936 = vmatpush1.msra.mxu0 %v4905
  %4937 = vmatprep.subr.mxu0 0.0
  %4938 = vmatpush1.msra.mxu0 %v4904
  %4939 = vmatprep.subr.mxu0 0.0
  %4940 = vmatpush1.msra.mxu0 %v4903
  %4941 = vmatprep.subr.mxu0 0.0
  %4942 = vmatpush1.msra.mxu0 %v4902
  %4943 = vmatprep.subr.mxu0 0.0
  %4944 = vmatpush1.msra.mxu0 %v4901
  %4945 = vmatprep.subr.mxu0 0.0
  %4946 = vmatpush1.msra.mxu0 %v4900
  %4947 = vmatprep.subr.mxu0 0.0
  %4948 = vmatpush1.msra.mxu0 %v4899
  %4949 = vmatprep.subr.mxu0 0.0
  %4950 = vmatpush1.msra.mxu0 %v4898
  %4951 = vmatprep.subr.mxu0 0.0
  %4952 = vmatpush1.msra.mxu0 %v4897
  %4953 = vmatprep.subr.mxu0 0.0
  %4954 = vmatpush1.msra.mxu0 %v4896
  %4955 = vmatprep.subr.mxu0 0.0
  %4956 = vmatpush1.msra.mxu0 %v4895
  %4957 = vmatprep.subr.mxu0 0.0
  %4958 = vmatpush1.msra.mxu0 %v4894
  %4959 = vmatprep.subr.mxu0 0.0
  %4960 = vmatpush1.msra.mxu0 %v4893
  %4961 = vmatprep.subr.mxu0 0.0
  %4962 = vmatpush2.msra.mxu0 %v4924
  %4963 = vmatprep.subr.mxu0 0.0
  %4964 = vmatpush2.msra.mxu0 %v4923
  %4965 = vmatprep.subr.mxu0 0.0
  %4966 = vmatpush2.msra.mxu0 %v4922
  %4967 = vmatprep.subr.mxu0 0.0
  %4968 = vmatpush2.msra.mxu0 %v4921
  %4969 = vmatprep.subr.mxu0 0.0
  %4970 = vmatpush2.msra.mxu0 %v4920
  %4971 = vmatprep.subr.mxu0 0.0
  %4972 = vmatpush2.msra.mxu0 %v4919
  %4973 = vmatprep.subr.mxu0 0.0
  %4974 = vmatpush2.msra.mxu0 %v4918
  %4975 = vmatprep.subr.mxu0 0.0
  %4976 = vmatpush2.msra.mxu0 %v4917
  %4977 = vmatprep.subr.mxu0 0.0
  %4978 = vmatpush2.msra.mxu0 %v4916
  %4979 = vmatprep.subr.mxu0 0.0
  %4980 = vmatpush2.msra.mxu0 %v4915
  %4981 = vmatprep.subr.mxu0 0.0
  %4982 = vmatpush2.msra.mxu0 %v4914
  %4983 = vmatprep.subr.mxu0 0.0
  %4984 = vmatpush2.msra.mxu0 %v4913
  %4985 = vmatprep.subr.mxu0 0.0
  %4986 = vmatpush2.msra.mxu0 %v4912
  %4987 = vmatprep.subr.mxu0 0.0
  %4988 = vmatpush2.msra.mxu0 %v4911
  %4989 = vmatprep.subr.mxu0 0.0
  %4990 = vmatpush2.msra.mxu0 %v4910
  %4991 = vmatprep.subr.mxu0 0.0
  %4992 = vmatpush2.msra.mxu0 %v4909
  %4993 = vmatprep.mubr.f32.mxu0 %v596
  %4994 = vmatmul.mubr.f32.gmra.mxu0 %v595
  %v4995 = vpop.f32.mrf.mxu0
  %v4996 = vadd.f32 0.0, %v4995
  %v4997 = vpop.f32.mrf.mxu0
  %4998 = vmatprep.mubr.f32.mxu0 %v599
  %4999 = vmatmul.mubr.f32.gmra.mxu0 %v598
  %v5000 = vpop.f32.mrf.mxu0
  %v5001 = vadd.f32 0.0, %v5000
  %v5002 = vpop.f32.mrf.mxu0
  %5003 = vdwg.mxu0
  %5004 = vmatprep.subr.mxu0 0.0
  %5005 = vmatpush1.msra.mxu0 0.0
  %5006 = vmatprep.subr.mxu0 0.0
  %5007 = vmatpush1.msra.mxu0 0.0
  %5008 = vmatprep.subr.mxu0 0.0
  %5009 = vmatpush1.msra.mxu0 0.0
  %5010 = vmatprep.subr.mxu0 0.0
  %5011 = vmatpush1.msra.mxu0 0.0
  %5012 = vmatprep.subr.mxu0 0.0
  %5013 = vmatpush1.msra.mxu0 0.0
  %5014 = vmatprep.subr.mxu0 0.0
  %5015 = vmatpush1.msra.mxu0 0.0
  %5016 = vmatprep.subr.mxu0 0.0
  %5017 = vmatpush1.msra.mxu0 0.0
  %5018 = vmatprep.subr.mxu0 0.0
  %5019 = vmatpush1.msra.mxu0 0.0
  %5020 = vmatprep.subr.mxu0 0.0
  %5021 = vmatpush1.msra.mxu0 0.0
  %5022 = vmatprep.subr.mxu0 0.0
  %5023 = vmatpush1.msra.mxu0 0.0
  %5024 = vmatprep.subr.mxu0 0.0
  %5025 = vmatpush1.msra.mxu0 0.0
  %5026 = vmatprep.subr.mxu0 0.0
  %5027 = vmatpush1.msra.mxu0 0.0
  %5028 = vmatprep.subr.mxu0 0.0
  %5029 = vmatpush1.msra.mxu0 %v4928
  %5030 = vmatprep.subr.mxu0 0.0
  %5031 = vmatpush1.msra.mxu0 %v4927
  %5032 = vmatprep.subr.mxu0 0.0
  %5033 = vmatpush1.msra.mxu0 %v4926
  %5034 = vmatprep.subr.mxu0 0.0
  %5035 = vmatpush1.msra.mxu0 %v4925
  %5036 = vmatprep.subr.mxu0 0.0
  %5037 = vmatpush2.msra.mxu0 0.0
  %5038 = vmatprep.subr.mxu0 0.0
  %5039 = vmatpush2.msra.mxu0 0.0
  %5040 = vmatprep.subr.mxu0 0.0
  %5041 = vmatpush2.msra.mxu0 0.0
  %5042 = vmatprep.subr.mxu0 0.0
  %5043 = vmatpush2.msra.mxu0 0.0
  %5044 = vmatprep.subr.mxu0 0.0
  %5045 = vmatpush2.msra.mxu0 0.0
  %5046 = vmatprep.subr.mxu0 0.0
  %5047 = vmatpush2.msra.mxu0 0.0
  %5048 = vmatprep.subr.mxu0 0.0
  %5049 = vmatpush2.msra.mxu0 0.0
  %5050 = vmatprep.subr.mxu0 0.0
  %5051 = vmatpush2.msra.mxu0 0.0
  %5052 = vmatprep.subr.mxu0 0.0
  %5053 = vmatpush2.msra.mxu0 0.0
  %5054 = vmatprep.subr.mxu0 0.0
  %5055 = vmatpush2.msra.mxu0 0.0
  %5056 = vmatprep.subr.mxu0 0.0
  %5057 = vmatpush2.msra.mxu0 0.0
  %5058 = vmatprep.subr.mxu0 0.0
  %5059 = vmatpush2.msra.mxu0 0.0
  %5060 = vmatprep.subr.mxu0 0.0
  %5061 = vmatpush2.msra.mxu0 0.0
  %5062 = vmatprep.subr.mxu0 0.0
  %5063 = vmatpush2.msra.mxu0 0.0
  %5064 = vmatprep.subr.mxu0 0.0
  %5065 = vmatpush2.msra.mxu0 0.0
  %5066 = vmatprep.subr.mxu0 0.0
  %5067 = vmatpush2.msra.mxu0 0.0
  %5068 = vmatprep.mubr.f32.mxu0 0.0
  %5069 = vmatmul.mubr.f32.gmra.mxu0 %v639
  %v5070 = vpop.f32.mrf.mxu0
  %v5071 = vadd.f32 %v4996, %v5070
  %v5072 = vpop.f32.mrf.mxu0
  %5073 = vmatprep.mubr.f32.mxu0 0.0
  %5074 = vmatmul.mubr.f32.gmra.mxu0 %v642
  %v5075 = vpop.f32.mrf.mxu0
  %v5076 = vadd.f32 %v5001, %v5075
  %v5077 = vpop.f32.mrf.mxu0
  %5078 = vdwg.mxu0
  %s5079 = scalar_lea.vmem %s3, 360
  %v5080 = vld [vmem:[%s5079] sm:$0xff]
  %v5081 = vld [vmem:[%s5079 + $0x8] sm:$0xff]
  %v5082 = vld [vmem:[%s5079 + $0x10] sm:$0xf]
  %v5084 = vsel %vm988, %v5080, 0
  %v5087 = vsel %vm988, %v5081, 0
  %v5090 = vsel %vm988, %v5082, 0
  %v5093 = vsel %vm998, %v5076, 0
  %5095 = vmatprep.subr.mxu0 0.0
  %5096 = vmatpush1.msra.mxu0 0.0
  %5097 = vmatprep.subr.mxu0 0.0
  %5098 = vmatpush1.msra.mxu0 0.0
  %5099 = vmatprep.subr.mxu0 0.0
  %5100 = vmatpush1.msra.mxu0 0.0
  %5101 = vmatprep.subr.mxu0 0.0
  %5102 = vmatpush1.msra.mxu0 0.0
  %5103 = vmatprep.subr.mxu0 0.0
  %5104 = vmatpush1.msra.mxu0 0.0
  %5105 = vmatprep.subr.mxu0 0.0
  %5106 = vmatpush1.msra.mxu0 0.0
  %5107 = vmatprep.subr.mxu0 0.0
  %5108 = vmatpush1.msra.mxu0 0.0
  %5109 = vmatprep.subr.mxu0 0.0
  %5110 = vmatpush1.msra.mxu0 0.0
  %5111 = vmatprep.subr.mxu0 0.0
  %5112 = vmatpush1.msra.mxu0 0.0
  %5113 = vmatprep.subr.mxu0 0.0
  %5114 = vmatpush1.msra.mxu0 0.0
  %5115 = vmatprep.subr.mxu0 0.0
  %5116 = vmatpush1.msra.mxu0 0.0
  %5117 = vmatprep.subr.mxu0 0.0
  %5118 = vmatpush1.msra.mxu0 0.0
  %5119 = vmatprep.subr.mxu0 0.0
  %5120 = vmatpush1.msra.mxu0 0.0
  %5121 = vmatprep.subr.mxu0 0.0
  %5122 = vmatpush1.msra.mxu0 0.0
  %5123 = vmatprep.subr.mxu0 0.0
  %5124 = vmatpush1.msra.mxu0 %v5093
  %5125 = vmatprep.subr.mxu0 0.0
  %5126 = vmatpush1.msra.mxu0 %v5071
  %5127 = vmatprep.subr.mxu0 0.0
  %5128 = vmatpush2.msra.mxu0 0.0
  %5129 = vmatprep.subr.mxu0 0.0
  %5130 = vmatpush2.msra.mxu0 0.0
  %5131 = vmatprep.subr.mxu0 0.0
  %5132 = vmatpush2.msra.mxu0 0.0
  %5133 = vmatprep.subr.mxu0 0.0
  %5134 = vmatpush2.msra.mxu0 0.0
  %5135 = vmatprep.subr.mxu0 0.0
  %5136 = vmatpush2.msra.mxu0 0.0
  %5137 = vmatprep.subr.mxu0 0.0
  %5138 = vmatpush2.msra.mxu0 0.0
  %5139 = vmatprep.subr.mxu0 0.0
  %5140 = vmatpush2.msra.mxu0 0.0
  %5141 = vmatprep.subr.mxu0 0.0
  %5142 = vmatpush2.msra.mxu0 0.0
  %5143 = vmatprep.subr.mxu0 0.0
  %5144 = vmatpush2.msra.mxu0 0.0
  %5145 = vmatprep.subr.mxu0 0.0
  %5146 = vmatpush2.msra.mxu0 0.0
  %5147 = vmatprep.subr.mxu0 0.0
  %5148 = vmatpush2.msra.mxu0 0.0
  %5149 = vmatprep.subr.mxu0 0.0
  %5150 = vmatpush2.msra.mxu0 0.0
  %5151 = vmatprep.subr.mxu0 0.0
  %5152 = vmatpush2.msra.mxu0 0.0
  %5153 = vmatprep.subr.mxu0 0.0
  %5154 = vmatpush2.msra.mxu0 0.0
  %5155 = vmatprep.subr.mxu0 0.0
  %5156 = vmatpush2.msra.mxu0 0.0
  %5157 = vmatprep.subr.mxu0 0.0
  %5158 = vmatpush2.msra.mxu0 0.0
  %5159 = vmatprep.mubr.f32.mxu0 0.0
  %5160 = vmatmul.mubr.f32.gmra.mxu0 %v5084
  %v5161 = vpop.f32.mrf.mxu0
  %v5162 = vadd.f32 0.0, %v5161
  %v5163 = vpop.f32.mrf.mxu0
  %5164 = vmatprep.mubr.f32.mxu0 0.0
  %5165 = vmatmul.mubr.f32.gmra.mxu0 %v5087
  %v5166 = vpop.f32.mrf.mxu0
  %v5167 = vadd.f32 0.0, %v5166
  %v5168 = vpop.f32.mrf.mxu0
  %5169 = vmatprep.mubr.f32.mxu0 0.0
  %5170 = vmatmul.mubr.f32.gmra.mxu0 %v5090
  %v5171 = vpop.f32.mrf.mxu0
  %v5172 = vadd.f32 0.0, %v5171
  %v5173 = vpop.f32.mrf.mxu0
  %5174 = vdwg.mxu0
  %v5175 = vadd.f32 %v4889, %v5162
  %v5176 = vadd.f32 %v4890, %v5167
  %v5177 = vadd.f32 %v4891, %v5172
  %s5178 = scalar_lea.vmem %s5, 4608
  %v5179 = vld [vmem:[%s5178] sm:$0xff]
  %v5180 = vld [vmem:[%s5178 + $0x8] sm:$0xff]
  %v5181 = vld [vmem:[%s5178 + $0x10] sm:$0xff]
  %v5182 = vld [vmem:[%s5178 + $0x18] sm:$0xff]
  %v5183 = vld [vmem:[%s5178 + $0x20] sm:$0xff]
  %v5184 = vld [vmem:[%s5178 + $0x28] sm:$0xff]
  %v5185 = vld [vmem:[%s5178 + $0x30] sm:$0xff]
  %v5186 = vld [vmem:[%s5178 + $0x38] sm:$0xff]
  %v5187 = vld [vmem:[%s5178 + $0x40] sm:$0xff]
  %v5188 = vld [vmem:[%s5178 + $0x48] sm:$0xff]
  %v5189 = vld [vmem:[%s5178 + $0x50] sm:$0xff]
  %v5190 = vld [vmem:[%s5178 + $0x58] sm:$0xff]
  %v5191 = vld [vmem:[%s5178 + $0x60] sm:$0xff]
  %v5192 = vld [vmem:[%s5178 + $0x68] sm:$0xff]
  %v5193 = vld [vmem:[%s5178 + $0x70] sm:$0xff]
  %v5194 = vld [vmem:[%s5178 + $0x78] sm:$0xff]
  %v5195 = vld [vmem:[%s5178 + $0x80] sm:$0xff]
  %v5196 = vld [vmem:[%s5178 + $0x88] sm:$0xff]
  %v5197 = vld [vmem:[%s5178 + $0x90] sm:$0xff]
  %v5198 = vld [vmem:[%s5178 + $0x98] sm:$0xff]
  %v5199 = vld [vmem:[%s5178 + $0xa0] sm:$0xff]
  %v5200 = vld [vmem:[%s5178 + $0xa8] sm:$0xff]
  %v5201 = vld [vmem:[%s5178 + $0xb0] sm:$0xff]
  %v5202 = vld [vmem:[%s5178 + $0xb8] sm:$0xff]
  %v5203 = vld [vmem:[%s5178 + $0xc0] sm:$0xff]
  %v5204 = vld [vmem:[%s5178 + $0xc8] sm:$0xff]
  %v5205 = vld [vmem:[%s5178 + $0xd0] sm:$0xff]
  %v5206 = vld [vmem:[%s5178 + $0xd8] sm:$0xff]
  %v5207 = vld [vmem:[%s5178 + $0xe0] sm:$0xff]
  %v5208 = vld [vmem:[%s5178 + $0xe8] sm:$0xff]
  %v5209 = vld [vmem:[%s5178 + $0xf0] sm:$0xff]
  %v5210 = vld [vmem:[%s5178 + $0xf8] sm:$0xff]
  %v5211 = vld [vmem:[%s5178 + $0x100] sm:$0xff]
  %v5212 = vld [vmem:[%s5178 + $0x108] sm:$0xff]
  %v5213 = vld [vmem:[%s5178 + $0x110] sm:$0xff]
  %v5214 = vld [vmem:[%s5178 + $0x118] sm:$0xff]
  %5215 = vmatprep.subr.mxu0 0.0
  %5216 = vmatpush1.msra.mxu0 %v5194
  %5217 = vmatprep.subr.mxu0 0.0
  %5218 = vmatpush1.msra.mxu0 %v5193
  %5219 = vmatprep.subr.mxu0 0.0
  %5220 = vmatpush1.msra.mxu0 %v5192
  %5221 = vmatprep.subr.mxu0 0.0
  %5222 = vmatpush1.msra.mxu0 %v5191
  %5223 = vmatprep.subr.mxu0 0.0
  %5224 = vmatpush1.msra.mxu0 %v5190
  %5225 = vmatprep.subr.mxu0 0.0
  %5226 = vmatpush1.msra.mxu0 %v5189
  %5227 = vmatprep.subr.mxu0 0.0
  %5228 = vmatpush1.msra.mxu0 %v5188
  %5229 = vmatprep.subr.mxu0 0.0
  %5230 = vmatpush1.msra.mxu0 %v5187
  %5231 = vmatprep.subr.mxu0 0.0
  %5232 = vmatpush1.msra.mxu0 %v5186
  %5233 = vmatprep.subr.mxu0 0.0
  %5234 = vmatpush1.msra.mxu0 %v5185
  %5235 = vmatprep.subr.mxu0 0.0
  %5236 = vmatpush1.msra.mxu0 %v5184
  %5237 = vmatprep.subr.mxu0 0.0
  %5238 = vmatpush1.msra.mxu0 %v5183
  %5239 = vmatprep.subr.mxu0 0.0
  %5240 = vmatpush1.msra.mxu0 %v5182
  %5241 = vmatprep.subr.mxu0 0.0
  %5242 = vmatpush1.msra.mxu0 %v5181
  %5243 = vmatprep.subr.mxu0 0.0
  %5244 = vmatpush1.msra.mxu0 %v5180
  %5245 = vmatprep.subr.mxu0 0.0
  %5246 = vmatpush1.msra.mxu0 %v5179
  %5247 = vmatprep.subr.mxu0 0.0
  %5248 = vmatpush2.msra.mxu0 %v5210
  %5249 = vmatprep.subr.mxu0 0.0
  %5250 = vmatpush2.msra.mxu0 %v5209
  %5251 = vmatprep.subr.mxu0 0.0
  %5252 = vmatpush2.msra.mxu0 %v5208
  %5253 = vmatprep.subr.mxu0 0.0
  %5254 = vmatpush2.msra.mxu0 %v5207
  %5255 = vmatprep.subr.mxu0 0.0
  %5256 = vmatpush2.msra.mxu0 %v5206
  %5257 = vmatprep.subr.mxu0 0.0
  %5258 = vmatpush2.msra.mxu0 %v5205
  %5259 = vmatprep.subr.mxu0 0.0
  %5260 = vmatpush2.msra.mxu0 %v5204
  %5261 = vmatprep.subr.mxu0 0.0
  %5262 = vmatpush2.msra.mxu0 %v5203
  %5263 = vmatprep.subr.mxu0 0.0
  %5264 = vmatpush2.msra.mxu0 %v5202
  %5265 = vmatprep.subr.mxu0 0.0
  %5266 = vmatpush2.msra.mxu0 %v5201
  %5267 = vmatprep.subr.mxu0 0.0
  %5268 = vmatpush2.msra.mxu0 %v5200
  %5269 = vmatprep.subr.mxu0 0.0
  %5270 = vmatpush2.msra.mxu0 %v5199
  %5271 = vmatprep.subr.mxu0 0.0
  %5272 = vmatpush2.msra.mxu0 %v5198
  %5273 = vmatprep.subr.mxu0 0.0
  %5274 = vmatpush2.msra.mxu0 %v5197
  %5275 = vmatprep.subr.mxu0 0.0
  %5276 = vmatpush2.msra.mxu0 %v5196
  %5277 = vmatprep.subr.mxu0 0.0
  %5278 = vmatpush2.msra.mxu0 %v5195
  %5279 = vmatprep.mubr.f32.mxu0 %v596
  %5280 = vmatmul.mubr.f32.gmra.mxu0 %v595
  %v5281 = vpop.f32.mrf.mxu0
  %v5282 = vadd.f32 0.0, %v5281
  %v5283 = vpop.f32.mrf.mxu0
  %5284 = vmatprep.mubr.f32.mxu0 %v599
  %5285 = vmatmul.mubr.f32.gmra.mxu0 %v598
  %v5286 = vpop.f32.mrf.mxu0
  %v5287 = vadd.f32 0.0, %v5286
  %v5288 = vpop.f32.mrf.mxu0
  %5289 = vdwg.mxu0
  %5290 = vmatprep.subr.mxu0 0.0
  %5291 = vmatpush1.msra.mxu0 0.0
  %5292 = vmatprep.subr.mxu0 0.0
  %5293 = vmatpush1.msra.mxu0 0.0
  %5294 = vmatprep.subr.mxu0 0.0
  %5295 = vmatpush1.msra.mxu0 0.0
  %5296 = vmatprep.subr.mxu0 0.0
  %5297 = vmatpush1.msra.mxu0 0.0
  %5298 = vmatprep.subr.mxu0 0.0
  %5299 = vmatpush1.msra.mxu0 0.0
  %5300 = vmatprep.subr.mxu0 0.0
  %5301 = vmatpush1.msra.mxu0 0.0
  %5302 = vmatprep.subr.mxu0 0.0
  %5303 = vmatpush1.msra.mxu0 0.0
  %5304 = vmatprep.subr.mxu0 0.0
  %5305 = vmatpush1.msra.mxu0 0.0
  %5306 = vmatprep.subr.mxu0 0.0
  %5307 = vmatpush1.msra.mxu0 0.0
  %5308 = vmatprep.subr.mxu0 0.0
  %5309 = vmatpush1.msra.mxu0 0.0
  %5310 = vmatprep.subr.mxu0 0.0
  %5311 = vmatpush1.msra.mxu0 0.0
  %5312 = vmatprep.subr.mxu0 0.0
  %5313 = vmatpush1.msra.mxu0 0.0
  %5314 = vmatprep.subr.mxu0 0.0
  %5315 = vmatpush1.msra.mxu0 %v5214
  %5316 = vmatprep.subr.mxu0 0.0
  %5317 = vmatpush1.msra.mxu0 %v5213
  %5318 = vmatprep.subr.mxu0 0.0
  %5319 = vmatpush1.msra.mxu0 %v5212
  %5320 = vmatprep.subr.mxu0 0.0
  %5321 = vmatpush1.msra.mxu0 %v5211
  %5322 = vmatprep.subr.mxu0 0.0
  %5323 = vmatpush2.msra.mxu0 0.0
  %5324 = vmatprep.subr.mxu0 0.0
  %5325 = vmatpush2.msra.mxu0 0.0
  %5326 = vmatprep.subr.mxu0 0.0
  %5327 = vmatpush2.msra.mxu0 0.0
  %5328 = vmatprep.subr.mxu0 0.0
  %5329 = vmatpush2.msra.mxu0 0.0
  %5330 = vmatprep.subr.mxu0 0.0
  %5331 = vmatpush2.msra.mxu0 0.0
  %5332 = vmatprep.subr.mxu0 0.0
  %5333 = vmatpush2.msra.mxu0 0.0
  %5334 = vmatprep.subr.mxu0 0.0
  %5335 = vmatpush2.msra.mxu0 0.0
  %5336 = vmatprep.subr.mxu0 0.0
  %5337 = vmatpush2.msra.mxu0 0.0
  %5338 = vmatprep.subr.mxu0 0.0
  %5339 = vmatpush2.msra.mxu0 0.0
  %5340 = vmatprep.subr.mxu0 0.0
  %5341 = vmatpush2.msra.mxu0 0.0
  %5342 = vmatprep.subr.mxu0 0.0
  %5343 = vmatpush2.msra.mxu0 0.0
  %5344 = vmatprep.subr.mxu0 0.0
  %5345 = vmatpush2.msra.mxu0 0.0
  %5346 = vmatprep.subr.mxu0 0.0
  %5347 = vmatpush2.msra.mxu0 0.0
  %5348 = vmatprep.subr.mxu0 0.0
  %5349 = vmatpush2.msra.mxu0 0.0
  %5350 = vmatprep.subr.mxu0 0.0
  %5351 = vmatpush2.msra.mxu0 0.0
  %5352 = vmatprep.subr.mxu0 0.0
  %5353 = vmatpush2.msra.mxu0 0.0
  %5354 = vmatprep.mubr.f32.mxu0 0.0
  %5355 = vmatmul.mubr.f32.gmra.mxu0 %v639
  %v5356 = vpop.f32.mrf.mxu0
  %v5357 = vadd.f32 %v5282, %v5356
  %v5358 = vpop.f32.mrf.mxu0
  %5359 = vmatprep.mubr.f32.mxu0 0.0
  %5360 = vmatmul.mubr.f32.gmra.mxu0 %v642
  %v5361 = vpop.f32.mrf.mxu0
  %v5362 = vadd.f32 %v5287, %v5361
  %v5363 = vpop.f32.mrf.mxu0
  %5364 = vdwg.mxu0
  %s5365 = scalar_lea.vmem %s3, 384
  %v5366 = vld [vmem:[%s5365] sm:$0xff]
  %v5367 = vld [vmem:[%s5365 + $0x8] sm:$0xff]
  %v5368 = vld [vmem:[%s5365 + $0x10] sm:$0xf]
  %v5370 = vsel %vm988, %v5366, 0
  %v5373 = vsel %vm988, %v5367, 0
  %v5376 = vsel %vm988, %v5368, 0
  %v5379 = vsel %vm998, %v5362, 0
  %5381 = vmatprep.subr.mxu0 0.0
  %5382 = vmatpush1.msra.mxu0 0.0
  %5383 = vmatprep.subr.mxu0 0.0
  %5384 = vmatpush1.msra.mxu0 0.0
  %5385 = vmatprep.subr.mxu0 0.0
  %5386 = vmatpush1.msra.mxu0 0.0
  %5387 = vmatprep.subr.mxu0 0.0
  %5388 = vmatpush1.msra.mxu0 0.0
  %5389 = vmatprep.subr.mxu0 0.0
  %5390 = vmatpush1.msra.mxu0 0.0
  %5391 = vmatprep.subr.mxu0 0.0
  %5392 = vmatpush1.msra.mxu0 0.0
  %5393 = vmatprep.subr.mxu0 0.0
  %5394 = vmatpush1.msra.mxu0 0.0
  %5395 = vmatprep.subr.mxu0 0.0
  %5396 = vmatpush1.msra.mxu0 0.0
  %5397 = vmatprep.subr.mxu0 0.0
  %5398 = vmatpush1.msra.mxu0 0.0
  %5399 = vmatprep.subr.mxu0 0.0
  %5400 = vmatpush1.msra.mxu0 0.0
  %5401 = vmatprep.subr.mxu0 0.0
  %5402 = vmatpush1.msra.mxu0 0.0
  %5403 = vmatprep.subr.mxu0 0.0
  %5404 = vmatpush1.msra.mxu0 0.0
  %5405 = vmatprep.subr.mxu0 0.0
  %5406 = vmatpush1.msra.mxu0 0.0
  %5407 = vmatprep.subr.mxu0 0.0
  %5408 = vmatpush1.msra.mxu0 0.0
  %5409 = vmatprep.subr.mxu0 0.0
  %5410 = vmatpush1.msra.mxu0 %v5379
  %5411 = vmatprep.subr.mxu0 0.0
  %5412 = vmatpush1.msra.mxu0 %v5357
  %5413 = vmatprep.subr.mxu0 0.0
  %5414 = vmatpush2.msra.mxu0 0.0
  %5415 = vmatprep.subr.mxu0 0.0
  %5416 = vmatpush2.msra.mxu0 0.0
  %5417 = vmatprep.subr.mxu0 0.0
  %5418 = vmatpush2.msra.mxu0 0.0
  %5419 = vmatprep.subr.mxu0 0.0
  %5420 = vmatpush2.msra.mxu0 0.0
  %5421 = vmatprep.subr.mxu0 0.0
  %5422 = vmatpush2.msra.mxu0 0.0
  %5423 = vmatprep.subr.mxu0 0.0
  %5424 = vmatpush2.msra.mxu0 0.0
  %5425 = vmatprep.subr.mxu0 0.0
  %5426 = vmatpush2.msra.mxu0 0.0
  %5427 = vmatprep.subr.mxu0 0.0
  %5428 = vmatpush2.msra.mxu0 0.0
  %5429 = vmatprep.subr.mxu0 0.0
  %5430 = vmatpush2.msra.mxu0 0.0
  %5431 = vmatprep.subr.mxu0 0.0
  %5432 = vmatpush2.msra.mxu0 0.0
  %5433 = vmatprep.subr.mxu0 0.0
  %5434 = vmatpush2.msra.mxu0 0.0
  %5435 = vmatprep.subr.mxu0 0.0
  %5436 = vmatpush2.msra.mxu0 0.0
  %5437 = vmatprep.subr.mxu0 0.0
  %5438 = vmatpush2.msra.mxu0 0.0
  %5439 = vmatprep.subr.mxu0 0.0
  %5440 = vmatpush2.msra.mxu0 0.0
  %5441 = vmatprep.subr.mxu0 0.0
  %5442 = vmatpush2.msra.mxu0 0.0
  %5443 = vmatprep.subr.mxu0 0.0
  %5444 = vmatpush2.msra.mxu0 0.0
  %5445 = vmatprep.mubr.f32.mxu0 0.0
  %5446 = vmatmul.mubr.f32.gmra.mxu0 %v5370
  %v5447 = vpop.f32.mrf.mxu0
  %v5448 = vadd.f32 0.0, %v5447
  %v5449 = vpop.f32.mrf.mxu0
  %5450 = vmatprep.mubr.f32.mxu0 0.0
  %5451 = vmatmul.mubr.f32.gmra.mxu0 %v5373
  %v5452 = vpop.f32.mrf.mxu0
  %v5453 = vadd.f32 0.0, %v5452
  %v5454 = vpop.f32.mrf.mxu0
  %5455 = vmatprep.mubr.f32.mxu0 0.0
  %5456 = vmatmul.mubr.f32.gmra.mxu0 %v5376
  %v5457 = vpop.f32.mrf.mxu0
  %v5458 = vadd.f32 0.0, %v5457
  %v5459 = vpop.f32.mrf.mxu0
  %5460 = vdwg.mxu0
  %v5461 = vadd.f32 %v5175, %v5448
  %v5462 = vadd.f32 %v5176, %v5453
  %v5463 = vadd.f32 %v5177, %v5458
  %s5464 = scalar_lea.vmem %s5, 4896
  %v5465 = vld [vmem:[%s5464] sm:$0xff]
  %v5466 = vld [vmem:[%s5464 + $0x8] sm:$0xff]
  %v5467 = vld [vmem:[%s5464 + $0x10] sm:$0xff]
  %v5468 = vld [vmem:[%s5464 + $0x18] sm:$0xff]
  %v5469 = vld [vmem:[%s5464 + $0x20] sm:$0xff]
  %v5470 = vld [vmem:[%s5464 + $0x28] sm:$0xff]
  %v5471 = vld [vmem:[%s5464 + $0x30] sm:$0xff]
  %v5472 = vld [vmem:[%s5464 + $0x38] sm:$0xff]
  %v5473 = vld [vmem:[%s5464 + $0x40] sm:$0xff]
  %v5474 = vld [vmem:[%s5464 + $0x48] sm:$0xff]
  %v5475 = vld [vmem:[%s5464 + $0x50] sm:$0xff]
  %v5476 = vld [vmem:[%s5464 + $0x58] sm:$0xff]
  %v5477 = vld [vmem:[%s5464 + $0x60] sm:$0xff]
  %v5478 = vld [vmem:[%s5464 + $0x68] sm:$0xff]
  %v5479 = vld [vmem:[%s5464 + $0x70] sm:$0xff]
  %v5480 = vld [vmem:[%s5464 + $0x78] sm:$0xff]
  %v5481 = vld [vmem:[%s5464 + $0x80] sm:$0xff]
  %v5482 = vld [vmem:[%s5464 + $0x88] sm:$0xff]
  %v5483 = vld [vmem:[%s5464 + $0x90] sm:$0xff]
  %v5484 = vld [vmem:[%s5464 + $0x98] sm:$0xff]
  %v5485 = vld [vmem:[%s5464 + $0xa0] sm:$0xff]
  %v5486 = vld [vmem:[%s5464 + $0xa8] sm:$0xff]
  %v5487 = vld [vmem:[%s5464 + $0xb0] sm:$0xff]
  %v5488 = vld [vmem:[%s5464 + $0xb8] sm:$0xff]
  %v5489 = vld [vmem:[%s5464 + $0xc0] sm:$0xff]
  %v5490 = vld [vmem:[%s5464 + $0xc8] sm:$0xff]
  %v5491 = vld [vmem:[%s5464 + $0xd0] sm:$0xff]
  %v5492 = vld [vmem:[%s5464 + $0xd8] sm:$0xff]
  %v5493 = vld [vmem:[%s5464 + $0xe0] sm:$0xff]
  %v5494 = vld [vmem:[%s5464 + $0xe8] sm:$0xff]
  %v5495 = vld [vmem:[%s5464 + $0xf0] sm:$0xff]
  %v5496 = vld [vmem:[%s5464 + $0xf8] sm:$0xff]
  %v5497 = vld [vmem:[%s5464 + $0x100] sm:$0xff]
  %v5498 = vld [vmem:[%s5464 + $0x108] sm:$0xff]
  %v5499 = vld [vmem:[%s5464 + $0x110] sm:$0xff]
  %v5500 = vld [vmem:[%s5464 + $0x118] sm:$0xff]
  %5501 = vmatprep.subr.mxu0 0.0
  %5502 = vmatpush1.msra.mxu0 %v5480
  %5503 = vmatprep.subr.mxu0 0.0
  %5504 = vmatpush1.msra.mxu0 %v5479
  %5505 = vmatprep.subr.mxu0 0.0
  %5506 = vmatpush1.msra.mxu0 %v5478
  %5507 = vmatprep.subr.mxu0 0.0
  %5508 = vmatpush1.msra.mxu0 %v5477
  %5509 = vmatprep.subr.mxu0 0.0
  %5510 = vmatpush1.msra.mxu0 %v5476
  %5511 = vmatprep.subr.mxu0 0.0
  %5512 = vmatpush1.msra.mxu0 %v5475
  %5513 = vmatprep.subr.mxu0 0.0
  %5514 = vmatpush1.msra.mxu0 %v5474
  %5515 = vmatprep.subr.mxu0 0.0
  %5516 = vmatpush1.msra.mxu0 %v5473
  %5517 = vmatprep.subr.mxu0 0.0
  %5518 = vmatpush1.msra.mxu0 %v5472
  %5519 = vmatprep.subr.mxu0 0.0
  %5520 = vmatpush1.msra.mxu0 %v5471
  %5521 = vmatprep.subr.mxu0 0.0
  %5522 = vmatpush1.msra.mxu0 %v5470
  %5523 = vmatprep.subr.mxu0 0.0
  %5524 = vmatpush1.msra.mxu0 %v5469
  %5525 = vmatprep.subr.mxu0 0.0
  %5526 = vmatpush1.msra.mxu0 %v5468
  %5527 = vmatprep.subr.mxu0 0.0
  %5528 = vmatpush1.msra.mxu0 %v5467
  %5529 = vmatprep.subr.mxu0 0.0
  %5530 = vmatpush1.msra.mxu0 %v5466
  %5531 = vmatprep.subr.mxu0 0.0
  %5532 = vmatpush1.msra.mxu0 %v5465
  %5533 = vmatprep.subr.mxu0 0.0
  %5534 = vmatpush2.msra.mxu0 %v5496
  %5535 = vmatprep.subr.mxu0 0.0
  %5536 = vmatpush2.msra.mxu0 %v5495
  %5537 = vmatprep.subr.mxu0 0.0
  %5538 = vmatpush2.msra.mxu0 %v5494
  %5539 = vmatprep.subr.mxu0 0.0
  %5540 = vmatpush2.msra.mxu0 %v5493
  %5541 = vmatprep.subr.mxu0 0.0
  %5542 = vmatpush2.msra.mxu0 %v5492
  %5543 = vmatprep.subr.mxu0 0.0
  %5544 = vmatpush2.msra.mxu0 %v5491
  %5545 = vmatprep.subr.mxu0 0.0
  %5546 = vmatpush2.msra.mxu0 %v5490
  %5547 = vmatprep.subr.mxu0 0.0
  %5548 = vmatpush2.msra.mxu0 %v5489
  %5549 = vmatprep.subr.mxu0 0.0
  %5550 = vmatpush2.msra.mxu0 %v5488
  %5551 = vmatprep.subr.mxu0 0.0
  %5552 = vmatpush2.msra.mxu0 %v5487
  %5553 = vmatprep.subr.mxu0 0.0
  %5554 = vmatpush2.msra.mxu0 %v5486
  %5555 = vmatprep.subr.mxu0 0.0
  %5556 = vmatpush2.msra.mxu0 %v5485
  %5557 = vmatprep.subr.mxu0 0.0
  %5558 = vmatpush2.msra.mxu0 %v5484
  %5559 = vmatprep.subr.mxu0 0.0
  %5560 = vmatpush2.msra.mxu0 %v5483
  %5561 = vmatprep.subr.mxu0 0.0
  %5562 = vmatpush2.msra.mxu0 %v5482
  %5563 = vmatprep.subr.mxu0 0.0
  %5564 = vmatpush2.msra.mxu0 %v5481
  %5565 = vmatprep.mubr.f32.mxu0 %v596
  %5566 = vmatmul.mubr.f32.gmra.mxu0 %v595
  %v5567 = vpop.f32.mrf.mxu0
  %v5568 = vadd.f32 0.0, %v5567
  %v5569 = vpop.f32.mrf.mxu0
  %5570 = vmatprep.mubr.f32.mxu0 %v599
  %5571 = vmatmul.mubr.f32.gmra.mxu0 %v598
  %v5572 = vpop.f32.mrf.mxu0
  %v5573 = vadd.f32 0.0, %v5572
  %v5574 = vpop.f32.mrf.mxu0
  %5575 = vdwg.mxu0
  %5576 = vmatprep.subr.mxu0 0.0
  %5577 = vmatpush1.msra.mxu0 0.0
  %5578 = vmatprep.subr.mxu0 0.0
  %5579 = vmatpush1.msra.mxu0 0.0
  %5580 = vmatprep.subr.mxu0 0.0
  %5581 = vmatpush1.msra.mxu0 0.0
  %5582 = vmatprep.subr.mxu0 0.0
  %5583 = vmatpush1.msra.mxu0 0.0
  %5584 = vmatprep.subr.mxu0 0.0
  %5585 = vmatpush1.msra.mxu0 0.0
  %5586 = vmatprep.subr.mxu0 0.0
  %5587 = vmatpush1.msra.mxu0 0.0
  %5588 = vmatprep.subr.mxu0 0.0
  %5589 = vmatpush1.msra.mxu0 0.0
  %5590 = vmatprep.subr.mxu0 0.0
  %5591 = vmatpush1.msra.mxu0 0.0
  %5592 = vmatprep.subr.mxu0 0.0
  %5593 = vmatpush1.msra.mxu0 0.0
  %5594 = vmatprep.subr.mxu0 0.0
  %5595 = vmatpush1.msra.mxu0 0.0
  %5596 = vmatprep.subr.mxu0 0.0
  %5597 = vmatpush1.msra.mxu0 0.0
  %5598 = vmatprep.subr.mxu0 0.0
  %5599 = vmatpush1.msra.mxu0 0.0
  %5600 = vmatprep.subr.mxu0 0.0
  %5601 = vmatpush1.msra.mxu0 %v5500
  %5602 = vmatprep.subr.mxu0 0.0
  %5603 = vmatpush1.msra.mxu0 %v5499
  %5604 = vmatprep.subr.mxu0 0.0
  %5605 = vmatpush1.msra.mxu0 %v5498
  %5606 = vmatprep.subr.mxu0 0.0
  %5607 = vmatpush1.msra.mxu0 %v5497
  %5608 = vmatprep.subr.mxu0 0.0
  %5609 = vmatpush2.msra.mxu0 0.0
  %5610 = vmatprep.subr.mxu0 0.0
  %5611 = vmatpush2.msra.mxu0 0.0
  %5612 = vmatprep.subr.mxu0 0.0
  %5613 = vmatpush2.msra.mxu0 0.0
  %5614 = vmatprep.subr.mxu0 0.0
  %5615 = vmatpush2.msra.mxu0 0.0
  %5616 = vmatprep.subr.mxu0 0.0
  %5617 = vmatpush2.msra.mxu0 0.0
  %5618 = vmatprep.subr.mxu0 0.0
  %5619 = vmatpush2.msra.mxu0 0.0
  %5620 = vmatprep.subr.mxu0 0.0
  %5621 = vmatpush2.msra.mxu0 0.0
  %5622 = vmatprep.subr.mxu0 0.0
  %5623 = vmatpush2.msra.mxu0 0.0
  %5624 = vmatprep.subr.mxu0 0.0
  %5625 = vmatpush2.msra.mxu0 0.0
  %5626 = vmatprep.subr.mxu0 0.0
  %5627 = vmatpush2.msra.mxu0 0.0
  %5628 = vmatprep.subr.mxu0 0.0
  %5629 = vmatpush2.msra.mxu0 0.0
  %5630 = vmatprep.subr.mxu0 0.0
  %5631 = vmatpush2.msra.mxu0 0.0
  %5632 = vmatprep.subr.mxu0 0.0
  %5633 = vmatpush2.msra.mxu0 0.0
  %5634 = vmatprep.subr.mxu0 0.0
  %5635 = vmatpush2.msra.mxu0 0.0
  %5636 = vmatprep.subr.mxu0 0.0
  %5637 = vmatpush2.msra.mxu0 0.0
  %5638 = vmatprep.subr.mxu0 0.0
  %5639 = vmatpush2.msra.mxu0 0.0
  %5640 = vmatprep.mubr.f32.mxu0 0.0
  %5641 = vmatmul.mubr.f32.gmra.mxu0 %v639
  %v5642 = vpop.f32.mrf.mxu0
  %v5643 = vadd.f32 %v5568, %v5642
  %v5644 = vpop.f32.mrf.mxu0
  %5645 = vmatprep.mubr.f32.mxu0 0.0
  %5646 = vmatmul.mubr.f32.gmra.mxu0 %v642
  %v5647 = vpop.f32.mrf.mxu0
  %v5648 = vadd.f32 %v5573, %v5647
  %v5649 = vpop.f32.mrf.mxu0
  %5650 = vdwg.mxu0
  %s5651 = scalar_lea.vmem %s3, 408
  %v5652 = vld [vmem:[%s5651] sm:$0xff]
  %v5653 = vld [vmem:[%s5651 + $0x8] sm:$0xff]
  %v5654 = vld [vmem:[%s5651 + $0x10] sm:$0xf]
  %v5656 = vsel %vm988, %v5652, 0
  %v5659 = vsel %vm988, %v5653, 0
  %v5662 = vsel %vm988, %v5654, 0
  %v5665 = vsel %vm998, %v5648, 0
  %5667 = vmatprep.subr.mxu0 0.0
  %5668 = vmatpush1.msra.mxu0 0.0
  %5669 = vmatprep.subr.mxu0 0.0
  %5670 = vmatpush1.msra.mxu0 0.0
  %5671 = vmatprep.subr.mxu0 0.0
  %5672 = vmatpush1.msra.mxu0 0.0
  %5673 = vmatprep.subr.mxu0 0.0
  %5674 = vmatpush1.msra.mxu0 0.0
  %5675 = vmatprep.subr.mxu0 0.0
  %5676 = vmatpush1.msra.mxu0 0.0
  %5677 = vmatprep.subr.mxu0 0.0
  %5678 = vmatpush1.msra.mxu0 0.0
  %5679 = vmatprep.subr.mxu0 0.0
  %5680 = vmatpush1.msra.mxu0 0.0
  %5681 = vmatprep.subr.mxu0 0.0
  %5682 = vmatpush1.msra.mxu0 0.0
  %5683 = vmatprep.subr.mxu0 0.0
  %5684 = vmatpush1.msra.mxu0 0.0
  %5685 = vmatprep.subr.mxu0 0.0
  %5686 = vmatpush1.msra.mxu0 0.0
  %5687 = vmatprep.subr.mxu0 0.0
  %5688 = vmatpush1.msra.mxu0 0.0
  %5689 = vmatprep.subr.mxu0 0.0
  %5690 = vmatpush1.msra.mxu0 0.0
  %5691 = vmatprep.subr.mxu0 0.0
  %5692 = vmatpush1.msra.mxu0 0.0
  %5693 = vmatprep.subr.mxu0 0.0
  %5694 = vmatpush1.msra.mxu0 0.0
  %5695 = vmatprep.subr.mxu0 0.0
  %5696 = vmatpush1.msra.mxu0 %v5665
  %5697 = vmatprep.subr.mxu0 0.0
  %5698 = vmatpush1.msra.mxu0 %v5643
  %5699 = vmatprep.subr.mxu0 0.0
  %5700 = vmatpush2.msra.mxu0 0.0
  %5701 = vmatprep.subr.mxu0 0.0
  %5702 = vmatpush2.msra.mxu0 0.0
  %5703 = vmatprep.subr.mxu0 0.0
  %5704 = vmatpush2.msra.mxu0 0.0
  %5705 = vmatprep.subr.mxu0 0.0
  %5706 = vmatpush2.msra.mxu0 0.0
  %5707 = vmatprep.subr.mxu0 0.0
  %5708 = vmatpush2.msra.mxu0 0.0
  %5709 = vmatprep.subr.mxu0 0.0
  %5710 = vmatpush2.msra.mxu0 0.0
  %5711 = vmatprep.subr.mxu0 0.0
  %5712 = vmatpush2.msra.mxu0 0.0
  %5713 = vmatprep.subr.mxu0 0.0
  %5714 = vmatpush2.msra.mxu0 0.0
  %5715 = vmatprep.subr.mxu0 0.0
  %5716 = vmatpush2.msra.mxu0 0.0
  %5717 = vmatprep.subr.mxu0 0.0
  %5718 = vmatpush2.msra.mxu0 0.0
  %5719 = vmatprep.subr.mxu0 0.0
  %5720 = vmatpush2.msra.mxu0 0.0
  %5721 = vmatprep.subr.mxu0 0.0
  %5722 = vmatpush2.msra.mxu0 0.0
  %5723 = vmatprep.subr.mxu0 0.0
  %5724 = vmatpush2.msra.mxu0 0.0
  %5725 = vmatprep.subr.mxu0 0.0
  %5726 = vmatpush2.msra.mxu0 0.0
  %5727 = vmatprep.subr.mxu0 0.0
  %5728 = vmatpush2.msra.mxu0 0.0
  %5729 = vmatprep.subr.mxu0 0.0
  %5730 = vmatpush2.msra.mxu0 0.0
  %5731 = vmatprep.mubr.f32.mxu0 0.0
  %5732 = vmatmul.mubr.f32.gmra.mxu0 %v5656
  %v5733 = vpop.f32.mrf.mxu0
  %v5734 = vadd.f32 0.0, %v5733
  %v5735 = vpop.f32.mrf.mxu0
  %5736 = vmatprep.mubr.f32.mxu0 0.0
  %5737 = vmatmul.mubr.f32.gmra.mxu0 %v5659
  %v5738 = vpop.f32.mrf.mxu0
  %v5739 = vadd.f32 0.0, %v5738
  %v5740 = vpop.f32.mrf.mxu0
  %5741 = vmatprep.mubr.f32.mxu0 0.0
  %5742 = vmatmul.mubr.f32.gmra.mxu0 %v5662
  %v5743 = vpop.f32.mrf.mxu0
  %v5744 = vadd.f32 0.0, %v5743
  %v5745 = vpop.f32.mrf.mxu0
  %5746 = vdwg.mxu0
  %v5747 = vadd.f32 %v5461, %v5734
  %v5748 = vadd.f32 %v5462, %v5739
  %v5749 = vadd.f32 %v5463, %v5744
  %s5750 = scalar_lea.vmem %s5, 5184
  %v5751 = vld [vmem:[%s5750] sm:$0xff]
  %v5752 = vld [vmem:[%s5750 + $0x8] sm:$0xff]
  %v5753 = vld [vmem:[%s5750 + $0x10] sm:$0xff]
  %v5754 = vld [vmem:[%s5750 + $0x18] sm:$0xff]
  %v5755 = vld [vmem:[%s5750 + $0x20] sm:$0xff]
  %v5756 = vld [vmem:[%s5750 + $0x28] sm:$0xff]
  %v5757 = vld [vmem:[%s5750 + $0x30] sm:$0xff]
  %v5758 = vld [vmem:[%s5750 + $0x38] sm:$0xff]
  %v5759 = vld [vmem:[%s5750 + $0x40] sm:$0xff]
  %v5760 = vld [vmem:[%s5750 + $0x48] sm:$0xff]
  %v5761 = vld [vmem:[%s5750 + $0x50] sm:$0xff]
  %v5762 = vld [vmem:[%s5750 + $0x58] sm:$0xff]
  %v5763 = vld [vmem:[%s5750 + $0x60] sm:$0xff]
  %v5764 = vld [vmem:[%s5750 + $0x68] sm:$0xff]
  %v5765 = vld [vmem:[%s5750 + $0x70] sm:$0xff]
  %v5766 = vld [vmem:[%s5750 + $0x78] sm:$0xff]
  %v5767 = vld [vmem:[%s5750 + $0x80] sm:$0xff]
  %v5768 = vld [vmem:[%s5750 + $0x88] sm:$0xff]
  %v5769 = vld [vmem:[%s5750 + $0x90] sm:$0xff]
  %v5770 = vld [vmem:[%s5750 + $0x98] sm:$0xff]
  %v5771 = vld [vmem:[%s5750 + $0xa0] sm:$0xff]
  %v5772 = vld [vmem:[%s5750 + $0xa8] sm:$0xff]
  %v5773 = vld [vmem:[%s5750 + $0xb0] sm:$0xff]
  %v5774 = vld [vmem:[%s5750 + $0xb8] sm:$0xff]
  %v5775 = vld [vmem:[%s5750 + $0xc0] sm:$0xff]
  %v5776 = vld [vmem:[%s5750 + $0xc8] sm:$0xff]
  %v5777 = vld [vmem:[%s5750 + $0xd0] sm:$0xff]
  %v5778 = vld [vmem:[%s5750 + $0xd8] sm:$0xff]
  %v5779 = vld [vmem:[%s5750 + $0xe0] sm:$0xff]
  %v5780 = vld [vmem:[%s5750 + $0xe8] sm:$0xff]
  %v5781 = vld [vmem:[%s5750 + $0xf0] sm:$0xff]
  %v5782 = vld [vmem:[%s5750 + $0xf8] sm:$0xff]
  %v5783 = vld [vmem:[%s5750 + $0x100] sm:$0xff]
  %v5784 = vld [vmem:[%s5750 + $0x108] sm:$0xff]
  %v5785 = vld [vmem:[%s5750 + $0x110] sm:$0xff]
  %v5786 = vld [vmem:[%s5750 + $0x118] sm:$0xff]
  %5787 = vmatprep.subr.mxu0 0.0
  %5788 = vmatpush1.msra.mxu0 %v5766
  %5789 = vmatprep.subr.mxu0 0.0
  %5790 = vmatpush1.msra.mxu0 %v5765
  %5791 = vmatprep.subr.mxu0 0.0
  %5792 = vmatpush1.msra.mxu0 %v5764
  %5793 = vmatprep.subr.mxu0 0.0
  %5794 = vmatpush1.msra.mxu0 %v5763
  %5795 = vmatprep.subr.mxu0 0.0
  %5796 = vmatpush1.msra.mxu0 %v5762
  %5797 = vmatprep.subr.mxu0 0.0
  %5798 = vmatpush1.msra.mxu0 %v5761
  %5799 = vmatprep.subr.mxu0 0.0
  %5800 = vmatpush1.msra.mxu0 %v5760
  %5801 = vmatprep.subr.mxu0 0.0
  %5802 = vmatpush1.msra.mxu0 %v5759
  %5803 = vmatprep.subr.mxu0 0.0
  %5804 = vmatpush1.msra.mxu0 %v5758
  %5805 = vmatprep.subr.mxu0 0.0
  %5806 = vmatpush1.msra.mxu0 %v5757
  %5807 = vmatprep.subr.mxu0 0.0
  %5808 = vmatpush1.msra.mxu0 %v5756
  %5809 = vmatprep.subr.mxu0 0.0
  %5810 = vmatpush1.msra.mxu0 %v5755
  %5811 = vmatprep.subr.mxu0 0.0
  %5812 = vmatpush1.msra.mxu0 %v5754
  %5813 = vmatprep.subr.mxu0 0.0
  %5814 = vmatpush1.msra.mxu0 %v5753
  %5815 = vmatprep.subr.mxu0 0.0
  %5816 = vmatpush1.msra.mxu0 %v5752
  %5817 = vmatprep.subr.mxu0 0.0
  %5818 = vmatpush1.msra.mxu0 %v5751
  %5819 = vmatprep.subr.mxu0 0.0
  %5820 = vmatpush2.msra.mxu0 %v5782
  %5821 = vmatprep.subr.mxu0 0.0
  %5822 = vmatpush2.msra.mxu0 %v5781
  %5823 = vmatprep.subr.mxu0 0.0
  %5824 = vmatpush2.msra.mxu0 %v5780
  %5825 = vmatprep.subr.mxu0 0.0
  %5826 = vmatpush2.msra.mxu0 %v5779
  %5827 = vmatprep.subr.mxu0 0.0
  %5828 = vmatpush2.msra.mxu0 %v5778
  %5829 = vmatprep.subr.mxu0 0.0
  %5830 = vmatpush2.msra.mxu0 %v5777
  %5831 = vmatprep.subr.mxu0 0.0
  %5832 = vmatpush2.msra.mxu0 %v5776
  %5833 = vmatprep.subr.mxu0 0.0
  %5834 = vmatpush2.msra.mxu0 %v5775
  %5835 = vmatprep.subr.mxu0 0.0
  %5836 = vmatpush2.msra.mxu0 %v5774
  %5837 = vmatprep.subr.mxu0 0.0
  %5838 = vmatpush2.msra.mxu0 %v5773
  %5839 = vmatprep.subr.mxu0 0.0
  %5840 = vmatpush2.msra.mxu0 %v5772
  %5841 = vmatprep.subr.mxu0 0.0
  %5842 = vmatpush2.msra.mxu0 %v5771
  %5843 = vmatprep.subr.mxu0 0.0
  %5844 = vmatpush2.msra.mxu0 %v5770
  %5845 = vmatprep.subr.mxu0 0.0
  %5846 = vmatpush2.msra.mxu0 %v5769
  %5847 = vmatprep.subr.mxu0 0.0
  %5848 = vmatpush2.msra.mxu0 %v5768
  %5849 = vmatprep.subr.mxu0 0.0
  %5850 = vmatpush2.msra.mxu0 %v5767
  %5851 = vmatprep.mubr.f32.mxu0 %v596
  %5852 = vmatmul.mubr.f32.gmra.mxu0 %v595
  %v5853 = vpop.f32.mrf.mxu0
  %v5854 = vadd.f32 0.0, %v5853
  %v5855 = vpop.f32.mrf.mxu0
  %5856 = vmatprep.mubr.f32.mxu0 %v599
  %5857 = vmatmul.mubr.f32.gmra.mxu0 %v598
  %v5858 = vpop.f32.mrf.mxu0
  %v5859 = vadd.f32 0.0, %v5858
  %v5860 = vpop.f32.mrf.mxu0
  %5861 = vdwg.mxu0
  %5862 = vmatprep.subr.mxu0 0.0
  %5863 = vmatpush1.msra.mxu0 0.0
  %5864 = vmatprep.subr.mxu0 0.0
  %5865 = vmatpush1.msra.mxu0 0.0
  %5866 = vmatprep.subr.mxu0 0.0
  %5867 = vmatpush1.msra.mxu0 0.0
  %5868 = vmatprep.subr.mxu0 0.0
  %5869 = vmatpush1.msra.mxu0 0.0
  %5870 = vmatprep.subr.mxu0 0.0
  %5871 = vmatpush1.msra.mxu0 0.0
  %5872 = vmatprep.subr.mxu0 0.0
  %5873 = vmatpush1.msra.mxu0 0.0
  %5874 = vmatprep.subr.mxu0 0.0
  %5875 = vmatpush1.msra.mxu0 0.0
  %5876 = vmatprep.subr.mxu0 0.0
  %5877 = vmatpush1.msra.mxu0 0.0
  %5878 = vmatprep.subr.mxu0 0.0
  %5879 = vmatpush1.msra.mxu0 0.0
  %5880 = vmatprep.subr.mxu0 0.0
  %5881 = vmatpush1.msra.mxu0 0.0
  %5882 = vmatprep.subr.mxu0 0.0
  %5883 = vmatpush1.msra.mxu0 0.0
  %5884 = vmatprep.subr.mxu0 0.0
  %5885 = vmatpush1.msra.mxu0 0.0
  %5886 = vmatprep.subr.mxu0 0.0
  %5887 = vmatpush1.msra.mxu0 %v5786
  %5888 = vmatprep.subr.mxu0 0.0
  %5889 = vmatpush1.msra.mxu0 %v5785
  %5890 = vmatprep.subr.mxu0 0.0
  %5891 = vmatpush1.msra.mxu0 %v5784
  %5892 = vmatprep.subr.mxu0 0.0
  %5893 = vmatpush1.msra.mxu0 %v5783
  %5894 = vmatprep.subr.mxu0 0.0
  %5895 = vmatpush2.msra.mxu0 0.0
  %5896 = vmatprep.subr.mxu0 0.0
  %5897 = vmatpush2.msra.mxu0 0.0
  %5898 = vmatprep.subr.mxu0 0.0
  %5899 = vmatpush2.msra.mxu0 0.0
  %5900 = vmatprep.subr.mxu0 0.0
  %5901 = vmatpush2.msra.mxu0 0.0
  %5902 = vmatprep.subr.mxu0 0.0
  %5903 = vmatpush2.msra.mxu0 0.0
  %5904 = vmatprep.subr.mxu0 0.0
  %5905 = vmatpush2.msra.mxu0 0.0
  %5906 = vmatprep.subr.mxu0 0.0
  %5907 = vmatpush2.msra.mxu0 0.0
  %5908 = vmatprep.subr.mxu0 0.0
  %5909 = vmatpush2.msra.mxu0 0.0
  %5910 = vmatprep.subr.mxu0 0.0
  %5911 = vmatpush2.msra.mxu0 0.0
  %5912 = vmatprep.subr.mxu0 0.0
  %5913 = vmatpush2.msra.mxu0 0.0
  %5914 = vmatprep.subr.mxu0 0.0
  %5915 = vmatpush2.msra.mxu0 0.0
  %5916 = vmatprep.subr.mxu0 0.0
  %5917 = vmatpush2.msra.mxu0 0.0
  %5918 = vmatprep.subr.mxu0 0.0
  %5919 = vmatpush2.msra.mxu0 0.0
  %5920 = vmatprep.subr.mxu0 0.0
  %5921 = vmatpush2.msra.mxu0 0.0
  %5922 = vmatprep.subr.mxu0 0.0
  %5923 = vmatpush2.msra.mxu0 0.0
  %5924 = vmatprep.subr.mxu0 0.0
  %5925 = vmatpush2.msra.mxu0 0.0
  %5926 = vmatprep.mubr.f32.mxu0 0.0
  %5927 = vmatmul.mubr.f32.gmra.mxu0 %v639
  %v5928 = vpop.f32.mrf.mxu0
  %v5929 = vadd.f32 %v5854, %v5928
  %v5930 = vpop.f32.mrf.mxu0
  %5931 = vmatprep.mubr.f32.mxu0 0.0
  %5932 = vmatmul.mubr.f32.gmra.mxu0 %v642
  %v5933 = vpop.f32.mrf.mxu0
  %v5934 = vadd.f32 %v5859, %v5933
  %v5935 = vpop.f32.mrf.mxu0
  %5936 = vdwg.mxu0
  %s5937 = scalar_lea.vmem %s3, 432
  %v5938 = vld [vmem:[%s5937] sm:$0xff]
  %v5939 = vld [vmem:[%s5937 + $0x8] sm:$0xff]
  %v5940 = vld [vmem:[%s5937 + $0x10] sm:$0xf]
  %v5942 = vsel %vm988, %v5938, 0
  %v5945 = vsel %vm988, %v5939, 0
  %v5948 = vsel %vm988, %v5940, 0
  %v5951 = vsel %vm998, %v5934, 0
  %5953 = vmatprep.subr.mxu0 0.0
  %5954 = vmatpush1.msra.mxu0 0.0
  %5955 = vmatprep.subr.mxu0 0.0
  %5956 = vmatpush1.msra.mxu0 0.0
  %5957 = vmatprep.subr.mxu0 0.0
  %5958 = vmatpush1.msra.mxu0 0.0
  %5959 = vmatprep.subr.mxu0 0.0
  %5960 = vmatpush1.msra.mxu0 0.0
  %5961 = vmatprep.subr.mxu0 0.0
  %5962 = vmatpush1.msra.mxu0 0.0
  %5963 = vmatprep.subr.mxu0 0.0
  %5964 = vmatpush1.msra.mxu0 0.0
  %5965 = vmatprep.subr.mxu0 0.0
  %5966 = vmatpush1.msra.mxu0 0.0
  %5967 = vmatprep.subr.mxu0 0.0
  %5968 = vmatpush1.msra.mxu0 0.0
  %5969 = vmatprep.subr.mxu0 0.0
  %5970 = vmatpush1.msra.mxu0 0.0
  %5971 = vmatprep.subr.mxu0 0.0
  %5972 = vmatpush1.msra.mxu0 0.0
  %5973 = vmatprep.subr.mxu0 0.0
  %5974 = vmatpush1.msra.mxu0 0.0
  %5975 = vmatprep.subr.mxu0 0.0
  %5976 = vmatpush1.msra.mxu0 0.0
  %5977 = vmatprep.subr.mxu0 0.0
  %5978 = vmatpush1.msra.mxu0 0.0
  %5979 = vmatprep.subr.mxu0 0.0
  %5980 = vmatpush1.msra.mxu0 0.0
  %5981 = vmatprep.subr.mxu0 0.0
  %5982 = vmatpush1.msra.mxu0 %v5951
  %5983 = vmatprep.subr.mxu0 0.0
  %5984 = vmatpush1.msra.mxu0 %v5929
  %5985 = vmatprep.subr.mxu0 0.0
  %5986 = vmatpush2.msra.mxu0 0.0
  %5987 = vmatprep.subr.mxu0 0.0
  %5988 = vmatpush2.msra.mxu0 0.0
  %5989 = vmatprep.subr.mxu0 0.0
  %5990 = vmatpush2.msra.mxu0 0.0
  %5991 = vmatprep.subr.mxu0 0.0
  %5992 = vmatpush2.msra.mxu0 0.0
  %5993 = vmatprep.subr.mxu0 0.0
  %5994 = vmatpush2.msra.mxu0 0.0
  %5995 = vmatprep.subr.mxu0 0.0
  %5996 = vmatpush2.msra.mxu0 0.0
  %5997 = vmatprep.subr.mxu0 0.0
  %5998 = vmatpush2.msra.mxu0 0.0
  %5999 = vmatprep.subr.mxu0 0.0
  %6000 = vmatpush2.msra.mxu0 0.0
  %6001 = vmatprep.subr.mxu0 0.0
  %6002 = vmatpush2.msra.mxu0 0.0
  %6003 = vmatprep.subr.mxu0 0.0
  %6004 = vmatpush2.msra.mxu0 0.0
  %6005 = vmatprep.subr.mxu0 0.0
  %6006 = vmatpush2.msra.mxu0 0.0
  %6007 = vmatprep.subr.mxu0 0.0
  %6008 = vmatpush2.msra.mxu0 0.0
  %6009 = vmatprep.subr.mxu0 0.0
  %6010 = vmatpush2.msra.mxu0 0.0
  %6011 = vmatprep.subr.mxu0 0.0
  %6012 = vmatpush2.msra.mxu0 0.0
  %6013 = vmatprep.subr.mxu0 0.0
  %6014 = vmatpush2.msra.mxu0 0.0
  %6015 = vmatprep.subr.mxu0 0.0
  %6016 = vmatpush2.msra.mxu0 0.0
  %6017 = vmatprep.mubr.f32.mxu0 0.0
  %6018 = vmatmul.mubr.f32.gmra.mxu0 %v5942
  %v6019 = vpop.f32.mrf.mxu0
  %v6020 = vadd.f32 0.0, %v6019
  %v6021 = vpop.f32.mrf.mxu0
  %6022 = vmatprep.mubr.f32.mxu0 0.0
  %6023 = vmatmul.mubr.f32.gmra.mxu0 %v5945
  %v6024 = vpop.f32.mrf.mxu0
  %v6025 = vadd.f32 0.0, %v6024
  %v6026 = vpop.f32.mrf.mxu0
  %6027 = vmatprep.mubr.f32.mxu0 0.0
  %6028 = vmatmul.mubr.f32.gmra.mxu0 %v5948
  %v6029 = vpop.f32.mrf.mxu0
  %v6030 = vadd.f32 0.0, %v6029
  %v6031 = vpop.f32.mrf.mxu0
  %6032 = vdwg.mxu0
  %v6033 = vadd.f32 %v5747, %v6020
  %v6034 = vadd.f32 %v5748, %v6025
  %v6035 = vadd.f32 %v5749, %v6030
  %s6036 = scalar_lea.vmem %s5, 5472
  %v6037 = vld [vmem:[%s6036] sm:$0xff]
  %v6038 = vld [vmem:[%s6036 + $0x8] sm:$0xff]
  %v6039 = vld [vmem:[%s6036 + $0x10] sm:$0xff]
  %v6040 = vld [vmem:[%s6036 + $0x18] sm:$0xff]
  %v6041 = vld [vmem:[%s6036 + $0x20] sm:$0xff]
  %v6042 = vld [vmem:[%s6036 + $0x28] sm:$0xff]
  %v6043 = vld [vmem:[%s6036 + $0x30] sm:$0xff]
  %v6044 = vld [vmem:[%s6036 + $0x38] sm:$0xff]
  %v6045 = vld [vmem:[%s6036 + $0x40] sm:$0xff]
  %v6046 = vld [vmem:[%s6036 + $0x48] sm:$0xff]
  %v6047 = vld [vmem:[%s6036 + $0x50] sm:$0xff]
  %v6048 = vld [vmem:[%s6036 + $0x58] sm:$0xff]
  %v6049 = vld [vmem:[%s6036 + $0x60] sm:$0xff]
  %v6050 = vld [vmem:[%s6036 + $0x68] sm:$0xff]
  %v6051 = vld [vmem:[%s6036 + $0x70] sm:$0xff]
  %v6052 = vld [vmem:[%s6036 + $0x78] sm:$0xff]
  %v6053 = vld [vmem:[%s6036 + $0x80] sm:$0xff]
  %v6054 = vld [vmem:[%s6036 + $0x88] sm:$0xff]
  %v6055 = vld [vmem:[%s6036 + $0x90] sm:$0xff]
  %v6056 = vld [vmem:[%s6036 + $0x98] sm:$0xff]
  %v6057 = vld [vmem:[%s6036 + $0xa0] sm:$0xff]
  %v6058 = vld [vmem:[%s6036 + $0xa8] sm:$0xff]
  %v6059 = vld [vmem:[%s6036 + $0xb0] sm:$0xff]
  %v6060 = vld [vmem:[%s6036 + $0xb8] sm:$0xff]
  %v6061 = vld [vmem:[%s6036 + $0xc0] sm:$0xff]
  %v6062 = vld [vmem:[%s6036 + $0xc8] sm:$0xff]
  %v6063 = vld [vmem:[%s6036 + $0xd0] sm:$0xff]
  %v6064 = vld [vmem:[%s6036 + $0xd8] sm:$0xff]
  %v6065 = vld [vmem:[%s6036 + $0xe0] sm:$0xff]
  %v6066 = vld [vmem:[%s6036 + $0xe8] sm:$0xff]
  %v6067 = vld [vmem:[%s6036 + $0xf0] sm:$0xff]
  %v6068 = vld [vmem:[%s6036 + $0xf8] sm:$0xff]
  %v6069 = vld [vmem:[%s6036 + $0x100] sm:$0xff]
  %v6070 = vld [vmem:[%s6036 + $0x108] sm:$0xff]
  %v6071 = vld [vmem:[%s6036 + $0x110] sm:$0xff]
  %v6072 = vld [vmem:[%s6036 + $0x118] sm:$0xff]
  %6073 = vmatprep.subr.mxu0 0.0
  %6074 = vmatpush1.msra.mxu0 %v6052
  %6075 = vmatprep.subr.mxu0 0.0
  %6076 = vmatpush1.msra.mxu0 %v6051
  %6077 = vmatprep.subr.mxu0 0.0
  %6078 = vmatpush1.msra.mxu0 %v6050
  %6079 = vmatprep.subr.mxu0 0.0
  %6080 = vmatpush1.msra.mxu0 %v6049
  %6081 = vmatprep.subr.mxu0 0.0
  %6082 = vmatpush1.msra.mxu0 %v6048
  %6083 = vmatprep.subr.mxu0 0.0
  %6084 = vmatpush1.msra.mxu0 %v6047
  %6085 = vmatprep.subr.mxu0 0.0
  %6086 = vmatpush1.msra.mxu0 %v6046
  %6087 = vmatprep.subr.mxu0 0.0
  %6088 = vmatpush1.msra.mxu0 %v6045
  %6089 = vmatprep.subr.mxu0 0.0
  %6090 = vmatpush1.msra.mxu0 %v6044
  %6091 = vmatprep.subr.mxu0 0.0
  %6092 = vmatpush1.msra.mxu0 %v6043
  %6093 = vmatprep.subr.mxu0 0.0
  %6094 = vmatpush1.msra.mxu0 %v6042
  %6095 = vmatprep.subr.mxu0 0.0
  %6096 = vmatpush1.msra.mxu0 %v6041
  %6097 = vmatprep.subr.mxu0 0.0
  %6098 = vmatpush1.msra.mxu0 %v6040
  %6099 = vmatprep.subr.mxu0 0.0
  %6100 = vmatpush1.msra.mxu0 %v6039
  %6101 = vmatprep.subr.mxu0 0.0
  %6102 = vmatpush1.msra.mxu0 %v6038
  %6103 = vmatprep.subr.mxu0 0.0
  %6104 = vmatpush1.msra.mxu0 %v6037
  %6105 = vmatprep.subr.mxu0 0.0
  %6106 = vmatpush2.msra.mxu0 %v6068
  %6107 = vmatprep.subr.mxu0 0.0
  %6108 = vmatpush2.msra.mxu0 %v6067
  %6109 = vmatprep.subr.mxu0 0.0
  %6110 = vmatpush2.msra.mxu0 %v6066
  %6111 = vmatprep.subr.mxu0 0.0
  %6112 = vmatpush2.msra.mxu0 %v6065
  %6113 = vmatprep.subr.mxu0 0.0
  %6114 = vmatpush2.msra.mxu0 %v6064
  %6115 = vmatprep.subr.mxu0 0.0
  %6116 = vmatpush2.msra.mxu0 %v6063
  %6117 = vmatprep.subr.mxu0 0.0
  %6118 = vmatpush2.msra.mxu0 %v6062
  %6119 = vmatprep.subr.mxu0 0.0
  %6120 = vmatpush2.msra.mxu0 %v6061
  %6121 = vmatprep.subr.mxu0 0.0
  %6122 = vmatpush2.msra.mxu0 %v6060
  %6123 = vmatprep.subr.mxu0 0.0
  %6124 = vmatpush2.msra.mxu0 %v6059
  %6125 = vmatprep.subr.mxu0 0.0
  %6126 = vmatpush2.msra.mxu0 %v6058
  %6127 = vmatprep.subr.mxu0 0.0
  %6128 = vmatpush2.msra.mxu0 %v6057
  %6129 = vmatprep.subr.mxu0 0.0
  %6130 = vmatpush2.msra.mxu0 %v6056
  %6131 = vmatprep.subr.mxu0 0.0
  %6132 = vmatpush2.msra.mxu0 %v6055
  %6133 = vmatprep.subr.mxu0 0.0
  %6134 = vmatpush2.msra.mxu0 %v6054
  %6135 = vmatprep.subr.mxu0 0.0
  %6136 = vmatpush2.msra.mxu0 %v6053
  %6137 = vmatprep.mubr.f32.mxu0 %v596
  %6138 = vmatmul.mubr.f32.gmra.mxu0 %v595
  %v6139 = vpop.f32.mrf.mxu0
  %v6140 = vadd.f32 0.0, %v6139
  %v6141 = vpop.f32.mrf.mxu0
  %6142 = vmatprep.mubr.f32.mxu0 %v599
  %6143 = vmatmul.mubr.f32.gmra.mxu0 %v598
  %v6144 = vpop.f32.mrf.mxu0
  %v6145 = vadd.f32 0.0, %v6144
  %v6146 = vpop.f32.mrf.mxu0
  %6147 = vdwg.mxu0
  %6148 = vmatprep.subr.mxu0 0.0
  %6149 = vmatpush1.msra.mxu0 0.0
  %6150 = vmatprep.subr.mxu0 0.0
  %6151 = vmatpush1.msra.mxu0 0.0
  %6152 = vmatprep.subr.mxu0 0.0
  %6153 = vmatpush1.msra.mxu0 0.0
  %6154 = vmatprep.subr.mxu0 0.0
  %6155 = vmatpush1.msra.mxu0 0.0
  %6156 = vmatprep.subr.mxu0 0.0
  %6157 = vmatpush1.msra.mxu0 0.0
  %6158 = vmatprep.subr.mxu0 0.0
  %6159 = vmatpush1.msra.mxu0 0.0
  %6160 = vmatprep.subr.mxu0 0.0
  %6161 = vmatpush1.msra.mxu0 0.0
  %6162 = vmatprep.subr.mxu0 0.0
  %6163 = vmatpush1.msra.mxu0 0.0
  %6164 = vmatprep.subr.mxu0 0.0
  %6165 = vmatpush1.msra.mxu0 0.0
  %6166 = vmatprep.subr.mxu0 0.0
  %6167 = vmatpush1.msra.mxu0 0.0
  %6168 = vmatprep.subr.mxu0 0.0
  %6169 = vmatpush1.msra.mxu0 0.0
  %6170 = vmatprep.subr.mxu0 0.0
  %6171 = vmatpush1.msra.mxu0 0.0
  %6172 = vmatprep.subr.mxu0 0.0
  %6173 = vmatpush1.msra.mxu0 %v6072
  %6174 = vmatprep.subr.mxu0 0.0
  %6175 = vmatpush1.msra.mxu0 %v6071
  %6176 = vmatprep.subr.mxu0 0.0
  %6177 = vmatpush1.msra.mxu0 %v6070
  %6178 = vmatprep.subr.mxu0 0.0
  %6179 = vmatpush1.msra.mxu0 %v6069
  %6180 = vmatprep.subr.mxu0 0.0
  %6181 = vmatpush2.msra.mxu0 0.0
  %6182 = vmatprep.subr.mxu0 0.0
  %6183 = vmatpush2.msra.mxu0 0.0
  %6184 = vmatprep.subr.mxu0 0.0
  %6185 = vmatpush2.msra.mxu0 0.0
  %6186 = vmatprep.subr.mxu0 0.0
  %6187 = vmatpush2.msra.mxu0 0.0
  %6188 = vmatprep.subr.mxu0 0.0
  %6189 = vmatpush2.msra.mxu0 0.0
  %6190 = vmatprep.subr.mxu0 0.0
  %6191 = vmatpush2.msra.mxu0 0.0
  %6192 = vmatprep.subr.mxu0 0.0
  %6193 = vmatpush2.msra.mxu0 0.0
  %6194 = vmatprep.subr.mxu0 0.0
  %6195 = vmatpush2.msra.mxu0 0.0
  %6196 = vmatprep.subr.mxu0 0.0
  %6197 = vmatpush2.msra.mxu0 0.0
  %6198 = vmatprep.subr.mxu0 0.0
  %6199 = vmatpush2.msra.mxu0 0.0
  %6200 = vmatprep.subr.mxu0 0.0
  %6201 = vmatpush2.msra.mxu0 0.0
  %6202 = vmatprep.subr.mxu0 0.0
  %6203 = vmatpush2.msra.mxu0 0.0
  %6204 = vmatprep.subr.mxu0 0.0
  %6205 = vmatpush2.msra.mxu0 0.0
  %6206 = vmatprep.subr.mxu0 0.0
  %6207 = vmatpush2.msra.mxu0 0.0
  %6208 = vmatprep.subr.mxu0 0.0
  %6209 = vmatpush2.msra.mxu0 0.0
  %6210 = vmatprep.subr.mxu0 0.0
  %6211 = vmatpush2.msra.mxu0 0.0
  %6212 = vmatprep.mubr.f32.mxu0 0.0
  %6213 = vmatmul.mubr.f32.gmra.mxu0 %v639
  %v6214 = vpop.f32.mrf.mxu0
  %v6215 = vadd.f32 %v6140, %v6214
  %v6216 = vpop.f32.mrf.mxu0
  %6217 = vmatprep.mubr.f32.mxu0 0.0
  %6218 = vmatmul.mubr.f32.gmra.mxu0 %v642
  %v6219 = vpop.f32.mrf.mxu0
  %v6220 = vadd.f32 %v6145, %v6219
  %v6221 = vpop.f32.mrf.mxu0
  %6222 = vdwg.mxu0
  %s6223 = scalar_lea.vmem %s3, 456
  %v6224 = vld [vmem:[%s6223] sm:$0xff]
  %v6225 = vld [vmem:[%s6223 + $0x8] sm:$0xff]
  %v6226 = vld [vmem:[%s6223 + $0x10] sm:$0xf]
  %v6228 = vsel %vm988, %v6224, 0
  %v6231 = vsel %vm988, %v6225, 0
  %v6234 = vsel %vm988, %v6226, 0
  %v6237 = vsel %vm998, %v6220, 0
  %6239 = vmatprep.subr.mxu0 0.0
  %6240 = vmatpush1.msra.mxu0 0.0
  %6241 = vmatprep.subr.mxu0 0.0
  %6242 = vmatpush1.msra.mxu0 0.0
  %6243 = vmatprep.subr.mxu0 0.0
  %6244 = vmatpush1.msra.mxu0 0.0
  %6245 = vmatprep.subr.mxu0 0.0
  %6246 = vmatpush1.msra.mxu0 0.0
  %6247 = vmatprep.subr.mxu0 0.0
  %6248 = vmatpush1.msra.mxu0 0.0
  %6249 = vmatprep.subr.mxu0 0.0
  %6250 = vmatpush1.msra.mxu0 0.0
  %6251 = vmatprep.subr.mxu0 0.0
  %6252 = vmatpush1.msra.mxu0 0.0
  %6253 = vmatprep.subr.mxu0 0.0
  %6254 = vmatpush1.msra.mxu0 0.0
  %6255 = vmatprep.subr.mxu0 0.0
  %6256 = vmatpush1.msra.mxu0 0.0
  %6257 = vmatprep.subr.mxu0 0.0
  %6258 = vmatpush1.msra.mxu0 0.0
  %6259 = vmatprep.subr.mxu0 0.0
  %6260 = vmatpush1.msra.mxu0 0.0
  %6261 = vmatprep.subr.mxu0 0.0
  %6262 = vmatpush1.msra.mxu0 0.0
  %6263 = vmatprep.subr.mxu0 0.0
  %6264 = vmatpush1.msra.mxu0 0.0
  %6265 = vmatprep.subr.mxu0 0.0
  %6266 = vmatpush1.msra.mxu0 0.0
  %6267 = vmatprep.subr.mxu0 0.0
  %6268 = vmatpush1.msra.mxu0 %v6237
  %6269 = vmatprep.subr.mxu0 0.0
  %6270 = vmatpush1.msra.mxu0 %v6215
  %6271 = vmatprep.subr.mxu0 0.0
  %6272 = vmatpush2.msra.mxu0 0.0
  %6273 = vmatprep.subr.mxu0 0.0
  %6274 = vmatpush2.msra.mxu0 0.0
  %6275 = vmatprep.subr.mxu0 0.0
  %6276 = vmatpush2.msra.mxu0 0.0
  %6277 = vmatprep.subr.mxu0 0.0
  %6278 = vmatpush2.msra.mxu0 0.0
  %6279 = vmatprep.subr.mxu0 0.0
  %6280 = vmatpush2.msra.mxu0 0.0
  %6281 = vmatprep.subr.mxu0 0.0
  %6282 = vmatpush2.msra.mxu0 0.0
  %6283 = vmatprep.subr.mxu0 0.0
  %6284 = vmatpush2.msra.mxu0 0.0
  %6285 = vmatprep.subr.mxu0 0.0
  %6286 = vmatpush2.msra.mxu0 0.0
  %6287 = vmatprep.subr.mxu0 0.0
  %6288 = vmatpush2.msra.mxu0 0.0
  %6289 = vmatprep.subr.mxu0 0.0
  %6290 = vmatpush2.msra.mxu0 0.0
  %6291 = vmatprep.subr.mxu0 0.0
  %6292 = vmatpush2.msra.mxu0 0.0
  %6293 = vmatprep.subr.mxu0 0.0
  %6294 = vmatpush2.msra.mxu0 0.0
  %6295 = vmatprep.subr.mxu0 0.0
  %6296 = vmatpush2.msra.mxu0 0.0
  %6297 = vmatprep.subr.mxu0 0.0
  %6298 = vmatpush2.msra.mxu0 0.0
  %6299 = vmatprep.subr.mxu0 0.0
  %6300 = vmatpush2.msra.mxu0 0.0
  %6301 = vmatprep.subr.mxu0 0.0
  %6302 = vmatpush2.msra.mxu0 0.0
  %6303 = vmatprep.mubr.f32.mxu0 0.0
  %6304 = vmatmul.mubr.f32.gmra.mxu0 %v6228
  %v6305 = vpop.f32.mrf.mxu0
  %v6306 = vadd.f32 0.0, %v6305
  %v6307 = vpop.f32.mrf.mxu0
  %6308 = vmatprep.mubr.f32.mxu0 0.0
  %6309 = vmatmul.mubr.f32.gmra.mxu0 %v6231
  %v6310 = vpop.f32.mrf.mxu0
  %v6311 = vadd.f32 0.0, %v6310
  %v6312 = vpop.f32.mrf.mxu0
  %6313 = vmatprep.mubr.f32.mxu0 0.0
  %6314 = vmatmul.mubr.f32.gmra.mxu0 %v6234
  %v6315 = vpop.f32.mrf.mxu0
  %v6316 = vadd.f32 0.0, %v6315
  %v6317 = vpop.f32.mrf.mxu0
  %6318 = vdwg.mxu0
  %v6319 = vadd.f32 %v6033, %v6306
  %v6320 = vadd.f32 %v6034, %v6311
  %v6321 = vadd.f32 %v6035, %v6316
  %s6322 = scalar_lea.vmem %s5, 5760
  %v6323 = vld [vmem:[%s6322] sm:$0xff]
  %v6324 = vld [vmem:[%s6322 + $0x8] sm:$0xff]
  %v6325 = vld [vmem:[%s6322 + $0x10] sm:$0xff]
  %v6326 = vld [vmem:[%s6322 + $0x18] sm:$0xff]
  %v6327 = vld [vmem:[%s6322 + $0x20] sm:$0xff]
  %v6328 = vld [vmem:[%s6322 + $0x28] sm:$0xff]
  %v6329 = vld [vmem:[%s6322 + $0x30] sm:$0xff]
  %v6330 = vld [vmem:[%s6322 + $0x38] sm:$0xff]
  %v6331 = vld [vmem:[%s6322 + $0x40] sm:$0xff]
  %v6332 = vld [vmem:[%s6322 + $0x48] sm:$0xff]
  %v6333 = vld [vmem:[%s6322 + $0x50] sm:$0xff]
  %v6334 = vld [vmem:[%s6322 + $0x58] sm:$0xff]
  %v6335 = vld [vmem:[%s6322 + $0x60] sm:$0xff]
  %v6336 = vld [vmem:[%s6322 + $0x68] sm:$0xff]
  %v6337 = vld [vmem:[%s6322 + $0x70] sm:$0xff]
  %v6338 = vld [vmem:[%s6322 + $0x78] sm:$0xff]
  %v6339 = vld [vmem:[%s6322 + $0x80] sm:$0xff]
  %v6340 = vld [vmem:[%s6322 + $0x88] sm:$0xff]
  %v6341 = vld [vmem:[%s6322 + $0x90] sm:$0xff]
  %v6342 = vld [vmem:[%s6322 + $0x98] sm:$0xff]
  %v6343 = vld [vmem:[%s6322 + $0xa0] sm:$0xff]
  %v6344 = vld [vmem:[%s6322 + $0xa8] sm:$0xff]
  %v6345 = vld [vmem:[%s6322 + $0xb0] sm:$0xff]
  %v6346 = vld [vmem:[%s6322 + $0xb8] sm:$0xff]
  %v6347 = vld [vmem:[%s6322 + $0xc0] sm:$0xff]
  %v6348 = vld [vmem:[%s6322 + $0xc8] sm:$0xff]
  %v6349 = vld [vmem:[%s6322 + $0xd0] sm:$0xff]
  %v6350 = vld [vmem:[%s6322 + $0xd8] sm:$0xff]
  %v6351 = vld [vmem:[%s6322 + $0xe0] sm:$0xff]
  %v6352 = vld [vmem:[%s6322 + $0xe8] sm:$0xff]
  %v6353 = vld [vmem:[%s6322 + $0xf0] sm:$0xff]
  %v6354 = vld [vmem:[%s6322 + $0xf8] sm:$0xff]
  %v6355 = vld [vmem:[%s6322 + $0x100] sm:$0xff]
  %v6356 = vld [vmem:[%s6322 + $0x108] sm:$0xff]
  %v6357 = vld [vmem:[%s6322 + $0x110] sm:$0xff]
  %v6358 = vld [vmem:[%s6322 + $0x118] sm:$0xff]
  %6359 = vmatprep.subr.mxu0 0.0
  %6360 = vmatpush1.msra.mxu0 %v6338
  %6361 = vmatprep.subr.mxu0 0.0
  %6362 = vmatpush1.msra.mxu0 %v6337
  %6363 = vmatprep.subr.mxu0 0.0
  %6364 = vmatpush1.msra.mxu0 %v6336
  %6365 = vmatprep.subr.mxu0 0.0
  %6366 = vmatpush1.msra.mxu0 %v6335
  %6367 = vmatprep.subr.mxu0 0.0
  %6368 = vmatpush1.msra.mxu0 %v6334
  %6369 = vmatprep.subr.mxu0 0.0
  %6370 = vmatpush1.msra.mxu0 %v6333
  %6371 = vmatprep.subr.mxu0 0.0
  %6372 = vmatpush1.msra.mxu0 %v6332
  %6373 = vmatprep.subr.mxu0 0.0
  %6374 = vmatpush1.msra.mxu0 %v6331
  %6375 = vmatprep.subr.mxu0 0.0
  %6376 = vmatpush1.msra.mxu0 %v6330
  %6377 = vmatprep.subr.mxu0 0.0
  %6378 = vmatpush1.msra.mxu0 %v6329
  %6379 = vmatprep.subr.mxu0 0.0
  %6380 = vmatpush1.msra.mxu0 %v6328
  %6381 = vmatprep.subr.mxu0 0.0
  %6382 = vmatpush1.msra.mxu0 %v6327
  %6383 = vmatprep.subr.mxu0 0.0
  %6384 = vmatpush1.msra.mxu0 %v6326
  %6385 = vmatprep.subr.mxu0 0.0
  %6386 = vmatpush1.msra.mxu0 %v6325
  %6387 = vmatprep.subr.mxu0 0.0
  %6388 = vmatpush1.msra.mxu0 %v6324
  %6389 = vmatprep.subr.mxu0 0.0
  %6390 = vmatpush1.msra.mxu0 %v6323
  %6391 = vmatprep.subr.mxu0 0.0
  %6392 = vmatpush2.msra.mxu0 %v6354
  %6393 = vmatprep.subr.mxu0 0.0
  %6394 = vmatpush2.msra.mxu0 %v6353
  %6395 = vmatprep.subr.mxu0 0.0
  %6396 = vmatpush2.msra.mxu0 %v6352
  %6397 = vmatprep.subr.mxu0 0.0
  %6398 = vmatpush2.msra.mxu0 %v6351
  %6399 = vmatprep.subr.mxu0 0.0
  %6400 = vmatpush2.msra.mxu0 %v6350
  %6401 = vmatprep.subr.mxu0 0.0
  %6402 = vmatpush2.msra.mxu0 %v6349
  %6403 = vmatprep.subr.mxu0 0.0
  %6404 = vmatpush2.msra.mxu0 %v6348
  %6405 = vmatprep.subr.mxu0 0.0
  %6406 = vmatpush2.msra.mxu0 %v6347
  %6407 = vmatprep.subr.mxu0 0.0
  %6408 = vmatpush2.msra.mxu0 %v6346
  %6409 = vmatprep.subr.mxu0 0.0
  %6410 = vmatpush2.msra.mxu0 %v6345
  %6411 = vmatprep.subr.mxu0 0.0
  %6412 = vmatpush2.msra.mxu0 %v6344
  %6413 = vmatprep.subr.mxu0 0.0
  %6414 = vmatpush2.msra.mxu0 %v6343
  %6415 = vmatprep.subr.mxu0 0.0
  %6416 = vmatpush2.msra.mxu0 %v6342
  %6417 = vmatprep.subr.mxu0 0.0
  %6418 = vmatpush2.msra.mxu0 %v6341
  %6419 = vmatprep.subr.mxu0 0.0
  %6420 = vmatpush2.msra.mxu0 %v6340
  %6421 = vmatprep.subr.mxu0 0.0
  %6422 = vmatpush2.msra.mxu0 %v6339
  %6423 = vmatprep.mubr.f32.mxu0 %v596
  %6424 = vmatmul.mubr.f32.gmra.mxu0 %v595
  %v6425 = vpop.f32.mrf.mxu0
  %v6426 = vadd.f32 0.0, %v6425
  %v6427 = vpop.f32.mrf.mxu0
  %6428 = vmatprep.mubr.f32.mxu0 %v599
  %6429 = vmatmul.mubr.f32.gmra.mxu0 %v598
  %v6430 = vpop.f32.mrf.mxu0
  %v6431 = vadd.f32 0.0, %v6430
  %v6432 = vpop.f32.mrf.mxu0
  %6433 = vdwg.mxu0
  %6434 = vmatprep.subr.mxu0 0.0
  %6435 = vmatpush1.msra.mxu0 0.0
  %6436 = vmatprep.subr.mxu0 0.0
  %6437 = vmatpush1.msra.mxu0 0.0
  %6438 = vmatprep.subr.mxu0 0.0
  %6439 = vmatpush1.msra.mxu0 0.0
  %6440 = vmatprep.subr.mxu0 0.0
  %6441 = vmatpush1.msra.mxu0 0.0
  %6442 = vmatprep.subr.mxu0 0.0
  %6443 = vmatpush1.msra.mxu0 0.0
  %6444 = vmatprep.subr.mxu0 0.0
  %6445 = vmatpush1.msra.mxu0 0.0
  %6446 = vmatprep.subr.mxu0 0.0
  %6447 = vmatpush1.msra.mxu0 0.0
  %6448 = vmatprep.subr.mxu0 0.0
  %6449 = vmatpush1.msra.mxu0 0.0
  %6450 = vmatprep.subr.mxu0 0.0
  %6451 = vmatpush1.msra.mxu0 0.0
  %6452 = vmatprep.subr.mxu0 0.0
  %6453 = vmatpush1.msra.mxu0 0.0
  %6454 = vmatprep.subr.mxu0 0.0
  %6455 = vmatpush1.msra.mxu0 0.0
  %6456 = vmatprep.subr.mxu0 0.0
  %6457 = vmatpush1.msra.mxu0 0.0
  %6458 = vmatprep.subr.mxu0 0.0
  %6459 = vmatpush1.msra.mxu0 %v6358
  %6460 = vmatprep.subr.mxu0 0.0
  %6461 = vmatpush1.msra.mxu0 %v6357
  %6462 = vmatprep.subr.mxu0 0.0
  %6463 = vmatpush1.msra.mxu0 %v6356
  %6464 = vmatprep.subr.mxu0 0.0
  %6465 = vmatpush1.msra.mxu0 %v6355
  %6466 = vmatprep.subr.mxu0 0.0
  %6467 = vmatpush2.msra.mxu0 0.0
  %6468 = vmatprep.subr.mxu0 0.0
  %6469 = vmatpush2.msra.mxu0 0.0
  %6470 = vmatprep.subr.mxu0 0.0
  %6471 = vmatpush2.msra.mxu0 0.0
  %6472 = vmatprep.subr.mxu0 0.0
  %6473 = vmatpush2.msra.mxu0 0.0
  %6474 = vmatprep.subr.mxu0 0.0
  %6475 = vmatpush2.msra.mxu0 0.0
  %6476 = vmatprep.subr.mxu0 0.0
  %6477 = vmatpush2.msra.mxu0 0.0
  %6478 = vmatprep.subr.mxu0 0.0
  %6479 = vmatpush2.msra.mxu0 0.0
  %6480 = vmatprep.subr.mxu0 0.0
  %6481 = vmatpush2.msra.mxu0 0.0
  %6482 = vmatprep.subr.mxu0 0.0
  %6483 = vmatpush2.msra.mxu0 0.0
  %6484 = vmatprep.subr.mxu0 0.0
  %6485 = vmatpush2.msra.mxu0 0.0
  %6486 = vmatprep.subr.mxu0 0.0
  %6487 = vmatpush2.msra.mxu0 0.0
  %6488 = vmatprep.subr.mxu0 0.0
  %6489 = vmatpush2.msra.mxu0 0.0
  %6490 = vmatprep.subr.mxu0 0.0
  %6491 = vmatpush2.msra.mxu0 0.0
  %6492 = vmatprep.subr.mxu0 0.0
  %6493 = vmatpush2.msra.mxu0 0.0
  %6494 = vmatprep.subr.mxu0 0.0
  %6495 = vmatpush2.msra.mxu0 0.0
  %6496 = vmatprep.subr.mxu0 0.0
  %6497 = vmatpush2.msra.mxu0 0.0
  %6498 = vmatprep.mubr.f32.mxu0 0.0
  %6499 = vmatmul.mubr.f32.gmra.mxu0 %v639
  %v6500 = vpop.f32.mrf.mxu0
  %v6501 = vadd.f32 %v6426, %v6500
  %v6502 = vpop.f32.mrf.mxu0
  %6503 = vmatprep.mubr.f32.mxu0 0.0
  %6504 = vmatmul.mubr.f32.gmra.mxu0 %v642
  %v6505 = vpop.f32.mrf.mxu0
  %v6506 = vadd.f32 %v6431, %v6505
  %v6507 = vpop.f32.mrf.mxu0
  %6508 = vdwg.mxu0
  %s6509 = scalar_lea.vmem %s3, 480
  %v6510 = vld [vmem:[%s6509] sm:$0xff]
  %v6511 = vld [vmem:[%s6509 + $0x8] sm:$0xff]
  %v6512 = vld [vmem:[%s6509 + $0x10] sm:$0xf]
  %v6514 = vsel %vm988, %v6510, 0
  %v6517 = vsel %vm988, %v6511, 0
  %v6520 = vsel %vm988, %v6512, 0
  %v6523 = vsel %vm998, %v6506, 0
  %6525 = vmatprep.subr.mxu0 0.0
  %6526 = vmatpush1.msra.mxu0 0.0
  %6527 = vmatprep.subr.mxu0 0.0
  %6528 = vmatpush1.msra.mxu0 0.0
  %6529 = vmatprep.subr.mxu0 0.0
  %6530 = vmatpush1.msra.mxu0 0.0
  %6531 = vmatprep.subr.mxu0 0.0
  %6532 = vmatpush1.msra.mxu0 0.0
  %6533 = vmatprep.subr.mxu0 0.0
  %6534 = vmatpush1.msra.mxu0 0.0
  %6535 = vmatprep.subr.mxu0 0.0
  %6536 = vmatpush1.msra.mxu0 0.0
  %6537 = vmatprep.subr.mxu0 0.0
  %6538 = vmatpush1.msra.mxu0 0.0
  %6539 = vmatprep.subr.mxu0 0.0
  %6540 = vmatpush1.msra.mxu0 0.0
  %6541 = vmatprep.subr.mxu0 0.0
  %6542 = vmatpush1.msra.mxu0 0.0
  %6543 = vmatprep.subr.mxu0 0.0
  %6544 = vmatpush1.msra.mxu0 0.0
  %6545 = vmatprep.subr.mxu0 0.0
  %6546 = vmatpush1.msra.mxu0 0.0
  %6547 = vmatprep.subr.mxu0 0.0
  %6548 = vmatpush1.msra.mxu0 0.0
  %6549 = vmatprep.subr.mxu0 0.0
  %6550 = vmatpush1.msra.mxu0 0.0
  %6551 = vmatprep.subr.mxu0 0.0
  %6552 = vmatpush1.msra.mxu0 0.0
  %6553 = vmatprep.subr.mxu0 0.0
  %6554 = vmatpush1.msra.mxu0 %v6523
  %6555 = vmatprep.subr.mxu0 0.0
  %6556 = vmatpush1.msra.mxu0 %v6501
  %6557 = vmatprep.subr.mxu0 0.0
  %6558 = vmatpush2.msra.mxu0 0.0
  %6559 = vmatprep.subr.mxu0 0.0
  %6560 = vmatpush2.msra.mxu0 0.0
  %6561 = vmatprep.subr.mxu0 0.0
  %6562 = vmatpush2.msra.mxu0 0.0
  %6563 = vmatprep.subr.mxu0 0.0
  %6564 = vmatpush2.msra.mxu0 0.0
  %6565 = vmatprep.subr.mxu0 0.0
  %6566 = vmatpush2.msra.mxu0 0.0
  %6567 = vmatprep.subr.mxu0 0.0
  %6568 = vmatpush2.msra.mxu0 0.0
  %6569 = vmatprep.subr.mxu0 0.0
  %6570 = vmatpush2.msra.mxu0 0.0
  %6571 = vmatprep.subr.mxu0 0.0
  %6572 = vmatpush2.msra.mxu0 0.0
  %6573 = vmatprep.subr.mxu0 0.0
  %6574 = vmatpush2.msra.mxu0 0.0
  %6575 = vmatprep.subr.mxu0 0.0
  %6576 = vmatpush2.msra.mxu0 0.0
  %6577 = vmatprep.subr.mxu0 0.0
  %6578 = vmatpush2.msra.mxu0 0.0
  %6579 = vmatprep.subr.mxu0 0.0
  %6580 = vmatpush2.msra.mxu0 0.0
  %6581 = vmatprep.subr.mxu0 0.0
  %6582 = vmatpush2.msra.mxu0 0.0
  %6583 = vmatprep.subr.mxu0 0.0
  %6584 = vmatpush2.msra.mxu0 0.0
  %6585 = vmatprep.subr.mxu0 0.0
  %6586 = vmatpush2.msra.mxu0 0.0
  %6587 = vmatprep.subr.mxu0 0.0
  %6588 = vmatpush2.msra.mxu0 0.0
  %6589 = vmatprep.mubr.f32.mxu0 0.0
  %6590 = vmatmul.mubr.f32.gmra.mxu0 %v6514
  %v6591 = vpop.f32.mrf.mxu0
  %v6592 = vadd.f32 0.0, %v6591
  %v6593 = vpop.f32.mrf.mxu0
  %6594 = vmatprep.mubr.f32.mxu0 0.0
  %6595 = vmatmul.mubr.f32.gmra.mxu0 %v6517
  %v6596 = vpop.f32.mrf.mxu0
  %v6597 = vadd.f32 0.0, %v6596
  %v6598 = vpop.f32.mrf.mxu0
  %6599 = vmatprep.mubr.f32.mxu0 0.0
  %6600 = vmatmul.mubr.f32.gmra.mxu0 %v6520
  %v6601 = vpop.f32.mrf.mxu0
  %v6602 = vadd.f32 0.0, %v6601
  %v6603 = vpop.f32.mrf.mxu0
  %6604 = vdwg.mxu0
  %v6605 = vadd.f32 %v6319, %v6592
  %v6606 = vadd.f32 %v6320, %v6597
  %v6607 = vadd.f32 %v6321, %v6602
  %s6608 = scalar_lea.vmem %s5, 6048
  %v6609 = vld [vmem:[%s6608] sm:$0xff]
  %v6610 = vld [vmem:[%s6608 + $0x8] sm:$0xff]
  %v6611 = vld [vmem:[%s6608 + $0x10] sm:$0xff]
  %v6612 = vld [vmem:[%s6608 + $0x18] sm:$0xff]
  %v6613 = vld [vmem:[%s6608 + $0x20] sm:$0xff]
  %v6614 = vld [vmem:[%s6608 + $0x28] sm:$0xff]
  %v6615 = vld [vmem:[%s6608 + $0x30] sm:$0xff]
  %v6616 = vld [vmem:[%s6608 + $0x38] sm:$0xff]
  %v6617 = vld [vmem:[%s6608 + $0x40] sm:$0xff]
  %v6618 = vld [vmem:[%s6608 + $0x48] sm:$0xff]
  %v6619 = vld [vmem:[%s6608 + $0x50] sm:$0xff]
  %v6620 = vld [vmem:[%s6608 + $0x58] sm:$0xff]
  %v6621 = vld [vmem:[%s6608 + $0x60] sm:$0xff]
  %v6622 = vld [vmem:[%s6608 + $0x68] sm:$0xff]
  %v6623 = vld [vmem:[%s6608 + $0x70] sm:$0xff]
  %v6624 = vld [vmem:[%s6608 + $0x78] sm:$0xff]
  %v6625 = vld [vmem:[%s6608 + $0x80] sm:$0xff]
  %v6626 = vld [vmem:[%s6608 + $0x88] sm:$0xff]
  %v6627 = vld [vmem:[%s6608 + $0x90] sm:$0xff]
  %v6628 = vld [vmem:[%s6608 + $0x98] sm:$0xff]
  %v6629 = vld [vmem:[%s6608 + $0xa0] sm:$0xff]
  %v6630 = vld [vmem:[%s6608 + $0xa8] sm:$0xff]
  %v6631 = vld [vmem:[%s6608 + $0xb0] sm:$0xff]
  %v6632 = vld [vmem:[%s6608 + $0xb8] sm:$0xff]
  %v6633 = vld [vmem:[%s6608 + $0xc0] sm:$0xff]
  %v6634 = vld [vmem:[%s6608 + $0xc8] sm:$0xff]
  %v6635 = vld [vmem:[%s6608 + $0xd0] sm:$0xff]
  %v6636 = vld [vmem:[%s6608 + $0xd8] sm:$0xff]
  %v6637 = vld [vmem:[%s6608 + $0xe0] sm:$0xff]
  %v6638 = vld [vmem:[%s6608 + $0xe8] sm:$0xff]
  %v6639 = vld [vmem:[%s6608 + $0xf0] sm:$0xff]
  %v6640 = vld [vmem:[%s6608 + $0xf8] sm:$0xff]
  %v6641 = vld [vmem:[%s6608 + $0x100] sm:$0xff]
  %v6642 = vld [vmem:[%s6608 + $0x108] sm:$0xff]
  %v6643 = vld [vmem:[%s6608 + $0x110] sm:$0xff]
  %v6644 = vld [vmem:[%s6608 + $0x118] sm:$0xff]
  %6645 = vmatprep.subr.mxu0 0.0
  %6646 = vmatpush1.msra.mxu0 %v6624
  %6647 = vmatprep.subr.mxu0 0.0
  %6648 = vmatpush1.msra.mxu0 %v6623
  %6649 = vmatprep.subr.mxu0 0.0
  %6650 = vmatpush1.msra.mxu0 %v6622
  %6651 = vmatprep.subr.mxu0 0.0
  %6652 = vmatpush1.msra.mxu0 %v6621
  %6653 = vmatprep.subr.mxu0 0.0
  %6654 = vmatpush1.msra.mxu0 %v6620
  %6655 = vmatprep.subr.mxu0 0.0
  %6656 = vmatpush1.msra.mxu0 %v6619
  %6657 = vmatprep.subr.mxu0 0.0
  %6658 = vmatpush1.msra.mxu0 %v6618
  %6659 = vmatprep.subr.mxu0 0.0
  %6660 = vmatpush1.msra.mxu0 %v6617
  %6661 = vmatprep.subr.mxu0 0.0
  %6662 = vmatpush1.msra.mxu0 %v6616
  %6663 = vmatprep.subr.mxu0 0.0
  %6664 = vmatpush1.msra.mxu0 %v6615
  %6665 = vmatprep.subr.mxu0 0.0
  %6666 = vmatpush1.msra.mxu0 %v6614
  %6667 = vmatprep.subr.mxu0 0.0
  %6668 = vmatpush1.msra.mxu0 %v6613
  %6669 = vmatprep.subr.mxu0 0.0
  %6670 = vmatpush1.msra.mxu0 %v6612
  %6671 = vmatprep.subr.mxu0 0.0
  %6672 = vmatpush1.msra.mxu0 %v6611
  %6673 = vmatprep.subr.mxu0 0.0
  %6674 = vmatpush1.msra.mxu0 %v6610
  %6675 = vmatprep.subr.mxu0 0.0
  %6676 = vmatpush1.msra.mxu0 %v6609
  %6677 = vmatprep.subr.mxu0 0.0
  %6678 = vmatpush2.msra.mxu0 %v6640
  %6679 = vmatprep.subr.mxu0 0.0
  %6680 = vmatpush2.msra.mxu0 %v6639
  %6681 = vmatprep.subr.mxu0 0.0
  %6682 = vmatpush2.msra.mxu0 %v6638
  %6683 = vmatprep.subr.mxu0 0.0
  %6684 = vmatpush2.msra.mxu0 %v6637
  %6685 = vmatprep.subr.mxu0 0.0
  %6686 = vmatpush2.msra.mxu0 %v6636
  %6687 = vmatprep.subr.mxu0 0.0
  %6688 = vmatpush2.msra.mxu0 %v6635
  %6689 = vmatprep.subr.mxu0 0.0
  %6690 = vmatpush2.msra.mxu0 %v6634
  %6691 = vmatprep.subr.mxu0 0.0
  %6692 = vmatpush2.msra.mxu0 %v6633
  %6693 = vmatprep.subr.mxu0 0.0
  %6694 = vmatpush2.msra.mxu0 %v6632
  %6695 = vmatprep.subr.mxu0 0.0
  %6696 = vmatpush2.msra.mxu0 %v6631
  %6697 = vmatprep.subr.mxu0 0.0
  %6698 = vmatpush2.msra.mxu0 %v6630
  %6699 = vmatprep.subr.mxu0 0.0
  %6700 = vmatpush2.msra.mxu0 %v6629
  %6701 = vmatprep.subr.mxu0 0.0
  %6702 = vmatpush2.msra.mxu0 %v6628
  %6703 = vmatprep.subr.mxu0 0.0
  %6704 = vmatpush2.msra.mxu0 %v6627
  %6705 = vmatprep.subr.mxu0 0.0
  %6706 = vmatpush2.msra.mxu0 %v6626
  %6707 = vmatprep.subr.mxu0 0.0
  %6708 = vmatpush2.msra.mxu0 %v6625
  %6709 = vmatprep.mubr.f32.mxu0 %v596
  %6710 = vmatmul.mubr.f32.gmra.mxu0 %v595
  %v6711 = vpop.f32.mrf.mxu0
  %v6712 = vadd.f32 0.0, %v6711
  %v6713 = vpop.f32.mrf.mxu0
  %6714 = vmatprep.mubr.f32.mxu0 %v599
  %6715 = vmatmul.mubr.f32.gmra.mxu0 %v598
  %v6716 = vpop.f32.mrf.mxu0
  %v6717 = vadd.f32 0.0, %v6716
  %v6718 = vpop.f32.mrf.mxu0
  %6719 = vdwg.mxu0
  %6720 = vmatprep.subr.mxu0 0.0
  %6721 = vmatpush1.msra.mxu0 0.0
  %6722 = vmatprep.subr.mxu0 0.0
  %6723 = vmatpush1.msra.mxu0 0.0
  %6724 = vmatprep.subr.mxu0 0.0
  %6725 = vmatpush1.msra.mxu0 0.0
  %6726 = vmatprep.subr.mxu0 0.0
  %6727 = vmatpush1.msra.mxu0 0.0
  %6728 = vmatprep.subr.mxu0 0.0
  %6729 = vmatpush1.msra.mxu0 0.0
  %6730 = vmatprep.subr.mxu0 0.0
  %6731 = vmatpush1.msra.mxu0 0.0
  %6732 = vmatprep.subr.mxu0 0.0
  %6733 = vmatpush1.msra.mxu0 0.0
  %6734 = vmatprep.subr.mxu0 0.0
  %6735 = vmatpush1.msra.mxu0 0.0
  %6736 = vmatprep.subr.mxu0 0.0
  %6737 = vmatpush1.msra.mxu0 0.0
  %6738 = vmatprep.subr.mxu0 0.0
  %6739 = vmatpush1.msra.mxu0 0.0
  %6740 = vmatprep.subr.mxu0 0.0
  %6741 = vmatpush1.msra.mxu0 0.0
  %6742 = vmatprep.subr.mxu0 0.0
  %6743 = vmatpush1.msra.mxu0 0.0
  %6744 = vmatprep.subr.mxu0 0.0
  %6745 = vmatpush1.msra.mxu0 %v6644
  %6746 = vmatprep.subr.mxu0 0.0
  %6747 = vmatpush1.msra.mxu0 %v6643
  %6748 = vmatprep.subr.mxu0 0.0
  %6749 = vmatpush1.msra.mxu0 %v6642
  %6750 = vmatprep.subr.mxu0 0.0
  %6751 = vmatpush1.msra.mxu0 %v6641
  %6752 = vmatprep.subr.mxu0 0.0
  %6753 = vmatpush2.msra.mxu0 0.0
  %6754 = vmatprep.subr.mxu0 0.0
  %6755 = vmatpush2.msra.mxu0 0.0
  %6756 = vmatprep.subr.mxu0 0.0
  %6757 = vmatpush2.msra.mxu0 0.0
  %6758 = vmatprep.subr.mxu0 0.0
  %6759 = vmatpush2.msra.mxu0 0.0
  %6760 = vmatprep.subr.mxu0 0.0
  %6761 = vmatpush2.msra.mxu0 0.0
  %6762 = vmatprep.subr.mxu0 0.0
  %6763 = vmatpush2.msra.mxu0 0.0
  %6764 = vmatprep.subr.mxu0 0.0
  %6765 = vmatpush2.msra.mxu0 0.0
  %6766 = vmatprep.subr.mxu0 0.0
  %6767 = vmatpush2.msra.mxu0 0.0
  %6768 = vmatprep.subr.mxu0 0.0
  %6769 = vmatpush2.msra.mxu0 0.0
  %6770 = vmatprep.subr.mxu0 0.0
  %6771 = vmatpush2.msra.mxu0 0.0
  %6772 = vmatprep.subr.mxu0 0.0
  %6773 = vmatpush2.msra.mxu0 0.0
  %6774 = vmatprep.subr.mxu0 0.0
  %6775 = vmatpush2.msra.mxu0 0.0
  %6776 = vmatprep.subr.mxu0 0.0
  %6777 = vmatpush2.msra.mxu0 0.0
  %6778 = vmatprep.subr.mxu0 0.0
  %6779 = vmatpush2.msra.mxu0 0.0
  %6780 = vmatprep.subr.mxu0 0.0
  %6781 = vmatpush2.msra.mxu0 0.0
  %6782 = vmatprep.subr.mxu0 0.0
  %6783 = vmatpush2.msra.mxu0 0.0
  %6784 = vmatprep.mubr.f32.mxu0 0.0
  %6785 = vmatmul.mubr.f32.gmra.mxu0 %v639
  %v6786 = vpop.f32.mrf.mxu0
  %v6787 = vadd.f32 %v6712, %v6786
  %v6788 = vpop.f32.mrf.mxu0
  %6789 = vmatprep.mubr.f32.mxu0 0.0
  %6790 = vmatmul.mubr.f32.gmra.mxu0 %v642
  %v6791 = vpop.f32.mrf.mxu0
  %v6792 = vadd.f32 %v6717, %v6791
  %v6793 = vpop.f32.mrf.mxu0
  %6794 = vdwg.mxu0
  %s6795 = scalar_lea.vmem %s3, 504
  %v6796 = vld [vmem:[%s6795] sm:$0xff]
  %v6797 = vld [vmem:[%s6795 + $0x8] sm:$0xff]
  %v6798 = vld [vmem:[%s6795 + $0x10] sm:$0xf]
  %v6800 = vsel %vm988, %v6796, 0
  %v6803 = vsel %vm988, %v6797, 0
  %v6806 = vsel %vm988, %v6798, 0
  %v6809 = vsel %vm998, %v6792, 0
  %6811 = vmatprep.subr.mxu0 0.0
  %6812 = vmatpush1.msra.mxu0 0.0
  %6813 = vmatprep.subr.mxu0 0.0
  %6814 = vmatpush1.msra.mxu0 0.0
  %6815 = vmatprep.subr.mxu0 0.0
  %6816 = vmatpush1.msra.mxu0 0.0
  %6817 = vmatprep.subr.mxu0 0.0
  %6818 = vmatpush1.msra.mxu0 0.0
  %6819 = vmatprep.subr.mxu0 0.0
  %6820 = vmatpush1.msra.mxu0 0.0
  %6821 = vmatprep.subr.mxu0 0.0
  %6822 = vmatpush1.msra.mxu0 0.0
  %6823 = vmatprep.subr.mxu0 0.0
  %6824 = vmatpush1.msra.mxu0 0.0
  %6825 = vmatprep.subr.mxu0 0.0
  %6826 = vmatpush1.msra.mxu0 0.0
  %6827 = vmatprep.subr.mxu0 0.0
  %6828 = vmatpush1.msra.mxu0 0.0
  %6829 = vmatprep.subr.mxu0 0.0
  %6830 = vmatpush1.msra.mxu0 0.0
  %6831 = vmatprep.subr.mxu0 0.0
  %6832 = vmatpush1.msra.mxu0 0.0
  %6833 = vmatprep.subr.mxu0 0.0
  %6834 = vmatpush1.msra.mxu0 0.0
  %6835 = vmatprep.subr.mxu0 0.0
  %6836 = vmatpush1.msra.mxu0 0.0
  %6837 = vmatprep.subr.mxu0 0.0
  %6838 = vmatpush1.msra.mxu0 0.0
  %6839 = vmatprep.subr.mxu0 0.0
  %6840 = vmatpush1.msra.mxu0 %v6809
  %6841 = vmatprep.subr.mxu0 0.0
  %6842 = vmatpush1.msra.mxu0 %v6787
  %6843 = vmatprep.subr.mxu0 0.0
  %6844 = vmatpush2.msra.mxu0 0.0
  %6845 = vmatprep.subr.mxu0 0.0
  %6846 = vmatpush2.msra.mxu0 0.0
  %6847 = vmatprep.subr.mxu0 0.0
  %6848 = vmatpush2.msra.mxu0 0.0
  %6849 = vmatprep.subr.mxu0 0.0
  %6850 = vmatpush2.msra.mxu0 0.0
  %6851 = vmatprep.subr.mxu0 0.0
  %6852 = vmatpush2.msra.mxu0 0.0
  %6853 = vmatprep.subr.mxu0 0.0
  %6854 = vmatpush2.msra.mxu0 0.0
  %6855 = vmatprep.subr.mxu0 0.0
  %6856 = vmatpush2.msra.mxu0 0.0
  %6857 = vmatprep.subr.mxu0 0.0
  %6858 = vmatpush2.msra.mxu0 0.0
  %6859 = vmatprep.subr.mxu0 0.0
  %6860 = vmatpush2.msra.mxu0 0.0
  %6861 = vmatprep.subr.mxu0 0.0
  %6862 = vmatpush2.msra.mxu0 0.0
  %6863 = vmatprep.subr.mxu0 0.0
  %6864 = vmatpush2.msra.mxu0 0.0
  %6865 = vmatprep.subr.mxu0 0.0
  %6866 = vmatpush2.msra.mxu0 0.0
  %6867 = vmatprep.subr.mxu0 0.0
  %6868 = vmatpush2.msra.mxu0 0.0
  %6869 = vmatprep.subr.mxu0 0.0
  %6870 = vmatpush2.msra.mxu0 0.0
  %6871 = vmatprep.subr.mxu0 0.0
  %6872 = vmatpush2.msra.mxu0 0.0
  %6873 = vmatprep.subr.mxu0 0.0
  %6874 = vmatpush2.msra.mxu0 0.0
  %6875 = vmatprep.mubr.f32.mxu0 0.0
  %6876 = vmatmul.mubr.f32.gmra.mxu0 %v6800
  %v6877 = vpop.f32.mrf.mxu0
  %v6878 = vadd.f32 0.0, %v6877
  %v6879 = vpop.f32.mrf.mxu0
  %6880 = vmatprep.mubr.f32.mxu0 0.0
  %6881 = vmatmul.mubr.f32.gmra.mxu0 %v6803
  %v6882 = vpop.f32.mrf.mxu0
  %v6883 = vadd.f32 0.0, %v6882
  %v6884 = vpop.f32.mrf.mxu0
  %6885 = vmatprep.mubr.f32.mxu0 0.0
  %6886 = vmatmul.mubr.f32.gmra.mxu0 %v6806
  %v6887 = vpop.f32.mrf.mxu0
  %v6888 = vadd.f32 0.0, %v6887
  %v6889 = vpop.f32.mrf.mxu0
  %6890 = vdwg.mxu0
  %v6891 = vadd.f32 %v6605, %v6878
  %v6892 = vadd.f32 %v6606, %v6883
  %v6893 = vadd.f32 %v6607, %v6888
  %s6894 = scalar_lea.vmem %s5, 6336
  %v6895 = vld [vmem:[%s6894] sm:$0xff]
  %v6896 = vld [vmem:[%s6894 + $0x8] sm:$0xff]
  %v6897 = vld [vmem:[%s6894 + $0x10] sm:$0xff]
  %v6898 = vld [vmem:[%s6894 + $0x18] sm:$0xff]
  %v6899 = vld [vmem:[%s6894 + $0x20] sm:$0xff]
  %v6900 = vld [vmem:[%s6894 + $0x28] sm:$0xff]
  %v6901 = vld [vmem:[%s6894 + $0x30] sm:$0xff]
  %v6902 = vld [vmem:[%s6894 + $0x38] sm:$0xff]
  %v6903 = vld [vmem:[%s6894 + $0x40] sm:$0xff]
  %v6904 = vld [vmem:[%s6894 + $0x48] sm:$0xff]
  %v6905 = vld [vmem:[%s6894 + $0x50] sm:$0xff]
  %v6906 = vld [vmem:[%s6894 + $0x58] sm:$0xff]
  %v6907 = vld [vmem:[%s6894 + $0x60] sm:$0xff]
  %v6908 = vld [vmem:[%s6894 + $0x68] sm:$0xff]
  %v6909 = vld [vmem:[%s6894 + $0x70] sm:$0xff]
  %v6910 = vld [vmem:[%s6894 + $0x78] sm:$0xff]
  %v6911 = vld [vmem:[%s6894 + $0x80] sm:$0xff]
  %v6912 = vld [vmem:[%s6894 + $0x88] sm:$0xff]
  %v6913 = vld [vmem:[%s6894 + $0x90] sm:$0xff]
  %v6914 = vld [vmem:[%s6894 + $0x98] sm:$0xff]
  %v6915 = vld [vmem:[%s6894 + $0xa0] sm:$0xff]
  %v6916 = vld [vmem:[%s6894 + $0xa8] sm:$0xff]
  %v6917 = vld [vmem:[%s6894 + $0xb0] sm:$0xff]
  %v6918 = vld [vmem:[%s6894 + $0xb8] sm:$0xff]
  %v6919 = vld [vmem:[%s6894 + $0xc0] sm:$0xff]
  %v6920 = vld [vmem:[%s6894 + $0xc8] sm:$0xff]
  %v6921 = vld [vmem:[%s6894 + $0xd0] sm:$0xff]
  %v6922 = vld [vmem:[%s6894 + $0xd8] sm:$0xff]
  %v6923 = vld [vmem:[%s6894 + $0xe0] sm:$0xff]
  %v6924 = vld [vmem:[%s6894 + $0xe8] sm:$0xff]
  %v6925 = vld [vmem:[%s6894 + $0xf0] sm:$0xff]
  %v6926 = vld [vmem:[%s6894 + $0xf8] sm:$0xff]
  %v6927 = vld [vmem:[%s6894 + $0x100] sm:$0xff]
  %v6928 = vld [vmem:[%s6894 + $0x108] sm:$0xff]
  %v6929 = vld [vmem:[%s6894 + $0x110] sm:$0xff]
  %v6930 = vld [vmem:[%s6894 + $0x118] sm:$0xff]
  %6931 = vmatprep.subr.mxu0 0.0
  %6932 = vmatpush1.msra.mxu0 %v6910
  %6933 = vmatprep.subr.mxu0 0.0
  %6934 = vmatpush1.msra.mxu0 %v6909
  %6935 = vmatprep.subr.mxu0 0.0
  %6936 = vmatpush1.msra.mxu0 %v6908
  %6937 = vmatprep.subr.mxu0 0.0
  %6938 = vmatpush1.msra.mxu0 %v6907
  %6939 = vmatprep.subr.mxu0 0.0
  %6940 = vmatpush1.msra.mxu0 %v6906
  %6941 = vmatprep.subr.mxu0 0.0
  %6942 = vmatpush1.msra.mxu0 %v6905
  %6943 = vmatprep.subr.mxu0 0.0
  %6944 = vmatpush1.msra.mxu0 %v6904
  %6945 = vmatprep.subr.mxu0 0.0
  %6946 = vmatpush1.msra.mxu0 %v6903
  %6947 = vmatprep.subr.mxu0 0.0
  %6948 = vmatpush1.msra.mxu0 %v6902
  %6949 = vmatprep.subr.mxu0 0.0
  %6950 = vmatpush1.msra.mxu0 %v6901
  %6951 = vmatprep.subr.mxu0 0.0
  %6952 = vmatpush1.msra.mxu0 %v6900
  %6953 = vmatprep.subr.mxu0 0.0
  %6954 = vmatpush1.msra.mxu0 %v6899
  %6955 = vmatprep.subr.mxu0 0.0
  %6956 = vmatpush1.msra.mxu0 %v6898
  %6957 = vmatprep.subr.mxu0 0.0
  %6958 = vmatpush1.msra.mxu0 %v6897
  %6959 = vmatprep.subr.mxu0 0.0
  %6960 = vmatpush1.msra.mxu0 %v6896
  %6961 = vmatprep.subr.mxu0 0.0
  %6962 = vmatpush1.msra.mxu0 %v6895
  %6963 = vmatprep.subr.mxu0 0.0
  %6964 = vmatpush2.msra.mxu0 %v6926
  %6965 = vmatprep.subr.mxu0 0.0
  %6966 = vmatpush2.msra.mxu0 %v6925
  %6967 = vmatprep.subr.mxu0 0.0
  %6968 = vmatpush2.msra.mxu0 %v6924
  %6969 = vmatprep.subr.mxu0 0.0
  %6970 = vmatpush2.msra.mxu0 %v6923
  %6971 = vmatprep.subr.mxu0 0.0
  %6972 = vmatpush2.msra.mxu0 %v6922
  %6973 = vmatprep.subr.mxu0 0.0
  %6974 = vmatpush2.msra.mxu0 %v6921
  %6975 = vmatprep.subr.mxu0 0.0
  %6976 = vmatpush2.msra.mxu0 %v6920
  %6977 = vmatprep.subr.mxu0 0.0
  %6978 = vmatpush2.msra.mxu0 %v6919
  %6979 = vmatprep.subr.mxu0 0.0
  %6980 = vmatpush2.msra.mxu0 %v6918
  %6981 = vmatprep.subr.mxu0 0.0
  %6982 = vmatpush2.msra.mxu0 %v6917
  %6983 = vmatprep.subr.mxu0 0.0
  %6984 = vmatpush2.msra.mxu0 %v6916
  %6985 = vmatprep.subr.mxu0 0.0
  %6986 = vmatpush2.msra.mxu0 %v6915
  %6987 = vmatprep.subr.mxu0 0.0
  %6988 = vmatpush2.msra.mxu0 %v6914
  %6989 = vmatprep.subr.mxu0 0.0
  %6990 = vmatpush2.msra.mxu0 %v6913
  %6991 = vmatprep.subr.mxu0 0.0
  %6992 = vmatpush2.msra.mxu0 %v6912
  %6993 = vmatprep.subr.mxu0 0.0
  %6994 = vmatpush2.msra.mxu0 %v6911
  %6995 = vmatprep.mubr.f32.mxu0 %v596
  %6996 = vmatmul.mubr.f32.gmra.mxu0 %v595
  %v6997 = vpop.f32.mrf.mxu0
  %v6998 = vadd.f32 0.0, %v6997
  %v6999 = vpop.f32.mrf.mxu0
  %7000 = vmatprep.mubr.f32.mxu0 %v599
  %7001 = vmatmul.mubr.f32.gmra.mxu0 %v598
  %v7002 = vpop.f32.mrf.mxu0
  %v7003 = vadd.f32 0.0, %v7002
  %v7004 = vpop.f32.mrf.mxu0
  %7005 = vdwg.mxu0
  %7006 = vmatprep.subr.mxu0 0.0
  %7007 = vmatpush1.msra.mxu0 0.0
  %7008 = vmatprep.subr.mxu0 0.0
  %7009 = vmatpush1.msra.mxu0 0.0
  %7010 = vmatprep.subr.mxu0 0.0
  %7011 = vmatpush1.msra.mxu0 0.0
  %7012 = vmatprep.subr.mxu0 0.0
  %7013 = vmatpush1.msra.mxu0 0.0
  %7014 = vmatprep.subr.mxu0 0.0
  %7015 = vmatpush1.msra.mxu0 0.0
  %7016 = vmatprep.subr.mxu0 0.0
  %7017 = vmatpush1.msra.mxu0 0.0
  %7018 = vmatprep.subr.mxu0 0.0
  %7019 = vmatpush1.msra.mxu0 0.0
  %7020 = vmatprep.subr.mxu0 0.0
  %7021 = vmatpush1.msra.mxu0 0.0
  %7022 = vmatprep.subr.mxu0 0.0
  %7023 = vmatpush1.msra.mxu0 0.0
  %7024 = vmatprep.subr.mxu0 0.0
  %7025 = vmatpush1.msra.mxu0 0.0
  %7026 = vmatprep.subr.mxu0 0.0
  %7027 = vmatpush1.msra.mxu0 0.0
  %7028 = vmatprep.subr.mxu0 0.0
  %7029 = vmatpush1.msra.mxu0 0.0
  %7030 = vmatprep.subr.mxu0 0.0
  %7031 = vmatpush1.msra.mxu0 %v6930
  %7032 = vmatprep.subr.mxu0 0.0
  %7033 = vmatpush1.msra.mxu0 %v6929
  %7034 = vmatprep.subr.mxu0 0.0
  %7035 = vmatpush1.msra.mxu0 %v6928
  %7036 = vmatprep.subr.mxu0 0.0
  %7037 = vmatpush1.msra.mxu0 %v6927
  %7038 = vmatprep.subr.mxu0 0.0
  %7039 = vmatpush2.msra.mxu0 0.0
  %7040 = vmatprep.subr.mxu0 0.0
  %7041 = vmatpush2.msra.mxu0 0.0
  %7042 = vmatprep.subr.mxu0 0.0
  %7043 = vmatpush2.msra.mxu0 0.0
  %7044 = vmatprep.subr.mxu0 0.0
  %7045 = vmatpush2.msra.mxu0 0.0
  %7046 = vmatprep.subr.mxu0 0.0
  %7047 = vmatpush2.msra.mxu0 0.0
  %7048 = vmatprep.subr.mxu0 0.0
  %7049 = vmatpush2.msra.mxu0 0.0
  %7050 = vmatprep.subr.mxu0 0.0
  %7051 = vmatpush2.msra.mxu0 0.0
  %7052 = vmatprep.subr.mxu0 0.0
  %7053 = vmatpush2.msra.mxu0 0.0
  %7054 = vmatprep.subr.mxu0 0.0
  %7055 = vmatpush2.msra.mxu0 0.0
  %7056 = vmatprep.subr.mxu0 0.0
  %7057 = vmatpush2.msra.mxu0 0.0
  %7058 = vmatprep.subr.mxu0 0.0
  %7059 = vmatpush2.msra.mxu0 0.0
  %7060 = vmatprep.subr.mxu0 0.0
  %7061 = vmatpush2.msra.mxu0 0.0
  %7062 = vmatprep.subr.mxu0 0.0
  %7063 = vmatpush2.msra.mxu0 0.0
  %7064 = vmatprep.subr.mxu0 0.0
  %7065 = vmatpush2.msra.mxu0 0.0
  %7066 = vmatprep.subr.mxu0 0.0
  %7067 = vmatpush2.msra.mxu0 0.0
  %7068 = vmatprep.subr.mxu0 0.0
  %7069 = vmatpush2.msra.mxu0 0.0
  %7070 = vmatprep.mubr.f32.mxu0 0.0
  %7071 = vmatmul.mubr.f32.gmra.mxu0 %v639
  %v7072 = vpop.f32.mrf.mxu0
  %v7073 = vadd.f32 %v6998, %v7072
  %v7074 = vpop.f32.mrf.mxu0
  %7075 = vmatprep.mubr.f32.mxu0 0.0
  %7076 = vmatmul.mubr.f32.gmra.mxu0 %v642
  %v7077 = vpop.f32.mrf.mxu0
  %v7078 = vadd.f32 %v7003, %v7077
  %v7079 = vpop.f32.mrf.mxu0
  %7080 = vdwg.mxu0
  %s7081 = scalar_lea.vmem %s3, 528
  %v7082 = vld [vmem:[%s7081] sm:$0xff]
  %v7083 = vld [vmem:[%s7081 + $0x8] sm:$0xff]
  %v7084 = vld [vmem:[%s7081 + $0x10] sm:$0xf]
  %v7086 = vsel %vm988, %v7082, 0
  %v7089 = vsel %vm988, %v7083, 0
  %v7092 = vsel %vm988, %v7084, 0
  %v7095 = vsel %vm998, %v7078, 0
  %7097 = vmatprep.subr.mxu0 0.0
  %7098 = vmatpush1.msra.mxu0 0.0
  %7099 = vmatprep.subr.mxu0 0.0
  %7100 = vmatpush1.msra.mxu0 0.0
  %7101 = vmatprep.subr.mxu0 0.0
  %7102 = vmatpush1.msra.mxu0 0.0
  %7103 = vmatprep.subr.mxu0 0.0
  %7104 = vmatpush1.msra.mxu0 0.0
  %7105 = vmatprep.subr.mxu0 0.0
  %7106 = vmatpush1.msra.mxu0 0.0
  %7107 = vmatprep.subr.mxu0 0.0
  %7108 = vmatpush1.msra.mxu0 0.0
  %7109 = vmatprep.subr.mxu0 0.0
  %7110 = vmatpush1.msra.mxu0 0.0
  %7111 = vmatprep.subr.mxu0 0.0
  %7112 = vmatpush1.msra.mxu0 0.0
  %7113 = vmatprep.subr.mxu0 0.0
  %7114 = vmatpush1.msra.mxu0 0.0
  %7115 = vmatprep.subr.mxu0 0.0
  %7116 = vmatpush1.msra.mxu0 0.0
  %7117 = vmatprep.subr.mxu0 0.0
  %7118 = vmatpush1.msra.mxu0 0.0
  %7119 = vmatprep.subr.mxu0 0.0
  %7120 = vmatpush1.msra.mxu0 0.0
  %7121 = vmatprep.subr.mxu0 0.0
  %7122 = vmatpush1.msra.mxu0 0.0
  %7123 = vmatprep.subr.mxu0 0.0
  %7124 = vmatpush1.msra.mxu0 0.0
  %7125 = vmatprep.subr.mxu0 0.0
  %7126 = vmatpush1.msra.mxu0 %v7095
  %7127 = vmatprep.subr.mxu0 0.0
  %7128 = vmatpush1.msra.mxu0 %v7073
  %7129 = vmatprep.subr.mxu0 0.0
  %7130 = vmatpush2.msra.mxu0 0.0
  %7131 = vmatprep.subr.mxu0 0.0
  %7132 = vmatpush2.msra.mxu0 0.0
  %7133 = vmatprep.subr.mxu0 0.0
  %7134 = vmatpush2.msra.mxu0 0.0
  %7135 = vmatprep.subr.mxu0 0.0
  %7136 = vmatpush2.msra.mxu0 0.0
  %7137 = vmatprep.subr.mxu0 0.0
  %7138 = vmatpush2.msra.mxu0 0.0
  %7139 = vmatprep.subr.mxu0 0.0
  %7140 = vmatpush2.msra.mxu0 0.0
  %7141 = vmatprep.subr.mxu0 0.0
  %7142 = vmatpush2.msra.mxu0 0.0
  %7143 = vmatprep.subr.mxu0 0.0
  %7144 = vmatpush2.msra.mxu0 0.0
  %7145 = vmatprep.subr.mxu0 0.0
  %7146 = vmatpush2.msra.mxu0 0.0
  %7147 = vmatprep.subr.mxu0 0.0
  %7148 = vmatpush2.msra.mxu0 0.0
  %7149 = vmatprep.subr.mxu0 0.0
  %7150 = vmatpush2.msra.mxu0 0.0
  %7151 = vmatprep.subr.mxu0 0.0
  %7152 = vmatpush2.msra.mxu0 0.0
  %7153 = vmatprep.subr.mxu0 0.0
  %7154 = vmatpush2.msra.mxu0 0.0
  %7155 = vmatprep.subr.mxu0 0.0
  %7156 = vmatpush2.msra.mxu0 0.0
  %7157 = vmatprep.subr.mxu0 0.0
  %7158 = vmatpush2.msra.mxu0 0.0
  %7159 = vmatprep.subr.mxu0 0.0
  %7160 = vmatpush2.msra.mxu0 0.0
  %7161 = vmatprep.mubr.f32.mxu0 0.0
  %7162 = vmatmul.mubr.f32.gmra.mxu0 %v7086
  %v7163 = vpop.f32.mrf.mxu0
  %v7164 = vadd.f32 0.0, %v7163
  %v7165 = vpop.f32.mrf.mxu0
  %7166 = vmatprep.mubr.f32.mxu0 0.0
  %7167 = vmatmul.mubr.f32.gmra.mxu0 %v7089
  %v7168 = vpop.f32.mrf.mxu0
  %v7169 = vadd.f32 0.0, %v7168
  %v7170 = vpop.f32.mrf.mxu0
  %7171 = vmatprep.mubr.f32.mxu0 0.0
  %7172 = vmatmul.mubr.f32.gmra.mxu0 %v7092
  %v7173 = vpop.f32.mrf.mxu0
  %v7174 = vadd.f32 0.0, %v7173
  %v7175 = vpop.f32.mrf.mxu0
  %7176 = vdwg.mxu0
  %v7177 = vadd.f32 %v6891, %v7164
  %v7178 = vadd.f32 %v6892, %v7169
  %v7179 = vadd.f32 %v6893, %v7174
  %s7180 = scalar_lea.vmem %s5, 6624
  %v7181 = vld [vmem:[%s7180] sm:$0xff]
  %v7182 = vld [vmem:[%s7180 + $0x8] sm:$0xff]
  %v7183 = vld [vmem:[%s7180 + $0x10] sm:$0xff]
  %v7184 = vld [vmem:[%s7180 + $0x18] sm:$0xff]
  %v7185 = vld [vmem:[%s7180 + $0x20] sm:$0xff]
  %v7186 = vld [vmem:[%s7180 + $0x28] sm:$0xff]
  %v7187 = vld [vmem:[%s7180 + $0x30] sm:$0xff]
  %v7188 = vld [vmem:[%s7180 + $0x38] sm:$0xff]
  %v7189 = vld [vmem:[%s7180 + $0x40] sm:$0xff]
  %v7190 = vld [vmem:[%s7180 + $0x48] sm:$0xff]
  %v7191 = vld [vmem:[%s7180 + $0x50] sm:$0xff]
  %v7192 = vld [vmem:[%s7180 + $0x58] sm:$0xff]
  %v7193 = vld [vmem:[%s7180 + $0x60] sm:$0xff]
  %v7194 = vld [vmem:[%s7180 + $0x68] sm:$0xff]
  %v7195 = vld [vmem:[%s7180 + $0x70] sm:$0xff]
  %v7196 = vld [vmem:[%s7180 + $0x78] sm:$0xff]
  %v7197 = vld [vmem:[%s7180 + $0x80] sm:$0xff]
  %v7198 = vld [vmem:[%s7180 + $0x88] sm:$0xff]
  %v7199 = vld [vmem:[%s7180 + $0x90] sm:$0xff]
  %v7200 = vld [vmem:[%s7180 + $0x98] sm:$0xff]
  %v7201 = vld [vmem:[%s7180 + $0xa0] sm:$0xff]
  %v7202 = vld [vmem:[%s7180 + $0xa8] sm:$0xff]
  %v7203 = vld [vmem:[%s7180 + $0xb0] sm:$0xff]
  %v7204 = vld [vmem:[%s7180 + $0xb8] sm:$0xff]
  %v7205 = vld [vmem:[%s7180 + $0xc0] sm:$0xff]
  %v7206 = vld [vmem:[%s7180 + $0xc8] sm:$0xff]
  %v7207 = vld [vmem:[%s7180 + $0xd0] sm:$0xff]
  %v7208 = vld [vmem:[%s7180 + $0xd8] sm:$0xff]
  %v7209 = vld [vmem:[%s7180 + $0xe0] sm:$0xff]
  %v7210 = vld [vmem:[%s7180 + $0xe8] sm:$0xff]
  %v7211 = vld [vmem:[%s7180 + $0xf0] sm:$0xff]
  %v7212 = vld [vmem:[%s7180 + $0xf8] sm:$0xff]
  %v7213 = vld [vmem:[%s7180 + $0x100] sm:$0xff]
  %v7214 = vld [vmem:[%s7180 + $0x108] sm:$0xff]
  %v7215 = vld [vmem:[%s7180 + $0x110] sm:$0xff]
  %v7216 = vld [vmem:[%s7180 + $0x118] sm:$0xff]
  %7217 = vmatprep.subr.mxu0 0.0
  %7218 = vmatpush1.msra.mxu0 %v7196
  %7219 = vmatprep.subr.mxu0 0.0
  %7220 = vmatpush1.msra.mxu0 %v7195
  %7221 = vmatprep.subr.mxu0 0.0
  %7222 = vmatpush1.msra.mxu0 %v7194
  %7223 = vmatprep.subr.mxu0 0.0
  %7224 = vmatpush1.msra.mxu0 %v7193
  %7225 = vmatprep.subr.mxu0 0.0
  %7226 = vmatpush1.msra.mxu0 %v7192
  %7227 = vmatprep.subr.mxu0 0.0
  %7228 = vmatpush1.msra.mxu0 %v7191
  %7229 = vmatprep.subr.mxu0 0.0
  %7230 = vmatpush1.msra.mxu0 %v7190
  %7231 = vmatprep.subr.mxu0 0.0
  %7232 = vmatpush1.msra.mxu0 %v7189
  %7233 = vmatprep.subr.mxu0 0.0
  %7234 = vmatpush1.msra.mxu0 %v7188
  %7235 = vmatprep.subr.mxu0 0.0
  %7236 = vmatpush1.msra.mxu0 %v7187
  %7237 = vmatprep.subr.mxu0 0.0
  %7238 = vmatpush1.msra.mxu0 %v7186
  %7239 = vmatprep.subr.mxu0 0.0
  %7240 = vmatpush1.msra.mxu0 %v7185
  %7241 = vmatprep.subr.mxu0 0.0
  %7242 = vmatpush1.msra.mxu0 %v7184
  %7243 = vmatprep.subr.mxu0 0.0
  %7244 = vmatpush1.msra.mxu0 %v7183
  %7245 = vmatprep.subr.mxu0 0.0
  %7246 = vmatpush1.msra.mxu0 %v7182
  %7247 = vmatprep.subr.mxu0 0.0
  %7248 = vmatpush1.msra.mxu0 %v7181
  %7249 = vmatprep.subr.mxu0 0.0
  %7250 = vmatpush2.msra.mxu0 %v7212
  %7251 = vmatprep.subr.mxu0 0.0
  %7252 = vmatpush2.msra.mxu0 %v7211
  %7253 = vmatprep.subr.mxu0 0.0
  %7254 = vmatpush2.msra.mxu0 %v7210
  %7255 = vmatprep.subr.mxu0 0.0
  %7256 = vmatpush2.msra.mxu0 %v7209
  %7257 = vmatprep.subr.mxu0 0.0
  %7258 = vmatpush2.msra.mxu0 %v7208
  %7259 = vmatprep.subr.mxu0 0.0
  %7260 = vmatpush2.msra.mxu0 %v7207
  %7261 = vmatprep.subr.mxu0 0.0
  %7262 = vmatpush2.msra.mxu0 %v7206
  %7263 = vmatprep.subr.mxu0 0.0
  %7264 = vmatpush2.msra.mxu0 %v7205
  %7265 = vmatprep.subr.mxu0 0.0
  %7266 = vmatpush2.msra.mxu0 %v7204
  %7267 = vmatprep.subr.mxu0 0.0
  %7268 = vmatpush2.msra.mxu0 %v7203
  %7269 = vmatprep.subr.mxu0 0.0
  %7270 = vmatpush2.msra.mxu0 %v7202
  %7271 = vmatprep.subr.mxu0 0.0
  %7272 = vmatpush2.msra.mxu0 %v7201
  %7273 = vmatprep.subr.mxu0 0.0
  %7274 = vmatpush2.msra.mxu0 %v7200
  %7275 = vmatprep.subr.mxu0 0.0
  %7276 = vmatpush2.msra.mxu0 %v7199
  %7277 = vmatprep.subr.mxu0 0.0
  %7278 = vmatpush2.msra.mxu0 %v7198
  %7279 = vmatprep.subr.mxu0 0.0
  %7280 = vmatpush2.msra.mxu0 %v7197
  %7281 = vmatprep.mubr.f32.mxu0 %v596
  %7282 = vmatmul.mubr.f32.gmra.mxu0 %v595
  %v7283 = vpop.f32.mrf.mxu0
  %v7284 = vadd.f32 0.0, %v7283
  %v7285 = vpop.f32.mrf.mxu0
  %7286 = vmatprep.mubr.f32.mxu0 %v599
  %7287 = vmatmul.mubr.f32.gmra.mxu0 %v598
  %v7288 = vpop.f32.mrf.mxu0
  %v7289 = vadd.f32 0.0, %v7288
  %v7290 = vpop.f32.mrf.mxu0
  %7291 = vdwg.mxu0
  %7292 = vmatprep.subr.mxu0 0.0
  %7293 = vmatpush1.msra.mxu0 0.0
  %7294 = vmatprep.subr.mxu0 0.0
  %7295 = vmatpush1.msra.mxu0 0.0
  %7296 = vmatprep.subr.mxu0 0.0
  %7297 = vmatpush1.msra.mxu0 0.0
  %7298 = vmatprep.subr.mxu0 0.0
  %7299 = vmatpush1.msra.mxu0 0.0
  %7300 = vmatprep.subr.mxu0 0.0
  %7301 = vmatpush1.msra.mxu0 0.0
  %7302 = vmatprep.subr.mxu0 0.0
  %7303 = vmatpush1.msra.mxu0 0.0
  %7304 = vmatprep.subr.mxu0 0.0
  %7305 = vmatpush1.msra.mxu0 0.0
  %7306 = vmatprep.subr.mxu0 0.0
  %7307 = vmatpush1.msra.mxu0 0.0
  %7308 = vmatprep.subr.mxu0 0.0
  %7309 = vmatpush1.msra.mxu0 0.0
  %7310 = vmatprep.subr.mxu0 0.0
  %7311 = vmatpush1.msra.mxu0 0.0
  %7312 = vmatprep.subr.mxu0 0.0
  %7313 = vmatpush1.msra.mxu0 0.0
  %7314 = vmatprep.subr.mxu0 0.0
  %7315 = vmatpush1.msra.mxu0 0.0
  %7316 = vmatprep.subr.mxu0 0.0
  %7317 = vmatpush1.msra.mxu0 %v7216
  %7318 = vmatprep.subr.mxu0 0.0
  %7319 = vmatpush1.msra.mxu0 %v7215
  %7320 = vmatprep.subr.mxu0 0.0
  %7321 = vmatpush1.msra.mxu0 %v7214
  %7322 = vmatprep.subr.mxu0 0.0
  %7323 = vmatpush1.msra.mxu0 %v7213
  %7324 = vmatprep.subr.mxu0 0.0
  %7325 = vmatpush2.msra.mxu0 0.0
  %7326 = vmatprep.subr.mxu0 0.0
  %7327 = vmatpush2.msra.mxu0 0.0
  %7328 = vmatprep.subr.mxu0 0.0
  %7329 = vmatpush2.msra.mxu0 0.0
  %7330 = vmatprep.subr.mxu0 0.0
  %7331 = vmatpush2.msra.mxu0 0.0
  %7332 = vmatprep.subr.mxu0 0.0
  %7333 = vmatpush2.msra.mxu0 0.0
  %7334 = vmatprep.subr.mxu0 0.0
  %7335 = vmatpush2.msra.mxu0 0.0
  %7336 = vmatprep.subr.mxu0 0.0
  %7337 = vmatpush2.msra.mxu0 0.0
  %7338 = vmatprep.subr.mxu0 0.0
  %7339 = vmatpush2.msra.mxu0 0.0
  %7340 = vmatprep.subr.mxu0 0.0
  %7341 = vmatpush2.msra.mxu0 0.0
  %7342 = vmatprep.subr.mxu0 0.0
  %7343 = vmatpush2.msra.mxu0 0.0
  %7344 = vmatprep.subr.mxu0 0.0
  %7345 = vmatpush2.msra.mxu0 0.0
  %7346 = vmatprep.subr.mxu0 0.0
  %7347 = vmatpush2.msra.mxu0 0.0
  %7348 = vmatprep.subr.mxu0 0.0
  %7349 = vmatpush2.msra.mxu0 0.0
  %7350 = vmatprep.subr.mxu0 0.0
  %7351 = vmatpush2.msra.mxu0 0.0
  %7352 = vmatprep.subr.mxu0 0.0
  %7353 = vmatpush2.msra.mxu0 0.0
  %7354 = vmatprep.subr.mxu0 0.0
  %7355 = vmatpush2.msra.mxu0 0.0
  %7356 = vmatprep.mubr.f32.mxu0 0.0
  %7357 = vmatmul.mubr.f32.gmra.mxu0 %v639
  %v7358 = vpop.f32.mrf.mxu0
  %v7359 = vadd.f32 %v7284, %v7358
  %v7360 = vpop.f32.mrf.mxu0
  %7361 = vmatprep.mubr.f32.mxu0 0.0
  %7362 = vmatmul.mubr.f32.gmra.mxu0 %v642
  %v7363 = vpop.f32.mrf.mxu0
  %v7364 = vadd.f32 %v7289, %v7363
  %v7365 = vpop.f32.mrf.mxu0
  %7366 = vdwg.mxu0
  %s7367 = scalar_lea.vmem %s3, 552
  %v7368 = vld [vmem:[%s7367] sm:$0xff]
  %v7369 = vld [vmem:[%s7367 + $0x8] sm:$0xff]
  %v7370 = vld [vmem:[%s7367 + $0x10] sm:$0xf]
  %v7372 = vsel %vm988, %v7368, 0
  %v7375 = vsel %vm988, %v7369, 0
  %v7378 = vsel %vm988, %v7370, 0
  %v7381 = vsel %vm998, %v7364, 0
  %7383 = vmatprep.subr.mxu0 0.0
  %7384 = vmatpush1.msra.mxu0 0.0
  %7385 = vmatprep.subr.mxu0 0.0
  %7386 = vmatpush1.msra.mxu0 0.0
  %7387 = vmatprep.subr.mxu0 0.0
  %7388 = vmatpush1.msra.mxu0 0.0
  %7389 = vmatprep.subr.mxu0 0.0
  %7390 = vmatpush1.msra.mxu0 0.0
  %7391 = vmatprep.subr.mxu0 0.0
  %7392 = vmatpush1.msra.mxu0 0.0
  %7393 = vmatprep.subr.mxu0 0.0
  %7394 = vmatpush1.msra.mxu0 0.0
  %7395 = vmatprep.subr.mxu0 0.0
  %7396 = vmatpush1.msra.mxu0 0.0
  %7397 = vmatprep.subr.mxu0 0.0
  %7398 = vmatpush1.msra.mxu0 0.0
  %7399 = vmatprep.subr.mxu0 0.0
  %7400 = vmatpush1.msra.mxu0 0.0
  %7401 = vmatprep.subr.mxu0 0.0
  %7402 = vmatpush1.msra.mxu0 0.0
  %7403 = vmatprep.subr.mxu0 0.0
  %7404 = vmatpush1.msra.mxu0 0.0
  %7405 = vmatprep.subr.mxu0 0.0
  %7406 = vmatpush1.msra.mxu0 0.0
  %7407 = vmatprep.subr.mxu0 0.0
  %7408 = vmatpush1.msra.mxu0 0.0
  %7409 = vmatprep.subr.mxu0 0.0
  %7410 = vmatpush1.msra.mxu0 0.0
  %7411 = vmatprep.subr.mxu0 0.0
  %7412 = vmatpush1.msra.mxu0 %v7381
  %7413 = vmatprep.subr.mxu0 0.0
  %7414 = vmatpush1.msra.mxu0 %v7359
  %7415 = vmatprep.subr.mxu0 0.0
  %7416 = vmatpush2.msra.mxu0 0.0
  %7417 = vmatprep.subr.mxu0 0.0
  %7418 = vmatpush2.msra.mxu0 0.0
  %7419 = vmatprep.subr.mxu0 0.0
  %7420 = vmatpush2.msra.mxu0 0.0
  %7421 = vmatprep.subr.mxu0 0.0
  %7422 = vmatpush2.msra.mxu0 0.0
  %7423 = vmatprep.subr.mxu0 0.0
  %7424 = vmatpush2.msra.mxu0 0.0
  %7425 = vmatprep.subr.mxu0 0.0
  %7426 = vmatpush2.msra.mxu0 0.0
  %7427 = vmatprep.subr.mxu0 0.0
  %7428 = vmatpush2.msra.mxu0 0.0
  %7429 = vmatprep.subr.mxu0 0.0
  %7430 = vmatpush2.msra.mxu0 0.0
  %7431 = vmatprep.subr.mxu0 0.0
  %7432 = vmatpush2.msra.mxu0 0.0
  %7433 = vmatprep.subr.mxu0 0.0
  %7434 = vmatpush2.msra.mxu0 0.0
  %7435 = vmatprep.subr.mxu0 0.0
  %7436 = vmatpush2.msra.mxu0 0.0
  %7437 = vmatprep.subr.mxu0 0.0
  %7438 = vmatpush2.msra.mxu0 0.0
  %7439 = vmatprep.subr.mxu0 0.0
  %7440 = vmatpush2.msra.mxu0 0.0
  %7441 = vmatprep.subr.mxu0 0.0
  %7442 = vmatpush2.msra.mxu0 0.0
  %7443 = vmatprep.subr.mxu0 0.0
  %7444 = vmatpush2.msra.mxu0 0.0
  %7445 = vmatprep.subr.mxu0 0.0
  %7446 = vmatpush2.msra.mxu0 0.0
  %7447 = vmatprep.mubr.f32.mxu0 0.0
  %7448 = vmatmul.mubr.f32.gmra.mxu0 %v7372
  %v7449 = vpop.f32.mrf.mxu0
  %v7450 = vadd.f32 0.0, %v7449
  %v7451 = vpop.f32.mrf.mxu0
  %7452 = vmatprep.mubr.f32.mxu0 0.0
  %7453 = vmatmul.mubr.f32.gmra.mxu0 %v7375
  %v7454 = vpop.f32.mrf.mxu0
  %v7455 = vadd.f32 0.0, %v7454
  %v7456 = vpop.f32.mrf.mxu0
  %7457 = vmatprep.mubr.f32.mxu0 0.0
  %7458 = vmatmul.mubr.f32.gmra.mxu0 %v7378
  %v7459 = vpop.f32.mrf.mxu0
  %v7460 = vadd.f32 0.0, %v7459
  %v7461 = vpop.f32.mrf.mxu0
  %7462 = vdwg.mxu0
  %v7463 = vadd.f32 %v7177, %v7450
  %v7464 = vadd.f32 %v7178, %v7455
  %v7465 = vadd.f32 %v7179, %v7460
  %s7466 = scalar_lea.vmem %s5, 6912
  %v7467 = vld [vmem:[%s7466] sm:$0xff]
  %v7468 = vld [vmem:[%s7466 + $0x8] sm:$0xff]
  %v7469 = vld [vmem:[%s7466 + $0x10] sm:$0xff]
  %v7470 = vld [vmem:[%s7466 + $0x18] sm:$0xff]
  %v7471 = vld [vmem:[%s7466 + $0x20] sm:$0xff]
  %v7472 = vld [vmem:[%s7466 + $0x28] sm:$0xff]
  %v7473 = vld [vmem:[%s7466 + $0x30] sm:$0xff]
  %v7474 = vld [vmem:[%s7466 + $0x38] sm:$0xff]
  %v7475 = vld [vmem:[%s7466 + $0x40] sm:$0xff]
  %v7476 = vld [vmem:[%s7466 + $0x48] sm:$0xff]
  %v7477 = vld [vmem:[%s7466 + $0x50] sm:$0xff]
  %v7478 = vld [vmem:[%s7466 + $0x58] sm:$0xff]
  %v7479 = vld [vmem:[%s7466 + $0x60] sm:$0xff]
  %v7480 = vld [vmem:[%s7466 + $0x68] sm:$0xff]
  %v7481 = vld [vmem:[%s7466 + $0x70] sm:$0xff]
  %v7482 = vld [vmem:[%s7466 + $0x78] sm:$0xff]
  %v7483 = vld [vmem:[%s7466 + $0x80] sm:$0xff]
  %v7484 = vld [vmem:[%s7466 + $0x88] sm:$0xff]
  %v7485 = vld [vmem:[%s7466 + $0x90] sm:$0xff]
  %v7486 = vld [vmem:[%s7466 + $0x98] sm:$0xff]
  %v7487 = vld [vmem:[%s7466 + $0xa0] sm:$0xff]
  %v7488 = vld [vmem:[%s7466 + $0xa8] sm:$0xff]
  %v7489 = vld [vmem:[%s7466 + $0xb0] sm:$0xff]
  %v7490 = vld [vmem:[%s7466 + $0xb8] sm:$0xff]
  %v7491 = vld [vmem:[%s7466 + $0xc0] sm:$0xff]
  %v7492 = vld [vmem:[%s7466 + $0xc8] sm:$0xff]
  %v7493 = vld [vmem:[%s7466 + $0xd0] sm:$0xff]
  %v7494 = vld [vmem:[%s7466 + $0xd8] sm:$0xff]
  %v7495 = vld [vmem:[%s7466 + $0xe0] sm:$0xff]
  %v7496 = vld [vmem:[%s7466 + $0xe8] sm:$0xff]
  %v7497 = vld [vmem:[%s7466 + $0xf0] sm:$0xff]
  %v7498 = vld [vmem:[%s7466 + $0xf8] sm:$0xff]
  %v7499 = vld [vmem:[%s7466 + $0x100] sm:$0xff]
  %v7500 = vld [vmem:[%s7466 + $0x108] sm:$0xff]
  %v7501 = vld [vmem:[%s7466 + $0x110] sm:$0xff]
  %v7502 = vld [vmem:[%s7466 + $0x118] sm:$0xff]
  %7503 = vmatprep.subr.mxu0 0.0
  %7504 = vmatpush1.msra.mxu0 %v7482
  %7505 = vmatprep.subr.mxu0 0.0
  %7506 = vmatpush1.msra.mxu0 %v7481
  %7507 = vmatprep.subr.mxu0 0.0
  %7508 = vmatpush1.msra.mxu0 %v7480
  %7509 = vmatprep.subr.mxu0 0.0
  %7510 = vmatpush1.msra.mxu0 %v7479
  %7511 = vmatprep.subr.mxu0 0.0
  %7512 = vmatpush1.msra.mxu0 %v7478
  %7513 = vmatprep.subr.mxu0 0.0
  %7514 = vmatpush1.msra.mxu0 %v7477
  %7515 = vmatprep.subr.mxu0 0.0
  %7516 = vmatpush1.msra.mxu0 %v7476
  %7517 = vmatprep.subr.mxu0 0.0
  %7518 = vmatpush1.msra.mxu0 %v7475
  %7519 = vmatprep.subr.mxu0 0.0
  %7520 = vmatpush1.msra.mxu0 %v7474
  %7521 = vmatprep.subr.mxu0 0.0
  %7522 = vmatpush1.msra.mxu0 %v7473
  %7523 = vmatprep.subr.mxu0 0.0
  %7524 = vmatpush1.msra.mxu0 %v7472
  %7525 = vmatprep.subr.mxu0 0.0
  %7526 = vmatpush1.msra.mxu0 %v7471
  %7527 = vmatprep.subr.mxu0 0.0
  %7528 = vmatpush1.msra.mxu0 %v7470
  %7529 = vmatprep.subr.mxu0 0.0
  %7530 = vmatpush1.msra.mxu0 %v7469
  %7531 = vmatprep.subr.mxu0 0.0
  %7532 = vmatpush1.msra.mxu0 %v7468
  %7533 = vmatprep.subr.mxu0 0.0
  %7534 = vmatpush1.msra.mxu0 %v7467
  %7535 = vmatprep.subr.mxu0 0.0
  %7536 = vmatpush2.msra.mxu0 %v7498
  %7537 = vmatprep.subr.mxu0 0.0
  %7538 = vmatpush2.msra.mxu0 %v7497
  %7539 = vmatprep.subr.mxu0 0.0
  %7540 = vmatpush2.msra.mxu0 %v7496
  %7541 = vmatprep.subr.mxu0 0.0
  %7542 = vmatpush2.msra.mxu0 %v7495
  %7543 = vmatprep.subr.mxu0 0.0
  %7544 = vmatpush2.msra.mxu0 %v7494
  %7545 = vmatprep.subr.mxu0 0.0
  %7546 = vmatpush2.msra.mxu0 %v7493
  %7547 = vmatprep.subr.mxu0 0.0
  %7548 = vmatpush2.msra.mxu0 %v7492
  %7549 = vmatprep.subr.mxu0 0.0
  %7550 = vmatpush2.msra.mxu0 %v7491
  %7551 = vmatprep.subr.mxu0 0.0
  %7552 = vmatpush2.msra.mxu0 %v7490
  %7553 = vmatprep.subr.mxu0 0.0
  %7554 = vmatpush2.msra.mxu0 %v7489
  %7555 = vmatprep.subr.mxu0 0.0
  %7556 = vmatpush2.msra.mxu0 %v7488
  %7557 = vmatprep.subr.mxu0 0.0
  %7558 = vmatpush2.msra.mxu0 %v7487
  %7559 = vmatprep.subr.mxu0 0.0
  %7560 = vmatpush2.msra.mxu0 %v7486
  %7561 = vmatprep.subr.mxu0 0.0
  %7562 = vmatpush2.msra.mxu0 %v7485
  %7563 = vmatprep.subr.mxu0 0.0
  %7564 = vmatpush2.msra.mxu0 %v7484
  %7565 = vmatprep.subr.mxu0 0.0
  %7566 = vmatpush2.msra.mxu0 %v7483
  %7567 = vmatprep.mubr.f32.mxu0 %v596
  %7568 = vmatmul.mubr.f32.gmra.mxu0 %v595
  %v7569 = vpop.f32.mrf.mxu0
  %v7570 = vadd.f32 0.0, %v7569
  %v7571 = vpop.f32.mrf.mxu0
  %7572 = vmatprep.mubr.f32.mxu0 %v599
  %7573 = vmatmul.mubr.f32.gmra.mxu0 %v598
  %v7574 = vpop.f32.mrf.mxu0
  %v7575 = vadd.f32 0.0, %v7574
  %v7576 = vpop.f32.mrf.mxu0
  %7577 = vdwg.mxu0
  %7578 = vmatprep.subr.mxu0 0.0
  %7579 = vmatpush1.msra.mxu0 0.0
  %7580 = vmatprep.subr.mxu0 0.0
  %7581 = vmatpush1.msra.mxu0 0.0
  %7582 = vmatprep.subr.mxu0 0.0
  %7583 = vmatpush1.msra.mxu0 0.0
  %7584 = vmatprep.subr.mxu0 0.0
  %7585 = vmatpush1.msra.mxu0 0.0
  %7586 = vmatprep.subr.mxu0 0.0
  %7587 = vmatpush1.msra.mxu0 0.0
  %7588 = vmatprep.subr.mxu0 0.0
  %7589 = vmatpush1.msra.mxu0 0.0
  %7590 = vmatprep.subr.mxu0 0.0
  %7591 = vmatpush1.msra.mxu0 0.0
  %7592 = vmatprep.subr.mxu0 0.0
  %7593 = vmatpush1.msra.mxu0 0.0
  %7594 = vmatprep.subr.mxu0 0.0
  %7595 = vmatpush1.msra.mxu0 0.0
  %7596 = vmatprep.subr.mxu0 0.0
  %7597 = vmatpush1.msra.mxu0 0.0
  %7598 = vmatprep.subr.mxu0 0.0
  %7599 = vmatpush1.msra.mxu0 0.0
  %7600 = vmatprep.subr.mxu0 0.0
  %7601 = vmatpush1.msra.mxu0 0.0
  %7602 = vmatprep.subr.mxu0 0.0
  %7603 = vmatpush1.msra.mxu0 %v7502
  %7604 = vmatprep.subr.mxu0 0.0
  %7605 = vmatpush1.msra.mxu0 %v7501
  %7606 = vmatprep.subr.mxu0 0.0
  %7607 = vmatpush1.msra.mxu0 %v7500
  %7608 = vmatprep.subr.mxu0 0.0
  %7609 = vmatpush1.msra.mxu0 %v7499
  %7610 = vmatprep.subr.mxu0 0.0
  %7611 = vmatpush2.msra.mxu0 0.0
  %7612 = vmatprep.subr.mxu0 0.0
  %7613 = vmatpush2.msra.mxu0 0.0
  %7614 = vmatprep.subr.mxu0 0.0
  %7615 = vmatpush2.msra.mxu0 0.0
  %7616 = vmatprep.subr.mxu0 0.0
  %7617 = vmatpush2.msra.mxu0 0.0
  %7618 = vmatprep.subr.mxu0 0.0
  %7619 = vmatpush2.msra.mxu0 0.0
  %7620 = vmatprep.subr.mxu0 0.0
  %7621 = vmatpush2.msra.mxu0 0.0
  %7622 = vmatprep.subr.mxu0 0.0
  %7623 = vmatpush2.msra.mxu0 0.0
  %7624 = vmatprep.subr.mxu0 0.0
  %7625 = vmatpush2.msra.mxu0 0.0
  %7626 = vmatprep.subr.mxu0 0.0
  %7627 = vmatpush2.msra.mxu0 0.0
  %7628 = vmatprep.subr.mxu0 0.0
  %7629 = vmatpush2.msra.mxu0 0.0
  %7630 = vmatprep.subr.mxu0 0.0
  %7631 = vmatpush2.msra.mxu0 0.0
  %7632 = vmatprep.subr.mxu0 0.0
  %7633 = vmatpush2.msra.mxu0 0.0
  %7634 = vmatprep.subr.mxu0 0.0
  %7635 = vmatpush2.msra.mxu0 0.0
  %7636 = vmatprep.subr.mxu0 0.0
  %7637 = vmatpush2.msra.mxu0 0.0
  %7638 = vmatprep.subr.mxu0 0.0
  %7639 = vmatpush2.msra.mxu0 0.0
  %7640 = vmatprep.subr.mxu0 0.0
  %7641 = vmatpush2.msra.mxu0 0.0
  %7642 = vmatprep.mubr.f32.mxu0 0.0
  %7643 = vmatmul.mubr.f32.gmra.mxu0 %v639
  %v7644 = vpop.f32.mrf.mxu0
  %v7645 = vadd.f32 %v7570, %v7644
  %v7646 = vpop.f32.mrf.mxu0
  %7647 = vmatprep.mubr.f32.mxu0 0.0
  %7648 = vmatmul.mubr.f32.gmra.mxu0 %v642
  %v7649 = vpop.f32.mrf.mxu0
  %v7650 = vadd.f32 %v7575, %v7649
  %v7651 = vpop.f32.mrf.mxu0
  %7652 = vdwg.mxu0
  %s7653 = scalar_lea.vmem %s3, 576
  %v7654 = vld [vmem:[%s7653] sm:$0xff]
  %v7655 = vld [vmem:[%s7653 + $0x8] sm:$0xff]
  %v7656 = vld [vmem:[%s7653 + $0x10] sm:$0xf]
  %v7658 = vsel %vm988, %v7654, 0
  %v7661 = vsel %vm988, %v7655, 0
  %v7664 = vsel %vm988, %v7656, 0
  %v7667 = vsel %vm998, %v7650, 0
  %7669 = vmatprep.subr.mxu0 0.0
  %7670 = vmatpush1.msra.mxu0 0.0
  %7671 = vmatprep.subr.mxu0 0.0
  %7672 = vmatpush1.msra.mxu0 0.0
  %7673 = vmatprep.subr.mxu0 0.0
  %7674 = vmatpush1.msra.mxu0 0.0
  %7675 = vmatprep.subr.mxu0 0.0
  %7676 = vmatpush1.msra.mxu0 0.0
  %7677 = vmatprep.subr.mxu0 0.0
  %7678 = vmatpush1.msra.mxu0 0.0
  %7679 = vmatprep.subr.mxu0 0.0
  %7680 = vmatpush1.msra.mxu0 0.0
  %7681 = vmatprep.subr.mxu0 0.0
  %7682 = vmatpush1.msra.mxu0 0.0
  %7683 = vmatprep.subr.mxu0 0.0
  %7684 = vmatpush1.msra.mxu0 0.0
  %7685 = vmatprep.subr.mxu0 0.0
  %7686 = vmatpush1.msra.mxu0 0.0
  %7687 = vmatprep.subr.mxu0 0.0
  %7688 = vmatpush1.msra.mxu0 0.0
  %7689 = vmatprep.subr.mxu0 0.0
  %7690 = vmatpush1.msra.mxu0 0.0
  %7691 = vmatprep.subr.mxu0 0.0
  %7692 = vmatpush1.msra.mxu0 0.0
  %7693 = vmatprep.subr.mxu0 0.0
  %7694 = vmatpush1.msra.mxu0 0.0
  %7695 = vmatprep.subr.mxu0 0.0
  %7696 = vmatpush1.msra.mxu0 0.0
  %7697 = vmatprep.subr.mxu0 0.0
  %7698 = vmatpush1.msra.mxu0 %v7667
  %7699 = vmatprep.subr.mxu0 0.0
  %7700 = vmatpush1.msra.mxu0 %v7645
  %7701 = vmatprep.subr.mxu0 0.0
  %7702 = vmatpush2.msra.mxu0 0.0
  %7703 = vmatprep.subr.mxu0 0.0
  %7704 = vmatpush2.msra.mxu0 0.0
  %7705 = vmatprep.subr.mxu0 0.0
  %7706 = vmatpush2.msra.mxu0 0.0
  %7707 = vmatprep.subr.mxu0 0.0
  %7708 = vmatpush2.msra.mxu0 0.0
  %7709 = vmatprep.subr.mxu0 0.0
  %7710 = vmatpush2.msra.mxu0 0.0
  %7711 = vmatprep.subr.mxu0 0.0
  %7712 = vmatpush2.msra.mxu0 0.0
  %7713 = vmatprep.subr.mxu0 0.0
  %7714 = vmatpush2.msra.mxu0 0.0
  %7715 = vmatprep.subr.mxu0 0.0
  %7716 = vmatpush2.msra.mxu0 0.0
  %7717 = vmatprep.subr.mxu0 0.0
  %7718 = vmatpush2.msra.mxu0 0.0
  %7719 = vmatprep.subr.mxu0 0.0
  %7720 = vmatpush2.msra.mxu0 0.0
  %7721 = vmatprep.subr.mxu0 0.0
  %7722 = vmatpush2.msra.mxu0 0.0
  %7723 = vmatprep.subr.mxu0 0.0
  %7724 = vmatpush2.msra.mxu0 0.0
  %7725 = vmatprep.subr.mxu0 0.0
  %7726 = vmatpush2.msra.mxu0 0.0
  %7727 = vmatprep.subr.mxu0 0.0
  %7728 = vmatpush2.msra.mxu0 0.0
  %7729 = vmatprep.subr.mxu0 0.0
  %7730 = vmatpush2.msra.mxu0 0.0
  %7731 = vmatprep.subr.mxu0 0.0
  %7732 = vmatpush2.msra.mxu0 0.0
  %7733 = vmatprep.mubr.f32.mxu0 0.0
  %7734 = vmatmul.mubr.f32.gmra.mxu0 %v7658
  %v7735 = vpop.f32.mrf.mxu0
  %v7736 = vadd.f32 0.0, %v7735
  %v7737 = vpop.f32.mrf.mxu0
  %7738 = vmatprep.mubr.f32.mxu0 0.0
  %7739 = vmatmul.mubr.f32.gmra.mxu0 %v7661
  %v7740 = vpop.f32.mrf.mxu0
  %v7741 = vadd.f32 0.0, %v7740
  %v7742 = vpop.f32.mrf.mxu0
  %7743 = vmatprep.mubr.f32.mxu0 0.0
  %7744 = vmatmul.mubr.f32.gmra.mxu0 %v7664
  %v7745 = vpop.f32.mrf.mxu0
  %v7746 = vadd.f32 0.0, %v7745
  %v7747 = vpop.f32.mrf.mxu0
  %7748 = vdwg.mxu0
  %v7749 = vadd.f32 %v7463, %v7736
  %v7750 = vadd.f32 %v7464, %v7741
  %v7751 = vadd.f32 %v7465, %v7746
  %v7752 = vld [vmem:[%s4] sm:$0xff]
  %v7753 = vld [vmem:[%s4 + $0x8] sm:$0xff]
  %v7754 = vld [vmem:[%s4 + $0x10] sm:$0xf]
  %7756 = vset.pattern.permute.xlu0 0
  %7757 = vperm.xlu0 %7756, %v7752
  %v7758 = vpop.permute.xlu0 %7757
  %7761 = vset.pattern.permute.xlu0 0
  %7762 = vperm.xlu0 %7761, %v7753
  %v7763 = vpop.permute.xlu0 %7762
  %7766 = vset.pattern.permute.xlu0 0
  %7767 = vperm.xlu0 %7766, %v7754
  %v7768 = vpop.permute.xlu0 %7767
  %v7770 = vadd.f32 %v7749, %v7758
  %v7771 = vadd.f32 %v7750, %v7763
  %v7772 = vadd.f32 %v7751, %v7768
  %7776 = vrot.lane.b32.xlu0 %v7770, 96
  %v7777 = vpop.permute.xlu0 %7776
  %7778 = vrot.lane.b32.xlu0 %v7771, 96
  %v7779 = vpop.permute.xlu0 %7778
  %7780 = vrot.lane.b32.xlu0 %v7772, 96
  %v7781 = vpop.permute.xlu0 %7780
  %v7785 = vmax.f32 %v7770, %v7777
  %v7786 = vmax.f32 %v7771, %v7779
  %v7787 = vmax.f32 %v7772, %v7781
  %7791 = vrot.lane.b32.xlu0 %v7785, 64
  %v7792 = vpop.permute.xlu0 %7791
  %7793 = vrot.lane.b32.xlu0 %v7786, 64
  %v7794 = vpop.permute.xlu0 %7793
  %7795 = vrot.lane.b32.xlu0 %v7787, 64
  %v7796 = vpop.permute.xlu0 %7795
  %v7800 = vmax.f32 %v7785, %v7792
  %v7801 = vmax.f32 %v7786, %v7794
  %v7802 = vmax.f32 %v7787, %v7796
  %v7803 = vmax.f32 %v7800, 0.0
  %v7804 = vmax.f32 %v7801, 0.0
  %v7805 = vmax.f32 %v7802, 0.0
  %7806 = vst.msk [vmem:[%s6] sm:$0xff] %vm637, %v7803
  %7807 = vst.msk [vmem:[%s6 + $0x8] sm:$0xff] %vm637, %v7804
  %vm7808 = vcmask 257024
  %7809 = vst.msk [vmem:[%s6 + $0x10] sm:$0xf] %vm7808, %v7805
  // Predicated region
  $region26: #{net_forward.2} parent=0 // pred_check
    _
  $region27: #{net_forward.2} parent=0 // pred_check_branch
    %7811 = sbr.rel (0) target = $region29
  $region28: #{net_forward.2} parent=0 // pred_region
    _
  $region29: #{net_forward.2} parent=0 // pred_fallthru
    _
  // Predicated region
  $region30: #{net_forward.2} parent=0 // pred_check
    _
  $region31: #{net_forward.2} parent=0 // pred_check_branch
    %7813 = sbr.rel (0) target = $region33
  $region32: #{net_forward.2} parent=0 // pred_region
    _
  $region33: #{net_forward.2} parent=0 // pred_fallthru
    _

</llo_original>
